<compile_context>
chip_gen: v7x
topology: tpu7x:2x2x1
jax: 0.10.0
libtpu: 0.0.40
codegen_flags: <defaults>
</compile_context>

<pallas_src>
import jax
import jax.numpy as jnp
from jax.experimental import pallas as pl
from jax.experimental.pallas import tpu as pltpu

NEG_SLOPE = 0.01  # nn.LeakyReLU default negative_slope
FC_OUT = 48

# (K, Cin, Cout, pad) for every Conv2d(.., kernel_size=(1,K), padding=(0,pad))
CONV_CFG = [
    (7, 1, 32, 3),
    (5, 32, 32, 4),
    (5, 32, 64, 2),
    (4, 64, 128, 2),
    (3, 128, 128, 0),
    (3, 128, 256, 1),
]
POOL_AFTER = {1, 2, 4}  # MaxPool2d((1,2)) after conv index (0-based)


# ----------------------------- static schedule ------------------------------

def _layer_schedule(w0):
    """Per-layer widths + padded VMEM-buffer geometry (all static Python)."""
    sched = []
    win = w0
    for idx, (k, cin, cout, pad) in enumerate(CONV_CFG):
        wout = win + 2 * pad - k + 1
        pool = idx in POOL_AFTER
        left = 8 if pad > 0 else 0          # sublane-aligned interior offset
        sched.append(dict(k=k, cin=cin, cout=cout, pad=pad, win=win, wout=wout,
                          pool=pool, left=left, buf_w=left + win + pad))
        win = wout // 2 if pool else wout
    return sched, win                        # win == final spatial width (6)


# ------------------------------ fused kernel --------------------------------

def _make_fused_kernel(sched, num_rows, w_final):
    n = len(sched)
    n_pool = sum(1 for s in sched if s["pool"])

    def kernel(*refs):
        x_ref = refs[0]
        conv_w = [refs[1 + 2 * i] for i in range(n)]
        conv_b = [refs[2 + 2 * i] for i in range(n)]
        fcw_ref = refs[1 + 2 * n]
        fcb_ref = refs[2 + 2 * n]
        o_ref = refs[3 + 2 * n]
        scr = refs[4 + 2 * n:]
        pbuf = list(scr[:n])                   # zero-padded per-layer inputs
        pool_stage = list(scr[n:n + n_pool])   # un-pooled conv-output staging
        pf = scr[n + n_pool]                   # last conv output (FC flatten)

        # ---- zero the halo buffers (VMEM scratch is uninitialised) ----
        for s, p in zip(sched, pbuf):
            if s["pad"] > 0:
                p[...] = jnp.zeros(p.shape, jnp.float32)

        # ---- stage this sample's (num_rows, W0, 1) input into conv-0 buffer --
        s0 = sched[0]
        pbuf[0][:, pl.ds(s0["left"], s0["win"]), :] = x_ref[0]

        def conv_row(layer, row):
            """One row through conv `layer` + bias + LeakyReLU -> (Wout, Cout)."""
            s = sched[layer]
            src, w_ref, b_ref = pbuf[layer], conv_w[layer], conv_b[layer]
            start = s["left"] - s["pad"]
            acc = jnp.zeros((s["wout"], s["cout"]), jnp.float32)
            for t in range(s["k"]):        # static tap unroll -> K MXU matmuls
                xs = src[row, pl.ds(start + t, s["wout"]), :]      # (Wout, Cin)
                if s["cin"] == 1:
                    acc = acc + xs * w_ref[t]        # outer product (Cin == 1)
                else:
                    acc = acc + jnp.dot(xs, w_ref[t],
                                        preferred_element_type=jnp.float32)
            acc = acc + b_ref[...]
            return jnp.where(acc > 0.0, acc, NEG_SLOPE * acc)     # LeakyReLU

        fc_chunks = [None] * (num_rows * w_final)
        pool_i = 0
        for layer in range(n):
            s = sched[layer]
            for row in range(num_rows):
                y = conv_row(layer, row)                          # (Wout, Cout)
                if s["pool"]:
                    # fused MaxPool2d((1, 2)) epilogue
                    stage = pool_stage[pool_i]
                    stage[0] = y
                    half = s["wout"] // 2
                    pooled = jnp.maximum(
                        stage[:, pl.ds(0, half, stride=2), :],
                        stage[:, pl.ds(1, half, stride=2), :])    # (1, half, C)
                    nxt = sched[layer + 1]
                    pbuf[layer + 1][pl.ds(row, 1),
                                    pl.ds(nxt["left"], half), :] = pooled
                elif layer + 1 < n:
                    nxt = sched[layer + 1]
                    pbuf[layer + 1][row, pl.ds(nxt["left"], s["wout"]), :] = y
                else:
                    # last conv: flatten (w_final, 256) into lane-aligned
                    # (1, 256) chunks in natural (h, w, c) order.
                    pf[...] = y
                    for w in range(w_final):
                        fc_chunks[row * w_final + w] = pf[pl.ds(w, 1), :]
            if s["pool"]:
                pool_i += 1

        # ---- FC head: one MXU matmul straight out of VMEM ----
        feat = jnp.concatenate(fc_chunks, axis=1)      # (1, num_rows*w_final*256)
        out = jnp.dot(feat, fcw_ref[...],
                      preferred_element_type=jnp.float32) + fcb_ref[...]
        o_ref[0] = out

    return kernel


# ------------------------------ model wrapper --------------------------------

def init_params(key, input_days):
    """PyTorch-layout params: conv w (K,Cin,Cout); fc w (fin,48) with rows in
    NCHW-flatten (c, h, w) order, exactly what nn.Linear sees after .view()."""
    params = {"convs": [], "fc": None}
    for (k, cin, cout, _pad) in CONV_CFG:
        key, kw, kb = jax.random.split(key, 3)
        w = jax.random.normal(kw, (k, cin, cout), jnp.float32) / jnp.sqrt(cin * k)
        b = jax.random.normal(kb, (1, cout), jnp.float32) * 0.01
        params["convs"].append((w, b))
    fin = input_days * 256 * 6
    key, kw, kb = jax.random.split(key, 3)
    fcw = jax.random.normal(kw, (fin, FC_OUT), jnp.float32) / jnp.sqrt(fin)
    fcb = jax.random.normal(kb, (1, FC_OUT), jnp.float32) * 0.01
    params["fc"] = (fcw, fcb)
    return params


def prepare_params(params, input_days):
    """One-time weight prep: permute FC rows from PyTorch's (c, h, w) flatten
    order to the kernel's natural (h, w, c) order -> no runtime transpose."""
    cf, wf = CONV_CFG[-1][2], 6
    fcw, fcb = params["fc"]
    fcw_perm = (fcw.reshape(cf, input_days, wf, FC_OUT)
                   .transpose(1, 2, 0, 3)
                   .reshape(input_days * wf * cf, FC_OUT))
    return {"convs": params["convs"], "fc": (fcw_perm, fcb)}


def cnn_big_forward(params, x_nchw):
    """Fused forward. `params` must come from prepare_params(); x: (B,1,H,W)."""
    bsz, cin, num_days, w0 = x_nchw.shape
    assert cin == 1
    sched, w_final = _layer_schedule(w0)
    c_final = CONV_CFG[-1][2]
    fin = num_days * w_final * c_final
    assert params["fc"][0].shape == (fin, FC_OUT)

    x = x_nchw.reshape(bsz, num_days, w0, 1)        # (B, H, W, 1): C on lanes

    in_specs = [pl.BlockSpec((1, num_days, w0, 1), lambda b: (b, 0, 0, 0))]
    for (k, ci, co, _pad) in CONV_CFG:
        in_specs.append(pl.BlockSpec((k, ci, co), lambda b: (0, 0, 0)))
        in_specs.append(pl.BlockSpec((1, co), lambda b: (0, 0)))
    in_specs.append(pl.BlockSpec((fin, FC_OUT), lambda b: (0, 0)))
    in_specs.append(pl.BlockSpec((1, FC_OUT), lambda b: (0, 0)))

    scratch = [pltpu.VMEM((num_days, s["buf_w"], s["cin"]), jnp.float32)
               for s in sched]
    scratch += [pltpu.VMEM((1, s["wout"], s["cout"]), jnp.float32)
                for s in sched if s["pool"]]
    scratch.append(pltpu.VMEM((w_final, c_final), jnp.float32))

    args = [x]
    for (w, b) in params["convs"]:
        args += [w, b]
    args += [params["fc"][0], params["fc"][1]]

    out = pl.pallas_call(
        _make_fused_kernel(sched, num_days, w_final),
        out_shape=jax.ShapeDtypeStruct((bsz, 1, FC_OUT), jnp.float32),
        grid=(bsz,),
        in_specs=in_specs,
        out_specs=pl.BlockSpec((1, 1, FC_OUT), lambda b: (b, 0, 0)),
        scratch_shapes=scratch,
        compiler_params=pltpu.CompilerParams(
            dimension_semantics=("parallel",)),   # v7x: 2 TCs split the batch
    )(*args)
    return out.reshape(bsz, FC_OUT)


# ------------------------- pure-JAX reference check --------------------------

def reference_forward(params, x_nchw):
    bsz, _, h, w0 = x_nchw.shape
    x = x_nchw.reshape(bsz * h, w0, 1)
    for idx, ((wgt, bias), (k, _ci, _co, pad)) in enumerate(
            zip(params["convs"], CONV_CFG)):
        wout = x.shape[1] + 2 * pad - k + 1
        xp = jnp.pad(x, ((0, 0), (pad, pad), (0, 0)))
        acc = jnp.zeros((x.shape[0], wout, wgt.shape[2]), jnp.float32)
        for t in range(k):
            acc = acc + jnp.einsum("rwc,co->rwo", xp[:, t:t + wout, :], wgt[t],
                                   precision=jax.lax.Precision.HIGHEST)
        acc = acc + bias[None]
        x = jnp.where(acc > 0, acc, NEG_SLOPE * acc)
        if idx in POOL_AFTER:
            wo = x.shape[1] // 2
            x = jnp.maximum(x[:, 0:2 * wo:2, :], x[:, 1:2 * wo:2, :])
    r, wf, cf = x.shape
    feat = x.reshape(bsz, h, wf, cf).transpose(0, 3, 1, 2).reshape(bsz, cf * h * wf)
    fcw, fcb = params["fc"]
    return jnp.dot(feat, fcw, precision=jax.lax.Precision.HIGHEST) + fcb


if __name__ == "__main__":
    input_days = 2
    width = 48       # width that yields final spatial (input_days, 6), as FC expects
    batch = 2

    key = jax.random.PRNGKey(0)
    key, kx = jax.random.split(key)
    x = jax.random.normal(kx, (batch, 1, input_days, width), jnp.float32)
    params = init_params(key, input_days)
    kparams = prepare_params(params, input_days)   # one-time FC weight permute

    out = jax.block_until_ready(cnn_big_forward(kparams, x))
    assert out.shape == (batch, FC_OUT), out.shape

    ref = jax.block_until_ready(reference_forward(params, x))
    assert jnp.allclose(out, ref, rtol=2e-3, atol=2e-3), \
        float(jnp.max(jnp.abs(out - ref)))

    print("KERNEL_OK")
</pallas_src>

<mosaic_0001>
module attributes {stable_mosaic.version = 11 : i64} {
  func.func @kernel(%arg0: i32, %arg1: memref<1x2x48x1xf32, #tpu.memory_space<vmem>>, %arg2: memref<7x1x32xf32, #tpu.memory_space<vmem>>, %arg3: memref<1x32xf32, #tpu.memory_space<vmem>>, %arg4: memref<5x32x32xf32, #tpu.memory_space<vmem>>, %arg5: memref<1x32xf32, #tpu.memory_space<vmem>>, %arg6: memref<5x32x64xf32, #tpu.memory_space<vmem>>, %arg7: memref<1x64xf32, #tpu.memory_space<vmem>>, %arg8: memref<4x64x128xf32, #tpu.memory_space<vmem>>, %arg9: memref<1x128xf32, #tpu.memory_space<vmem>>, %arg10: memref<3x128x128xf32, #tpu.memory_space<vmem>>, %arg11: memref<1x128xf32, #tpu.memory_space<vmem>>, %arg12: memref<3x128x256xf32, #tpu.memory_space<vmem>>, %arg13: memref<1x256xf32, #tpu.memory_space<vmem>>, %arg14: memref<3072x48xf32, #tpu.memory_space<vmem>>, %arg15: memref<1x48xf32, #tpu.memory_space<vmem>>, %arg16: memref<1x1x48xf32, #tpu.memory_space<vmem>>, %arg17: memref<2x59x1xf32, #tpu.memory_space<vmem>>, %arg18: memref<2x60x32xf32, #tpu.memory_space<vmem>>, %arg19: memref<2x36x32xf32, #tpu.memory_space<vmem>>, %arg20: memref<2x23x64xf32, #tpu.memory_space<vmem>>, %arg21: memref<2x14x128xf32, #tpu.memory_space<vmem>>, %arg22: memref<2x15x128xf32, #tpu.memory_space<vmem>>, %arg23: memref<1x52x32xf32, #tpu.memory_space<vmem>>, %arg24: memref<1x26x64xf32, #tpu.memory_space<vmem>>, %arg25: memref<1x12x128xf32, #tpu.memory_space<vmem>>, %arg26: memref<6x256xf32, #tpu.memory_space<vmem>>) attributes {dimension_semantics = [#tpu.dimension_semantics<parallel>], iteration_bounds = array<i64: 2>, scalar_prefetch = 0 : i64, scratch_operands = 10 : i64, tpu.core_type = #tpu.core_type<tc>, window_params = [{transform_indices = @transform_0, window_bounds = array<i64: 1, 2, 48, 1>}, {pipeline_mode = #tpu.pipeline_mode<synchronous>, transform_indices = @transform_1, window_bounds = array<i64: 7, 1, 32>}, {pipeline_mode = #tpu.pipeline_mode<synchronous>, transform_indices = @transform_2, window_bounds = array<i64: 1, 32>}, {pipeline_mode = #tpu.pipeline_mode<synchronous>, transform_indices = @transform_3, window_bounds = array<i64: 5, 32, 32>}, {pipeline_mode = #tpu.pipeline_mode<synchronous>, transform_indices = @transform_4, window_bounds = array<i64: 1, 32>}, {pipeline_mode = #tpu.pipeline_mode<synchronous>, transform_indices = @transform_5, window_bounds = array<i64: 5, 32, 64>}, {pipeline_mode = #tpu.pipeline_mode<synchronous>, transform_indices = @transform_6, window_bounds = array<i64: 1, 64>}, {pipeline_mode = #tpu.pipeline_mode<synchronous>, transform_indices = @transform_7, window_bounds = array<i64: 4, 64, 128>}, {pipeline_mode = #tpu.pipeline_mode<synchronous>, transform_indices = @transform_8, window_bounds = array<i64: 1, 128>}, {pipeline_mode = #tpu.pipeline_mode<synchronous>, transform_indices = @transform_9, window_bounds = array<i64: 3, 128, 128>}, {pipeline_mode = #tpu.pipeline_mode<synchronous>, transform_indices = @transform_10, window_bounds = array<i64: 1, 128>}, {pipeline_mode = #tpu.pipeline_mode<synchronous>, transform_indices = @transform_11, window_bounds = array<i64: 3, 128, 256>}, {pipeline_mode = #tpu.pipeline_mode<synchronous>, transform_indices = @transform_12, window_bounds = array<i64: 1, 256>}, {pipeline_mode = #tpu.pipeline_mode<synchronous>, transform_indices = @transform_13, window_bounds = array<i64: 3072, 48>}, {pipeline_mode = #tpu.pipeline_mode<synchronous>, transform_indices = @transform_14, window_bounds = array<i64: 1, 48>}, {transform_indices = @transform_15, window_bounds = array<i64: 1, 1, 48>}]} {
    %cst = arith.constant 0.000000e+00 : f32
    %0 = vector.broadcast %cst : f32 to vector<2x59x1xf32>
    %c0 = arith.constant 0 : index
    %c0_0 = arith.constant 0 : index
    %c0_1 = arith.constant 0 : index
    %1 = vector.load %arg17[%c0, %c0_0, %c0_1] : memref<2x59x1xf32, #tpu.memory_space<vmem>>, vector<2x59x1xf32>
    tpu.vector_store %arg17[%c0, %c0_0, %c0_1], %0 {strides = array<i32>} : memref<2x59x1xf32, #tpu.memory_space<vmem>>, vector<2x59x1xf32>,
    %cst_2 = arith.constant 0.000000e+00 : f32
    %2 = vector.broadcast %cst_2 : f32 to vector<2x60x32xf32>
    %c0_3 = arith.constant 0 : index
    %c0_4 = arith.constant 0 : index
    %c0_5 = arith.constant 0 : index
    %3 = vector.load %arg18[%c0_3, %c0_4, %c0_5] : memref<2x60x32xf32, #tpu.memory_space<vmem>>, vector<2x60x32xf32>
    tpu.vector_store %arg18[%c0_3, %c0_4, %c0_5], %2 {strides = array<i32>} : memref<2x60x32xf32, #tpu.memory_space<vmem>>, vector<2x60x32xf32>,
    %cst_6 = arith.constant 0.000000e+00 : f32
    %4 = vector.broadcast %cst_6 : f32 to vector<2x36x32xf32>
    %c0_7 = arith.constant 0 : index
    %c0_8 = arith.constant 0 : index
    %c0_9 = arith.constant 0 : index
    %5 = vector.load %arg19[%c0_7, %c0_8, %c0_9] : memref<2x36x32xf32, #tpu.memory_space<vmem>>, vector<2x36x32xf32>
    tpu.vector_store %arg19[%c0_7, %c0_8, %c0_9], %4 {strides = array<i32>} : memref<2x36x32xf32, #tpu.memory_space<vmem>>, vector<2x36x32xf32>,
    %cst_10 = arith.constant 0.000000e+00 : f32
    %6 = vector.broadcast %cst_10 : f32 to vector<2x23x64xf32>
    %c0_11 = arith.constant 0 : index
    %c0_12 = arith.constant 0 : index
    %c0_13 = arith.constant 0 : index
    %7 = vector.load %arg20[%c0_11, %c0_12, %c0_13] : memref<2x23x64xf32, #tpu.memory_space<vmem>>, vector<2x23x64xf32>
    tpu.vector_store %arg20[%c0_11, %c0_12, %c0_13], %6 {strides = array<i32>} : memref<2x23x64xf32, #tpu.memory_space<vmem>>, vector<2x23x64xf32>,
    %cst_14 = arith.constant 0.000000e+00 : f32
    %8 = vector.broadcast %cst_14 : f32 to vector<2x15x128xf32>
    %c0_15 = arith.constant 0 : index
    %c0_16 = arith.constant 0 : index
    %c0_17 = arith.constant 0 : index
    %9 = vector.load %arg22[%c0_15, %c0_16, %c0_17] : memref<2x15x128xf32, #tpu.memory_space<vmem>>, vector<2x15x128xf32>
    tpu.vector_store %arg22[%c0_15, %c0_16, %c0_17], %8 {strides = array<i32>} : memref<2x15x128xf32, #tpu.memory_space<vmem>>, vector<2x15x128xf32>,
    %c0_18 = arith.constant 0 : index
    %c0_19 = arith.constant 0 : index
    %c0_20 = arith.constant 0 : index
    %c0_21 = arith.constant 0 : index
    %10 = vector.load %arg1[%c0_18, %c0_19, %c0_20, %c0_21] : memref<1x2x48x1xf32, #tpu.memory_space<vmem>>, vector<1x2x48x1xf32>
    %11 = vector.shape_cast %10 : vector<1x2x48x1xf32> to vector<2x48x1xf32>
    %c0_22 = arith.constant 0 : index
    %c8 = arith.constant 8 : index
    %c0_23 = arith.constant 0 : index
    %12 = vector.load %arg17[%c0_22, %c8, %c0_23] : memref<2x59x1xf32, #tpu.memory_space<vmem>>, vector<2x48x1xf32>
    tpu.vector_store %arg17[%c0_22, %c8, %c0_23], %11 {strides = array<i32>} : memref<2x59x1xf32, #tpu.memory_space<vmem>>, vector<2x48x1xf32>,
    %cst_24 = arith.constant 0.000000e+00 : f32
    %13 = vector.broadcast %cst_24 : f32 to vector<48x32xf32>
    %c0_25 = arith.constant 0 : index
    %c5 = arith.constant 5 : index
    %c0_26 = arith.constant 0 : index
    %14 = vector.load %arg17[%c0_25, %c5, %c0_26] : memref<2x59x1xf32, #tpu.memory_space<vmem>>, vector<1x48x1xf32>
    %15 = vector.shape_cast %14 : vector<1x48x1xf32> to vector<48x1xf32>
    %c0_27 = arith.constant 0 : index
    %c0_28 = arith.constant 0 : index
    %c0_29 = arith.constant 0 : index
    %16 = vector.load %arg2[%c0_27, %c0_28, %c0_29] : memref<7x1x32xf32, #tpu.memory_space<vmem>>, vector<1x1x32xf32>
    %17 = vector.shape_cast %16 : vector<1x1x32xf32> to vector<1x32xf32>
    %18 = vector.broadcast %15 : vector<48x1xf32> to vector<48x32xf32>
    %19 = vector.broadcast %17 : vector<1x32xf32> to vector<48x32xf32>
    %20 = arith.mulf %18, %19 : vector<48x32xf32>
    %21 = arith.addf %13, %20 : vector<48x32xf32>
    %c0_30 = arith.constant 0 : index
    %c6 = arith.constant 6 : index
    %c0_31 = arith.constant 0 : index
    %22 = vector.load %arg17[%c0_30, %c6, %c0_31] : memref<2x59x1xf32, #tpu.memory_space<vmem>>, vector<1x48x1xf32>
    %23 = vector.shape_cast %22 : vector<1x48x1xf32> to vector<48x1xf32>
    %c1 = arith.constant 1 : index
    %c0_32 = arith.constant 0 : index
    %c0_33 = arith.constant 0 : index
    %24 = vector.load %arg2[%c1, %c0_32, %c0_33] : memref<7x1x32xf32, #tpu.memory_space<vmem>>, vector<1x1x32xf32>
    %25 = vector.shape_cast %24 : vector<1x1x32xf32> to vector<1x32xf32>
    %26 = vector.broadcast %23 : vector<48x1xf32> to vector<48x32xf32>
    %27 = vector.broadcast %25 : vector<1x32xf32> to vector<48x32xf32>
    %28 = arith.mulf %26, %27 : vector<48x32xf32>
    %29 = arith.addf %21, %28 : vector<48x32xf32>
    %c0_34 = arith.constant 0 : index
    %c7 = arith.constant 7 : index
    %c0_35 = arith.constant 0 : index
    %30 = vector.load %arg17[%c0_34, %c7, %c0_35] : memref<2x59x1xf32, #tpu.memory_space<vmem>>, vector<1x48x1xf32>
    %31 = vector.shape_cast %30 : vector<1x48x1xf32> to vector<48x1xf32>
    %c2 = arith.constant 2 : index
    %c0_36 = arith.constant 0 : index
    %c0_37 = arith.constant 0 : index
    %32 = vector.load %arg2[%c2, %c0_36, %c0_37] : memref<7x1x32xf32, #tpu.memory_space<vmem>>, vector<1x1x32xf32>
    %33 = vector.shape_cast %32 : vector<1x1x32xf32> to vector<1x32xf32>
    %34 = vector.broadcast %31 : vector<48x1xf32> to vector<48x32xf32>
    %35 = vector.broadcast %33 : vector<1x32xf32> to vector<48x32xf32>
    %36 = arith.mulf %34, %35 : vector<48x32xf32>
    %37 = arith.addf %29, %36 : vector<48x32xf32>
    %c0_38 = arith.constant 0 : index
    %c8_39 = arith.constant 8 : index
    %c0_40 = arith.constant 0 : index
    %38 = vector.load %arg17[%c0_38, %c8_39, %c0_40] : memref<2x59x1xf32, #tpu.memory_space<vmem>>, vector<1x48x1xf32>
    %39 = vector.shape_cast %38 : vector<1x48x1xf32> to vector<48x1xf32>
    %c3 = arith.constant 3 : index
    %c0_41 = arith.constant 0 : index
    %c0_42 = arith.constant 0 : index
    %40 = vector.load %arg2[%c3, %c0_41, %c0_42] : memref<7x1x32xf32, #tpu.memory_space<vmem>>, vector<1x1x32xf32>
    %41 = vector.shape_cast %40 : vector<1x1x32xf32> to vector<1x32xf32>
    %42 = vector.broadcast %39 : vector<48x1xf32> to vector<48x32xf32>
    %43 = vector.broadcast %41 : vector<1x32xf32> to vector<48x32xf32>
    %44 = arith.mulf %42, %43 : vector<48x32xf32>
    %45 = arith.addf %37, %44 : vector<48x32xf32>
    %c0_43 = arith.constant 0 : index
    %c9 = arith.constant 9 : index
    %c0_44 = arith.constant 0 : index
    %46 = vector.load %arg17[%c0_43, %c9, %c0_44] : memref<2x59x1xf32, #tpu.memory_space<vmem>>, vector<1x48x1xf32>
    %47 = vector.shape_cast %46 : vector<1x48x1xf32> to vector<48x1xf32>
    %c4 = arith.constant 4 : index
    %c0_45 = arith.constant 0 : index
    %c0_46 = arith.constant 0 : index
    %48 = vector.load %arg2[%c4, %c0_45, %c0_46] : memref<7x1x32xf32, #tpu.memory_space<vmem>>, vector<1x1x32xf32>
    %49 = vector.shape_cast %48 : vector<1x1x32xf32> to vector<1x32xf32>
    %50 = vector.broadcast %47 : vector<48x1xf32> to vector<48x32xf32>
    %51 = vector.broadcast %49 : vector<1x32xf32> to vector<48x32xf32>
    %52 = arith.mulf %50, %51 : vector<48x32xf32>
    %53 = arith.addf %45, %52 : vector<48x32xf32>
    %c0_47 = arith.constant 0 : index
    %c10 = arith.constant 10 : index
    %c0_48 = arith.constant 0 : index
    %54 = vector.load %arg17[%c0_47, %c10, %c0_48] : memref<2x59x1xf32, #tpu.memory_space<vmem>>, vector<1x48x1xf32>
    %55 = vector.shape_cast %54 : vector<1x48x1xf32> to vector<48x1xf32>
    %c5_49 = arith.constant 5 : index
    %c0_50 = arith.constant 0 : index
    %c0_51 = arith.constant 0 : index
    %56 = vector.load %arg2[%c5_49, %c0_50, %c0_51] : memref<7x1x32xf32, #tpu.memory_space<vmem>>, vector<1x1x32xf32>
    %57 = vector.shape_cast %56 : vector<1x1x32xf32> to vector<1x32xf32>
    %58 = vector.broadcast %55 : vector<48x1xf32> to vector<48x32xf32>
    %59 = vector.broadcast %57 : vector<1x32xf32> to vector<48x32xf32>
    %60 = arith.mulf %58, %59 : vector<48x32xf32>
    %61 = arith.addf %53, %60 : vector<48x32xf32>
    %c0_52 = arith.constant 0 : index
    %c11 = arith.constant 11 : index
    %c0_53 = arith.constant 0 : index
    %62 = vector.load %arg17[%c0_52, %c11, %c0_53] : memref<2x59x1xf32, #tpu.memory_space<vmem>>, vector<1x48x1xf32>
    %63 = vector.shape_cast %62 : vector<1x48x1xf32> to vector<48x1xf32>
    %c6_54 = arith.constant 6 : index
    %c0_55 = arith.constant 0 : index
    %c0_56 = arith.constant 0 : index
    %64 = vector.load %arg2[%c6_54, %c0_55, %c0_56] : memref<7x1x32xf32, #tpu.memory_space<vmem>>, vector<1x1x32xf32>
    %65 = vector.shape_cast %64 : vector<1x1x32xf32> to vector<1x32xf32>
    %66 = vector.broadcast %63 : vector<48x1xf32> to vector<48x32xf32>
    %67 = vector.broadcast %65 : vector<1x32xf32> to vector<48x32xf32>
    %68 = arith.mulf %66, %67 : vector<48x32xf32>
    %69 = arith.addf %61, %68 : vector<48x32xf32>
    %c0_57 = arith.constant 0 : index
    %c0_58 = arith.constant 0 : index
    %70 = vector.load %arg3[%c0_57, %c0_58] : memref<1x32xf32, #tpu.memory_space<vmem>>, vector<1x32xf32>
    %71 = vector.broadcast %70 : vector<1x32xf32> to vector<48x32xf32>
    %72 = arith.addf %69, %71 : vector<48x32xf32>
    %cst_59 = arith.constant 0.000000e+00 : f32
    %73 = vector.broadcast %cst_59 : f32 to vector<48x32xf32>
    %74 = arith.cmpf ogt, %72, %73 : vector<48x32xf32>
    %cst_60 = arith.constant 0.00999999977 : f32
    %75 = vector.broadcast %cst_60 : f32 to vector<48x32xf32>
    %76 = arith.mulf %75, %72 : vector<48x32xf32>
    %77 = arith.select %74, %72, %76 : vector<48x32xi1>, vector<48x32xf32>
    %c0_61 = arith.constant 0 : index
    %c8_62 = arith.constant 8 : index
    %c0_63 = arith.constant 0 : index
    %78 = vector.load %arg18[%c0_61, %c8_62, %c0_63] : memref<2x60x32xf32, #tpu.memory_space<vmem>>, vector<1x48x32xf32>
    %79 = vector.shape_cast %78 : vector<1x48x32xf32> to vector<48x32xf32>
    %80 = vector.shape_cast %77 : vector<48x32xf32> to vector<1x48x32xf32>
    tpu.vector_store %arg18[%c0_61, %c8_62, %c0_63], %80 {strides = array<i32>} : memref<2x60x32xf32, #tpu.memory_space<vmem>>, vector<1x48x32xf32>,
    %cst_64 = arith.constant 0.000000e+00 : f32
    %81 = vector.broadcast %cst_64 : f32 to vector<48x32xf32>
    %c1_65 = arith.constant 1 : index
    %c5_66 = arith.constant 5 : index
    %c0_67 = arith.constant 0 : index
    %82 = vector.load %arg17[%c1_65, %c5_66, %c0_67] : memref<2x59x1xf32, #tpu.memory_space<vmem>>, vector<1x48x1xf32>
    %83 = vector.shape_cast %82 : vector<1x48x1xf32> to vector<48x1xf32>
    %c0_68 = arith.constant 0 : index
    %c0_69 = arith.constant 0 : index
    %c0_70 = arith.constant 0 : index
    %84 = vector.load %arg2[%c0_68, %c0_69, %c0_70] : memref<7x1x32xf32, #tpu.memory_space<vmem>>, vector<1x1x32xf32>
    %85 = vector.shape_cast %84 : vector<1x1x32xf32> to vector<1x32xf32>
    %86 = vector.broadcast %83 : vector<48x1xf32> to vector<48x32xf32>
    %87 = vector.broadcast %85 : vector<1x32xf32> to vector<48x32xf32>
    %88 = arith.mulf %86, %87 : vector<48x32xf32>
    %89 = arith.addf %81, %88 : vector<48x32xf32>
    %c1_71 = arith.constant 1 : index
    %c6_72 = arith.constant 6 : index
    %c0_73 = arith.constant 0 : index
    %90 = vector.load %arg17[%c1_71, %c6_72, %c0_73] : memref<2x59x1xf32, #tpu.memory_space<vmem>>, vector<1x48x1xf32>
    %91 = vector.shape_cast %90 : vector<1x48x1xf32> to vector<48x1xf32>
    %c1_74 = arith.constant 1 : index
    %c0_75 = arith.constant 0 : index
    %c0_76 = arith.constant 0 : index
    %92 = vector.load %arg2[%c1_74, %c0_75, %c0_76] : memref<7x1x32xf32, #tpu.memory_space<vmem>>, vector<1x1x32xf32>
    %93 = vector.shape_cast %92 : vector<1x1x32xf32> to vector<1x32xf32>
    %94 = vector.broadcast %91 : vector<48x1xf32> to vector<48x32xf32>
    %95 = vector.broadcast %93 : vector<1x32xf32> to vector<48x32xf32>
    %96 = arith.mulf %94, %95 : vector<48x32xf32>
    %97 = arith.addf %89, %96 : vector<48x32xf32>
    %c1_77 = arith.constant 1 : index
    %c7_78 = arith.constant 7 : index
    %c0_79 = arith.constant 0 : index
    %98 = vector.load %arg17[%c1_77, %c7_78, %c0_79] : memref<2x59x1xf32, #tpu.memory_space<vmem>>, vector<1x48x1xf32>
    %99 = vector.shape_cast %98 : vector<1x48x1xf32> to vector<48x1xf32>
    %c2_80 = arith.constant 2 : index
    %c0_81 = arith.constant 0 : index
    %c0_82 = arith.constant 0 : index
    %100 = vector.load %arg2[%c2_80, %c0_81, %c0_82] : memref<7x1x32xf32, #tpu.memory_space<vmem>>, vector<1x1x32xf32>
    %101 = vector.shape_cast %100 : vector<1x1x32xf32> to vector<1x32xf32>
    %102 = vector.broadcast %99 : vector<48x1xf32> to vector<48x32xf32>
    %103 = vector.broadcast %101 : vector<1x32xf32> to vector<48x32xf32>
    %104 = arith.mulf %102, %103 : vector<48x32xf32>
    %105 = arith.addf %97, %104 : vector<48x32xf32>
    %c1_83 = arith.constant 1 : index
    %c8_84 = arith.constant 8 : index
    %c0_85 = arith.constant 0 : index
    %106 = vector.load %arg17[%c1_83, %c8_84, %c0_85] : memref<2x59x1xf32, #tpu.memory_space<vmem>>, vector<1x48x1xf32>
    %107 = vector.shape_cast %106 : vector<1x48x1xf32> to vector<48x1xf32>
    %c3_86 = arith.constant 3 : index
    %c0_87 = arith.constant 0 : index
    %c0_88 = arith.constant 0 : index
    %108 = vector.load %arg2[%c3_86, %c0_87, %c0_88] : memref<7x1x32xf32, #tpu.memory_space<vmem>>, vector<1x1x32xf32>
    %109 = vector.shape_cast %108 : vector<1x1x32xf32> to vector<1x32xf32>
    %110 = vector.broadcast %107 : vector<48x1xf32> to vector<48x32xf32>
    %111 = vector.broadcast %109 : vector<1x32xf32> to vector<48x32xf32>
    %112 = arith.mulf %110, %111 : vector<48x32xf32>
    %113 = arith.addf %105, %112 : vector<48x32xf32>
    %c1_89 = arith.constant 1 : index
    %c9_90 = arith.constant 9 : index
    %c0_91 = arith.constant 0 : index
    %114 = vector.load %arg17[%c1_89, %c9_90, %c0_91] : memref<2x59x1xf32, #tpu.memory_space<vmem>>, vector<1x48x1xf32>
    %115 = vector.shape_cast %114 : vector<1x48x1xf32> to vector<48x1xf32>
    %c4_92 = arith.constant 4 : index
    %c0_93 = arith.constant 0 : index
    %c0_94 = arith.constant 0 : index
    %116 = vector.load %arg2[%c4_92, %c0_93, %c0_94] : memref<7x1x32xf32, #tpu.memory_space<vmem>>, vector<1x1x32xf32>
    %117 = vector.shape_cast %116 : vector<1x1x32xf32> to vector<1x32xf32>
    %118 = vector.broadcast %115 : vector<48x1xf32> to vector<48x32xf32>
    %119 = vector.broadcast %117 : vector<1x32xf32> to vector<48x32xf32>
    %120 = arith.mulf %118, %119 : vector<48x32xf32>
    %121 = arith.addf %113, %120 : vector<48x32xf32>
    %c1_95 = arith.constant 1 : index
    %c10_96 = arith.constant 10 : index
    %c0_97 = arith.constant 0 : index
    %122 = vector.load %arg17[%c1_95, %c10_96, %c0_97] : memref<2x59x1xf32, #tpu.memory_space<vmem>>, vector<1x48x1xf32>
    %123 = vector.shape_cast %122 : vector<1x48x1xf32> to vector<48x1xf32>
    %c5_98 = arith.constant 5 : index
    %c0_99 = arith.constant 0 : index
    %c0_100 = arith.constant 0 : index
    %124 = vector.load %arg2[%c5_98, %c0_99, %c0_100] : memref<7x1x32xf32, #tpu.memory_space<vmem>>, vector<1x1x32xf32>
    %125 = vector.shape_cast %124 : vector<1x1x32xf32> to vector<1x32xf32>
    %126 = vector.broadcast %123 : vector<48x1xf32> to vector<48x32xf32>
    %127 = vector.broadcast %125 : vector<1x32xf32> to vector<48x32xf32>
    %128 = arith.mulf %126, %127 : vector<48x32xf32>
    %129 = arith.addf %121, %128 : vector<48x32xf32>
    %c1_101 = arith.constant 1 : index
    %c11_102 = arith.constant 11 : index
    %c0_103 = arith.constant 0 : index
    %130 = vector.load %arg17[%c1_101, %c11_102, %c0_103] : memref<2x59x1xf32, #tpu.memory_space<vmem>>, vector<1x48x1xf32>
    %131 = vector.shape_cast %130 : vector<1x48x1xf32> to vector<48x1xf32>
    %c6_104 = arith.constant 6 : index
    %c0_105 = arith.constant 0 : index
    %c0_106 = arith.constant 0 : index
    %132 = vector.load %arg2[%c6_104, %c0_105, %c0_106] : memref<7x1x32xf32, #tpu.memory_space<vmem>>, vector<1x1x32xf32>
    %133 = vector.shape_cast %132 : vector<1x1x32xf32> to vector<1x32xf32>
    %134 = vector.broadcast %131 : vector<48x1xf32> to vector<48x32xf32>
    %135 = vector.broadcast %133 : vector<1x32xf32> to vector<48x32xf32>
    %136 = arith.mulf %134, %135 : vector<48x32xf32>
    %137 = arith.addf %129, %136 : vector<48x32xf32>
    %c0_107 = arith.constant 0 : index
    %c0_108 = arith.constant 0 : index
    %138 = vector.load %arg3[%c0_107, %c0_108] : memref<1x32xf32, #tpu.memory_space<vmem>>, vector<1x32xf32>
    %139 = vector.broadcast %138 : vector<1x32xf32> to vector<48x32xf32>
    %140 = arith.addf %137, %139 : vector<48x32xf32>
    %cst_109 = arith.constant 0.000000e+00 : f32
    %141 = vector.broadcast %cst_109 : f32 to vector<48x32xf32>
    %142 = arith.cmpf ogt, %140, %141 : vector<48x32xf32>
    %cst_110 = arith.constant 0.00999999977 : f32
    %143 = vector.broadcast %cst_110 : f32 to vector<48x32xf32>
    %144 = arith.mulf %143, %140 : vector<48x32xf32>
    %145 = arith.select %142, %140, %144 : vector<48x32xi1>, vector<48x32xf32>
    %c1_111 = arith.constant 1 : index
    %c8_112 = arith.constant 8 : index
    %c0_113 = arith.constant 0 : index
    %146 = vector.load %arg18[%c1_111, %c8_112, %c0_113] : memref<2x60x32xf32, #tpu.memory_space<vmem>>, vector<1x48x32xf32>
    %147 = vector.shape_cast %146 : vector<1x48x32xf32> to vector<48x32xf32>
    %148 = vector.shape_cast %145 : vector<48x32xf32> to vector<1x48x32xf32>
    tpu.vector_store %arg18[%c1_111, %c8_112, %c0_113], %148 {strides = array<i32>} : memref<2x60x32xf32, #tpu.memory_space<vmem>>, vector<1x48x32xf32>,
    %cst_114 = arith.constant 0.000000e+00 : f32
    %149 = vector.broadcast %cst_114 : f32 to vector<52x32xf32>
    %c0_115 = arith.constant 0 : index
    %c4_116 = arith.constant 4 : index
    %c0_117 = arith.constant 0 : index
    %150 = vector.load %arg18[%c0_115, %c4_116, %c0_117] : memref<2x60x32xf32, #tpu.memory_space<vmem>>, vector<1x52x32xf32>
    %151 = vector.shape_cast %150 : vector<1x52x32xf32> to vector<52x32xf32>
    %c0_118 = arith.constant 0 : index
    %c0_119 = arith.constant 0 : index
    %c0_120 = arith.constant 0 : index
    %152 = vector.load %arg4[%c0_118, %c0_119, %c0_120] : memref<5x32x32xf32, #tpu.memory_space<vmem>>, vector<1x32x32xf32>
    %153 = vector.shape_cast %152 : vector<1x32x32xf32> to vector<32x32xf32>
    %cst_121 = arith.constant dense<0.000000e+00> : vector<52x32xf32>
    %154 = tpu.matmul %151, %153, %cst_121 {dimension_numbers = #tpu.dot_dimension_numbers<[1], [0], [0], [1], [0, 0, 1, 1], [], []>} : vector<52x32xf32>, vector<32x32xf32>, vector<52x32xf32> -> vector<52x32xf32>
    %155 = arith.addf %149, %154 : vector<52x32xf32>
    %c0_122 = arith.constant 0 : index
    %c5_123 = arith.constant 5 : index
    %c0_124 = arith.constant 0 : index
    %156 = vector.load %arg18[%c0_122, %c5_123, %c0_124] : memref<2x60x32xf32, #tpu.memory_space<vmem>>, vector<1x52x32xf32>
    %157 = vector.shape_cast %156 : vector<1x52x32xf32> to vector<52x32xf32>
    %c1_125 = arith.constant 1 : index
    %c0_126 = arith.constant 0 : index
    %c0_127 = arith.constant 0 : index
    %158 = vector.load %arg4[%c1_125, %c0_126, %c0_127] : memref<5x32x32xf32, #tpu.memory_space<vmem>>, vector<1x32x32xf32>
    %159 = vector.shape_cast %158 : vector<1x32x32xf32> to vector<32x32xf32>
    %cst_128 = arith.constant dense<0.000000e+00> : vector<52x32xf32>
    %160 = tpu.matmul %157, %159, %cst_128 {dimension_numbers = #tpu.dot_dimension_numbers<[1], [0], [0], [1], [0, 0, 1, 1], [], []>} : vector<52x32xf32>, vector<32x32xf32>, vector<52x32xf32> -> vector<52x32xf32>
    %161 = arith.addf %155, %160 : vector<52x32xf32>
    %c0_129 = arith.constant 0 : index
    %c6_130 = arith.constant 6 : index
    %c0_131 = arith.constant 0 : index
    %162 = vector.load %arg18[%c0_129, %c6_130, %c0_131] : memref<2x60x32xf32, #tpu.memory_space<vmem>>, vector<1x52x32xf32>
    %163 = vector.shape_cast %162 : vector<1x52x32xf32> to vector<52x32xf32>
    %c2_132 = arith.constant 2 : index
    %c0_133 = arith.constant 0 : index
    %c0_134 = arith.constant 0 : index
    %164 = vector.load %arg4[%c2_132, %c0_133, %c0_134] : memref<5x32x32xf32, #tpu.memory_space<vmem>>, vector<1x32x32xf32>
    %165 = vector.shape_cast %164 : vector<1x32x32xf32> to vector<32x32xf32>
    %cst_135 = arith.constant dense<0.000000e+00> : vector<52x32xf32>
    %166 = tpu.matmul %163, %165, %cst_135 {dimension_numbers = #tpu.dot_dimension_numbers<[1], [0], [0], [1], [0, 0, 1, 1], [], []>} : vector<52x32xf32>, vector<32x32xf32>, vector<52x32xf32> -> vector<52x32xf32>
    %167 = arith.addf %161, %166 : vector<52x32xf32>
    %c0_136 = arith.constant 0 : index
    %c7_137 = arith.constant 7 : index
    %c0_138 = arith.constant 0 : index
    %168 = vector.load %arg18[%c0_136, %c7_137, %c0_138] : memref<2x60x32xf32, #tpu.memory_space<vmem>>, vector<1x52x32xf32>
    %169 = vector.shape_cast %168 : vector<1x52x32xf32> to vector<52x32xf32>
    %c3_139 = arith.constant 3 : index
    %c0_140 = arith.constant 0 : index
    %c0_141 = arith.constant 0 : index
    %170 = vector.load %arg4[%c3_139, %c0_140, %c0_141] : memref<5x32x32xf32, #tpu.memory_space<vmem>>, vector<1x32x32xf32>
    %171 = vector.shape_cast %170 : vector<1x32x32xf32> to vector<32x32xf32>
    %cst_142 = arith.constant dense<0.000000e+00> : vector<52x32xf32>
    %172 = tpu.matmul %169, %171, %cst_142 {dimension_numbers = #tpu.dot_dimension_numbers<[1], [0], [0], [1], [0, 0, 1, 1], [], []>} : vector<52x32xf32>, vector<32x32xf32>, vector<52x32xf32> -> vector<52x32xf32>
    %173 = arith.addf %167, %172 : vector<52x32xf32>
    %c0_143 = arith.constant 0 : index
    %c8_144 = arith.constant 8 : index
    %c0_145 = arith.constant 0 : index
    %174 = vector.load %arg18[%c0_143, %c8_144, %c0_145] : memref<2x60x32xf32, #tpu.memory_space<vmem>>, vector<1x52x32xf32>
    %175 = vector.shape_cast %174 : vector<1x52x32xf32> to vector<52x32xf32>
    %c4_146 = arith.constant 4 : index
    %c0_147 = arith.constant 0 : index
    %c0_148 = arith.constant 0 : index
    %176 = vector.load %arg4[%c4_146, %c0_147, %c0_148] : memref<5x32x32xf32, #tpu.memory_space<vmem>>, vector<1x32x32xf32>
    %177 = vector.shape_cast %176 : vector<1x32x32xf32> to vector<32x32xf32>
    %cst_149 = arith.constant dense<0.000000e+00> : vector<52x32xf32>
    %178 = tpu.matmul %175, %177, %cst_149 {dimension_numbers = #tpu.dot_dimension_numbers<[1], [0], [0], [1], [0, 0, 1, 1], [], []>} : vector<52x32xf32>, vector<32x32xf32>, vector<52x32xf32> -> vector<52x32xf32>
    %179 = arith.addf %173, %178 : vector<52x32xf32>
    %c0_150 = arith.constant 0 : index
    %c0_151 = arith.constant 0 : index
    %180 = vector.load %arg5[%c0_150, %c0_151] : memref<1x32xf32, #tpu.memory_space<vmem>>, vector<1x32xf32>
    %181 = vector.broadcast %180 : vector<1x32xf32> to vector<52x32xf32>
    %182 = arith.addf %179, %181 : vector<52x32xf32>
    %cst_152 = arith.constant 0.000000e+00 : f32
    %183 = vector.broadcast %cst_152 : f32 to vector<52x32xf32>
    %184 = arith.cmpf ogt, %182, %183 : vector<52x32xf32>
    %cst_153 = arith.constant 0.00999999977 : f32
    %185 = vector.broadcast %cst_153 : f32 to vector<52x32xf32>
    %186 = arith.mulf %185, %182 : vector<52x32xf32>
    %187 = arith.select %184, %182, %186 : vector<52x32xi1>, vector<52x32xf32>
    %c0_154 = arith.constant 0 : index
    %c0_155 = arith.constant 0 : index
    %c0_156 = arith.constant 0 : index
    %188 = vector.load %arg23[%c0_154, %c0_155, %c0_156] : memref<1x52x32xf32, #tpu.memory_space<vmem>>, vector<1x52x32xf32>
    %189 = vector.shape_cast %188 : vector<1x52x32xf32> to vector<52x32xf32>
    %190 = vector.shape_cast %187 : vector<52x32xf32> to vector<1x52x32xf32>
    tpu.vector_store %arg23[%c0_154, %c0_155, %c0_156], %190 {strides = array<i32>} : memref<1x52x32xf32, #tpu.memory_space<vmem>>, vector<1x52x32xf32>,
    %c0_157 = arith.constant 0 : index
    %c0_158 = arith.constant 0 : index
    %c0_159 = arith.constant 0 : index
    %191 = tpu.strided_load %arg23[%c0_157, %c0_158, %c0_159] {strides = array<i32: 1, 2, 1>} : memref<1x52x32xf32, #tpu.memory_space<vmem>>, vector<1x26x32xf32>
    %c0_160 = arith.constant 0 : index
    %c1_161 = arith.constant 1 : index
    %c0_162 = arith.constant 0 : index
    %192 = tpu.strided_load %arg23[%c0_160, %c1_161, %c0_162] {strides = array<i32: 1, 2, 1>} : memref<1x52x32xf32, #tpu.memory_space<vmem>>, vector<1x26x32xf32>
    %193 = arith.maximumf %191, %192 : vector<1x26x32xf32>
    %c0_163 = arith.constant 0 : index
    %c8_164 = arith.constant 8 : index
    %c0_165 = arith.constant 0 : index
    %194 = vector.load %arg19[%c0_163, %c8_164, %c0_165] : memref<2x36x32xf32, #tpu.memory_space<vmem>>, vector<1x26x32xf32>
    tpu.vector_store %arg19[%c0_163, %c8_164, %c0_165], %193 {strides = array<i32>} : memref<2x36x32xf32, #tpu.memory_space<vmem>>, vector<1x26x32xf32>,
    %cst_166 = arith.constant 0.000000e+00 : f32
    %195 = vector.broadcast %cst_166 : f32 to vector<52x32xf32>
    %c1_167 = arith.constant 1 : index
    %c4_168 = arith.constant 4 : index
    %c0_169 = arith.constant 0 : index
    %196 = vector.load %arg18[%c1_167, %c4_168, %c0_169] : memref<2x60x32xf32, #tpu.memory_space<vmem>>, vector<1x52x32xf32>
    %197 = vector.shape_cast %196 : vector<1x52x32xf32> to vector<52x32xf32>
    %c0_170 = arith.constant 0 : index
    %c0_171 = arith.constant 0 : index
    %c0_172 = arith.constant 0 : index
    %198 = vector.load %arg4[%c0_170, %c0_171, %c0_172] : memref<5x32x32xf32, #tpu.memory_space<vmem>>, vector<1x32x32xf32>
    %199 = vector.shape_cast %198 : vector<1x32x32xf32> to vector<32x32xf32>
    %cst_173 = arith.constant dense<0.000000e+00> : vector<52x32xf32>
    %200 = tpu.matmul %197, %199, %cst_173 {dimension_numbers = #tpu.dot_dimension_numbers<[1], [0], [0], [1], [0, 0, 1, 1], [], []>} : vector<52x32xf32>, vector<32x32xf32>, vector<52x32xf32> -> vector<52x32xf32>
    %201 = arith.addf %195, %200 : vector<52x32xf32>
    %c1_174 = arith.constant 1 : index
    %c5_175 = arith.constant 5 : index
    %c0_176 = arith.constant 0 : index
    %202 = vector.load %arg18[%c1_174, %c5_175, %c0_176] : memref<2x60x32xf32, #tpu.memory_space<vmem>>, vector<1x52x32xf32>
    %203 = vector.shape_cast %202 : vector<1x52x32xf32> to vector<52x32xf32>
    %c1_177 = arith.constant 1 : index
    %c0_178 = arith.constant 0 : index
    %c0_179 = arith.constant 0 : index
    %204 = vector.load %arg4[%c1_177, %c0_178, %c0_179] : memref<5x32x32xf32, #tpu.memory_space<vmem>>, vector<1x32x32xf32>
    %205 = vector.shape_cast %204 : vector<1x32x32xf32> to vector<32x32xf32>
    %cst_180 = arith.constant dense<0.000000e+00> : vector<52x32xf32>
    %206 = tpu.matmul %203, %205, %cst_180 {dimension_numbers = #tpu.dot_dimension_numbers<[1], [0], [0], [1], [0, 0, 1, 1], [], []>} : vector<52x32xf32>, vector<32x32xf32>, vector<52x32xf32> -> vector<52x32xf32>
    %207 = arith.addf %201, %206 : vector<52x32xf32>
    %c1_181 = arith.constant 1 : index
    %c6_182 = arith.constant 6 : index
    %c0_183 = arith.constant 0 : index
    %208 = vector.load %arg18[%c1_181, %c6_182, %c0_183] : memref<2x60x32xf32, #tpu.memory_space<vmem>>, vector<1x52x32xf32>
    %209 = vector.shape_cast %208 : vector<1x52x32xf32> to vector<52x32xf32>
    %c2_184 = arith.constant 2 : index
    %c0_185 = arith.constant 0 : index
    %c0_186 = arith.constant 0 : index
    %210 = vector.load %arg4[%c2_184, %c0_185, %c0_186] : memref<5x32x32xf32, #tpu.memory_space<vmem>>, vector<1x32x32xf32>
    %211 = vector.shape_cast %210 : vector<1x32x32xf32> to vector<32x32xf32>
    %cst_187 = arith.constant dense<0.000000e+00> : vector<52x32xf32>
    %212 = tpu.matmul %209, %211, %cst_187 {dimension_numbers = #tpu.dot_dimension_numbers<[1], [0], [0], [1], [0, 0, 1, 1], [], []>} : vector<52x32xf32>, vector<32x32xf32>, vector<52x32xf32> -> vector<52x32xf32>
    %213 = arith.addf %207, %212 : vector<52x32xf32>
    %c1_188 = arith.constant 1 : index
    %c7_189 = arith.constant 7 : index
    %c0_190 = arith.constant 0 : index
    %214 = vector.load %arg18[%c1_188, %c7_189, %c0_190] : memref<2x60x32xf32, #tpu.memory_space<vmem>>, vector<1x52x32xf32>
    %215 = vector.shape_cast %214 : vector<1x52x32xf32> to vector<52x32xf32>
    %c3_191 = arith.constant 3 : index
    %c0_192 = arith.constant 0 : index
    %c0_193 = arith.constant 0 : index
    %216 = vector.load %arg4[%c3_191, %c0_192, %c0_193] : memref<5x32x32xf32, #tpu.memory_space<vmem>>, vector<1x32x32xf32>
    %217 = vector.shape_cast %216 : vector<1x32x32xf32> to vector<32x32xf32>
    %cst_194 = arith.constant dense<0.000000e+00> : vector<52x32xf32>
    %218 = tpu.matmul %215, %217, %cst_194 {dimension_numbers = #tpu.dot_dimension_numbers<[1], [0], [0], [1], [0, 0, 1, 1], [], []>} : vector<52x32xf32>, vector<32x32xf32>, vector<52x32xf32> -> vector<52x32xf32>
    %219 = arith.addf %213, %218 : vector<52x32xf32>
    %c1_195 = arith.constant 1 : index
    %c8_196 = arith.constant 8 : index
    %c0_197 = arith.constant 0 : index
    %220 = vector.load %arg18[%c1_195, %c8_196, %c0_197] : memref<2x60x32xf32, #tpu.memory_space<vmem>>, vector<1x52x32xf32>
    %221 = vector.shape_cast %220 : vector<1x52x32xf32> to vector<52x32xf32>
    %c4_198 = arith.constant 4 : index
    %c0_199 = arith.constant 0 : index
    %c0_200 = arith.constant 0 : index
    %222 = vector.load %arg4[%c4_198, %c0_199, %c0_200] : memref<5x32x32xf32, #tpu.memory_space<vmem>>, vector<1x32x32xf32>
    %223 = vector.shape_cast %222 : vector<1x32x32xf32> to vector<32x32xf32>
    %cst_201 = arith.constant dense<0.000000e+00> : vector<52x32xf32>
    %224 = tpu.matmul %221, %223, %cst_201 {dimension_numbers = #tpu.dot_dimension_numbers<[1], [0], [0], [1], [0, 0, 1, 1], [], []>} : vector<52x32xf32>, vector<32x32xf32>, vector<52x32xf32> -> vector<52x32xf32>
    %225 = arith.addf %219, %224 : vector<52x32xf32>
    %c0_202 = arith.constant 0 : index
    %c0_203 = arith.constant 0 : index
    %226 = vector.load %arg5[%c0_202, %c0_203] : memref<1x32xf32, #tpu.memory_space<vmem>>, vector<1x32xf32>
    %227 = vector.broadcast %226 : vector<1x32xf32> to vector<52x32xf32>
    %228 = arith.addf %225, %227 : vector<52x32xf32>
    %cst_204 = arith.constant 0.000000e+00 : f32
    %229 = vector.broadcast %cst_204 : f32 to vector<52x32xf32>
    %230 = arith.cmpf ogt, %228, %229 : vector<52x32xf32>
    %cst_205 = arith.constant 0.00999999977 : f32
    %231 = vector.broadcast %cst_205 : f32 to vector<52x32xf32>
    %232 = arith.mulf %231, %228 : vector<52x32xf32>
    %233 = arith.select %230, %228, %232 : vector<52x32xi1>, vector<52x32xf32>
    %c0_206 = arith.constant 0 : index
    %c0_207 = arith.constant 0 : index
    %c0_208 = arith.constant 0 : index
    %234 = vector.load %arg23[%c0_206, %c0_207, %c0_208] : memref<1x52x32xf32, #tpu.memory_space<vmem>>, vector<1x52x32xf32>
    %235 = vector.shape_cast %234 : vector<1x52x32xf32> to vector<52x32xf32>
    %236 = vector.shape_cast %233 : vector<52x32xf32> to vector<1x52x32xf32>
    tpu.vector_store %arg23[%c0_206, %c0_207, %c0_208], %236 {strides = array<i32>} : memref<1x52x32xf32, #tpu.memory_space<vmem>>, vector<1x52x32xf32>,
    %c0_209 = arith.constant 0 : index
    %c0_210 = arith.constant 0 : index
    %c0_211 = arith.constant 0 : index
    %237 = tpu.strided_load %arg23[%c0_209, %c0_210, %c0_211] {strides = array<i32: 1, 2, 1>} : memref<1x52x32xf32, #tpu.memory_space<vmem>>, vector<1x26x32xf32>
    %c0_212 = arith.constant 0 : index
    %c1_213 = arith.constant 1 : index
    %c0_214 = arith.constant 0 : index
    %238 = tpu.strided_load %arg23[%c0_212, %c1_213, %c0_214] {strides = array<i32: 1, 2, 1>} : memref<1x52x32xf32, #tpu.memory_space<vmem>>, vector<1x26x32xf32>
    %239 = arith.maximumf %237, %238 : vector<1x26x32xf32>
    %c1_215 = arith.constant 1 : index
    %c8_216 = arith.constant 8 : index
    %c0_217 = arith.constant 0 : index
    %240 = vector.load %arg19[%c1_215, %c8_216, %c0_217] : memref<2x36x32xf32, #tpu.memory_space<vmem>>, vector<1x26x32xf32>
    tpu.vector_store %arg19[%c1_215, %c8_216, %c0_217], %239 {strides = array<i32>} : memref<2x36x32xf32, #tpu.memory_space<vmem>>, vector<1x26x32xf32>,
    %cst_218 = arith.constant 0.000000e+00 : f32
    %241 = vector.broadcast %cst_218 : f32 to vector<26x64xf32>
    %c0_219 = arith.constant 0 : index
    %c6_220 = arith.constant 6 : index
    %c0_221 = arith.constant 0 : index
    %242 = vector.load %arg19[%c0_219, %c6_220, %c0_221] : memref<2x36x32xf32, #tpu.memory_space<vmem>>, vector<1x26x32xf32>
    %243 = vector.shape_cast %242 : vector<1x26x32xf32> to vector<26x32xf32>
    %c0_222 = arith.constant 0 : index
    %c0_223 = arith.constant 0 : index
    %c0_224 = arith.constant 0 : index
    %244 = vector.load %arg6[%c0_222, %c0_223, %c0_224] : memref<5x32x64xf32, #tpu.memory_space<vmem>>, vector<1x32x64xf32>
    %245 = vector.shape_cast %244 : vector<1x32x64xf32> to vector<32x64xf32>
    %cst_225 = arith.constant dense<0.000000e+00> : vector<26x64xf32>
    %246 = tpu.matmul %243, %245, %cst_225 {dimension_numbers = #tpu.dot_dimension_numbers<[1], [0], [0], [1], [0, 0, 1, 1], [], []>} : vector<26x32xf32>, vector<32x64xf32>, vector<26x64xf32> -> vector<26x64xf32>
    %247 = arith.addf %241, %246 : vector<26x64xf32>
    %c0_226 = arith.constant 0 : index
    %c7_227 = arith.constant 7 : index
    %c0_228 = arith.constant 0 : index
    %248 = vector.load %arg19[%c0_226, %c7_227, %c0_228] : memref<2x36x32xf32, #tpu.memory_space<vmem>>, vector<1x26x32xf32>
    %249 = vector.shape_cast %248 : vector<1x26x32xf32> to vector<26x32xf32>
    %c1_229 = arith.constant 1 : index
    %c0_230 = arith.constant 0 : index
    %c0_231 = arith.constant 0 : index
    %250 = vector.load %arg6[%c1_229, %c0_230, %c0_231] : memref<5x32x64xf32, #tpu.memory_space<vmem>>, vector<1x32x64xf32>
    %251 = vector.shape_cast %250 : vector<1x32x64xf32> to vector<32x64xf32>
    %cst_232 = arith.constant dense<0.000000e+00> : vector<26x64xf32>
    %252 = tpu.matmul %249, %251, %cst_232 {dimension_numbers = #tpu.dot_dimension_numbers<[1], [0], [0], [1], [0, 0, 1, 1], [], []>} : vector<26x32xf32>, vector<32x64xf32>, vector<26x64xf32> -> vector<26x64xf32>
    %253 = arith.addf %247, %252 : vector<26x64xf32>
    %c0_233 = arith.constant 0 : index
    %c8_234 = arith.constant 8 : index
    %c0_235 = arith.constant 0 : index
    %254 = vector.load %arg19[%c0_233, %c8_234, %c0_235] : memref<2x36x32xf32, #tpu.memory_space<vmem>>, vector<1x26x32xf32>
    %255 = vector.shape_cast %254 : vector<1x26x32xf32> to vector<26x32xf32>
    %c2_236 = arith.constant 2 : index
    %c0_237 = arith.constant 0 : index
    %c0_238 = arith.constant 0 : index
    %256 = vector.load %arg6[%c2_236, %c0_237, %c0_238] : memref<5x32x64xf32, #tpu.memory_space<vmem>>, vector<1x32x64xf32>
    %257 = vector.shape_cast %256 : vector<1x32x64xf32> to vector<32x64xf32>
    %cst_239 = arith.constant dense<0.000000e+00> : vector<26x64xf32>
    %258 = tpu.matmul %255, %257, %cst_239 {dimension_numbers = #tpu.dot_dimension_numbers<[1], [0], [0], [1], [0, 0, 1, 1], [], []>} : vector<26x32xf32>, vector<32x64xf32>, vector<26x64xf32> -> vector<26x64xf32>
    %259 = arith.addf %253, %258 : vector<26x64xf32>
    %c0_240 = arith.constant 0 : index
    %c9_241 = arith.constant 9 : index
    %c0_242 = arith.constant 0 : index
    %260 = vector.load %arg19[%c0_240, %c9_241, %c0_242] : memref<2x36x32xf32, #tpu.memory_space<vmem>>, vector<1x26x32xf32>
    %261 = vector.shape_cast %260 : vector<1x26x32xf32> to vector<26x32xf32>
    %c3_243 = arith.constant 3 : index
    %c0_244 = arith.constant 0 : index
    %c0_245 = arith.constant 0 : index
    %262 = vector.load %arg6[%c3_243, %c0_244, %c0_245] : memref<5x32x64xf32, #tpu.memory_space<vmem>>, vector<1x32x64xf32>
    %263 = vector.shape_cast %262 : vector<1x32x64xf32> to vector<32x64xf32>
    %cst_246 = arith.constant dense<0.000000e+00> : vector<26x64xf32>
    %264 = tpu.matmul %261, %263, %cst_246 {dimension_numbers = #tpu.dot_dimension_numbers<[1], [0], [0], [1], [0, 0, 1, 1], [], []>} : vector<26x32xf32>, vector<32x64xf32>, vector<26x64xf32> -> vector<26x64xf32>
    %265 = arith.addf %259, %264 : vector<26x64xf32>
    %c0_247 = arith.constant 0 : index
    %c10_248 = arith.constant 10 : index
    %c0_249 = arith.constant 0 : index
    %266 = vector.load %arg19[%c0_247, %c10_248, %c0_249] : memref<2x36x32xf32, #tpu.memory_space<vmem>>, vector<1x26x32xf32>
    %267 = vector.shape_cast %266 : vector<1x26x32xf32> to vector<26x32xf32>
    %c4_250 = arith.constant 4 : index
    %c0_251 = arith.constant 0 : index
    %c0_252 = arith.constant 0 : index
    %268 = vector.load %arg6[%c4_250, %c0_251, %c0_252] : memref<5x32x64xf32, #tpu.memory_space<vmem>>, vector<1x32x64xf32>
    %269 = vector.shape_cast %268 : vector<1x32x64xf32> to vector<32x64xf32>
    %cst_253 = arith.constant dense<0.000000e+00> : vector<26x64xf32>
    %270 = tpu.matmul %267, %269, %cst_253 {dimension_numbers = #tpu.dot_dimension_numbers<[1], [0], [0], [1], [0, 0, 1, 1], [], []>} : vector<26x32xf32>, vector<32x64xf32>, vector<26x64xf32> -> vector<26x64xf32>
    %271 = arith.addf %265, %270 : vector<26x64xf32>
    %c0_254 = arith.constant 0 : index
    %c0_255 = arith.constant 0 : index
    %272 = vector.load %arg7[%c0_254, %c0_255] : memref<1x64xf32, #tpu.memory_space<vmem>>, vector<1x64xf32>
    %273 = vector.broadcast %272 : vector<1x64xf32> to vector<26x64xf32>
    %274 = arith.addf %271, %273 : vector<26x64xf32>
    %cst_256 = arith.constant 0.000000e+00 : f32
    %275 = vector.broadcast %cst_256 : f32 to vector<26x64xf32>
    %276 = arith.cmpf ogt, %274, %275 : vector<26x64xf32>
    %cst_257 = arith.constant 0.00999999977 : f32
    %277 = vector.broadcast %cst_257 : f32 to vector<26x64xf32>
    %278 = arith.mulf %277, %274 : vector<26x64xf32>
    %279 = arith.select %276, %274, %278 : vector<26x64xi1>, vector<26x64xf32>
    %c0_258 = arith.constant 0 : index
    %c0_259 = arith.constant 0 : index
    %c0_260 = arith.constant 0 : index
    %280 = vector.load %arg24[%c0_258, %c0_259, %c0_260] : memref<1x26x64xf32, #tpu.memory_space<vmem>>, vector<1x26x64xf32>
    %281 = vector.shape_cast %280 : vector<1x26x64xf32> to vector<26x64xf32>
    %282 = vector.shape_cast %279 : vector<26x64xf32> to vector<1x26x64xf32>
    tpu.vector_store %arg24[%c0_258, %c0_259, %c0_260], %282 {strides = array<i32>} : memref<1x26x64xf32, #tpu.memory_space<vmem>>, vector<1x26x64xf32>,
    %c0_261 = arith.constant 0 : index
    %c0_262 = arith.constant 0 : index
    %c0_263 = arith.constant 0 : index
    %283 = tpu.strided_load %arg24[%c0_261, %c0_262, %c0_263] {strides = array<i32: 1, 2, 1>} : memref<1x26x64xf32, #tpu.memory_space<vmem>>, vector<1x13x64xf32>
    %c0_264 = arith.constant 0 : index
    %c1_265 = arith.constant 1 : index
    %c0_266 = arith.constant 0 : index
    %284 = tpu.strided_load %arg24[%c0_264, %c1_265, %c0_266] {strides = array<i32: 1, 2, 1>} : memref<1x26x64xf32, #tpu.memory_space<vmem>>, vector<1x13x64xf32>
    %285 = arith.maximumf %283, %284 : vector<1x13x64xf32>
    %c0_267 = arith.constant 0 : index
    %c8_268 = arith.constant 8 : index
    %c0_269 = arith.constant 0 : index
    %286 = vector.load %arg20[%c0_267, %c8_268, %c0_269] : memref<2x23x64xf32, #tpu.memory_space<vmem>>, vector<1x13x64xf32>
    tpu.vector_store %arg20[%c0_267, %c8_268, %c0_269], %285 {strides = array<i32>} : memref<2x23x64xf32, #tpu.memory_space<vmem>>, vector<1x13x64xf32>,
    %cst_270 = arith.constant 0.000000e+00 : f32
    %287 = vector.broadcast %cst_270 : f32 to vector<26x64xf32>
    %c1_271 = arith.constant 1 : index
    %c6_272 = arith.constant 6 : index
    %c0_273 = arith.constant 0 : index
    %288 = vector.load %arg19[%c1_271, %c6_272, %c0_273] : memref<2x36x32xf32, #tpu.memory_space<vmem>>, vector<1x26x32xf32>
    %289 = vector.shape_cast %288 : vector<1x26x32xf32> to vector<26x32xf32>
    %c0_274 = arith.constant 0 : index
    %c0_275 = arith.constant 0 : index
    %c0_276 = arith.constant 0 : index
    %290 = vector.load %arg6[%c0_274, %c0_275, %c0_276] : memref<5x32x64xf32, #tpu.memory_space<vmem>>, vector<1x32x64xf32>
    %291 = vector.shape_cast %290 : vector<1x32x64xf32> to vector<32x64xf32>
    %cst_277 = arith.constant dense<0.000000e+00> : vector<26x64xf32>
    %292 = tpu.matmul %289, %291, %cst_277 {dimension_numbers = #tpu.dot_dimension_numbers<[1], [0], [0], [1], [0, 0, 1, 1], [], []>} : vector<26x32xf32>, vector<32x64xf32>, vector<26x64xf32> -> vector<26x64xf32>
    %293 = arith.addf %287, %292 : vector<26x64xf32>
    %c1_278 = arith.constant 1 : index
    %c7_279 = arith.constant 7 : index
    %c0_280 = arith.constant 0 : index
    %294 = vector.load %arg19[%c1_278, %c7_279, %c0_280] : memref<2x36x32xf32, #tpu.memory_space<vmem>>, vector<1x26x32xf32>
    %295 = vector.shape_cast %294 : vector<1x26x32xf32> to vector<26x32xf32>
    %c1_281 = arith.constant 1 : index
    %c0_282 = arith.constant 0 : index
    %c0_283 = arith.constant 0 : index
    %296 = vector.load %arg6[%c1_281, %c0_282, %c0_283] : memref<5x32x64xf32, #tpu.memory_space<vmem>>, vector<1x32x64xf32>
    %297 = vector.shape_cast %296 : vector<1x32x64xf32> to vector<32x64xf32>
    %cst_284 = arith.constant dense<0.000000e+00> : vector<26x64xf32>
    %298 = tpu.matmul %295, %297, %cst_284 {dimension_numbers = #tpu.dot_dimension_numbers<[1], [0], [0], [1], [0, 0, 1, 1], [], []>} : vector<26x32xf32>, vector<32x64xf32>, vector<26x64xf32> -> vector<26x64xf32>
    %299 = arith.addf %293, %298 : vector<26x64xf32>
    %c1_285 = arith.constant 1 : index
    %c8_286 = arith.constant 8 : index
    %c0_287 = arith.constant 0 : index
    %300 = vector.load %arg19[%c1_285, %c8_286, %c0_287] : memref<2x36x32xf32, #tpu.memory_space<vmem>>, vector<1x26x32xf32>
    %301 = vector.shape_cast %300 : vector<1x26x32xf32> to vector<26x32xf32>
    %c2_288 = arith.constant 2 : index
    %c0_289 = arith.constant 0 : index
    %c0_290 = arith.constant 0 : index
    %302 = vector.load %arg6[%c2_288, %c0_289, %c0_290] : memref<5x32x64xf32, #tpu.memory_space<vmem>>, vector<1x32x64xf32>
    %303 = vector.shape_cast %302 : vector<1x32x64xf32> to vector<32x64xf32>
    %cst_291 = arith.constant dense<0.000000e+00> : vector<26x64xf32>
    %304 = tpu.matmul %301, %303, %cst_291 {dimension_numbers = #tpu.dot_dimension_numbers<[1], [0], [0], [1], [0, 0, 1, 1], [], []>} : vector<26x32xf32>, vector<32x64xf32>, vector<26x64xf32> -> vector<26x64xf32>
    %305 = arith.addf %299, %304 : vector<26x64xf32>
    %c1_292 = arith.constant 1 : index
    %c9_293 = arith.constant 9 : index
    %c0_294 = arith.constant 0 : index
    %306 = vector.load %arg19[%c1_292, %c9_293, %c0_294] : memref<2x36x32xf32, #tpu.memory_space<vmem>>, vector<1x26x32xf32>
    %307 = vector.shape_cast %306 : vector<1x26x32xf32> to vector<26x32xf32>
    %c3_295 = arith.constant 3 : index
    %c0_296 = arith.constant 0 : index
    %c0_297 = arith.constant 0 : index
    %308 = vector.load %arg6[%c3_295, %c0_296, %c0_297] : memref<5x32x64xf32, #tpu.memory_space<vmem>>, vector<1x32x64xf32>
    %309 = vector.shape_cast %308 : vector<1x32x64xf32> to vector<32x64xf32>
    %cst_298 = arith.constant dense<0.000000e+00> : vector<26x64xf32>
    %310 = tpu.matmul %307, %309, %cst_298 {dimension_numbers = #tpu.dot_dimension_numbers<[1], [0], [0], [1], [0, 0, 1, 1], [], []>} : vector<26x32xf32>, vector<32x64xf32>, vector<26x64xf32> -> vector<26x64xf32>
    %311 = arith.addf %305, %310 : vector<26x64xf32>
    %c1_299 = arith.constant 1 : index
    %c10_300 = arith.constant 10 : index
    %c0_301 = arith.constant 0 : index
    %312 = vector.load %arg19[%c1_299, %c10_300, %c0_301] : memref<2x36x32xf32, #tpu.memory_space<vmem>>, vector<1x26x32xf32>
    %313 = vector.shape_cast %312 : vector<1x26x32xf32> to vector<26x32xf32>
    %c4_302 = arith.constant 4 : index
    %c0_303 = arith.constant 0 : index
    %c0_304 = arith.constant 0 : index
    %314 = vector.load %arg6[%c4_302, %c0_303, %c0_304] : memref<5x32x64xf32, #tpu.memory_space<vmem>>, vector<1x32x64xf32>
    %315 = vector.shape_cast %314 : vector<1x32x64xf32> to vector<32x64xf32>
    %cst_305 = arith.constant dense<0.000000e+00> : vector<26x64xf32>
    %316 = tpu.matmul %313, %315, %cst_305 {dimension_numbers = #tpu.dot_dimension_numbers<[1], [0], [0], [1], [0, 0, 1, 1], [], []>} : vector<26x32xf32>, vector<32x64xf32>, vector<26x64xf32> -> vector<26x64xf32>
    %317 = arith.addf %311, %316 : vector<26x64xf32>
    %c0_306 = arith.constant 0 : index
    %c0_307 = arith.constant 0 : index
    %318 = vector.load %arg7[%c0_306, %c0_307] : memref<1x64xf32, #tpu.memory_space<vmem>>, vector<1x64xf32>
    %319 = vector.broadcast %318 : vector<1x64xf32> to vector<26x64xf32>
    %320 = arith.addf %317, %319 : vector<26x64xf32>
    %cst_308 = arith.constant 0.000000e+00 : f32
    %321 = vector.broadcast %cst_308 : f32 to vector<26x64xf32>
    %322 = arith.cmpf ogt, %320, %321 : vector<26x64xf32>
    %cst_309 = arith.constant 0.00999999977 : f32
    %323 = vector.broadcast %cst_309 : f32 to vector<26x64xf32>
    %324 = arith.mulf %323, %320 : vector<26x64xf32>
    %325 = arith.select %322, %320, %324 : vector<26x64xi1>, vector<26x64xf32>
    %c0_310 = arith.constant 0 : index
    %c0_311 = arith.constant 0 : index
    %c0_312 = arith.constant 0 : index
    %326 = vector.load %arg24[%c0_310, %c0_311, %c0_312] : memref<1x26x64xf32, #tpu.memory_space<vmem>>, vector<1x26x64xf32>
    %327 = vector.shape_cast %326 : vector<1x26x64xf32> to vector<26x64xf32>
    %328 = vector.shape_cast %325 : vector<26x64xf32> to vector<1x26x64xf32>
    tpu.vector_store %arg24[%c0_310, %c0_311, %c0_312], %328 {strides = array<i32>} : memref<1x26x64xf32, #tpu.memory_space<vmem>>, vector<1x26x64xf32>,
    %c0_313 = arith.constant 0 : index
    %c0_314 = arith.constant 0 : index
    %c0_315 = arith.constant 0 : index
    %329 = tpu.strided_load %arg24[%c0_313, %c0_314, %c0_315] {strides = array<i32: 1, 2, 1>} : memref<1x26x64xf32, #tpu.memory_space<vmem>>, vector<1x13x64xf32>
    %c0_316 = arith.constant 0 : index
    %c1_317 = arith.constant 1 : index
    %c0_318 = arith.constant 0 : index
    %330 = tpu.strided_load %arg24[%c0_316, %c1_317, %c0_318] {strides = array<i32: 1, 2, 1>} : memref<1x26x64xf32, #tpu.memory_space<vmem>>, vector<1x13x64xf32>
    %331 = arith.maximumf %329, %330 : vector<1x13x64xf32>
    %c1_319 = arith.constant 1 : index
    %c8_320 = arith.constant 8 : index
    %c0_321 = arith.constant 0 : index
    %332 = vector.load %arg20[%c1_319, %c8_320, %c0_321] : memref<2x23x64xf32, #tpu.memory_space<vmem>>, vector<1x13x64xf32>
    tpu.vector_store %arg20[%c1_319, %c8_320, %c0_321], %331 {strides = array<i32>} : memref<2x23x64xf32, #tpu.memory_space<vmem>>, vector<1x13x64xf32>,
    %cst_322 = arith.constant 0.000000e+00 : f32
    %333 = vector.broadcast %cst_322 : f32 to vector<14x128xf32>
    %c0_323 = arith.constant 0 : index
    %c6_324 = arith.constant 6 : index
    %c0_325 = arith.constant 0 : index
    %334 = vector.load %arg20[%c0_323, %c6_324, %c0_325] : memref<2x23x64xf32, #tpu.memory_space<vmem>>, vector<1x14x64xf32>
    %335 = vector.shape_cast %334 : vector<1x14x64xf32> to vector<14x64xf32>
    %c0_326 = arith.constant 0 : index
    %c0_327 = arith.constant 0 : index
    %c0_328 = arith.constant 0 : index
    %336 = vector.load %arg8[%c0_326, %c0_327, %c0_328] : memref<4x64x128xf32, #tpu.memory_space<vmem>>, vector<1x64x128xf32>
    %337 = vector.shape_cast %336 : vector<1x64x128xf32> to vector<64x128xf32>
    %cst_329 = arith.constant dense<0.000000e+00> : vector<14x128xf32>
    %338 = tpu.matmul %335, %337, %cst_329 {dimension_numbers = #tpu.dot_dimension_numbers<[1], [0], [0], [1], [0, 0, 1, 1], [], []>} : vector<14x64xf32>, vector<64x128xf32>, vector<14x128xf32> -> vector<14x128xf32>
    %339 = arith.addf %333, %338 : vector<14x128xf32>
    %c0_330 = arith.constant 0 : index
    %c7_331 = arith.constant 7 : index
    %c0_332 = arith.constant 0 : index
    %340 = vector.load %arg20[%c0_330, %c7_331, %c0_332] : memref<2x23x64xf32, #tpu.memory_space<vmem>>, vector<1x14x64xf32>
    %341 = vector.shape_cast %340 : vector<1x14x64xf32> to vector<14x64xf32>
    %c1_333 = arith.constant 1 : index
    %c0_334 = arith.constant 0 : index
    %c0_335 = arith.constant 0 : index
    %342 = vector.load %arg8[%c1_333, %c0_334, %c0_335] : memref<4x64x128xf32, #tpu.memory_space<vmem>>, vector<1x64x128xf32>
    %343 = vector.shape_cast %342 : vector<1x64x128xf32> to vector<64x128xf32>
    %cst_336 = arith.constant dense<0.000000e+00> : vector<14x128xf32>
    %344 = tpu.matmul %341, %343, %cst_336 {dimension_numbers = #tpu.dot_dimension_numbers<[1], [0], [0], [1], [0, 0, 1, 1], [], []>} : vector<14x64xf32>, vector<64x128xf32>, vector<14x128xf32> -> vector<14x128xf32>
    %345 = arith.addf %339, %344 : vector<14x128xf32>
    %c0_337 = arith.constant 0 : index
    %c8_338 = arith.constant 8 : index
    %c0_339 = arith.constant 0 : index
    %346 = vector.load %arg20[%c0_337, %c8_338, %c0_339] : memref<2x23x64xf32, #tpu.memory_space<vmem>>, vector<1x14x64xf32>
    %347 = vector.shape_cast %346 : vector<1x14x64xf32> to vector<14x64xf32>
    %c2_340 = arith.constant 2 : index
    %c0_341 = arith.constant 0 : index
    %c0_342 = arith.constant 0 : index
    %348 = vector.load %arg8[%c2_340, %c0_341, %c0_342] : memref<4x64x128xf32, #tpu.memory_space<vmem>>, vector<1x64x128xf32>
    %349 = vector.shape_cast %348 : vector<1x64x128xf32> to vector<64x128xf32>
    %cst_343 = arith.constant dense<0.000000e+00> : vector<14x128xf32>
    %350 = tpu.matmul %347, %349, %cst_343 {dimension_numbers = #tpu.dot_dimension_numbers<[1], [0], [0], [1], [0, 0, 1, 1], [], []>} : vector<14x64xf32>, vector<64x128xf32>, vector<14x128xf32> -> vector<14x128xf32>
    %351 = arith.addf %345, %350 : vector<14x128xf32>
    %c0_344 = arith.constant 0 : index
    %c9_345 = arith.constant 9 : index
    %c0_346 = arith.constant 0 : index
    %352 = vector.load %arg20[%c0_344, %c9_345, %c0_346] : memref<2x23x64xf32, #tpu.memory_space<vmem>>, vector<1x14x64xf32>
    %353 = vector.shape_cast %352 : vector<1x14x64xf32> to vector<14x64xf32>
    %c3_347 = arith.constant 3 : index
    %c0_348 = arith.constant 0 : index
    %c0_349 = arith.constant 0 : index
    %354 = vector.load %arg8[%c3_347, %c0_348, %c0_349] : memref<4x64x128xf32, #tpu.memory_space<vmem>>, vector<1x64x128xf32>
    %355 = vector.shape_cast %354 : vector<1x64x128xf32> to vector<64x128xf32>
    %cst_350 = arith.constant dense<0.000000e+00> : vector<14x128xf32>
    %356 = tpu.matmul %353, %355, %cst_350 {dimension_numbers = #tpu.dot_dimension_numbers<[1], [0], [0], [1], [0, 0, 1, 1], [], []>} : vector<14x64xf32>, vector<64x128xf32>, vector<14x128xf32> -> vector<14x128xf32>
    %357 = arith.addf %351, %356 : vector<14x128xf32>
    %c0_351 = arith.constant 0 : index
    %c0_352 = arith.constant 0 : index
    %358 = vector.load %arg9[%c0_351, %c0_352] : memref<1x128xf32, #tpu.memory_space<vmem>>, vector<1x128xf32>
    %359 = vector.broadcast %358 : vector<1x128xf32> to vector<14x128xf32>
    %360 = arith.addf %357, %359 : vector<14x128xf32>
    %cst_353 = arith.constant 0.000000e+00 : f32
    %361 = vector.broadcast %cst_353 : f32 to vector<14x128xf32>
    %362 = arith.cmpf ogt, %360, %361 : vector<14x128xf32>
    %cst_354 = arith.constant 0.00999999977 : f32
    %363 = vector.broadcast %cst_354 : f32 to vector<14x128xf32>
    %364 = arith.mulf %363, %360 : vector<14x128xf32>
    %365 = arith.select %362, %360, %364 : vector<14x128xi1>, vector<14x128xf32>
    %c0_355 = arith.constant 0 : index
    %c0_356 = arith.constant 0 : index
    %c0_357 = arith.constant 0 : index
    %366 = vector.load %arg21[%c0_355, %c0_356, %c0_357] : memref<2x14x128xf32, #tpu.memory_space<vmem>>, vector<1x14x128xf32>
    %367 = vector.shape_cast %366 : vector<1x14x128xf32> to vector<14x128xf32>
    %368 = vector.shape_cast %365 : vector<14x128xf32> to vector<1x14x128xf32>
    tpu.vector_store %arg21[%c0_355, %c0_356, %c0_357], %368 {strides = array<i32>} : memref<2x14x128xf32, #tpu.memory_space<vmem>>, vector<1x14x128xf32>,
    %cst_358 = arith.constant 0.000000e+00 : f32
    %369 = vector.broadcast %cst_358 : f32 to vector<14x128xf32>
    %c1_359 = arith.constant 1 : index
    %c6_360 = arith.constant 6 : index
    %c0_361 = arith.constant 0 : index
    %370 = vector.load %arg20[%c1_359, %c6_360, %c0_361] : memref<2x23x64xf32, #tpu.memory_space<vmem>>, vector<1x14x64xf32>
    %371 = vector.shape_cast %370 : vector<1x14x64xf32> to vector<14x64xf32>
    %c0_362 = arith.constant 0 : index
    %c0_363 = arith.constant 0 : index
    %c0_364 = arith.constant 0 : index
    %372 = vector.load %arg8[%c0_362, %c0_363, %c0_364] : memref<4x64x128xf32, #tpu.memory_space<vmem>>, vector<1x64x128xf32>
    %373 = vector.shape_cast %372 : vector<1x64x128xf32> to vector<64x128xf32>
    %cst_365 = arith.constant dense<0.000000e+00> : vector<14x128xf32>
    %374 = tpu.matmul %371, %373, %cst_365 {dimension_numbers = #tpu.dot_dimension_numbers<[1], [0], [0], [1], [0, 0, 1, 1], [], []>} : vector<14x64xf32>, vector<64x128xf32>, vector<14x128xf32> -> vector<14x128xf32>
    %375 = arith.addf %369, %374 : vector<14x128xf32>
    %c1_366 = arith.constant 1 : index
    %c7_367 = arith.constant 7 : index
    %c0_368 = arith.constant 0 : index
    %376 = vector.load %arg20[%c1_366, %c7_367, %c0_368] : memref<2x23x64xf32, #tpu.memory_space<vmem>>, vector<1x14x64xf32>
    %377 = vector.shape_cast %376 : vector<1x14x64xf32> to vector<14x64xf32>
    %c1_369 = arith.constant 1 : index
    %c0_370 = arith.constant 0 : index
    %c0_371 = arith.constant 0 : index
    %378 = vector.load %arg8[%c1_369, %c0_370, %c0_371] : memref<4x64x128xf32, #tpu.memory_space<vmem>>, vector<1x64x128xf32>
    %379 = vector.shape_cast %378 : vector<1x64x128xf32> to vector<64x128xf32>
    %cst_372 = arith.constant dense<0.000000e+00> : vector<14x128xf32>
    %380 = tpu.matmul %377, %379, %cst_372 {dimension_numbers = #tpu.dot_dimension_numbers<[1], [0], [0], [1], [0, 0, 1, 1], [], []>} : vector<14x64xf32>, vector<64x128xf32>, vector<14x128xf32> -> vector<14x128xf32>
    %381 = arith.addf %375, %380 : vector<14x128xf32>
    %c1_373 = arith.constant 1 : index
    %c8_374 = arith.constant 8 : index
    %c0_375 = arith.constant 0 : index
    %382 = vector.load %arg20[%c1_373, %c8_374, %c0_375] : memref<2x23x64xf32, #tpu.memory_space<vmem>>, vector<1x14x64xf32>
    %383 = vector.shape_cast %382 : vector<1x14x64xf32> to vector<14x64xf32>
    %c2_376 = arith.constant 2 : index
    %c0_377 = arith.constant 0 : index
    %c0_378 = arith.constant 0 : index
    %384 = vector.load %arg8[%c2_376, %c0_377, %c0_378] : memref<4x64x128xf32, #tpu.memory_space<vmem>>, vector<1x64x128xf32>
    %385 = vector.shape_cast %384 : vector<1x64x128xf32> to vector<64x128xf32>
    %cst_379 = arith.constant dense<0.000000e+00> : vector<14x128xf32>
    %386 = tpu.matmul %383, %385, %cst_379 {dimension_numbers = #tpu.dot_dimension_numbers<[1], [0], [0], [1], [0, 0, 1, 1], [], []>} : vector<14x64xf32>, vector<64x128xf32>, vector<14x128xf32> -> vector<14x128xf32>
    %387 = arith.addf %381, %386 : vector<14x128xf32>
    %c1_380 = arith.constant 1 : index
    %c9_381 = arith.constant 9 : index
    %c0_382 = arith.constant 0 : index
    %388 = vector.load %arg20[%c1_380, %c9_381, %c0_382] : memref<2x23x64xf32, #tpu.memory_space<vmem>>, vector<1x14x64xf32>
    %389 = vector.shape_cast %388 : vector<1x14x64xf32> to vector<14x64xf32>
    %c3_383 = arith.constant 3 : index
    %c0_384 = arith.constant 0 : index
    %c0_385 = arith.constant 0 : index
    %390 = vector.load %arg8[%c3_383, %c0_384, %c0_385] : memref<4x64x128xf32, #tpu.memory_space<vmem>>, vector<1x64x128xf32>
    %391 = vector.shape_cast %390 : vector<1x64x128xf32> to vector<64x128xf32>
    %cst_386 = arith.constant dense<0.000000e+00> : vector<14x128xf32>
    %392 = tpu.matmul %389, %391, %cst_386 {dimension_numbers = #tpu.dot_dimension_numbers<[1], [0], [0], [1], [0, 0, 1, 1], [], []>} : vector<14x64xf32>, vector<64x128xf32>, vector<14x128xf32> -> vector<14x128xf32>
    %393 = arith.addf %387, %392 : vector<14x128xf32>
    %c0_387 = arith.constant 0 : index
    %c0_388 = arith.constant 0 : index
    %394 = vector.load %arg9[%c0_387, %c0_388] : memref<1x128xf32, #tpu.memory_space<vmem>>, vector<1x128xf32>
    %395 = vector.broadcast %394 : vector<1x128xf32> to vector<14x128xf32>
    %396 = arith.addf %393, %395 : vector<14x128xf32>
    %cst_389 = arith.constant 0.000000e+00 : f32
    %397 = vector.broadcast %cst_389 : f32 to vector<14x128xf32>
    %398 = arith.cmpf ogt, %396, %397 : vector<14x128xf32>
    %cst_390 = arith.constant 0.00999999977 : f32
    %399 = vector.broadcast %cst_390 : f32 to vector<14x128xf32>
    %400 = arith.mulf %399, %396 : vector<14x128xf32>
    %401 = arith.select %398, %396, %400 : vector<14x128xi1>, vector<14x128xf32>
    %c1_391 = arith.constant 1 : index
    %c0_392 = arith.constant 0 : index
    %c0_393 = arith.constant 0 : index
    %402 = vector.load %arg21[%c1_391, %c0_392, %c0_393] : memref<2x14x128xf32, #tpu.memory_space<vmem>>, vector<1x14x128xf32>
    %403 = vector.shape_cast %402 : vector<1x14x128xf32> to vector<14x128xf32>
    %404 = vector.shape_cast %401 : vector<14x128xf32> to vector<1x14x128xf32>
    tpu.vector_store %arg21[%c1_391, %c0_392, %c0_393], %404 {strides = array<i32>} : memref<2x14x128xf32, #tpu.memory_space<vmem>>, vector<1x14x128xf32>,
    %cst_394 = arith.constant 0.000000e+00 : f32
    %405 = vector.broadcast %cst_394 : f32 to vector<12x128xf32>
    %c0_395 = arith.constant 0 : index
    %c0_396 = arith.constant 0 : index
    %c0_397 = arith.constant 0 : index
    %406 = vector.load %arg21[%c0_395, %c0_396, %c0_397] : memref<2x14x128xf32, #tpu.memory_space<vmem>>, vector<1x12x128xf32>
    %407 = vector.shape_cast %406 : vector<1x12x128xf32> to vector<12x128xf32>
    %c0_398 = arith.constant 0 : index
    %c0_399 = arith.constant 0 : index
    %c0_400 = arith.constant 0 : index
    %408 = vector.load %arg10[%c0_398, %c0_399, %c0_400] : memref<3x128x128xf32, #tpu.memory_space<vmem>>, vector<1x128x128xf32>
    %409 = vector.shape_cast %408 : vector<1x128x128xf32> to vector<128x128xf32>
    %cst_401 = arith.constant dense<0.000000e+00> : vector<12x128xf32>
    %410 = tpu.matmul %407, %409, %cst_401 {dimension_numbers = #tpu.dot_dimension_numbers<[1], [0], [0], [1], [0, 0, 1, 1], [], []>} : vector<12x128xf32>, vector<128x128xf32>, vector<12x128xf32> -> vector<12x128xf32>
    %411 = arith.addf %405, %410 : vector<12x128xf32>
    %c0_402 = arith.constant 0 : index
    %c1_403 = arith.constant 1 : index
    %c0_404 = arith.constant 0 : index
    %412 = vector.load %arg21[%c0_402, %c1_403, %c0_404] : memref<2x14x128xf32, #tpu.memory_space<vmem>>, vector<1x12x128xf32>
    %413 = vector.shape_cast %412 : vector<1x12x128xf32> to vector<12x128xf32>
    %c1_405 = arith.constant 1 : index
    %c0_406 = arith.constant 0 : index
    %c0_407 = arith.constant 0 : index
    %414 = vector.load %arg10[%c1_405, %c0_406, %c0_407] : memref<3x128x128xf32, #tpu.memory_space<vmem>>, vector<1x128x128xf32>
    %415 = vector.shape_cast %414 : vector<1x128x128xf32> to vector<128x128xf32>
    %cst_408 = arith.constant dense<0.000000e+00> : vector<12x128xf32>
    %416 = tpu.matmul %413, %415, %cst_408 {dimension_numbers = #tpu.dot_dimension_numbers<[1], [0], [0], [1], [0, 0, 1, 1], [], []>} : vector<12x128xf32>, vector<128x128xf32>, vector<12x128xf32> -> vector<12x128xf32>
    %417 = arith.addf %411, %416 : vector<12x128xf32>
    %c0_409 = arith.constant 0 : index
    %c2_410 = arith.constant 2 : index
    %c0_411 = arith.constant 0 : index
    %418 = vector.load %arg21[%c0_409, %c2_410, %c0_411] : memref<2x14x128xf32, #tpu.memory_space<vmem>>, vector<1x12x128xf32>
    %419 = vector.shape_cast %418 : vector<1x12x128xf32> to vector<12x128xf32>
    %c2_412 = arith.constant 2 : index
    %c0_413 = arith.constant 0 : index
    %c0_414 = arith.constant 0 : index
    %420 = vector.load %arg10[%c2_412, %c0_413, %c0_414] : memref<3x128x128xf32, #tpu.memory_space<vmem>>, vector<1x128x128xf32>
    %421 = vector.shape_cast %420 : vector<1x128x128xf32> to vector<128x128xf32>
    %cst_415 = arith.constant dense<0.000000e+00> : vector<12x128xf32>
    %422 = tpu.matmul %419, %421, %cst_415 {dimension_numbers = #tpu.dot_dimension_numbers<[1], [0], [0], [1], [0, 0, 1, 1], [], []>} : vector<12x128xf32>, vector<128x128xf32>, vector<12x128xf32> -> vector<12x128xf32>
    %423 = arith.addf %417, %422 : vector<12x128xf32>
    %c0_416 = arith.constant 0 : index
    %c0_417 = arith.constant 0 : index
    %424 = vector.load %arg11[%c0_416, %c0_417] : memref<1x128xf32, #tpu.memory_space<vmem>>, vector<1x128xf32>
    %425 = vector.broadcast %424 : vector<1x128xf32> to vector<12x128xf32>
    %426 = arith.addf %423, %425 : vector<12x128xf32>
    %cst_418 = arith.constant 0.000000e+00 : f32
    %427 = vector.broadcast %cst_418 : f32 to vector<12x128xf32>
    %428 = arith.cmpf ogt, %426, %427 : vector<12x128xf32>
    %cst_419 = arith.constant 0.00999999977 : f32
    %429 = vector.broadcast %cst_419 : f32 to vector<12x128xf32>
    %430 = arith.mulf %429, %426 : vector<12x128xf32>
    %431 = arith.select %428, %426, %430 : vector<12x128xi1>, vector<12x128xf32>
    %c0_420 = arith.constant 0 : index
    %c0_421 = arith.constant 0 : index
    %c0_422 = arith.constant 0 : index
    %432 = vector.load %arg25[%c0_420, %c0_421, %c0_422] : memref<1x12x128xf32, #tpu.memory_space<vmem>>, vector<1x12x128xf32>
    %433 = vector.shape_cast %432 : vector<1x12x128xf32> to vector<12x128xf32>
    %434 = vector.shape_cast %431 : vector<12x128xf32> to vector<1x12x128xf32>
    tpu.vector_store %arg25[%c0_420, %c0_421, %c0_422], %434 {strides = array<i32>} : memref<1x12x128xf32, #tpu.memory_space<vmem>>, vector<1x12x128xf32>,
    %c0_423 = arith.constant 0 : index
    %c0_424 = arith.constant 0 : index
    %c0_425 = arith.constant 0 : index
    %435 = tpu.strided_load %arg25[%c0_423, %c0_424, %c0_425] {strides = array<i32: 1, 2, 1>} : memref<1x12x128xf32, #tpu.memory_space<vmem>>, vector<1x6x128xf32>
    %c0_426 = arith.constant 0 : index
    %c1_427 = arith.constant 1 : index
    %c0_428 = arith.constant 0 : index
    %436 = tpu.strided_load %arg25[%c0_426, %c1_427, %c0_428] {strides = array<i32: 1, 2, 1>} : memref<1x12x128xf32, #tpu.memory_space<vmem>>, vector<1x6x128xf32>
    %437 = arith.maximumf %435, %436 : vector<1x6x128xf32>
    %c0_429 = arith.constant 0 : index
    %c8_430 = arith.constant 8 : index
    %c0_431 = arith.constant 0 : index
    %438 = vector.load %arg22[%c0_429, %c8_430, %c0_431] : memref<2x15x128xf32, #tpu.memory_space<vmem>>, vector<1x6x128xf32>
    tpu.vector_store %arg22[%c0_429, %c8_430, %c0_431], %437 {strides = array<i32>} : memref<2x15x128xf32, #tpu.memory_space<vmem>>, vector<1x6x128xf32>,
    %cst_432 = arith.constant 0.000000e+00 : f32
    %439 = vector.broadcast %cst_432 : f32 to vector<12x128xf32>
    %c1_433 = arith.constant 1 : index
    %c0_434 = arith.constant 0 : index
    %c0_435 = arith.constant 0 : index
    %440 = vector.load %arg21[%c1_433, %c0_434, %c0_435] : memref<2x14x128xf32, #tpu.memory_space<vmem>>, vector<1x12x128xf32>
    %441 = vector.shape_cast %440 : vector<1x12x128xf32> to vector<12x128xf32>
    %c0_436 = arith.constant 0 : index
    %c0_437 = arith.constant 0 : index
    %c0_438 = arith.constant 0 : index
    %442 = vector.load %arg10[%c0_436, %c0_437, %c0_438] : memref<3x128x128xf32, #tpu.memory_space<vmem>>, vector<1x128x128xf32>
    %443 = vector.shape_cast %442 : vector<1x128x128xf32> to vector<128x128xf32>
    %cst_439 = arith.constant dense<0.000000e+00> : vector<12x128xf32>
    %444 = tpu.matmul %441, %443, %cst_439 {dimension_numbers = #tpu.dot_dimension_numbers<[1], [0], [0], [1], [0, 0, 1, 1], [], []>} : vector<12x128xf32>, vector<128x128xf32>, vector<12x128xf32> -> vector<12x128xf32>
    %445 = arith.addf %439, %444 : vector<12x128xf32>
    %c1_440 = arith.constant 1 : index
    %c1_441 = arith.constant 1 : index
    %c0_442 = arith.constant 0 : index
    %446 = vector.load %arg21[%c1_440, %c1_441, %c0_442] : memref<2x14x128xf32, #tpu.memory_space<vmem>>, vector<1x12x128xf32>
    %447 = vector.shape_cast %446 : vector<1x12x128xf32> to vector<12x128xf32>
    %c1_443 = arith.constant 1 : index
    %c0_444 = arith.constant 0 : index
    %c0_445 = arith.constant 0 : index
    %448 = vector.load %arg10[%c1_443, %c0_444, %c0_445] : memref<3x128x128xf32, #tpu.memory_space<vmem>>, vector<1x128x128xf32>
    %449 = vector.shape_cast %448 : vector<1x128x128xf32> to vector<128x128xf32>
    %cst_446 = arith.constant dense<0.000000e+00> : vector<12x128xf32>
    %450 = tpu.matmul %447, %449, %cst_446 {dimension_numbers = #tpu.dot_dimension_numbers<[1], [0], [0], [1], [0, 0, 1, 1], [], []>} : vector<12x128xf32>, vector<128x128xf32>, vector<12x128xf32> -> vector<12x128xf32>
    %451 = arith.addf %445, %450 : vector<12x128xf32>
    %c1_447 = arith.constant 1 : index
    %c2_448 = arith.constant 2 : index
    %c0_449 = arith.constant 0 : index
    %452 = vector.load %arg21[%c1_447, %c2_448, %c0_449] : memref<2x14x128xf32, #tpu.memory_space<vmem>>, vector<1x12x128xf32>
    %453 = vector.shape_cast %452 : vector<1x12x128xf32> to vector<12x128xf32>
    %c2_450 = arith.constant 2 : index
    %c0_451 = arith.constant 0 : index
    %c0_452 = arith.constant 0 : index
    %454 = vector.load %arg10[%c2_450, %c0_451, %c0_452] : memref<3x128x128xf32, #tpu.memory_space<vmem>>, vector<1x128x128xf32>
    %455 = vector.shape_cast %454 : vector<1x128x128xf32> to vector<128x128xf32>
    %cst_453 = arith.constant dense<0.000000e+00> : vector<12x128xf32>
    %456 = tpu.matmul %453, %455, %cst_453 {dimension_numbers = #tpu.dot_dimension_numbers<[1], [0], [0], [1], [0, 0, 1, 1], [], []>} : vector<12x128xf32>, vector<128x128xf32>, vector<12x128xf32> -> vector<12x128xf32>
    %457 = arith.addf %451, %456 : vector<12x128xf32>
    %c0_454 = arith.constant 0 : index
    %c0_455 = arith.constant 0 : index
    %458 = vector.load %arg11[%c0_454, %c0_455] : memref<1x128xf32, #tpu.memory_space<vmem>>, vector<1x128xf32>
    %459 = vector.broadcast %458 : vector<1x128xf32> to vector<12x128xf32>
    %460 = arith.addf %457, %459 : vector<12x128xf32>
    %cst_456 = arith.constant 0.000000e+00 : f32
    %461 = vector.broadcast %cst_456 : f32 to vector<12x128xf32>
    %462 = arith.cmpf ogt, %460, %461 : vector<12x128xf32>
    %cst_457 = arith.constant 0.00999999977 : f32
    %463 = vector.broadcast %cst_457 : f32 to vector<12x128xf32>
    %464 = arith.mulf %463, %460 : vector<12x128xf32>
    %465 = arith.select %462, %460, %464 : vector<12x128xi1>, vector<12x128xf32>
    %c0_458 = arith.constant 0 : index
    %c0_459 = arith.constant 0 : index
    %c0_460 = arith.constant 0 : index
    %466 = vector.load %arg25[%c0_458, %c0_459, %c0_460] : memref<1x12x128xf32, #tpu.memory_space<vmem>>, vector<1x12x128xf32>
    %467 = vector.shape_cast %466 : vector<1x12x128xf32> to vector<12x128xf32>
    %468 = vector.shape_cast %465 : vector<12x128xf32> to vector<1x12x128xf32>
    tpu.vector_store %arg25[%c0_458, %c0_459, %c0_460], %468 {strides = array<i32>} : memref<1x12x128xf32, #tpu.memory_space<vmem>>, vector<1x12x128xf32>,
    %c0_461 = arith.constant 0 : index
    %c0_462 = arith.constant 0 : index
    %c0_463 = arith.constant 0 : index
    %469 = tpu.strided_load %arg25[%c0_461, %c0_462, %c0_463] {strides = array<i32: 1, 2, 1>} : memref<1x12x128xf32, #tpu.memory_space<vmem>>, vector<1x6x128xf32>
    %c0_464 = arith.constant 0 : index
    %c1_465 = arith.constant 1 : index
    %c0_466 = arith.constant 0 : index
    %470 = tpu.strided_load %arg25[%c0_464, %c1_465, %c0_466] {strides = array<i32: 1, 2, 1>} : memref<1x12x128xf32, #tpu.memory_space<vmem>>, vector<1x6x128xf32>
    %471 = arith.maximumf %469, %470 : vector<1x6x128xf32>
    %c1_467 = arith.constant 1 : index
    %c8_468 = arith.constant 8 : index
    %c0_469 = arith.constant 0 : index
    %472 = vector.load %arg22[%c1_467, %c8_468, %c0_469] : memref<2x15x128xf32, #tpu.memory_space<vmem>>, vector<1x6x128xf32>
    tpu.vector_store %arg22[%c1_467, %c8_468, %c0_469], %471 {strides = array<i32>} : memref<2x15x128xf32, #tpu.memory_space<vmem>>, vector<1x6x128xf32>,
    %cst_470 = arith.constant 0.000000e+00 : f32
    %473 = vector.broadcast %cst_470 : f32 to vector<6x256xf32>
    %c0_471 = arith.constant 0 : index
    %c7_472 = arith.constant 7 : index
    %c0_473 = arith.constant 0 : index
    %474 = vector.load %arg22[%c0_471, %c7_472, %c0_473] : memref<2x15x128xf32, #tpu.memory_space<vmem>>, vector<1x6x128xf32>
    %475 = vector.shape_cast %474 : vector<1x6x128xf32> to vector<6x128xf32>
    %c0_474 = arith.constant 0 : index
    %c0_475 = arith.constant 0 : index
    %c0_476 = arith.constant 0 : index
    %476 = vector.load %arg12[%c0_474, %c0_475, %c0_476] : memref<3x128x256xf32, #tpu.memory_space<vmem>>, vector<1x128x256xf32>
    %477 = vector.shape_cast %476 : vector<1x128x256xf32> to vector<128x256xf32>
    %cst_477 = arith.constant dense<0.000000e+00> : vector<6x256xf32>
    %478 = tpu.matmul %475, %477, %cst_477 {dimension_numbers = #tpu.dot_dimension_numbers<[1], [0], [0], [1], [0, 0, 1, 1], [], []>} : vector<6x128xf32>, vector<128x256xf32>, vector<6x256xf32> -> vector<6x256xf32>
    %479 = arith.addf %473, %478 : vector<6x256xf32>
    %c0_478 = arith.constant 0 : index
    %c8_479 = arith.constant 8 : index
    %c0_480 = arith.constant 0 : index
    %480 = vector.load %arg22[%c0_478, %c8_479, %c0_480] : memref<2x15x128xf32, #tpu.memory_space<vmem>>, vector<1x6x128xf32>
    %481 = vector.shape_cast %480 : vector<1x6x128xf32> to vector<6x128xf32>
    %c1_481 = arith.constant 1 : index
    %c0_482 = arith.constant 0 : index
    %c0_483 = arith.constant 0 : index
    %482 = vector.load %arg12[%c1_481, %c0_482, %c0_483] : memref<3x128x256xf32, #tpu.memory_space<vmem>>, vector<1x128x256xf32>
    %483 = vector.shape_cast %482 : vector<1x128x256xf32> to vector<128x256xf32>
    %cst_484 = arith.constant dense<0.000000e+00> : vector<6x256xf32>
    %484 = tpu.matmul %481, %483, %cst_484 {dimension_numbers = #tpu.dot_dimension_numbers<[1], [0], [0], [1], [0, 0, 1, 1], [], []>} : vector<6x128xf32>, vector<128x256xf32>, vector<6x256xf32> -> vector<6x256xf32>
    %485 = arith.addf %479, %484 : vector<6x256xf32>
    %c0_485 = arith.constant 0 : index
    %c9_486 = arith.constant 9 : index
    %c0_487 = arith.constant 0 : index
    %486 = vector.load %arg22[%c0_485, %c9_486, %c0_487] : memref<2x15x128xf32, #tpu.memory_space<vmem>>, vector<1x6x128xf32>
    %487 = vector.shape_cast %486 : vector<1x6x128xf32> to vector<6x128xf32>
    %c2_488 = arith.constant 2 : index
    %c0_489 = arith.constant 0 : index
    %c0_490 = arith.constant 0 : index
    %488 = vector.load %arg12[%c2_488, %c0_489, %c0_490] : memref<3x128x256xf32, #tpu.memory_space<vmem>>, vector<1x128x256xf32>
    %489 = vector.shape_cast %488 : vector<1x128x256xf32> to vector<128x256xf32>
    %cst_491 = arith.constant dense<0.000000e+00> : vector<6x256xf32>
    %490 = tpu.matmul %487, %489, %cst_491 {dimension_numbers = #tpu.dot_dimension_numbers<[1], [0], [0], [1], [0, 0, 1, 1], [], []>} : vector<6x128xf32>, vector<128x256xf32>, vector<6x256xf32> -> vector<6x256xf32>
    %491 = arith.addf %485, %490 : vector<6x256xf32>
    %c0_492 = arith.constant 0 : index
    %c0_493 = arith.constant 0 : index
    %492 = vector.load %arg13[%c0_492, %c0_493] : memref<1x256xf32, #tpu.memory_space<vmem>>, vector<1x256xf32>
    %493 = vector.broadcast %492 : vector<1x256xf32> to vector<6x256xf32>
    %494 = arith.addf %491, %493 : vector<6x256xf32>
    %cst_494 = arith.constant 0.000000e+00 : f32
    %495 = vector.broadcast %cst_494 : f32 to vector<6x256xf32>
    %496 = arith.cmpf ogt, %494, %495 : vector<6x256xf32>
    %cst_495 = arith.constant 0.00999999977 : f32
    %497 = vector.broadcast %cst_495 : f32 to vector<6x256xf32>
    %498 = arith.mulf %497, %494 : vector<6x256xf32>
    %499 = arith.select %496, %494, %498 : vector<6x256xi1>, vector<6x256xf32>
    %c0_496 = arith.constant 0 : index
    %c0_497 = arith.constant 0 : index
    %500 = vector.load %arg26[%c0_496, %c0_497] : memref<6x256xf32, #tpu.memory_space<vmem>>, vector<6x256xf32>
    tpu.vector_store %arg26[%c0_496, %c0_497], %499 {strides = array<i32>} : memref<6x256xf32, #tpu.memory_space<vmem>>, vector<6x256xf32>,
    %c0_498 = arith.constant 0 : index
    %c0_499 = arith.constant 0 : index
    %501 = vector.load %arg26[%c0_498, %c0_499] : memref<6x256xf32, #tpu.memory_space<vmem>>, vector<1x256xf32>
    %c1_500 = arith.constant 1 : index
    %c0_501 = arith.constant 0 : index
    %502 = vector.load %arg26[%c1_500, %c0_501] : memref<6x256xf32, #tpu.memory_space<vmem>>, vector<1x256xf32>
    %c2_502 = arith.constant 2 : index
    %c0_503 = arith.constant 0 : index
    %503 = vector.load %arg26[%c2_502, %c0_503] : memref<6x256xf32, #tpu.memory_space<vmem>>, vector<1x256xf32>
    %c3_504 = arith.constant 3 : index
    %c0_505 = arith.constant 0 : index
    %504 = vector.load %arg26[%c3_504, %c0_505] : memref<6x256xf32, #tpu.memory_space<vmem>>, vector<1x256xf32>
    %c4_506 = arith.constant 4 : index
    %c0_507 = arith.constant 0 : index
    %505 = vector.load %arg26[%c4_506, %c0_507] : memref<6x256xf32, #tpu.memory_space<vmem>>, vector<1x256xf32>
    %c5_508 = arith.constant 5 : index
    %c0_509 = arith.constant 0 : index
    %506 = vector.load %arg26[%c5_508, %c0_509] : memref<6x256xf32, #tpu.memory_space<vmem>>, vector<1x256xf32>
    %cst_510 = arith.constant 0.000000e+00 : f32
    %507 = vector.broadcast %cst_510 : f32 to vector<6x256xf32>
    %c1_511 = arith.constant 1 : index
    %c7_512 = arith.constant 7 : index
    %c0_513 = arith.constant 0 : index
    %508 = vector.load %arg22[%c1_511, %c7_512, %c0_513] : memref<2x15x128xf32, #tpu.memory_space<vmem>>, vector<1x6x128xf32>
    %509 = vector.shape_cast %508 : vector<1x6x128xf32> to vector<6x128xf32>
    %c0_514 = arith.constant 0 : index
    %c0_515 = arith.constant 0 : index
    %c0_516 = arith.constant 0 : index
    %510 = vector.load %arg12[%c0_514, %c0_515, %c0_516] : memref<3x128x256xf32, #tpu.memory_space<vmem>>, vector<1x128x256xf32>
    %511 = vector.shape_cast %510 : vector<1x128x256xf32> to vector<128x256xf32>
    %cst_517 = arith.constant dense<0.000000e+00> : vector<6x256xf32>
    %512 = tpu.matmul %509, %511, %cst_517 {dimension_numbers = #tpu.dot_dimension_numbers<[1], [0], [0], [1], [0, 0, 1, 1], [], []>} : vector<6x128xf32>, vector<128x256xf32>, vector<6x256xf32> -> vector<6x256xf32>
    %513 = arith.addf %507, %512 : vector<6x256xf32>
    %c1_518 = arith.constant 1 : index
    %c8_519 = arith.constant 8 : index
    %c0_520 = arith.constant 0 : index
    %514 = vector.load %arg22[%c1_518, %c8_519, %c0_520] : memref<2x15x128xf32, #tpu.memory_space<vmem>>, vector<1x6x128xf32>
    %515 = vector.shape_cast %514 : vector<1x6x128xf32> to vector<6x128xf32>
    %c1_521 = arith.constant 1 : index
    %c0_522 = arith.constant 0 : index
    %c0_523 = arith.constant 0 : index
    %516 = vector.load %arg12[%c1_521, %c0_522, %c0_523] : memref<3x128x256xf32, #tpu.memory_space<vmem>>, vector<1x128x256xf32>
    %517 = vector.shape_cast %516 : vector<1x128x256xf32> to vector<128x256xf32>
    %cst_524 = arith.constant dense<0.000000e+00> : vector<6x256xf32>
    %518 = tpu.matmul %515, %517, %cst_524 {dimension_numbers = #tpu.dot_dimension_numbers<[1], [0], [0], [1], [0, 0, 1, 1], [], []>} : vector<6x128xf32>, vector<128x256xf32>, vector<6x256xf32> -> vector<6x256xf32>
    %519 = arith.addf %513, %518 : vector<6x256xf32>
    %c1_525 = arith.constant 1 : index
    %c9_526 = arith.constant 9 : index
    %c0_527 = arith.constant 0 : index
    %520 = vector.load %arg22[%c1_525, %c9_526, %c0_527] : memref<2x15x128xf32, #tpu.memory_space<vmem>>, vector<1x6x128xf32>
    %521 = vector.shape_cast %520 : vector<1x6x128xf32> to vector<6x128xf32>
    %c2_528 = arith.constant 2 : index
    %c0_529 = arith.constant 0 : index
    %c0_530 = arith.constant 0 : index
    %522 = vector.load %arg12[%c2_528, %c0_529, %c0_530] : memref<3x128x256xf32, #tpu.memory_space<vmem>>, vector<1x128x256xf32>
    %523 = vector.shape_cast %522 : vector<1x128x256xf32> to vector<128x256xf32>
    %cst_531 = arith.constant dense<0.000000e+00> : vector<6x256xf32>
    %524 = tpu.matmul %521, %523, %cst_531 {dimension_numbers = #tpu.dot_dimension_numbers<[1], [0], [0], [1], [0, 0, 1, 1], [], []>} : vector<6x128xf32>, vector<128x256xf32>, vector<6x256xf32> -> vector<6x256xf32>
    %525 = arith.addf %519, %524 : vector<6x256xf32>
    %c0_532 = arith.constant 0 : index
    %c0_533 = arith.constant 0 : index
    %526 = vector.load %arg13[%c0_532, %c0_533] : memref<1x256xf32, #tpu.memory_space<vmem>>, vector<1x256xf32>
    %527 = vector.broadcast %526 : vector<1x256xf32> to vector<6x256xf32>
    %528 = arith.addf %525, %527 : vector<6x256xf32>
    %cst_534 = arith.constant 0.000000e+00 : f32
    %529 = vector.broadcast %cst_534 : f32 to vector<6x256xf32>
    %530 = arith.cmpf ogt, %528, %529 : vector<6x256xf32>
    %cst_535 = arith.constant 0.00999999977 : f32
    %531 = vector.broadcast %cst_535 : f32 to vector<6x256xf32>
    %532 = arith.mulf %531, %528 : vector<6x256xf32>
    %533 = arith.select %530, %528, %532 : vector<6x256xi1>, vector<6x256xf32>
    %c0_536 = arith.constant 0 : index
    %c0_537 = arith.constant 0 : index
    %534 = vector.load %arg26[%c0_536, %c0_537] : memref<6x256xf32, #tpu.memory_space<vmem>>, vector<6x256xf32>
    tpu.vector_store %arg26[%c0_536, %c0_537], %533 {strides = array<i32>} : memref<6x256xf32, #tpu.memory_space<vmem>>, vector<6x256xf32>,
    %c0_538 = arith.constant 0 : index
    %c0_539 = arith.constant 0 : index
    %535 = vector.load %arg26[%c0_538, %c0_539] : memref<6x256xf32, #tpu.memory_space<vmem>>, vector<1x256xf32>
    %c1_540 = arith.constant 1 : index
    %c0_541 = arith.constant 0 : index
    %536 = vector.load %arg26[%c1_540, %c0_541] : memref<6x256xf32, #tpu.memory_space<vmem>>, vector<1x256xf32>
    %c2_542 = arith.constant 2 : index
    %c0_543 = arith.constant 0 : index
    %537 = vector.load %arg26[%c2_542, %c0_543] : memref<6x256xf32, #tpu.memory_space<vmem>>, vector<1x256xf32>
    %c3_544 = arith.constant 3 : index
    %c0_545 = arith.constant 0 : index
    %538 = vector.load %arg26[%c3_544, %c0_545] : memref<6x256xf32, #tpu.memory_space<vmem>>, vector<1x256xf32>
    %c4_546 = arith.constant 4 : index
    %c0_547 = arith.constant 0 : index
    %539 = vector.load %arg26[%c4_546, %c0_547] : memref<6x256xf32, #tpu.memory_space<vmem>>, vector<1x256xf32>
    %c5_548 = arith.constant 5 : index
    %c0_549 = arith.constant 0 : index
    %540 = vector.load %arg26[%c5_548, %c0_549] : memref<6x256xf32, #tpu.memory_space<vmem>>, vector<1x256xf32>
    %541 = tpu.concatenate %501, %502, %503, %504, %505, %506, %535, %536, %537, %538, %539, %540 in 1 : vector<1x256xf32>, vector<1x256xf32>, vector<1x256xf32>, vector<1x256xf32>, vector<1x256xf32>, vector<1x256xf32>, vector<1x256xf32>, vector<1x256xf32>, vector<1x256xf32>, vector<1x256xf32>, vector<1x256xf32>, vector<1x256xf32> -> vector<1x3072xf32>
    %c0_550 = arith.constant 0 : index
    %c0_551 = arith.constant 0 : index
    %542 = vector.load %arg14[%c0_550, %c0_551] : memref<3072x48xf32, #tpu.memory_space<vmem>>, vector<3072x48xf32>
    %cst_552 = arith.constant dense<0.000000e+00> : vector<1x48xf32>
    %543 = tpu.matmul %541, %542, %cst_552 {dimension_numbers = #tpu.dot_dimension_numbers<[1], [0], [0], [1], [0, 0, 1, 1], [], []>} : vector<1x3072xf32>, vector<3072x48xf32>, vector<1x48xf32> -> vector<1x48xf32>
    %c0_553 = arith.constant 0 : index
    %c0_554 = arith.constant 0 : index
    %544 = vector.load %arg15[%c0_553, %c0_554] : memref<1x48xf32, #tpu.memory_space<vmem>>, vector<1x48xf32>
    %545 = arith.addf %543, %544 : vector<1x48xf32>
    %c0_555 = arith.constant 0 : index
    %c0_556 = arith.constant 0 : index
    %c0_557 = arith.constant 0 : index
    %546 = vector.load %arg16[%c0_555, %c0_556, %c0_557] : memref<1x1x48xf32, #tpu.memory_space<vmem>>, vector<1x1x48xf32>
    %547 = vector.shape_cast %546 : vector<1x1x48xf32> to vector<1x48xf32>
    %548 = vector.shape_cast %545 : vector<1x48xf32> to vector<1x1x48xf32>
    tpu.vector_store %arg16[%c0_555, %c0_556, %c0_557], %548 {strides = array<i32>} : memref<1x1x48xf32, #tpu.memory_space<vmem>>, vector<1x1x48xf32>,
    return
  }
  func.func @transform_0(%arg0: i32) -> (i32, i32, i32, i32) {
    %c0_i32 = arith.constant 0 : i32
    %c0_i32_0 = arith.constant 0 : i32
    %c0_i32_1 = arith.constant 0 : i32
    %c0_i32_2 = arith.constant 0 : i32
    return %arg0, %c0_i32, %c0_i32_0, %c0_i32_1 : i32, i32, i32, i32
  }
  func.func @transform_1(%arg0: i32) -> (i32, i32, i32) {
    %c0_i32 = arith.constant 0 : i32
    %c0_i32_0 = arith.constant 0 : i32
    %c0_i32_1 = arith.constant 0 : i32
    %c0_i32_2 = arith.constant 0 : i32
    return %c0_i32, %c0_i32_0, %c0_i32_1 : i32, i32, i32
  }
  func.func @transform_2(%arg0: i32) -> (i32, i32) {
    %c0_i32 = arith.constant 0 : i32
    %c0_i32_0 = arith.constant 0 : i32
    %c0_i32_1 = arith.constant 0 : i32
    return %c0_i32, %c0_i32_0 : i32, i32
  }
  func.func @transform_3(%arg0: i32) -> (i32, i32, i32) {
    %c0_i32 = arith.constant 0 : i32
    %c0_i32_0 = arith.constant 0 : i32
    %c0_i32_1 = arith.constant 0 : i32
    %c0_i32_2 = arith.constant 0 : i32
    return %c0_i32, %c0_i32_0, %c0_i32_1 : i32, i32, i32
  }
  func.func @transform_4(%arg0: i32) -> (i32, i32) {
    %c0_i32 = arith.constant 0 : i32
    %c0_i32_0 = arith.constant 0 : i32
    %c0_i32_1 = arith.constant 0 : i32
    return %c0_i32, %c0_i32_0 : i32, i32
  }
  func.func @transform_5(%arg0: i32) -> (i32, i32, i32) {
    %c0_i32 = arith.constant 0 : i32
    %c0_i32_0 = arith.constant 0 : i32
    %c0_i32_1 = arith.constant 0 : i32
    %c0_i32_2 = arith.constant 0 : i32
    return %c0_i32, %c0_i32_0, %c0_i32_1 : i32, i32, i32
  }
  func.func @transform_6(%arg0: i32) -> (i32, i32) {
    %c0_i32 = arith.constant 0 : i32
    %c0_i32_0 = arith.constant 0 : i32
    %c0_i32_1 = arith.constant 0 : i32
    return %c0_i32, %c0_i32_0 : i32, i32
  }
  func.func @transform_7(%arg0: i32) -> (i32, i32, i32) {
    %c0_i32 = arith.constant 0 : i32
    %c0_i32_0 = arith.constant 0 : i32
    %c0_i32_1 = arith.constant 0 : i32
    %c0_i32_2 = arith.constant 0 : i32
    return %c0_i32, %c0_i32_0, %c0_i32_1 : i32, i32, i32
  }
  func.func @transform_8(%arg0: i32) -> (i32, i32) {
    %c0_i32 = arith.constant 0 : i32
    %c0_i32_0 = arith.constant 0 : i32
    %c0_i32_1 = arith.constant 0 : i32
    return %c0_i32, %c0_i32_0 : i32, i32
  }
  func.func @transform_9(%arg0: i32) -> (i32, i32, i32) {
    %c0_i32 = arith.constant 0 : i32
    %c0_i32_0 = arith.constant 0 : i32
    %c0_i32_1 = arith.constant 0 : i32
    %c0_i32_2 = arith.constant 0 : i32
    return %c0_i32, %c0_i32_0, %c0_i32_1 : i32, i32, i32
  }
  func.func @transform_10(%arg0: i32) -> (i32, i32) {
    %c0_i32 = arith.constant 0 : i32
    %c0_i32_0 = arith.constant 0 : i32
    %c0_i32_1 = arith.constant 0 : i32
    return %c0_i32, %c0_i32_0 : i32, i32
  }
  func.func @transform_11(%arg0: i32) -> (i32, i32, i32) {
    %c0_i32 = arith.constant 0 : i32
    %c0_i32_0 = arith.constant 0 : i32
    %c0_i32_1 = arith.constant 0 : i32
    %c0_i32_2 = arith.constant 0 : i32
    return %c0_i32, %c0_i32_0, %c0_i32_1 : i32, i32, i32
  }
  func.func @transform_12(%arg0: i32) -> (i32, i32) {
    %c0_i32 = arith.constant 0 : i32
    %c0_i32_0 = arith.constant 0 : i32
    %c0_i32_1 = arith.constant 0 : i32
    return %c0_i32, %c0_i32_0 : i32, i32
  }
  func.func @transform_13(%arg0: i32) -> (i32, i32) {
    %c0_i32 = arith.constant 0 : i32
    %c0_i32_0 = arith.constant 0 : i32
    %c0_i32_1 = arith.constant 0 : i32
    return %c0_i32, %c0_i32_0 : i32, i32
  }
  func.func @transform_14(%arg0: i32) -> (i32, i32) {
    %c0_i32 = arith.constant 0 : i32
    %c0_i32_0 = arith.constant 0 : i32
    %c0_i32_1 = arith.constant 0 : i32
    return %c0_i32, %c0_i32_0 : i32, i32
  }
  func.func @transform_15(%arg0: i32) -> (i32, i32, i32) {
    %c0_i32 = arith.constant 0 : i32
    %c0_i32_0 = arith.constant 0 : i32
    %c0_i32_1 = arith.constant 0 : i32
    return %arg0, %c0_i32, %c0_i32_0 : i32, i32, i32
  }
}

</mosaic_0001>

<llo_original>
// kernel: tpu_custom_call.1
$region0: #{tpu_custom_call.1}
  #allocation0 [shape = 'u32[]', space=smem, size = 0x4, offset = 0x4, fixed_abs, tag = 'smem constant byte address 0x4 - core index']
  #allocation1 [shape = 'u32[144,128]{1,0:T(1,128)}', space=vmem, size = 0x12000, scoped, tag = 'internal scratch']
  #allocation2 [shape = 'f32[2,59,1]{2,1,0:T(8,128)}', space=vmem, size = 0x10000, scoped, tag = 'scratch operand']
  #allocation3 [shape = 'f32[2,60,32]{2,1,0:T(8,128)}', space=vmem, size = 0x10000, scoped, tag = 'scratch operand']
  #allocation4 [shape = 'f32[2,36,32]{2,1,0:T(8,128)}', space=vmem, size = 0xa000, scoped, tag = 'scratch operand']
  #allocation5 [shape = 'f32[2,23,64]{2,1,0:T(8,128)}', space=vmem, size = 0x6000, scoped, tag = 'scratch operand']
  #allocation6 [shape = 'f32[2,14,128]{2,1,0:T(8,128)}', space=vmem, size = 0x4000, scoped, tag = 'scratch operand']
  #allocation7 [shape = 'f32[2,15,128]{2,1,0:T(8,128)}', space=vmem, size = 0x4000, scoped, tag = 'scratch operand']
  #allocation8 [shape = 'f32[1,52,32]{2,1,0:T(8,128)}', space=vmem, size = 0x7000, scoped, tag = 'scratch operand']
  #allocation9 [shape = 'f32[1,26,64]{2,1,0:T(8,128)}', space=vmem, size = 0x4000, scoped, tag = 'scratch operand']
  #allocation10 [shape = 'f32[1,12,128]{2,1,0:T(8,128)}', space=vmem, size = 0x2000, scoped, tag = 'scratch operand']
  #allocation11 [shape = 'f32[6,256]{1,0:T(8,128)}', space=vmem, size = 0x2000, scoped, tag = 'scratch operand']
  %s0 = inlined_call_operand.vmem [shape: f32[2,2,48,1], index: 0, kind: input, shape index: {}]
  %s1 = inlined_call_operand.vmem [shape: f32[7,1,32], index: 1, kind: input, shape index: {}]
  %s2 = inlined_call_operand.vmem [shape: f32[1,32], index: 2, kind: input, shape index: {}]
  %s3 = inlined_call_operand.vmem [shape: f32[5,32,32], index: 3, kind: input, shape index: {}]
  %s4 = inlined_call_operand.vmem [shape: f32[1,32], index: 4, kind: input, shape index: {}]
  %s5 = inlined_call_operand.vmem [shape: f32[5,32,64], index: 5, kind: input, shape index: {}]
  %s6 = inlined_call_operand.vmem [shape: f32[1,64], index: 6, kind: input, shape index: {}]
  %s7 = inlined_call_operand.vmem [shape: f32[4,64,128], index: 7, kind: input, shape index: {}]
  %s8 = inlined_call_operand.vmem [shape: f32[1,128], index: 8, kind: input, shape index: {}]
  %s9 = inlined_call_operand.vmem [shape: f32[3,128,128], index: 9, kind: input, shape index: {}]
  %s10 = inlined_call_operand.vmem [shape: f32[1,128], index: 10, kind: input, shape index: {}]
  %s11 = inlined_call_operand.vmem [shape: f32[3,128,256], index: 11, kind: input, shape index: {}]
  %s12 = inlined_call_operand.vmem [shape: f32[1,256], index: 12, kind: input, shape index: {}]
  %s13 = inlined_call_operand.vmem [shape: f32[3072,48], index: 13, kind: input, shape index: {}]
  %s14 = inlined_call_operand.vmem [shape: f32[1,48], index: 14, kind: input, shape index: {}]
  %s15 = inlined_call_operand.hbm [shape: f32[2,1,48], index: 15, kind: output, shape index: {}]
  %s16 = sld [smem:[#allocation0]]
  $region93: #{tpu_custom_call.1} parent=0
    _
  %s18 = ssub.s32 1, %s16
  %s19 = scalar_select 0, %s18, %s16
  $region1: #{tpu_custom_call.1} parent=0
    #allocation12 [shape = 'u8[1024]{0}', space=vmem, size = 0x400, scoped, tag = 'output window, operand 0']
    #allocation13 [shape = 's32[2]{0}', space=sflag, size = 0x8, scoped, tag = 'scoped memory for tpu_custom_call.1']
    %20 = vsyncpa [#allocation13], 0
    %s21 = scalar_lea.sflag [#allocation13], 1
    %22 = vsyncpa %s21, 0
    loop: start=0, step=1, limit=4
    $region2: #{tpu_custom_call.1} parent=1 // loop_pre_header
      _
    $region3: #{tpu_custom_call.1} parent=1 // loop_header
      %s24 = sphi 0, %s28
      %p25 = scmp.ge.s32.totalorder %s24, 4
      %s34 = sphi 0, %s36
      %s37 = sphi 0, %s34
      %s38 = sphi 0, %s37
      %s54 = sphi 0, %s38
      %s58 = sphi 0, %s58
      %s60 = sphi 0, %s58
      %s61 = sphi 0, %s60
      %s75 = sphi 0, %s61
      %s79 = sphi 0, %s79
      %s81 = sphi 0, %s79
      %s82 = sphi 0, %s81
      %s96 = sphi 0, %s82
      %s100 = sphi 0, %s100
      %s102 = sphi 0, %s100
      %s103 = sphi 0, %s102
      %s117 = sphi 0, %s103
      %s121 = sphi 0, %s121
      %s123 = sphi 0, %s121
      %s124 = sphi 0, %s123
      %s138 = sphi 0, %s124
      %s142 = sphi 0, %s142
      %s144 = sphi 0, %s142
      %s145 = sphi 0, %s144
      %s159 = sphi 0, %s145
      %s163 = sphi 0, %s163
      %s165 = sphi 0, %s163
      %s166 = sphi 0, %s165
      %s180 = sphi 0, %s166
      %s184 = sphi 0, %s184
      %s186 = sphi 0, %s184
      %s187 = sphi 0, %s186
      %s201 = sphi 0, %s187
      %s205 = sphi 0, %s205
      %s207 = sphi 0, %s205
      %s208 = sphi 0, %s207
      %s222 = sphi 0, %s208
      %s226 = sphi 0, %s226
      %s228 = sphi 0, %s226
      %s229 = sphi 0, %s228
      %s243 = sphi 0, %s229
      %s247 = sphi 0, %s247
      %s249 = sphi 0, %s247
      %s250 = sphi 0, %s249
      %s264 = sphi 0, %s250
      %s268 = sphi 0, %s268
      %s270 = sphi 0, %s268
      %s271 = sphi 0, %s270
      %s285 = sphi 0, %s271
      %s289 = sphi 0, %s289
      %s291 = sphi 0, %s289
      %s292 = sphi 0, %s291
      %s306 = sphi 0, %s292
      %s310 = sphi 0, %s310
      %s312 = sphi 0, %s310
      %s313 = sphi 0, %s312
      %s327 = sphi 0, %s313
      %s331 = sphi 0, %s331
      %s333 = sphi 0, %s331
      %s334 = sphi 0, %s333
      %s348 = sphi 0, %s334
      %s354 = sphi 0, %s356
      %s357 = sphi 0, %s354
      %s358 = sphi 0, %s357
      %s374 = sphi 0, %s358
    $region4: #{tpu_custom_call.1} parent=1 // loop_header_branch
      %27 = sbr.rel (%p25) target = $region8
    $region5: #{tpu_custom_call.1} parent=1 // loop_body
      %s29 = ssub.s32 %s24, 1
      %s30 = ssub.s32 %s24, 2
      %s31 = sadd.s32 %s24, 1
      %s32 = ssub.s32 %s24, %s31
      %p33 = scmp.eq.s32.totalorder %s32, 0
      %s35 = sadd.s32 %s34, 1
      %s36 = scalar_select %p33, %s34, %s35
      %p39 = pneg %p33
      %p40 = scmp.eq.s32.totalorder %s24, 1
      %p41 = por %p39, %p40
      %p42 = scmp.ne.s32.totalorder %s34, %s37
      %p43 = scmp.eq.s32.totalorder %s24, 0
      %p44 = por %p42, %p43
      %p45 = scmp.ne.s32.totalorder %s34, %s37
      %p46 = scmp.eq.s32.totalorder %s29, 1
      %p47 = por %p45, %p46
      %p48 = scmp.ne.s32.totalorder %s37, %s38
      %p49 = scmp.eq.s32.totalorder %s29, 0
      %p50 = por %p48, %p49
      %p51 = scmp.ne.s32.totalorder %s37, %s38
      %p52 = scmp.eq.s32.totalorder %s30, 1
      %p53 = por %p51, %p52
      %p55 = scmp.ne.s32.totalorder %s38, %s54
      %p56 = scmp.eq.s32.totalorder %s30, 0
      %p57 = por %p55, %p56
      %s59 = sadd.s32 %s58, 1
      %p62 = scmp.eq.s32.totalorder %s24, 1
      %p63 = scmp.ne.s32.totalorder %s58, %s60
      %p64 = scmp.eq.s32.totalorder %s24, 0
      %p65 = por %p63, %p64
      %p66 = scmp.ne.s32.totalorder %s58, %s60
      %p67 = scmp.eq.s32.totalorder %s29, 1
      %p68 = por %p66, %p67
      %p69 = scmp.ne.s32.totalorder %s60, %s61
      %p70 = scmp.eq.s32.totalorder %s29, 0
      %p71 = por %p69, %p70
      %p72 = scmp.ne.s32.totalorder %s60, %s61
      %p73 = scmp.eq.s32.totalorder %s30, 1
      %p74 = por %p72, %p73
      %p76 = scmp.ne.s32.totalorder %s61, %s75
      %p77 = scmp.eq.s32.totalorder %s30, 0
      %p78 = por %p76, %p77
      %s80 = sadd.s32 %s79, 1
      %p83 = scmp.eq.s32.totalorder %s24, 1
      %p84 = scmp.ne.s32.totalorder %s79, %s81
      %p85 = scmp.eq.s32.totalorder %s24, 0
      %p86 = por %p84, %p85
      %p87 = scmp.ne.s32.totalorder %s79, %s81
      %p88 = scmp.eq.s32.totalorder %s29, 1
      %p89 = por %p87, %p88
      %p90 = scmp.ne.s32.totalorder %s81, %s82
      %p91 = scmp.eq.s32.totalorder %s29, 0
      %p92 = por %p90, %p91
      %p93 = scmp.ne.s32.totalorder %s81, %s82
      %p94 = scmp.eq.s32.totalorder %s30, 1
      %p95 = por %p93, %p94
      %p97 = scmp.ne.s32.totalorder %s82, %s96
      %p98 = scmp.eq.s32.totalorder %s30, 0
      %p99 = por %p97, %p98
      %s101 = sadd.s32 %s100, 1
      %p104 = scmp.eq.s32.totalorder %s24, 1
      %p105 = scmp.ne.s32.totalorder %s100, %s102
      %p106 = scmp.eq.s32.totalorder %s24, 0
      %p107 = por %p105, %p106
      %p108 = scmp.ne.s32.totalorder %s100, %s102
      %p109 = scmp.eq.s32.totalorder %s29, 1
      %p110 = por %p108, %p109
      %p111 = scmp.ne.s32.totalorder %s102, %s103
      %p112 = scmp.eq.s32.totalorder %s29, 0
      %p113 = por %p111, %p112
      %p114 = scmp.ne.s32.totalorder %s102, %s103
      %p115 = scmp.eq.s32.totalorder %s30, 1
      %p116 = por %p114, %p115
      %p118 = scmp.ne.s32.totalorder %s103, %s117
      %p119 = scmp.eq.s32.totalorder %s30, 0
      %p120 = por %p118, %p119
      %s122 = sadd.s32 %s121, 1
      %p125 = scmp.eq.s32.totalorder %s24, 1
      %p126 = scmp.ne.s32.totalorder %s121, %s123
      %p127 = scmp.eq.s32.totalorder %s24, 0
      %p128 = por %p126, %p127
      %p129 = scmp.ne.s32.totalorder %s121, %s123
      %p130 = scmp.eq.s32.totalorder %s29, 1
      %p131 = por %p129, %p130
      %p132 = scmp.ne.s32.totalorder %s123, %s124
      %p133 = scmp.eq.s32.totalorder %s29, 0
      %p134 = por %p132, %p133
      %p135 = scmp.ne.s32.totalorder %s123, %s124
      %p136 = scmp.eq.s32.totalorder %s30, 1
      %p137 = por %p135, %p136
      %p139 = scmp.ne.s32.totalorder %s124, %s138
      %p140 = scmp.eq.s32.totalorder %s30, 0
      %p141 = por %p139, %p140
      %s143 = sadd.s32 %s142, 1
      %p146 = scmp.eq.s32.totalorder %s24, 1
      %p147 = scmp.ne.s32.totalorder %s142, %s144
      %p148 = scmp.eq.s32.totalorder %s24, 0
      %p149 = por %p147, %p148
      %p150 = scmp.ne.s32.totalorder %s142, %s144
      %p151 = scmp.eq.s32.totalorder %s29, 1
      %p152 = por %p150, %p151
      %p153 = scmp.ne.s32.totalorder %s144, %s145
      %p154 = scmp.eq.s32.totalorder %s29, 0
      %p155 = por %p153, %p154
      %p156 = scmp.ne.s32.totalorder %s144, %s145
      %p157 = scmp.eq.s32.totalorder %s30, 1
      %p158 = por %p156, %p157
      %p160 = scmp.ne.s32.totalorder %s145, %s159
      %p161 = scmp.eq.s32.totalorder %s30, 0
      %p162 = por %p160, %p161
      %s164 = sadd.s32 %s163, 1
      %p167 = scmp.eq.s32.totalorder %s24, 1
      %p168 = scmp.ne.s32.totalorder %s163, %s165
      %p169 = scmp.eq.s32.totalorder %s24, 0
      %p170 = por %p168, %p169
      %p171 = scmp.ne.s32.totalorder %s163, %s165
      %p172 = scmp.eq.s32.totalorder %s29, 1
      %p173 = por %p171, %p172
      %p174 = scmp.ne.s32.totalorder %s165, %s166
      %p175 = scmp.eq.s32.totalorder %s29, 0
      %p176 = por %p174, %p175
      %p177 = scmp.ne.s32.totalorder %s165, %s166
      %p178 = scmp.eq.s32.totalorder %s30, 1
      %p179 = por %p177, %p178
      %p181 = scmp.ne.s32.totalorder %s166, %s180
      %p182 = scmp.eq.s32.totalorder %s30, 0
      %p183 = por %p181, %p182
      %s185 = sadd.s32 %s184, 1
      %p188 = scmp.eq.s32.totalorder %s24, 1
      %p189 = scmp.ne.s32.totalorder %s184, %s186
      %p190 = scmp.eq.s32.totalorder %s24, 0
      %p191 = por %p189, %p190
      %p192 = scmp.ne.s32.totalorder %s184, %s186
      %p193 = scmp.eq.s32.totalorder %s29, 1
      %p194 = por %p192, %p193
      %p195 = scmp.ne.s32.totalorder %s186, %s187
      %p196 = scmp.eq.s32.totalorder %s29, 0
      %p197 = por %p195, %p196
      %p198 = scmp.ne.s32.totalorder %s186, %s187
      %p199 = scmp.eq.s32.totalorder %s30, 1
      %p200 = por %p198, %p199
      %p202 = scmp.ne.s32.totalorder %s187, %s201
      %p203 = scmp.eq.s32.totalorder %s30, 0
      %p204 = por %p202, %p203
      %s206 = sadd.s32 %s205, 1
      %p209 = scmp.eq.s32.totalorder %s24, 1
      %p210 = scmp.ne.s32.totalorder %s205, %s207
      %p211 = scmp.eq.s32.totalorder %s24, 0
      %p212 = por %p210, %p211
      %p213 = scmp.ne.s32.totalorder %s205, %s207
      %p214 = scmp.eq.s32.totalorder %s29, 1
      %p215 = por %p213, %p214
      %p216 = scmp.ne.s32.totalorder %s207, %s208
      %p217 = scmp.eq.s32.totalorder %s29, 0
      %p218 = por %p216, %p217
      %p219 = scmp.ne.s32.totalorder %s207, %s208
      %p220 = scmp.eq.s32.totalorder %s30, 1
      %p221 = por %p219, %p220
      %p223 = scmp.ne.s32.totalorder %s208, %s222
      %p224 = scmp.eq.s32.totalorder %s30, 0
      %p225 = por %p223, %p224
      %s227 = sadd.s32 %s226, 1
      %p230 = scmp.eq.s32.totalorder %s24, 1
      %p231 = scmp.ne.s32.totalorder %s226, %s228
      %p232 = scmp.eq.s32.totalorder %s24, 0
      %p233 = por %p231, %p232
      %p234 = scmp.ne.s32.totalorder %s226, %s228
      %p235 = scmp.eq.s32.totalorder %s29, 1
      %p236 = por %p234, %p235
      %p237 = scmp.ne.s32.totalorder %s228, %s229
      %p238 = scmp.eq.s32.totalorder %s29, 0
      %p239 = por %p237, %p238
      %p240 = scmp.ne.s32.totalorder %s228, %s229
      %p241 = scmp.eq.s32.totalorder %s30, 1
      %p242 = por %p240, %p241
      %p244 = scmp.ne.s32.totalorder %s229, %s243
      %p245 = scmp.eq.s32.totalorder %s30, 0
      %p246 = por %p244, %p245
      %s248 = sadd.s32 %s247, 1
      %p251 = scmp.eq.s32.totalorder %s24, 1
      %p252 = scmp.ne.s32.totalorder %s247, %s249
      %p253 = scmp.eq.s32.totalorder %s24, 0
      %p254 = por %p252, %p253
      %p255 = scmp.ne.s32.totalorder %s247, %s249
      %p256 = scmp.eq.s32.totalorder %s29, 1
      %p257 = por %p255, %p256
      %p258 = scmp.ne.s32.totalorder %s249, %s250
      %p259 = scmp.eq.s32.totalorder %s29, 0
      %p260 = por %p258, %p259
      %p261 = scmp.ne.s32.totalorder %s249, %s250
      %p262 = scmp.eq.s32.totalorder %s30, 1
      %p263 = por %p261, %p262
      %p265 = scmp.ne.s32.totalorder %s250, %s264
      %p266 = scmp.eq.s32.totalorder %s30, 0
      %p267 = por %p265, %p266
      %s269 = sadd.s32 %s268, 1
      %p272 = scmp.eq.s32.totalorder %s24, 1
      %p273 = scmp.ne.s32.totalorder %s268, %s270
      %p274 = scmp.eq.s32.totalorder %s24, 0
      %p275 = por %p273, %p274
      %p276 = scmp.ne.s32.totalorder %s268, %s270
      %p277 = scmp.eq.s32.totalorder %s29, 1
      %p278 = por %p276, %p277
      %p279 = scmp.ne.s32.totalorder %s270, %s271
      %p280 = scmp.eq.s32.totalorder %s29, 0
      %p281 = por %p279, %p280
      %p282 = scmp.ne.s32.totalorder %s270, %s271
      %p283 = scmp.eq.s32.totalorder %s30, 1
      %p284 = por %p282, %p283
      %p286 = scmp.ne.s32.totalorder %s271, %s285
      %p287 = scmp.eq.s32.totalorder %s30, 0
      %p288 = por %p286, %p287
      %s290 = sadd.s32 %s289, 1
      %p293 = scmp.eq.s32.totalorder %s24, 1
      %p294 = scmp.ne.s32.totalorder %s289, %s291
      %p295 = scmp.eq.s32.totalorder %s24, 0
      %p296 = por %p294, %p295
      %p297 = scmp.ne.s32.totalorder %s289, %s291
      %p298 = scmp.eq.s32.totalorder %s29, 1
      %p299 = por %p297, %p298
      %p300 = scmp.ne.s32.totalorder %s291, %s292
      %p301 = scmp.eq.s32.totalorder %s29, 0
      %p302 = por %p300, %p301
      %p303 = scmp.ne.s32.totalorder %s291, %s292
      %p304 = scmp.eq.s32.totalorder %s30, 1
      %p305 = por %p303, %p304
      %p307 = scmp.ne.s32.totalorder %s292, %s306
      %p308 = scmp.eq.s32.totalorder %s30, 0
      %p309 = por %p307, %p308
      %s311 = sadd.s32 %s310, 1
      %p314 = scmp.eq.s32.totalorder %s24, 1
      %p315 = scmp.ne.s32.totalorder %s310, %s312
      %p316 = scmp.eq.s32.totalorder %s24, 0
      %p317 = por %p315, %p316
      %p318 = scmp.ne.s32.totalorder %s310, %s312
      %p319 = scmp.eq.s32.totalorder %s29, 1
      %p320 = por %p318, %p319
      %p321 = scmp.ne.s32.totalorder %s312, %s313
      %p322 = scmp.eq.s32.totalorder %s29, 0
      %p323 = por %p321, %p322
      %p324 = scmp.ne.s32.totalorder %s312, %s313
      %p325 = scmp.eq.s32.totalorder %s30, 1
      %p326 = por %p324, %p325
      %p328 = scmp.ne.s32.totalorder %s313, %s327
      %p329 = scmp.eq.s32.totalorder %s30, 0
      %p330 = por %p328, %p329
      %s332 = sadd.s32 %s331, 1
      %p335 = scmp.eq.s32.totalorder %s24, 1
      %p336 = scmp.ne.s32.totalorder %s331, %s333
      %p337 = scmp.eq.s32.totalorder %s24, 0
      %p338 = por %p336, %p337
      %p339 = scmp.ne.s32.totalorder %s331, %s333
      %p340 = scmp.eq.s32.totalorder %s29, 1
      %p341 = por %p339, %p340
      %p342 = scmp.ne.s32.totalorder %s333, %s334
      %p343 = scmp.eq.s32.totalorder %s29, 0
      %p344 = por %p342, %p343
      %p345 = scmp.ne.s32.totalorder %s333, %s334
      %p346 = scmp.eq.s32.totalorder %s30, 1
      %p347 = por %p345, %p346
      %p349 = scmp.ne.s32.totalorder %s334, %s348
      %p350 = scmp.eq.s32.totalorder %s30, 0
      %p351 = por %p349, %p350
      %s352 = ssub.s32 %s24, %s31
      %p353 = scmp.eq.s32.totalorder %s352, 0
      %s355 = sadd.s32 %s354, 1
      %s356 = scalar_select %p353, %s354, %s355
      %p359 = pneg %p353
      %p360 = scmp.eq.s32.totalorder %s24, 1
      %p361 = por %p359, %p360
      %p362 = scmp.ne.s32.totalorder %s354, %s357
      %p363 = scmp.eq.s32.totalorder %s24, 0
      %p364 = por %p362, %p363
      %p365 = scmp.ne.s32.totalorder %s354, %s357
      %p366 = scmp.eq.s32.totalorder %s29, 1
      %p367 = por %p365, %p366
      %p368 = scmp.ne.s32.totalorder %s357, %s358
      %p369 = scmp.eq.s32.totalorder %s29, 0
      %p370 = por %p368, %p369
      %p371 = scmp.ne.s32.totalorder %s357, %s358
      %p372 = scmp.eq.s32.totalorder %s30, 1
      %p373 = por %p371, %p372
      %p375 = scmp.ne.s32.totalorder %s358, %s374
      %p376 = scmp.eq.s32.totalorder %s30, 0
      %p377 = por %p375, %p376
      %p378 = scmp.le.s32.totalorder 1, %s24
      %p379 = scmp.lt.s32.totalorder %s24, 3
      %p380 = pnand %p378, %p379
      %p381 = pneg %p380
      // Predicated region
      $region9: #{tpu_custom_call.1} parent=5 // pred_check
        _
      $region10: #{tpu_custom_call.1} parent=5 // pred_check_branch
        %383 = sbr.rel (%p380) target = $region12
      $region11: #{tpu_custom_call.1} parent=5 // pred_region
        %s384 = ssub.s32 %s24, 1
        // Predicated region
        $region13: #{tpu_custom_call.1} parent=11 // pred_check
          %p385 = pneg %p71
        $region14: #{tpu_custom_call.1} parent=11 // pred_check_branch
          %387 = sbr.rel (%p385) target = $region16
        $region15: #{tpu_custom_call.1} parent=11 // pred_region
          _
        $region16: #{tpu_custom_call.1} parent=11 // pred_fallthru
          _
        // Predicated region
        $region17: #{tpu_custom_call.1} parent=11 // pred_check
          %p388 = pneg %p92
        $region18: #{tpu_custom_call.1} parent=11 // pred_check_branch
          %390 = sbr.rel (%p388) target = $region20
        $region19: #{tpu_custom_call.1} parent=11 // pred_region
          _
        $region20: #{tpu_custom_call.1} parent=11 // pred_fallthru
          _
        // Predicated region
        $region21: #{tpu_custom_call.1} parent=11 // pred_check
          %p391 = pneg %p113
        $region22: #{tpu_custom_call.1} parent=11 // pred_check_branch
          %393 = sbr.rel (%p391) target = $region24
        $region23: #{tpu_custom_call.1} parent=11 // pred_region
          _
        $region24: #{tpu_custom_call.1} parent=11 // pred_fallthru
          _
        // Predicated region
        $region25: #{tpu_custom_call.1} parent=11 // pred_check
          %p394 = pneg %p134
        $region26: #{tpu_custom_call.1} parent=11 // pred_check_branch
          %396 = sbr.rel (%p394) target = $region28
        $region27: #{tpu_custom_call.1} parent=11 // pred_region
          _
        $region28: #{tpu_custom_call.1} parent=11 // pred_fallthru
          _
        // Predicated region
        $region29: #{tpu_custom_call.1} parent=11 // pred_check
          %p397 = pneg %p155
        $region30: #{tpu_custom_call.1} parent=11 // pred_check_branch
          %399 = sbr.rel (%p397) target = $region32
        $region31: #{tpu_custom_call.1} parent=11 // pred_region
          _
        $region32: #{tpu_custom_call.1} parent=11 // pred_fallthru
          _
        // Predicated region
        $region33: #{tpu_custom_call.1} parent=11 // pred_check
          %p400 = pneg %p176
        $region34: #{tpu_custom_call.1} parent=11 // pred_check_branch
          %402 = sbr.rel (%p400) target = $region36
        $region35: #{tpu_custom_call.1} parent=11 // pred_region
          _
        $region36: #{tpu_custom_call.1} parent=11 // pred_fallthru
          _
        // Predicated region
        $region37: #{tpu_custom_call.1} parent=11 // pred_check
          %p403 = pneg %p197
        $region38: #{tpu_custom_call.1} parent=11 // pred_check_branch
          %405 = sbr.rel (%p403) target = $region40
        $region39: #{tpu_custom_call.1} parent=11 // pred_region
          _
        $region40: #{tpu_custom_call.1} parent=11 // pred_fallthru
          _
        // Predicated region
        $region41: #{tpu_custom_call.1} parent=11 // pred_check
          %p406 = pneg %p218
        $region42: #{tpu_custom_call.1} parent=11 // pred_check_branch
          %408 = sbr.rel (%p406) target = $region44
        $region43: #{tpu_custom_call.1} parent=11 // pred_region
          _
        $region44: #{tpu_custom_call.1} parent=11 // pred_fallthru
          _
        // Predicated region
        $region45: #{tpu_custom_call.1} parent=11 // pred_check
          %p409 = pneg %p239
        $region46: #{tpu_custom_call.1} parent=11 // pred_check_branch
          %411 = sbr.rel (%p409) target = $region48
        $region47: #{tpu_custom_call.1} parent=11 // pred_region
          _
        $region48: #{tpu_custom_call.1} parent=11 // pred_fallthru
          _
        // Predicated region
        $region49: #{tpu_custom_call.1} parent=11 // pred_check
          %p412 = pneg %p260
        $region50: #{tpu_custom_call.1} parent=11 // pred_check_branch
          %414 = sbr.rel (%p412) target = $region52
        $region51: #{tpu_custom_call.1} parent=11 // pred_region
          _
        $region52: #{tpu_custom_call.1} parent=11 // pred_fallthru
          _
        // Predicated region
        $region53: #{tpu_custom_call.1} parent=11 // pred_check
          %p415 = pneg %p281
        $region54: #{tpu_custom_call.1} parent=11 // pred_check_branch
          %417 = sbr.rel (%p415) target = $region56
        $region55: #{tpu_custom_call.1} parent=11 // pred_region
          _
        $region56: #{tpu_custom_call.1} parent=11 // pred_fallthru
          _
        // Predicated region
        $region57: #{tpu_custom_call.1} parent=11 // pred_check
          %p418 = pneg %p302
        $region58: #{tpu_custom_call.1} parent=11 // pred_check_branch
          %420 = sbr.rel (%p418) target = $region60
        $region59: #{tpu_custom_call.1} parent=11 // pred_region
          _
        $region60: #{tpu_custom_call.1} parent=11 // pred_fallthru
          _
        // Predicated region
        $region61: #{tpu_custom_call.1} parent=11 // pred_check
          %p421 = pneg %p323
        $region62: #{tpu_custom_call.1} parent=11 // pred_check_branch
          %423 = sbr.rel (%p421) target = $region64
        $region63: #{tpu_custom_call.1} parent=11 // pred_region
          _
        $region64: #{tpu_custom_call.1} parent=11 // pred_fallthru
          _
        // Predicated region
        $region65: #{tpu_custom_call.1} parent=11 // pred_check
          %p424 = pneg %p344
        $region66: #{tpu_custom_call.1} parent=11 // pred_check_branch
          %426 = sbr.rel (%p424) target = $region68
        $region67: #{tpu_custom_call.1} parent=11 // pred_region
          _
        $region68: #{tpu_custom_call.1} parent=11 // pred_fallthru
          _
      $region12: #{tpu_custom_call.1} parent=5 // pred_fallthru
        _
      %p427 = scmp.lt.s32.totalorder %s24, 2
      // Predicated region
      $region69: #{tpu_custom_call.1} parent=5 // pred_check
        %p428 = pneg %p427
      $region70: #{tpu_custom_call.1} parent=5 // pred_check_branch
        %430 = sbr.rel (%p428) target = $region72
      $region71: #{tpu_custom_call.1} parent=5 // pred_region
        // Predicated region
        $region73: #{tpu_custom_call.1} parent=71 // pred_check
          %p431 = pneg %p44
        $region74: #{tpu_custom_call.1} parent=71 // pred_check_branch
          %433 = sbr.rel (%p431) target = $region76
        $region75: #{tpu_custom_call.1} parent=71 // pred_region
          %p434 = scmp.lt.s32.totalorder %s24, 1
          %s435 = scalar_select %p434, %s24, 1
          %s436 = smul.addr %s435, 12
          %s437 = smul.addr %s436, 8
          %s438 = scalar_lea.vmem %s0, %s437
        $region76: #{tpu_custom_call.1} parent=71 // pred_fallthru
          _
      $region72: #{tpu_custom_call.1} parent=5 // pred_fallthru
        _
      %p439 = scmp.le.s32.totalorder 1, %s24
      %p440 = scmp.lt.s32.totalorder %s24, 3
      %p441 = pnand %p439, %p440
      %p442 = pneg %p441
      // Predicated region
      $region77: #{tpu_custom_call.1} parent=5 // pred_check
        _
      $region78: #{tpu_custom_call.1} parent=5 // pred_check_branch
        %444 = sbr.rel (%p441) target = $region80
      $region79: #{tpu_custom_call.1} parent=5 // pred_region
        %s445 = ssub.s32 %s24, 1
        %p446 = scmp.lt.s32.totalorder %s29, 1
        %s447 = scalar_select %p446, %s29, 1
        %s448 = smul.addr %s447, 12
        %s449 = smul.addr %s448, 8
        %s450 = scalar_lea.vmem %s0, %s449
        %p451 = pneg %p50
        %p452 = pneg %p47
        %p453 = pneg %p71
        %p454 = pneg %p68
        %p455 = pneg %p92
        %p456 = pneg %p89
        %p457 = pneg %p113
        %p458 = pneg %p110
        %p459 = pneg %p134
        %p460 = pneg %p131
        %p461 = pneg %p155
        %p462 = pneg %p152
        %p463 = pneg %p176
        %p464 = pneg %p173
        %p465 = pneg %p197
        %p466 = pneg %p194
        %p467 = pneg %p218
        %p468 = pneg %p215
        %p469 = pneg %p239
        %p470 = pneg %p236
        %p471 = pneg %p260
        %p472 = pneg %p257
        %p473 = pneg %p281
        %p474 = pneg %p278
        %p475 = pneg %p302
        %p476 = pneg %p299
        %p477 = pneg %p323
        %p478 = pneg %p320
        %p479 = pneg %p344
        %p480 = pneg %p341
        %p481 = pneg %p370
        %p482 = pneg %p367
        %s483 = sand.u32 %s357, 1
        %s484 = scalar_lea.sflag [#allocation13], %s483
        %s485 = sand.u32 %s357, 1
        %s486 = scalar_lea.vmem [#allocation12], %s485
        %p487 = scmp.lt.s32.totalorder %s29, 1
        %s488 = scalar_select %p487, %s29, 1
        %s489 = smul.addr %s488, 12
        %s490 = smul.addr %s489, 8
        %s491 = scalar_lea.vmem %s0, %s490
        %vm492 = vcmask 7168
        %493 = vst.msk [vmem:[#allocation2] sm:$0xff] %vm492, 0.0
        %494 = vst.msk [vmem:[#allocation2 + $0x8] sm:$0xff] %vm492, 0.0
        %495 = vst.msk [vmem:[#allocation2 + $0x10] sm:$0xff] %vm492, 0.0
        %496 = vst.msk [vmem:[#allocation2 + $0x18] sm:$0xff] %vm492, 0.0
        %497 = vst.msk [vmem:[#allocation2 + $0x20] sm:$0xff] %vm492, 0.0
        %498 = vst.msk [vmem:[#allocation2 + $0x28] sm:$0xff] %vm492, 0.0
        %499 = vst.msk [vmem:[#allocation2 + $0x30] sm:$0xff] %vm492, 0.0
        %vm500 = vcmask 2048
        %501 = vst.msk [vmem:[#allocation2 + $0x38] sm:$0x7] %vm500, 0.0
        %502 = vst.msk [vmem:[#allocation2 + $0x40] sm:$0xff] %vm492, 0.0
        %503 = vst.msk [vmem:[#allocation2 + $0x48] sm:$0xff] %vm492, 0.0
        %504 = vst.msk [vmem:[#allocation2 + $0x50] sm:$0xff] %vm492, 0.0
        %505 = vst.msk [vmem:[#allocation2 + $0x58] sm:$0xff] %vm492, 0.0
        %506 = vst.msk [vmem:[#allocation2 + $0x60] sm:$0xff] %vm492, 0.0
        %507 = vst.msk [vmem:[#allocation2 + $0x68] sm:$0xff] %vm492, 0.0
        %508 = vst.msk [vmem:[#allocation2 + $0x70] sm:$0xff] %vm492, 0.0
        %509 = vst.msk [vmem:[#allocation2 + $0x78] sm:$0x7] %vm500, 0.0
        %vm510 = vcmask 261120
        %511 = vst.msk [vmem:[#allocation3] sm:$0xff] %vm510, 0.0
        %512 = vst.msk [vmem:[#allocation3 + $0x8] sm:$0xff] %vm510, 0.0
        %513 = vst.msk [vmem:[#allocation3 + $0x10] sm:$0xff] %vm510, 0.0
        %514 = vst.msk [vmem:[#allocation3 + $0x18] sm:$0xff] %vm510, 0.0
        %515 = vst.msk [vmem:[#allocation3 + $0x20] sm:$0xff] %vm510, 0.0
        %516 = vst.msk [vmem:[#allocation3 + $0x28] sm:$0xff] %vm510, 0.0
        %517 = vst.msk [vmem:[#allocation3 + $0x30] sm:$0xff] %vm510, 0.0
        %vm518 = vcmask 257024
        %519 = vst.msk [vmem:[#allocation3 + $0x38] sm:$0xf] %vm518, 0.0
        %520 = vst.msk [vmem:[#allocation3 + $0x40] sm:$0xff] %vm510, 0.0
        %521 = vst.msk [vmem:[#allocation3 + $0x48] sm:$0xff] %vm510, 0.0
        %522 = vst.msk [vmem:[#allocation3 + $0x50] sm:$0xff] %vm510, 0.0
        %523 = vst.msk [vmem:[#allocation3 + $0x58] sm:$0xff] %vm510, 0.0
        %524 = vst.msk [vmem:[#allocation3 + $0x60] sm:$0xff] %vm510, 0.0
        %525 = vst.msk [vmem:[#allocation3 + $0x68] sm:$0xff] %vm510, 0.0
        %526 = vst.msk [vmem:[#allocation3 + $0x70] sm:$0xff] %vm510, 0.0
        %527 = vst.msk [vmem:[#allocation3 + $0x78] sm:$0xf] %vm518, 0.0
        %528 = vst.msk [vmem:[#allocation4] sm:$0xff] %vm510, 0.0
        %529 = vst.msk [vmem:[#allocation4 + $0x8] sm:$0xff] %vm510, 0.0
        %530 = vst.msk [vmem:[#allocation4 + $0x10] sm:$0xff] %vm510, 0.0
        %531 = vst.msk [vmem:[#allocation4 + $0x18] sm:$0xff] %vm510, 0.0
        %532 = vst.msk [vmem:[#allocation4 + $0x20] sm:$0xf] %vm518, 0.0
        %533 = vst.msk [vmem:[#allocation4 + $0x28] sm:$0xff] %vm510, 0.0
        %534 = vst.msk [vmem:[#allocation4 + $0x30] sm:$0xff] %vm510, 0.0
        %535 = vst.msk [vmem:[#allocation4 + $0x38] sm:$0xff] %vm510, 0.0
        %536 = vst.msk [vmem:[#allocation4 + $0x40] sm:$0xff] %vm510, 0.0
        %537 = vst.msk [vmem:[#allocation4 + $0x48] sm:$0xf] %vm518, 0.0
        %vm538 = vcmask 523264
        %539 = vst.msk [vmem:[#allocation5] sm:$0xff] %vm538, 0.0
        %540 = vst.msk [vmem:[#allocation5 + $0x8] sm:$0xff] %vm538, 0.0
        %vm541 = vcmask 522240
        %542 = vst.msk [vmem:[#allocation5 + $0x10] sm:$0x7f] %vm541, 0.0
        %543 = vst.msk [vmem:[#allocation5 + $0x18] sm:$0xff] %vm538, 0.0
        %544 = vst.msk [vmem:[#allocation5 + $0x20] sm:$0xff] %vm538, 0.0
        %545 = vst.msk [vmem:[#allocation5 + $0x28] sm:$0x7f] %vm541, 0.0
        %546 = vst [vmem:[#allocation7] sm:$0xff] 0.0
        %547 = vst [vmem:[#allocation7 + $0x8] sm:$0x7f] 0.0
        %548 = vst [vmem:[#allocation7 + $0x10] sm:$0xff] 0.0
        %549 = vst [vmem:[#allocation7 + $0x18] sm:$0x7f] 0.0
        %v550 = vld [vmem:[%s491] sm:$0xff]
        %v551 = vld [vmem:[%s491 + $0x8] sm:$0xff]
        %v552 = vld [vmem:[%s491 + $0x10] sm:$0xff]
        %v553 = vld [vmem:[%s491 + $0x18] sm:$0xff]
        %v554 = vld [vmem:[%s491 + $0x20] sm:$0xff]
        %v555 = vld [vmem:[%s491 + $0x28] sm:$0xff]
        %v556 = vld [vmem:[%s491 + $0x30] sm:$0xff]
        %v557 = vld [vmem:[%s491 + $0x38] sm:$0xff]
        %v558 = vld [vmem:[%s491 + $0x40] sm:$0xff]
        %v559 = vld [vmem:[%s491 + $0x48] sm:$0xff]
        %v560 = vld [vmem:[%s491 + $0x50] sm:$0xff]
        %v561 = vld [vmem:[%s491 + $0x58] sm:$0xff]
        %562 = vst.msk [vmem:[#allocation2 + $0x8] sm:$0xff] %vm492, %v550
        %563 = vst.msk [vmem:[#allocation2 + $0x10] sm:$0xff] %vm492, %v551
        %564 = vst.msk [vmem:[#allocation2 + $0x18] sm:$0xff] %vm492, %v552
        %565 = vst.msk [vmem:[#allocation2 + $0x20] sm:$0xff] %vm492, %v553
        %566 = vst.msk [vmem:[#allocation2 + $0x28] sm:$0xff] %vm492, %v554
        %567 = vst.msk [vmem:[#allocation2 + $0x30] sm:$0xff] %vm492, %v555
        %568 = vst.msk [vmem:[#allocation2 + $0x48] sm:$0xff] %vm492, %v556
        %569 = vst.msk [vmem:[#allocation2 + $0x50] sm:$0xff] %vm492, %v557
        %570 = vst.msk [vmem:[#allocation2 + $0x58] sm:$0xff] %vm492, %v558
        %571 = vst.msk [vmem:[#allocation2 + $0x60] sm:$0xff] %vm492, %v559
        %572 = vst.msk [vmem:[#allocation2 + $0x68] sm:$0xff] %vm492, %v560
        %573 = vst.msk [vmem:[#allocation2 + $0x70] sm:$0xff] %vm492, %v561
        %v574 = vld [vmem:[#allocation2 + $0x5] sm:$0xff]
        %v575 = vld [vmem:[#allocation2 + $0xd] sm:$0xff]
        %v576 = vld [vmem:[#allocation2 + $0x15] sm:$0xff]
        %v577 = vld [vmem:[#allocation2 + $0x1d] sm:$0xff]
        %v578 = vld [vmem:[#allocation2 + $0x25] sm:$0xff]
        %v579 = vld [vmem:[#allocation2 + $0x2d] sm:$0xff]
        %v580 = vld [vmem:[%s1] sm:$0x1]
        %582 = vset.pattern.permute.xlu0 0
        %583 = vperm.xlu0 %582, %v574
        %v584 = vpop.permute.xlu0 %583
        %587 = vset.pattern.permute.xlu0 0
        %588 = vperm.xlu0 %587, %v575
        %v589 = vpop.permute.xlu0 %588
        %592 = vset.pattern.permute.xlu0 0
        %593 = vperm.xlu0 %592, %v576
        %v594 = vpop.permute.xlu0 %593
        %597 = vset.pattern.permute.xlu0 0
        %598 = vperm.xlu0 %597, %v577
        %v599 = vpop.permute.xlu0 %598
        %602 = vset.pattern.permute.xlu0 0
        %603 = vperm.xlu0 %602, %v578
        %v604 = vpop.permute.xlu0 %603
        %607 = vset.pattern.permute.xlu0 0
        %608 = vperm.xlu0 %607, %v579
        %v609 = vpop.permute.xlu0 %608
        %v612 = vlaneseq
        %v613 = vshrl.u32 %v612, 7
        %v614 = vsub.s32 0, %v613
        %v615 = vrot.slane %v580, %v614
        %v617 = vmul.f32 %v584, %v615
        %v618 = vmul.f32 %v589, %v615
        %v619 = vmul.f32 %v594, %v615
        %v620 = vmul.f32 %v599, %v615
        %v621 = vmul.f32 %v604, %v615
        %v622 = vmul.f32 %v609, %v615
        %v623 = vadd.f32 %v617, 0.0
        %v624 = vadd.f32 %v618, 0.0
        %v625 = vadd.f32 %v619, 0.0
        %v626 = vadd.f32 %v620, 0.0
        %v627 = vadd.f32 %v621, 0.0
        %v628 = vadd.f32 %v622, 0.0
        %v629 = vld [vmem:[#allocation2 + $0x6] sm:$0xff]
        %v630 = vld [vmem:[#allocation2 + $0xe] sm:$0xff]
        %v631 = vld [vmem:[#allocation2 + $0x16] sm:$0xff]
        %v632 = vld [vmem:[#allocation2 + $0x1e] sm:$0xff]
        %v633 = vld [vmem:[#allocation2 + $0x26] sm:$0xff]
        %v634 = vld [vmem:[#allocation2 + $0x2e] sm:$0xff]
        %s635 = scalar_lea.vmem %s1, 1
        %v636 = vld [vmem:[%s635] sm:$0x1]
        %638 = vset.pattern.permute.xlu0 0
        %639 = vperm.xlu0 %638, %v629
        %v640 = vpop.permute.xlu0 %639
        %643 = vset.pattern.permute.xlu0 0
        %644 = vperm.xlu0 %643, %v630
        %v645 = vpop.permute.xlu0 %644
        %648 = vset.pattern.permute.xlu0 0
        %649 = vperm.xlu0 %648, %v631
        %v650 = vpop.permute.xlu0 %649
        %653 = vset.pattern.permute.xlu0 0
        %654 = vperm.xlu0 %653, %v632
        %v655 = vpop.permute.xlu0 %654
        %658 = vset.pattern.permute.xlu0 0
        %659 = vperm.xlu0 %658, %v633
        %v660 = vpop.permute.xlu0 %659
        %663 = vset.pattern.permute.xlu0 0
        %664 = vperm.xlu0 %663, %v634
        %v665 = vpop.permute.xlu0 %664
        %v668 = vlaneseq
        %v669 = vshrl.u32 %v668, 7
        %v670 = vsub.s32 0, %v669
        %v671 = vrot.slane %v636, %v670
        %v673 = vmul.f32 %v640, %v671
        %v674 = vmul.f32 %v645, %v671
        %v675 = vmul.f32 %v650, %v671
        %v676 = vmul.f32 %v655, %v671
        %v677 = vmul.f32 %v660, %v671
        %v678 = vmul.f32 %v665, %v671
        %v679 = vadd.f32 %v623, %v673
        %v680 = vadd.f32 %v624, %v674
        %v681 = vadd.f32 %v625, %v675
        %v682 = vadd.f32 %v626, %v676
        %v683 = vadd.f32 %v627, %v677
        %v684 = vadd.f32 %v628, %v678
        %v685 = vld [vmem:[#allocation2 + $0x7] sm:$0xff]
        %v686 = vld [vmem:[#allocation2 + $0xf] sm:$0xff]
        %v687 = vld [vmem:[#allocation2 + $0x17] sm:$0xff]
        %v688 = vld [vmem:[#allocation2 + $0x1f] sm:$0xff]
        %v689 = vld [vmem:[#allocation2 + $0x27] sm:$0xff]
        %v690 = vld [vmem:[#allocation2 + $0x2f] sm:$0xff]
        %s691 = scalar_lea.vmem %s1, 2
        %v692 = vld [vmem:[%s691] sm:$0x1]
        %694 = vset.pattern.permute.xlu0 0
        %695 = vperm.xlu0 %694, %v685
        %v696 = vpop.permute.xlu0 %695
        %699 = vset.pattern.permute.xlu0 0
        %700 = vperm.xlu0 %699, %v686
        %v701 = vpop.permute.xlu0 %700
        %704 = vset.pattern.permute.xlu0 0
        %705 = vperm.xlu0 %704, %v687
        %v706 = vpop.permute.xlu0 %705
        %709 = vset.pattern.permute.xlu0 0
        %710 = vperm.xlu0 %709, %v688
        %v711 = vpop.permute.xlu0 %710
        %714 = vset.pattern.permute.xlu0 0
        %715 = vperm.xlu0 %714, %v689
        %v716 = vpop.permute.xlu0 %715
        %719 = vset.pattern.permute.xlu0 0
        %720 = vperm.xlu0 %719, %v690
        %v721 = vpop.permute.xlu0 %720
        %v724 = vlaneseq
        %v725 = vshrl.u32 %v724, 7
        %v726 = vsub.s32 0, %v725
        %v727 = vrot.slane %v692, %v726
        %v729 = vmul.f32 %v696, %v727
        %v730 = vmul.f32 %v701, %v727
        %v731 = vmul.f32 %v706, %v727
        %v732 = vmul.f32 %v711, %v727
        %v733 = vmul.f32 %v716, %v727
        %v734 = vmul.f32 %v721, %v727
        %v735 = vadd.f32 %v679, %v729
        %v736 = vadd.f32 %v680, %v730
        %v737 = vadd.f32 %v681, %v731
        %v738 = vadd.f32 %v682, %v732
        %v739 = vadd.f32 %v683, %v733
        %v740 = vadd.f32 %v684, %v734
        %v741 = vld [vmem:[#allocation2 + $0x8] sm:$0xff]
        %v742 = vld [vmem:[#allocation2 + $0x10] sm:$0xff]
        %v743 = vld [vmem:[#allocation2 + $0x18] sm:$0xff]
        %v744 = vld [vmem:[#allocation2 + $0x20] sm:$0xff]
        %v745 = vld [vmem:[#allocation2 + $0x28] sm:$0xff]
        %v746 = vld [vmem:[#allocation2 + $0x30] sm:$0xff]
        %s747 = scalar_lea.vmem %s1, 3
        %v748 = vld [vmem:[%s747] sm:$0x1]
        %750 = vset.pattern.permute.xlu0 0
        %751 = vperm.xlu0 %750, %v741
        %v752 = vpop.permute.xlu0 %751
        %755 = vset.pattern.permute.xlu0 0
        %756 = vperm.xlu0 %755, %v742
        %v757 = vpop.permute.xlu0 %756
        %760 = vset.pattern.permute.xlu0 0
        %761 = vperm.xlu0 %760, %v743
        %v762 = vpop.permute.xlu0 %761
        %765 = vset.pattern.permute.xlu0 0
        %766 = vperm.xlu0 %765, %v744
        %v767 = vpop.permute.xlu0 %766
        %770 = vset.pattern.permute.xlu0 0
        %771 = vperm.xlu0 %770, %v745
        %v772 = vpop.permute.xlu0 %771
        %775 = vset.pattern.permute.xlu0 0
        %776 = vperm.xlu0 %775, %v746
        %v777 = vpop.permute.xlu0 %776
        %v780 = vlaneseq
        %v781 = vshrl.u32 %v780, 7
        %v782 = vsub.s32 0, %v781
        %v783 = vrot.slane %v748, %v782
        %v785 = vmul.f32 %v752, %v783
        %v786 = vmul.f32 %v757, %v783
        %v787 = vmul.f32 %v762, %v783
        %v788 = vmul.f32 %v767, %v783
        %v789 = vmul.f32 %v772, %v783
        %v790 = vmul.f32 %v777, %v783
        %v791 = vadd.f32 %v735, %v785
        %v792 = vadd.f32 %v736, %v786
        %v793 = vadd.f32 %v737, %v787
        %v794 = vadd.f32 %v738, %v788
        %v795 = vadd.f32 %v739, %v789
        %v796 = vadd.f32 %v740, %v790
        %v797 = vld [vmem:[#allocation2 + $0x9] sm:$0xff]
        %v798 = vld [vmem:[#allocation2 + $0x11] sm:$0xff]
        %v799 = vld [vmem:[#allocation2 + $0x19] sm:$0xff]
        %v800 = vld [vmem:[#allocation2 + $0x21] sm:$0xff]
        %v801 = vld [vmem:[#allocation2 + $0x29] sm:$0xff]
        %v802 = vld [vmem:[#allocation2 + $0x31] sm:$0xff]
        %s803 = scalar_lea.vmem %s1, 4
        %v804 = vld [vmem:[%s803] sm:$0x1]
        %806 = vset.pattern.permute.xlu0 0
        %807 = vperm.xlu0 %806, %v797
        %v808 = vpop.permute.xlu0 %807
        %811 = vset.pattern.permute.xlu0 0
        %812 = vperm.xlu0 %811, %v798
        %v813 = vpop.permute.xlu0 %812
        %816 = vset.pattern.permute.xlu0 0
        %817 = vperm.xlu0 %816, %v799
        %v818 = vpop.permute.xlu0 %817
        %821 = vset.pattern.permute.xlu0 0
        %822 = vperm.xlu0 %821, %v800
        %v823 = vpop.permute.xlu0 %822
        %826 = vset.pattern.permute.xlu0 0
        %827 = vperm.xlu0 %826, %v801
        %v828 = vpop.permute.xlu0 %827
        %831 = vset.pattern.permute.xlu0 0
        %832 = vperm.xlu0 %831, %v802
        %v833 = vpop.permute.xlu0 %832
        %v836 = vlaneseq
        %v837 = vshrl.u32 %v836, 7
        %v838 = vsub.s32 0, %v837
        %v839 = vrot.slane %v804, %v838
        %v841 = vmul.f32 %v808, %v839
        %v842 = vmul.f32 %v813, %v839
        %v843 = vmul.f32 %v818, %v839
        %v844 = vmul.f32 %v823, %v839
        %v845 = vmul.f32 %v828, %v839
        %v846 = vmul.f32 %v833, %v839
        %v847 = vadd.f32 %v791, %v841
        %v848 = vadd.f32 %v792, %v842
        %v849 = vadd.f32 %v793, %v843
        %v850 = vadd.f32 %v794, %v844
        %v851 = vadd.f32 %v795, %v845
        %v852 = vadd.f32 %v796, %v846
        %v853 = vld [vmem:[#allocation2 + $0xa] sm:$0xff]
        %v854 = vld [vmem:[#allocation2 + $0x12] sm:$0xff]
        %v855 = vld [vmem:[#allocation2 + $0x1a] sm:$0xff]
        %v856 = vld [vmem:[#allocation2 + $0x22] sm:$0xff]
        %v857 = vld [vmem:[#allocation2 + $0x2a] sm:$0xff]
        %v858 = vld [vmem:[#allocation2 + $0x32] sm:$0xff]
        %s859 = scalar_lea.vmem %s1, 5
        %v860 = vld [vmem:[%s859] sm:$0x1]
        %862 = vset.pattern.permute.xlu0 0
        %863 = vperm.xlu0 %862, %v853
        %v864 = vpop.permute.xlu0 %863
        %867 = vset.pattern.permute.xlu0 0
        %868 = vperm.xlu0 %867, %v854
        %v869 = vpop.permute.xlu0 %868
        %872 = vset.pattern.permute.xlu0 0
        %873 = vperm.xlu0 %872, %v855
        %v874 = vpop.permute.xlu0 %873
        %877 = vset.pattern.permute.xlu0 0
        %878 = vperm.xlu0 %877, %v856
        %v879 = vpop.permute.xlu0 %878
        %882 = vset.pattern.permute.xlu0 0
        %883 = vperm.xlu0 %882, %v857
        %v884 = vpop.permute.xlu0 %883
        %887 = vset.pattern.permute.xlu0 0
        %888 = vperm.xlu0 %887, %v858
        %v889 = vpop.permute.xlu0 %888
        %v892 = vlaneseq
        %v893 = vshrl.u32 %v892, 7
        %v894 = vsub.s32 0, %v893
        %v895 = vrot.slane %v860, %v894
        %v897 = vmul.f32 %v864, %v895
        %v898 = vmul.f32 %v869, %v895
        %v899 = vmul.f32 %v874, %v895
        %v900 = vmul.f32 %v879, %v895
        %v901 = vmul.f32 %v884, %v895
        %v902 = vmul.f32 %v889, %v895
        %v903 = vadd.f32 %v847, %v897
        %v904 = vadd.f32 %v848, %v898
        %v905 = vadd.f32 %v849, %v899
        %v906 = vadd.f32 %v850, %v900
        %v907 = vadd.f32 %v851, %v901
        %v908 = vadd.f32 %v852, %v902
        %v909 = vld [vmem:[#allocation2 + $0xb] sm:$0xff]
        %v910 = vld [vmem:[#allocation2 + $0x13] sm:$0xff]
        %v911 = vld [vmem:[#allocation2 + $0x1b] sm:$0xff]
        %v912 = vld [vmem:[#allocation2 + $0x23] sm:$0xff]
        %v913 = vld [vmem:[#allocation2 + $0x2b] sm:$0xff]
        %v914 = vld [vmem:[#allocation2 + $0x33] sm:$0xff]
        %s915 = scalar_lea.vmem %s1, 6
        %v916 = vld [vmem:[%s915] sm:$0x1]
        %918 = vset.pattern.permute.xlu0 0
        %919 = vperm.xlu0 %918, %v909
        %v920 = vpop.permute.xlu0 %919
        %923 = vset.pattern.permute.xlu0 0
        %924 = vperm.xlu0 %923, %v910
        %v925 = vpop.permute.xlu0 %924
        %928 = vset.pattern.permute.xlu0 0
        %929 = vperm.xlu0 %928, %v911
        %v930 = vpop.permute.xlu0 %929
        %933 = vset.pattern.permute.xlu0 0
        %934 = vperm.xlu0 %933, %v912
        %v935 = vpop.permute.xlu0 %934
        %938 = vset.pattern.permute.xlu0 0
        %939 = vperm.xlu0 %938, %v913
        %v940 = vpop.permute.xlu0 %939
        %943 = vset.pattern.permute.xlu0 0
        %944 = vperm.xlu0 %943, %v914
        %v945 = vpop.permute.xlu0 %944
        %v948 = vlaneseq
        %v949 = vshrl.u32 %v948, 7
        %v950 = vsub.s32 0, %v949
        %v951 = vrot.slane %v916, %v950
        %v953 = vmul.f32 %v920, %v951
        %v954 = vmul.f32 %v925, %v951
        %v955 = vmul.f32 %v930, %v951
        %v956 = vmul.f32 %v935, %v951
        %v957 = vmul.f32 %v940, %v951
        %v958 = vmul.f32 %v945, %v951
        %v959 = vadd.f32 %v903, %v953
        %v960 = vadd.f32 %v904, %v954
        %v961 = vadd.f32 %v905, %v955
        %v962 = vadd.f32 %v906, %v956
        %v963 = vadd.f32 %v907, %v957
        %v964 = vadd.f32 %v908, %v958
        %v965 = vld [vmem:[%s2] sm:$0x1]
        %v967 = vlaneseq
        %v968 = vshrl.u32 %v967, 7
        %v969 = vsub.s32 0, %v968
        %v970 = vrot.slane %v965, %v969
        %v972 = vadd.f32 %v959, %v970
        %v973 = vadd.f32 %v960, %v970
        %v974 = vadd.f32 %v961, %v970
        %v975 = vadd.f32 %v962, %v970
        %v976 = vadd.f32 %v963, %v970
        %v977 = vadd.f32 %v964, %v970
        %vm978 = vcmp.gt.f32.partialorder %v972, 0.0
        %vm979 = vcmp.gt.f32.partialorder %v973, 0.0
        %vm980 = vcmp.gt.f32.partialorder %v974, 0.0
        %vm981 = vcmp.gt.f32.partialorder %v975, 0.0
        %vm982 = vcmp.gt.f32.partialorder %v976, 0.0
        %vm983 = vcmp.gt.f32.partialorder %v977, 0.0
        %v984 = vmul.f32 %v972, 0.01
        %v985 = vmul.f32 %v973, 0.01
        %v986 = vmul.f32 %v974, 0.01
        %v987 = vmul.f32 %v975, 0.01
        %v988 = vmul.f32 %v976, 0.01
        %v989 = vmul.f32 %v977, 0.01
        %v990 = vsel %vm978, %v972, %v984
        %v991 = vsel %vm979, %v973, %v985
        %v992 = vsel %vm980, %v974, %v986
        %v993 = vsel %vm981, %v975, %v987
        %v994 = vsel %vm982, %v976, %v988
        %v995 = vsel %vm983, %v977, %v989
        %996 = vst.msk [vmem:[#allocation3 + $0x8] sm:$0xff] %vm510, %v990
        %997 = vst.msk [vmem:[#allocation3 + $0x10] sm:$0xff] %vm510, %v991
        %998 = vst.msk [vmem:[#allocation3 + $0x18] sm:$0xff] %vm510, %v992
        %999 = vst.msk [vmem:[#allocation3 + $0x20] sm:$0xff] %vm510, %v993
        %1000 = vst.msk [vmem:[#allocation3 + $0x28] sm:$0xff] %vm510, %v994
        %1001 = vst.msk [vmem:[#allocation3 + $0x30] sm:$0xff] %vm510, %v995
        %s1002 = scalar_lea.vmem [#allocation2], 64
        %v1003 = vld [vmem:[%s1002 + $0x5] sm:$0xff]
        %v1004 = vld [vmem:[%s1002 + $0xd] sm:$0xff]
        %v1005 = vld [vmem:[%s1002 + $0x15] sm:$0xff]
        %v1006 = vld [vmem:[%s1002 + $0x1d] sm:$0xff]
        %v1007 = vld [vmem:[%s1002 + $0x25] sm:$0xff]
        %v1008 = vld [vmem:[%s1002 + $0x2d] sm:$0xff]
        %v1009 = vld [vmem:[%s1] sm:$0x1]
        %1011 = vset.pattern.permute.xlu0 0
        %1012 = vperm.xlu0 %1011, %v1003
        %v1013 = vpop.permute.xlu0 %1012
        %1016 = vset.pattern.permute.xlu0 0
        %1017 = vperm.xlu0 %1016, %v1004
        %v1018 = vpop.permute.xlu0 %1017
        %1021 = vset.pattern.permute.xlu0 0
        %1022 = vperm.xlu0 %1021, %v1005
        %v1023 = vpop.permute.xlu0 %1022
        %1026 = vset.pattern.permute.xlu0 0
        %1027 = vperm.xlu0 %1026, %v1006
        %v1028 = vpop.permute.xlu0 %1027
        %1031 = vset.pattern.permute.xlu0 0
        %1032 = vperm.xlu0 %1031, %v1007
        %v1033 = vpop.permute.xlu0 %1032
        %1036 = vset.pattern.permute.xlu0 0
        %1037 = vperm.xlu0 %1036, %v1008
        %v1038 = vpop.permute.xlu0 %1037
        %v1041 = vlaneseq
        %v1042 = vshrl.u32 %v1041, 7
        %v1043 = vsub.s32 0, %v1042
        %v1044 = vrot.slane %v1009, %v1043
        %v1046 = vmul.f32 %v1013, %v1044
        %v1047 = vmul.f32 %v1018, %v1044
        %v1048 = vmul.f32 %v1023, %v1044
        %v1049 = vmul.f32 %v1028, %v1044
        %v1050 = vmul.f32 %v1033, %v1044
        %v1051 = vmul.f32 %v1038, %v1044
        %v1052 = vadd.f32 %v1046, 0.0
        %v1053 = vadd.f32 %v1047, 0.0
        %v1054 = vadd.f32 %v1048, 0.0
        %v1055 = vadd.f32 %v1049, 0.0
        %v1056 = vadd.f32 %v1050, 0.0
        %v1057 = vadd.f32 %v1051, 0.0
        %v1058 = vld [vmem:[%s1002 + $0x6] sm:$0xff]
        %v1059 = vld [vmem:[%s1002 + $0xe] sm:$0xff]
        %v1060 = vld [vmem:[%s1002 + $0x16] sm:$0xff]
        %v1061 = vld [vmem:[%s1002 + $0x1e] sm:$0xff]
        %v1062 = vld [vmem:[%s1002 + $0x26] sm:$0xff]
        %v1063 = vld [vmem:[%s1002 + $0x2e] sm:$0xff]
        %v1064 = vld [vmem:[%s635] sm:$0x1]
        %1066 = vset.pattern.permute.xlu0 0
        %1067 = vperm.xlu0 %1066, %v1058
        %v1068 = vpop.permute.xlu0 %1067
        %1071 = vset.pattern.permute.xlu0 0
        %1072 = vperm.xlu0 %1071, %v1059
        %v1073 = vpop.permute.xlu0 %1072
        %1076 = vset.pattern.permute.xlu0 0
        %1077 = vperm.xlu0 %1076, %v1060
        %v1078 = vpop.permute.xlu0 %1077
        %1081 = vset.pattern.permute.xlu0 0
        %1082 = vperm.xlu0 %1081, %v1061
        %v1083 = vpop.permute.xlu0 %1082
        %1086 = vset.pattern.permute.xlu0 0
        %1087 = vperm.xlu0 %1086, %v1062
        %v1088 = vpop.permute.xlu0 %1087
        %1091 = vset.pattern.permute.xlu0 0
        %1092 = vperm.xlu0 %1091, %v1063
        %v1093 = vpop.permute.xlu0 %1092
        %v1096 = vlaneseq
        %v1097 = vshrl.u32 %v1096, 7
        %v1098 = vsub.s32 0, %v1097
        %v1099 = vrot.slane %v1064, %v1098
        %v1101 = vmul.f32 %v1068, %v1099
        %v1102 = vmul.f32 %v1073, %v1099
        %v1103 = vmul.f32 %v1078, %v1099
        %v1104 = vmul.f32 %v1083, %v1099
        %v1105 = vmul.f32 %v1088, %v1099
        %v1106 = vmul.f32 %v1093, %v1099
        %v1107 = vadd.f32 %v1052, %v1101
        %v1108 = vadd.f32 %v1053, %v1102
        %v1109 = vadd.f32 %v1054, %v1103
        %v1110 = vadd.f32 %v1055, %v1104
        %v1111 = vadd.f32 %v1056, %v1105
        %v1112 = vadd.f32 %v1057, %v1106
        %v1113 = vld [vmem:[%s1002 + $0x7] sm:$0xff]
        %v1114 = vld [vmem:[%s1002 + $0xf] sm:$0xff]
        %v1115 = vld [vmem:[%s1002 + $0x17] sm:$0xff]
        %v1116 = vld [vmem:[%s1002 + $0x1f] sm:$0xff]
        %v1117 = vld [vmem:[%s1002 + $0x27] sm:$0xff]
        %v1118 = vld [vmem:[%s1002 + $0x2f] sm:$0xff]
        %v1119 = vld [vmem:[%s691] sm:$0x1]
        %1121 = vset.pattern.permute.xlu0 0
        %1122 = vperm.xlu0 %1121, %v1113
        %v1123 = vpop.permute.xlu0 %1122
        %1126 = vset.pattern.permute.xlu0 0
        %1127 = vperm.xlu0 %1126, %v1114
        %v1128 = vpop.permute.xlu0 %1127
        %1131 = vset.pattern.permute.xlu0 0
        %1132 = vperm.xlu0 %1131, %v1115
        %v1133 = vpop.permute.xlu0 %1132
        %1136 = vset.pattern.permute.xlu0 0
        %1137 = vperm.xlu0 %1136, %v1116
        %v1138 = vpop.permute.xlu0 %1137
        %1141 = vset.pattern.permute.xlu0 0
        %1142 = vperm.xlu0 %1141, %v1117
        %v1143 = vpop.permute.xlu0 %1142
        %1146 = vset.pattern.permute.xlu0 0
        %1147 = vperm.xlu0 %1146, %v1118
        %v1148 = vpop.permute.xlu0 %1147
        %v1151 = vlaneseq
        %v1152 = vshrl.u32 %v1151, 7
        %v1153 = vsub.s32 0, %v1152
        %v1154 = vrot.slane %v1119, %v1153
        %v1156 = vmul.f32 %v1123, %v1154
        %v1157 = vmul.f32 %v1128, %v1154
        %v1158 = vmul.f32 %v1133, %v1154
        %v1159 = vmul.f32 %v1138, %v1154
        %v1160 = vmul.f32 %v1143, %v1154
        %v1161 = vmul.f32 %v1148, %v1154
        %v1162 = vadd.f32 %v1107, %v1156
        %v1163 = vadd.f32 %v1108, %v1157
        %v1164 = vadd.f32 %v1109, %v1158
        %v1165 = vadd.f32 %v1110, %v1159
        %v1166 = vadd.f32 %v1111, %v1160
        %v1167 = vadd.f32 %v1112, %v1161
        %v1168 = vld [vmem:[%s1002 + $0x8] sm:$0xff]
        %v1169 = vld [vmem:[%s1002 + $0x10] sm:$0xff]
        %v1170 = vld [vmem:[%s1002 + $0x18] sm:$0xff]
        %v1171 = vld [vmem:[%s1002 + $0x20] sm:$0xff]
        %v1172 = vld [vmem:[%s1002 + $0x28] sm:$0xff]
        %v1173 = vld [vmem:[%s1002 + $0x30] sm:$0xff]
        %v1174 = vld [vmem:[%s747] sm:$0x1]
        %1176 = vset.pattern.permute.xlu0 0
        %1177 = vperm.xlu0 %1176, %v1168
        %v1178 = vpop.permute.xlu0 %1177
        %1181 = vset.pattern.permute.xlu0 0
        %1182 = vperm.xlu0 %1181, %v1169
        %v1183 = vpop.permute.xlu0 %1182
        %1186 = vset.pattern.permute.xlu0 0
        %1187 = vperm.xlu0 %1186, %v1170
        %v1188 = vpop.permute.xlu0 %1187
        %1191 = vset.pattern.permute.xlu0 0
        %1192 = vperm.xlu0 %1191, %v1171
        %v1193 = vpop.permute.xlu0 %1192
        %1196 = vset.pattern.permute.xlu0 0
        %1197 = vperm.xlu0 %1196, %v1172
        %v1198 = vpop.permute.xlu0 %1197
        %1201 = vset.pattern.permute.xlu0 0
        %1202 = vperm.xlu0 %1201, %v1173
        %v1203 = vpop.permute.xlu0 %1202
        %v1206 = vlaneseq
        %v1207 = vshrl.u32 %v1206, 7
        %v1208 = vsub.s32 0, %v1207
        %v1209 = vrot.slane %v1174, %v1208
        %v1211 = vmul.f32 %v1178, %v1209
        %v1212 = vmul.f32 %v1183, %v1209
        %v1213 = vmul.f32 %v1188, %v1209
        %v1214 = vmul.f32 %v1193, %v1209
        %v1215 = vmul.f32 %v1198, %v1209
        %v1216 = vmul.f32 %v1203, %v1209
        %v1217 = vadd.f32 %v1162, %v1211
        %v1218 = vadd.f32 %v1163, %v1212
        %v1219 = vadd.f32 %v1164, %v1213
        %v1220 = vadd.f32 %v1165, %v1214
        %v1221 = vadd.f32 %v1166, %v1215
        %v1222 = vadd.f32 %v1167, %v1216
        %v1223 = vld [vmem:[%s1002 + $0x9] sm:$0xff]
        %v1224 = vld [vmem:[%s1002 + $0x11] sm:$0xff]
        %v1225 = vld [vmem:[%s1002 + $0x19] sm:$0xff]
        %v1226 = vld [vmem:[%s1002 + $0x21] sm:$0xff]
        %v1227 = vld [vmem:[%s1002 + $0x29] sm:$0xff]
        %v1228 = vld [vmem:[%s1002 + $0x31] sm:$0xff]
        %v1229 = vld [vmem:[%s803] sm:$0x1]
        %1231 = vset.pattern.permute.xlu0 0
        %1232 = vperm.xlu0 %1231, %v1223
        %v1233 = vpop.permute.xlu0 %1232
        %1236 = vset.pattern.permute.xlu0 0
        %1237 = vperm.xlu0 %1236, %v1224
        %v1238 = vpop.permute.xlu0 %1237
        %1241 = vset.pattern.permute.xlu0 0
        %1242 = vperm.xlu0 %1241, %v1225
        %v1243 = vpop.permute.xlu0 %1242
        %1246 = vset.pattern.permute.xlu0 0
        %1247 = vperm.xlu0 %1246, %v1226
        %v1248 = vpop.permute.xlu0 %1247
        %1251 = vset.pattern.permute.xlu0 0
        %1252 = vperm.xlu0 %1251, %v1227
        %v1253 = vpop.permute.xlu0 %1252
        %1256 = vset.pattern.permute.xlu0 0
        %1257 = vperm.xlu0 %1256, %v1228
        %v1258 = vpop.permute.xlu0 %1257
        %v1261 = vlaneseq
        %v1262 = vshrl.u32 %v1261, 7
        %v1263 = vsub.s32 0, %v1262
        %v1264 = vrot.slane %v1229, %v1263
        %v1266 = vmul.f32 %v1233, %v1264
        %v1267 = vmul.f32 %v1238, %v1264
        %v1268 = vmul.f32 %v1243, %v1264
        %v1269 = vmul.f32 %v1248, %v1264
        %v1270 = vmul.f32 %v1253, %v1264
        %v1271 = vmul.f32 %v1258, %v1264
        %v1272 = vadd.f32 %v1217, %v1266
        %v1273 = vadd.f32 %v1218, %v1267
        %v1274 = vadd.f32 %v1219, %v1268
        %v1275 = vadd.f32 %v1220, %v1269
        %v1276 = vadd.f32 %v1221, %v1270
        %v1277 = vadd.f32 %v1222, %v1271
        %v1278 = vld [vmem:[%s1002 + $0xa] sm:$0xff]
        %v1279 = vld [vmem:[%s1002 + $0x12] sm:$0xff]
        %v1280 = vld [vmem:[%s1002 + $0x1a] sm:$0xff]
        %v1281 = vld [vmem:[%s1002 + $0x22] sm:$0xff]
        %v1282 = vld [vmem:[%s1002 + $0x2a] sm:$0xff]
        %v1283 = vld [vmem:[%s1002 + $0x32] sm:$0xff]
        %v1284 = vld [vmem:[%s859] sm:$0x1]
        %1286 = vset.pattern.permute.xlu0 0
        %1287 = vperm.xlu0 %1286, %v1278
        %v1288 = vpop.permute.xlu0 %1287
        %1291 = vset.pattern.permute.xlu0 0
        %1292 = vperm.xlu0 %1291, %v1279
        %v1293 = vpop.permute.xlu0 %1292
        %1296 = vset.pattern.permute.xlu0 0
        %1297 = vperm.xlu0 %1296, %v1280
        %v1298 = vpop.permute.xlu0 %1297
        %1301 = vset.pattern.permute.xlu0 0
        %1302 = vperm.xlu0 %1301, %v1281
        %v1303 = vpop.permute.xlu0 %1302
        %1306 = vset.pattern.permute.xlu0 0
        %1307 = vperm.xlu0 %1306, %v1282
        %v1308 = vpop.permute.xlu0 %1307
        %1311 = vset.pattern.permute.xlu0 0
        %1312 = vperm.xlu0 %1311, %v1283
        %v1313 = vpop.permute.xlu0 %1312
        %v1316 = vlaneseq
        %v1317 = vshrl.u32 %v1316, 7
        %v1318 = vsub.s32 0, %v1317
        %v1319 = vrot.slane %v1284, %v1318
        %v1321 = vmul.f32 %v1288, %v1319
        %v1322 = vmul.f32 %v1293, %v1319
        %v1323 = vmul.f32 %v1298, %v1319
        %v1324 = vmul.f32 %v1303, %v1319
        %v1325 = vmul.f32 %v1308, %v1319
        %v1326 = vmul.f32 %v1313, %v1319
        %v1327 = vadd.f32 %v1272, %v1321
        %v1328 = vadd.f32 %v1273, %v1322
        %v1329 = vadd.f32 %v1274, %v1323
        %v1330 = vadd.f32 %v1275, %v1324
        %v1331 = vadd.f32 %v1276, %v1325
        %v1332 = vadd.f32 %v1277, %v1326
        %v1333 = vld [vmem:[%s1002 + $0xb] sm:$0xff]
        %v1334 = vld [vmem:[%s1002 + $0x13] sm:$0xff]
        %v1335 = vld [vmem:[%s1002 + $0x1b] sm:$0xff]
        %v1336 = vld [vmem:[%s1002 + $0x23] sm:$0xff]
        %v1337 = vld [vmem:[%s1002 + $0x2b] sm:$0xff]
        %v1338 = vld [vmem:[%s1002 + $0x33] sm:$0xff]
        %v1339 = vld [vmem:[%s915] sm:$0x1]
        %1341 = vset.pattern.permute.xlu0 0
        %1342 = vperm.xlu0 %1341, %v1333
        %v1343 = vpop.permute.xlu0 %1342
        %1346 = vset.pattern.permute.xlu0 0
        %1347 = vperm.xlu0 %1346, %v1334
        %v1348 = vpop.permute.xlu0 %1347
        %1351 = vset.pattern.permute.xlu0 0
        %1352 = vperm.xlu0 %1351, %v1335
        %v1353 = vpop.permute.xlu0 %1352
        %1356 = vset.pattern.permute.xlu0 0
        %1357 = vperm.xlu0 %1356, %v1336
        %v1358 = vpop.permute.xlu0 %1357
        %1361 = vset.pattern.permute.xlu0 0
        %1362 = vperm.xlu0 %1361, %v1337
        %v1363 = vpop.permute.xlu0 %1362
        %1366 = vset.pattern.permute.xlu0 0
        %1367 = vperm.xlu0 %1366, %v1338
        %v1368 = vpop.permute.xlu0 %1367
        %v1371 = vlaneseq
        %v1372 = vshrl.u32 %v1371, 7
        %v1373 = vsub.s32 0, %v1372
        %v1374 = vrot.slane %v1339, %v1373
        %v1376 = vmul.f32 %v1343, %v1374
        %v1377 = vmul.f32 %v1348, %v1374
        %v1378 = vmul.f32 %v1353, %v1374
        %v1379 = vmul.f32 %v1358, %v1374
        %v1380 = vmul.f32 %v1363, %v1374
        %v1381 = vmul.f32 %v1368, %v1374
        %v1382 = vadd.f32 %v1327, %v1376
        %v1383 = vadd.f32 %v1328, %v1377
        %v1384 = vadd.f32 %v1329, %v1378
        %v1385 = vadd.f32 %v1330, %v1379
        %v1386 = vadd.f32 %v1331, %v1380
        %v1387 = vadd.f32 %v1332, %v1381
        %v1388 = vld [vmem:[%s2] sm:$0x1]
        %v1390 = vlaneseq
        %v1391 = vshrl.u32 %v1390, 7
        %v1392 = vsub.s32 0, %v1391
        %v1393 = vrot.slane %v1388, %v1392
        %v1395 = vadd.f32 %v1382, %v1393
        %v1396 = vadd.f32 %v1383, %v1393
        %v1397 = vadd.f32 %v1384, %v1393
        %v1398 = vadd.f32 %v1385, %v1393
        %v1399 = vadd.f32 %v1386, %v1393
        %v1400 = vadd.f32 %v1387, %v1393
        %vm1401 = vcmp.gt.f32.partialorder %v1395, 0.0
        %vm1402 = vcmp.gt.f32.partialorder %v1396, 0.0
        %vm1403 = vcmp.gt.f32.partialorder %v1397, 0.0
        %vm1404 = vcmp.gt.f32.partialorder %v1398, 0.0
        %vm1405 = vcmp.gt.f32.partialorder %v1399, 0.0
        %vm1406 = vcmp.gt.f32.partialorder %v1400, 0.0
        %v1407 = vmul.f32 %v1395, 0.01
        %v1408 = vmul.f32 %v1396, 0.01
        %v1409 = vmul.f32 %v1397, 0.01
        %v1410 = vmul.f32 %v1398, 0.01
        %v1411 = vmul.f32 %v1399, 0.01
        %v1412 = vmul.f32 %v1400, 0.01
        %v1413 = vsel %vm1401, %v1395, %v1407
        %v1414 = vsel %vm1402, %v1396, %v1408
        %v1415 = vsel %vm1403, %v1397, %v1409
        %v1416 = vsel %vm1404, %v1398, %v1410
        %v1417 = vsel %vm1405, %v1399, %v1411
        %v1418 = vsel %vm1406, %v1400, %v1412
        %s1419 = scalar_lea.vmem [#allocation3], 64
        %1420 = vst.msk [vmem:[%s1419 + $0x8] sm:$0xff] %vm510, %v1413
        %1421 = vst.msk [vmem:[%s1419 + $0x10] sm:$0xff] %vm510, %v1414
        %1422 = vst.msk [vmem:[%s1419 + $0x18] sm:$0xff] %vm510, %v1415
        %1423 = vst.msk [vmem:[%s1419 + $0x20] sm:$0xff] %vm510, %v1416
        %1424 = vst.msk [vmem:[%s1419 + $0x28] sm:$0xff] %vm510, %v1417
        %1425 = vst.msk [vmem:[%s1419 + $0x30] sm:$0xff] %vm510, %v1418
        %v1426 = vld [vmem:[#allocation3 + $0x4] sm:$0xff]
        %v1427 = vld [vmem:[#allocation3 + $0xc] sm:$0xff]
        %v1428 = vld [vmem:[#allocation3 + $0x14] sm:$0xff]
        %v1429 = vld [vmem:[#allocation3 + $0x1c] sm:$0xff]
        %v1430 = vld [vmem:[#allocation3 + $0x24] sm:$0xff]
        %v1431 = vld [vmem:[#allocation3 + $0x2c] sm:$0xff]
        %v1432 = vld [vmem:[#allocation3 + $0x34] sm:$0xf]
        %v1433 = vld [vmem:[%s3] sm:$0xff]
        %v1434 = vld [vmem:[%s3 + $0x8] sm:$0xff]
        %v1435 = vld [vmem:[%s3 + $0x10] sm:$0xff]
        %v1436 = vld [vmem:[%s3 + $0x18] sm:$0xff]
        %v1437 = vld [vmem:[#allocation3 + $0x5] sm:$0xff]
        %v1438 = vld [vmem:[#allocation3 + $0xd] sm:$0xff]
        %v1439 = vld [vmem:[#allocation3 + $0x15] sm:$0xff]
        %v1440 = vld [vmem:[#allocation3 + $0x1d] sm:$0xff]
        %v1441 = vld [vmem:[#allocation3 + $0x25] sm:$0xff]
        %v1442 = vld [vmem:[#allocation3 + $0x2d] sm:$0xff]
        %v1443 = vld [vmem:[#allocation3 + $0x35] sm:$0xf]
        %s1444 = scalar_lea.vmem %s3, 32
        %v1445 = vld [vmem:[%s1444] sm:$0xff]
        %v1446 = vld [vmem:[%s1444 + $0x8] sm:$0xff]
        %v1447 = vld [vmem:[%s1444 + $0x10] sm:$0xff]
        %v1448 = vld [vmem:[%s1444 + $0x18] sm:$0xff]
        %v1450 = vsel %vm510, %v1437, 0
        %v1453 = vsel %vm510, %v1438, 0
        %v1456 = vsel %vm510, %v1439, 0
        %v1459 = vsel %vm510, %v1440, 0
        %v1462 = vsel %vm510, %v1441, 0
        %v1465 = vsel %vm510, %v1442, 0
        %v1468 = vsel %vm510, %v1443, 0
        %1470 = vmatprep.subr.mxu0 0.0
        %1471 = vmatpush1.msra.mxu0 %v1445
        %1472 = vmatprep.subr.mxu0 0.0
        %1473 = vmatpush1.msra.mxu0 %v1446
        %1474 = vmatprep.subr.mxu0 0.0
        %1475 = vmatpush1.msra.mxu0 %v1447
        %1476 = vmatprep.subr.mxu0 0.0
        %1477 = vmatpush1.msra.mxu0 %v1448
        %1478 = vmatprep.subr.mxu0 0.0
        %1479 = vmatpush1.msra.mxu0 0.0
        %1480 = vmatprep.subr.mxu0 0.0
        %1481 = vmatpush1.msra.mxu0 0.0
        %1482 = vmatprep.subr.mxu0 0.0
        %1483 = vmatpush1.msra.mxu0 0.0
        %1484 = vmatprep.subr.mxu0 0.0
        %1485 = vmatpush1.msra.mxu0 0.0
        %1486 = vmatprep.subr.mxu0 0.0
        %1487 = vmatpush1.msra.mxu0 0.0
        %1488 = vmatprep.subr.mxu0 0.0
        %1489 = vmatpush1.msra.mxu0 0.0
        %1490 = vmatprep.subr.mxu0 0.0
        %1491 = vmatpush1.msra.mxu0 0.0
        %1492 = vmatprep.subr.mxu0 0.0
        %1493 = vmatpush1.msra.mxu0 0.0
        %1494 = vmatprep.subr.mxu0 0.0
        %1495 = vmatpush1.msra.mxu0 0.0
        %1496 = vmatprep.subr.mxu0 0.0
        %1497 = vmatpush1.msra.mxu0 0.0
        %1498 = vmatprep.subr.mxu0 0.0
        %1499 = vmatpush1.msra.mxu0 0.0
        %1500 = vmatprep.subr.mxu0 0.0
        %1501 = vmatpush1.msra.mxu0 0.0
        %1502 = vmatprep.subr.mxu0 0.0
        %1503 = vmatpush1.msra.mxu0 0.0
        %1504 = vmatprep.subr.mxu0 0.0
        %1505 = vmatpush1.msra.mxu0 0.0
        %1506 = vmatprep.subr.mxu0 0.0
        %1507 = vmatpush1.msra.mxu0 0.0
        %1508 = vmatprep.subr.mxu0 0.0
        %1509 = vmatpush1.msra.mxu0 0.0
        %1510 = vmatprep.subr.mxu0 0.0
        %1511 = vmatpush1.msra.mxu0 0.0
        %1512 = vmatprep.subr.mxu0 0.0
        %1513 = vmatpush1.msra.mxu0 0.0
        %1514 = vmatprep.subr.mxu0 0.0
        %1515 = vmatpush1.msra.mxu0 0.0
        %1516 = vmatprep.subr.mxu0 0.0
        %1517 = vmatpush1.msra.mxu0 0.0
        %1518 = vmatprep.subr.mxu0 0.0
        %1519 = vmatpush1.msra.mxu0 0.0
        %1520 = vmatprep.subr.mxu0 0.0
        %1521 = vmatpush1.msra.mxu0 0.0
        %1522 = vmatprep.subr.mxu0 0.0
        %1523 = vmatpush1.msra.mxu0 0.0
        %1524 = vmatprep.subr.mxu0 0.0
        %1525 = vmatpush1.msra.mxu0 0.0
        %1526 = vmatprep.subr.mxu0 0.0
        %1527 = vmatpush1.msra.mxu0 0.0
        %1528 = vmatprep.subr.mxu0 0.0
        %1529 = vmatpush1.msra.mxu0 0.0
        %1530 = vmatprep.subr.mxu0 0.0
        %1531 = vmatpush1.msra.mxu0 0.0
        %1532 = vmatprep.subr.mxu0 0.0
        %1533 = vmatpush1.msra.mxu0 0.0
        %1534 = vmatprep.mubr.f32.mxu0 0.0
        %1535 = vmatmul.mubr.f32.gmra.mrb[0].mxu0 %v1450
        %v1536 = vpop.f32.mrb[0].mxu0
        %v1537 = vadd.f32 0.0, %v1536
        %v1538 = vpop.f32.mrb[0].mxu0
        %1539 = vmatprep.mubr.f32.mxu0 0.0
        %1540 = vmatmul.mubr.f32.gmra.mrb[0].mxu0 %v1453
        %v1541 = vpop.f32.mrb[0].mxu0
        %v1542 = vadd.f32 0.0, %v1541
        %v1543 = vpop.f32.mrb[0].mxu0
        %1544 = vmatprep.mubr.f32.mxu0 0.0
        %1545 = vmatmul.mubr.f32.gmra.mrb[0].mxu0 %v1456
        %v1546 = vpop.f32.mrb[0].mxu0
        %v1547 = vadd.f32 0.0, %v1546
        %v1548 = vpop.f32.mrb[0].mxu0
        %1549 = vmatprep.mubr.f32.mxu0 0.0
        %1550 = vmatmul.mubr.f32.gmra.mrb[0].mxu0 %v1459
        %v1551 = vpop.f32.mrb[0].mxu0
        %v1552 = vadd.f32 0.0, %v1551
        %v1553 = vpop.f32.mrb[0].mxu0
        %1554 = vmatprep.mubr.f32.mxu0 0.0
        %1555 = vmatmul.mubr.f32.gmra.mrb[0].mxu0 %v1462
        %v1556 = vpop.f32.mrb[0].mxu0
        %v1557 = vadd.f32 0.0, %v1556
        %v1558 = vpop.f32.mrb[0].mxu0
        %1559 = vmatprep.mubr.f32.mxu0 0.0
        %1560 = vmatmul.mubr.f32.gmra.mrb[0].mxu0 %v1465
        %v1561 = vpop.f32.mrb[0].mxu0
        %v1562 = vadd.f32 0.0, %v1561
        %v1563 = vpop.f32.mrb[0].mxu0
        %1564 = vmatprep.mubr.f32.mxu0 0.0
        %1565 = vmatmul.mubr.f32.gmra.mrb[0].mxu0 %v1468
        %v1566 = vpop.f32.mrb[0].mxu0
        %v1567 = vadd.f32 0.0, %v1566
        %v1568 = vpop.f32.mrb[0].mxu0
        %1569 = vdwg.mxu0
        %v1571 = vsel %vm510, %v1426, 0
        %v1574 = vsel %vm510, %v1427, 0
        %v1577 = vsel %vm510, %v1428, 0
        %v1580 = vsel %vm510, %v1429, 0
        %v1583 = vsel %vm510, %v1430, 0
        %v1586 = vsel %vm510, %v1431, 0
        %v1589 = vsel %vm510, %v1432, 0
        %1591 = vmatprep.subr.mxu0 0.0
        %1592 = vmatpush1.msra.mxu0 %v1433
        %1593 = vmatprep.subr.mxu0 0.0
        %1594 = vmatpush1.msra.mxu0 %v1434
        %1595 = vmatprep.subr.mxu0 0.0
        %1596 = vmatpush1.msra.mxu0 %v1435
        %1597 = vmatprep.subr.mxu0 0.0
        %1598 = vmatpush1.msra.mxu0 %v1436
        %1599 = vmatprep.subr.mxu0 0.0
        %1600 = vmatpush1.msra.mxu0 0.0
        %1601 = vmatprep.subr.mxu0 0.0
        %1602 = vmatpush1.msra.mxu0 0.0
        %1603 = vmatprep.subr.mxu0 0.0
        %1604 = vmatpush1.msra.mxu0 0.0
        %1605 = vmatprep.subr.mxu0 0.0
        %1606 = vmatpush1.msra.mxu0 0.0
        %1607 = vmatprep.subr.mxu0 0.0
        %1608 = vmatpush1.msra.mxu0 0.0
        %1609 = vmatprep.subr.mxu0 0.0
        %1610 = vmatpush1.msra.mxu0 0.0
        %1611 = vmatprep.subr.mxu0 0.0
        %1612 = vmatpush1.msra.mxu0 0.0
        %1613 = vmatprep.subr.mxu0 0.0
        %1614 = vmatpush1.msra.mxu0 0.0
        %1615 = vmatprep.subr.mxu0 0.0
        %1616 = vmatpush1.msra.mxu0 0.0
        %1617 = vmatprep.subr.mxu0 0.0
        %1618 = vmatpush1.msra.mxu0 0.0
        %1619 = vmatprep.subr.mxu0 0.0
        %1620 = vmatpush1.msra.mxu0 0.0
        %1621 = vmatprep.subr.mxu0 0.0
        %1622 = vmatpush1.msra.mxu0 0.0
        %1623 = vmatprep.subr.mxu0 0.0
        %1624 = vmatpush1.msra.mxu0 0.0
        %1625 = vmatprep.subr.mxu0 0.0
        %1626 = vmatpush1.msra.mxu0 0.0
        %1627 = vmatprep.subr.mxu0 0.0
        %1628 = vmatpush1.msra.mxu0 0.0
        %1629 = vmatprep.subr.mxu0 0.0
        %1630 = vmatpush1.msra.mxu0 0.0
        %1631 = vmatprep.subr.mxu0 0.0
        %1632 = vmatpush1.msra.mxu0 0.0
        %1633 = vmatprep.subr.mxu0 0.0
        %1634 = vmatpush1.msra.mxu0 0.0
        %1635 = vmatprep.subr.mxu0 0.0
        %1636 = vmatpush1.msra.mxu0 0.0
        %1637 = vmatprep.subr.mxu0 0.0
        %1638 = vmatpush1.msra.mxu0 0.0
        %1639 = vmatprep.subr.mxu0 0.0
        %1640 = vmatpush1.msra.mxu0 0.0
        %1641 = vmatprep.subr.mxu0 0.0
        %1642 = vmatpush1.msra.mxu0 0.0
        %1643 = vmatprep.subr.mxu0 0.0
        %1644 = vmatpush1.msra.mxu0 0.0
        %1645 = vmatprep.subr.mxu0 0.0
        %1646 = vmatpush1.msra.mxu0 0.0
        %1647 = vmatprep.subr.mxu0 0.0
        %1648 = vmatpush1.msra.mxu0 0.0
        %1649 = vmatprep.subr.mxu0 0.0
        %1650 = vmatpush1.msra.mxu0 0.0
        %1651 = vmatprep.subr.mxu0 0.0
        %1652 = vmatpush1.msra.mxu0 0.0
        %1653 = vmatprep.subr.mxu0 0.0
        %1654 = vmatpush1.msra.mxu0 0.0
        %1655 = vmatprep.mubr.f32.mxu0 0.0
        %1656 = vmatmul.mubr.f32.gmra.mrb[0].mxu0 %v1571
        %v1657 = vpop.f32.mrb[0].mxu0
        %v1658 = vadd.f32 %v1537, %v1657
        %v1659 = vpop.f32.mrb[0].mxu0
        %1660 = vmatprep.mubr.f32.mxu0 0.0
        %1661 = vmatmul.mubr.f32.gmra.mrb[0].mxu0 %v1574
        %v1662 = vpop.f32.mrb[0].mxu0
        %v1663 = vadd.f32 %v1542, %v1662
        %v1664 = vpop.f32.mrb[0].mxu0
        %1665 = vmatprep.mubr.f32.mxu0 0.0
        %1666 = vmatmul.mubr.f32.gmra.mrb[0].mxu0 %v1577
        %v1667 = vpop.f32.mrb[0].mxu0
        %v1668 = vadd.f32 %v1547, %v1667
        %v1669 = vpop.f32.mrb[0].mxu0
        %1670 = vmatprep.mubr.f32.mxu0 0.0
        %1671 = vmatmul.mubr.f32.gmra.mrb[0].mxu0 %v1580
        %v1672 = vpop.f32.mrb[0].mxu0
        %v1673 = vadd.f32 %v1552, %v1672
        %v1674 = vpop.f32.mrb[0].mxu0
        %1675 = vmatprep.mubr.f32.mxu0 0.0
        %1676 = vmatmul.mubr.f32.gmra.mrb[0].mxu0 %v1583
        %v1677 = vpop.f32.mrb[0].mxu0
        %v1678 = vadd.f32 %v1557, %v1677
        %v1679 = vpop.f32.mrb[0].mxu0
        %1680 = vmatprep.mubr.f32.mxu0 0.0
        %1681 = vmatmul.mubr.f32.gmra.mrb[0].mxu0 %v1586
        %v1682 = vpop.f32.mrb[0].mxu0
        %v1683 = vadd.f32 %v1562, %v1682
        %v1684 = vpop.f32.mrb[0].mxu0
        %1685 = vmatprep.mubr.f32.mxu0 0.0
        %1686 = vmatmul.mubr.f32.gmra.mrb[0].mxu0 %v1589
        %v1687 = vpop.f32.mrb[0].mxu0
        %v1688 = vadd.f32 %v1567, %v1687
        %v1689 = vpop.f32.mrb[0].mxu0
        %1690 = vdwg.mxu0
        %v1691 = vld [vmem:[#allocation3 + $0x6] sm:$0xff]
        %v1692 = vld [vmem:[#allocation3 + $0xe] sm:$0xff]
        %v1693 = vld [vmem:[#allocation3 + $0x16] sm:$0xff]
        %v1694 = vld [vmem:[#allocation3 + $0x1e] sm:$0xff]
        %v1695 = vld [vmem:[#allocation3 + $0x26] sm:$0xff]
        %v1696 = vld [vmem:[#allocation3 + $0x2e] sm:$0xff]
        %v1697 = vld [vmem:[#allocation3 + $0x36] sm:$0xf]
        %s1698 = scalar_lea.vmem %s3, 64
        %v1699 = vld [vmem:[%s1698] sm:$0xff]
        %v1700 = vld [vmem:[%s1698 + $0x8] sm:$0xff]
        %v1701 = vld [vmem:[%s1698 + $0x10] sm:$0xff]
        %v1702 = vld [vmem:[%s1698 + $0x18] sm:$0xff]
        %v1704 = vsel %vm510, %v1691, 0
        %v1707 = vsel %vm510, %v1692, 0
        %v1710 = vsel %vm510, %v1693, 0
        %v1713 = vsel %vm510, %v1694, 0
        %v1716 = vsel %vm510, %v1695, 0
        %v1719 = vsel %vm510, %v1696, 0
        %v1722 = vsel %vm510, %v1697, 0
        %1724 = vmatprep.subr.mxu0 0.0
        %1725 = vmatpush1.msra.mxu0 %v1699
        %1726 = vmatprep.subr.mxu0 0.0
        %1727 = vmatpush1.msra.mxu0 %v1700
        %1728 = vmatprep.subr.mxu0 0.0
        %1729 = vmatpush1.msra.mxu0 %v1701
        %1730 = vmatprep.subr.mxu0 0.0
        %1731 = vmatpush1.msra.mxu0 %v1702
        %1732 = vmatprep.subr.mxu0 0.0
        %1733 = vmatpush1.msra.mxu0 0.0
        %1734 = vmatprep.subr.mxu0 0.0
        %1735 = vmatpush1.msra.mxu0 0.0
        %1736 = vmatprep.subr.mxu0 0.0
        %1737 = vmatpush1.msra.mxu0 0.0
        %1738 = vmatprep.subr.mxu0 0.0
        %1739 = vmatpush1.msra.mxu0 0.0
        %1740 = vmatprep.subr.mxu0 0.0
        %1741 = vmatpush1.msra.mxu0 0.0
        %1742 = vmatprep.subr.mxu0 0.0
        %1743 = vmatpush1.msra.mxu0 0.0
        %1744 = vmatprep.subr.mxu0 0.0
        %1745 = vmatpush1.msra.mxu0 0.0
        %1746 = vmatprep.subr.mxu0 0.0
        %1747 = vmatpush1.msra.mxu0 0.0
        %1748 = vmatprep.subr.mxu0 0.0
        %1749 = vmatpush1.msra.mxu0 0.0
        %1750 = vmatprep.subr.mxu0 0.0
        %1751 = vmatpush1.msra.mxu0 0.0
        %1752 = vmatprep.subr.mxu0 0.0
        %1753 = vmatpush1.msra.mxu0 0.0
        %1754 = vmatprep.subr.mxu0 0.0
        %1755 = vmatpush1.msra.mxu0 0.0
        %1756 = vmatprep.subr.mxu0 0.0
        %1757 = vmatpush1.msra.mxu0 0.0
        %1758 = vmatprep.subr.mxu0 0.0
        %1759 = vmatpush1.msra.mxu0 0.0
        %1760 = vmatprep.subr.mxu0 0.0
        %1761 = vmatpush1.msra.mxu0 0.0
        %1762 = vmatprep.subr.mxu0 0.0
        %1763 = vmatpush1.msra.mxu0 0.0
        %1764 = vmatprep.subr.mxu0 0.0
        %1765 = vmatpush1.msra.mxu0 0.0
        %1766 = vmatprep.subr.mxu0 0.0
        %1767 = vmatpush1.msra.mxu0 0.0
        %1768 = vmatprep.subr.mxu0 0.0
        %1769 = vmatpush1.msra.mxu0 0.0
        %1770 = vmatprep.subr.mxu0 0.0
        %1771 = vmatpush1.msra.mxu0 0.0
        %1772 = vmatprep.subr.mxu0 0.0
        %1773 = vmatpush1.msra.mxu0 0.0
        %1774 = vmatprep.subr.mxu0 0.0
        %1775 = vmatpush1.msra.mxu0 0.0
        %1776 = vmatprep.subr.mxu0 0.0
        %1777 = vmatpush1.msra.mxu0 0.0
        %1778 = vmatprep.subr.mxu0 0.0
        %1779 = vmatpush1.msra.mxu0 0.0
        %1780 = vmatprep.subr.mxu0 0.0
        %1781 = vmatpush1.msra.mxu0 0.0
        %1782 = vmatprep.subr.mxu0 0.0
        %1783 = vmatpush1.msra.mxu0 0.0
        %1784 = vmatprep.subr.mxu0 0.0
        %1785 = vmatpush1.msra.mxu0 0.0
        %1786 = vmatprep.subr.mxu0 0.0
        %1787 = vmatpush1.msra.mxu0 0.0
        %1788 = vmatprep.mubr.f32.mxu0 0.0
        %1789 = vmatmul.mubr.f32.gmra.mrb[0].mxu0 %v1704
        %v1790 = vpop.f32.mrb[0].mxu0
        %v1791 = vadd.f32 0.0, %v1790
        %v1792 = vpop.f32.mrb[0].mxu0
        %1793 = vmatprep.mubr.f32.mxu0 0.0
        %1794 = vmatmul.mubr.f32.gmra.mrb[0].mxu0 %v1707
        %v1795 = vpop.f32.mrb[0].mxu0
        %v1796 = vadd.f32 0.0, %v1795
        %v1797 = vpop.f32.mrb[0].mxu0
        %1798 = vmatprep.mubr.f32.mxu0 0.0
        %1799 = vmatmul.mubr.f32.gmra.mrb[0].mxu0 %v1710
        %v1800 = vpop.f32.mrb[0].mxu0
        %v1801 = vadd.f32 0.0, %v1800
        %v1802 = vpop.f32.mrb[0].mxu0
        %1803 = vmatprep.mubr.f32.mxu0 0.0
        %1804 = vmatmul.mubr.f32.gmra.mrb[0].mxu0 %v1713
        %v1805 = vpop.f32.mrb[0].mxu0
        %v1806 = vadd.f32 0.0, %v1805
        %v1807 = vpop.f32.mrb[0].mxu0
        %1808 = vmatprep.mubr.f32.mxu0 0.0
        %1809 = vmatmul.mubr.f32.gmra.mrb[0].mxu0 %v1716
        %v1810 = vpop.f32.mrb[0].mxu0
        %v1811 = vadd.f32 0.0, %v1810
        %v1812 = vpop.f32.mrb[0].mxu0
        %1813 = vmatprep.mubr.f32.mxu0 0.0
        %1814 = vmatmul.mubr.f32.gmra.mrb[0].mxu0 %v1719
        %v1815 = vpop.f32.mrb[0].mxu0
        %v1816 = vadd.f32 0.0, %v1815
        %v1817 = vpop.f32.mrb[0].mxu0
        %1818 = vmatprep.mubr.f32.mxu0 0.0
        %1819 = vmatmul.mubr.f32.gmra.mrb[0].mxu0 %v1722
        %v1820 = vpop.f32.mrb[0].mxu0
        %v1821 = vadd.f32 0.0, %v1820
        %v1822 = vpop.f32.mrb[0].mxu0
        %1823 = vdwg.mxu0
        %v1824 = vadd.f32 %v1658, %v1791
        %v1825 = vadd.f32 %v1663, %v1796
        %v1826 = vadd.f32 %v1668, %v1801
        %v1827 = vadd.f32 %v1673, %v1806
        %v1828 = vadd.f32 %v1678, %v1811
        %v1829 = vadd.f32 %v1683, %v1816
        %v1830 = vadd.f32 %v1688, %v1821
        %v1831 = vld [vmem:[#allocation3 + $0x7] sm:$0xff]
        %v1832 = vld [vmem:[#allocation3 + $0xf] sm:$0xff]
        %v1833 = vld [vmem:[#allocation3 + $0x17] sm:$0xff]
        %v1834 = vld [vmem:[#allocation3 + $0x1f] sm:$0xff]
        %v1835 = vld [vmem:[#allocation3 + $0x27] sm:$0xff]
        %v1836 = vld [vmem:[#allocation3 + $0x2f] sm:$0xff]
        %v1837 = vld [vmem:[#allocation3 + $0x37] sm:$0xf]
        %s1838 = scalar_lea.vmem %s3, 96
        %v1839 = vld [vmem:[%s1838] sm:$0xff]
        %v1840 = vld [vmem:[%s1838 + $0x8] sm:$0xff]
        %v1841 = vld [vmem:[%s1838 + $0x10] sm:$0xff]
        %v1842 = vld [vmem:[%s1838 + $0x18] sm:$0xff]
        %v1844 = vsel %vm510, %v1831, 0
        %v1847 = vsel %vm510, %v1832, 0
        %v1850 = vsel %vm510, %v1833, 0
        %v1853 = vsel %vm510, %v1834, 0
        %v1856 = vsel %vm510, %v1835, 0
        %v1859 = vsel %vm510, %v1836, 0
        %v1862 = vsel %vm510, %v1837, 0
        %1864 = vmatprep.subr.mxu0 0.0
        %1865 = vmatpush1.msra.mxu0 %v1839
        %1866 = vmatprep.subr.mxu0 0.0
        %1867 = vmatpush1.msra.mxu0 %v1840
        %1868 = vmatprep.subr.mxu0 0.0
        %1869 = vmatpush1.msra.mxu0 %v1841
        %1870 = vmatprep.subr.mxu0 0.0
        %1871 = vmatpush1.msra.mxu0 %v1842
        %1872 = vmatprep.subr.mxu0 0.0
        %1873 = vmatpush1.msra.mxu0 0.0
        %1874 = vmatprep.subr.mxu0 0.0
        %1875 = vmatpush1.msra.mxu0 0.0
        %1876 = vmatprep.subr.mxu0 0.0
        %1877 = vmatpush1.msra.mxu0 0.0
        %1878 = vmatprep.subr.mxu0 0.0
        %1879 = vmatpush1.msra.mxu0 0.0
        %1880 = vmatprep.subr.mxu0 0.0
        %1881 = vmatpush1.msra.mxu0 0.0
        %1882 = vmatprep.subr.mxu0 0.0
        %1883 = vmatpush1.msra.mxu0 0.0
        %1884 = vmatprep.subr.mxu0 0.0
        %1885 = vmatpush1.msra.mxu0 0.0
        %1886 = vmatprep.subr.mxu0 0.0
        %1887 = vmatpush1.msra.mxu0 0.0
        %1888 = vmatprep.subr.mxu0 0.0
        %1889 = vmatpush1.msra.mxu0 0.0
        %1890 = vmatprep.subr.mxu0 0.0
        %1891 = vmatpush1.msra.mxu0 0.0
        %1892 = vmatprep.subr.mxu0 0.0
        %1893 = vmatpush1.msra.mxu0 0.0
        %1894 = vmatprep.subr.mxu0 0.0
        %1895 = vmatpush1.msra.mxu0 0.0
        %1896 = vmatprep.subr.mxu0 0.0
        %1897 = vmatpush1.msra.mxu0 0.0
        %1898 = vmatprep.subr.mxu0 0.0
        %1899 = vmatpush1.msra.mxu0 0.0
        %1900 = vmatprep.subr.mxu0 0.0
        %1901 = vmatpush1.msra.mxu0 0.0
        %1902 = vmatprep.subr.mxu0 0.0
        %1903 = vmatpush1.msra.mxu0 0.0
        %1904 = vmatprep.subr.mxu0 0.0
        %1905 = vmatpush1.msra.mxu0 0.0
        %1906 = vmatprep.subr.mxu0 0.0
        %1907 = vmatpush1.msra.mxu0 0.0
        %1908 = vmatprep.subr.mxu0 0.0
        %1909 = vmatpush1.msra.mxu0 0.0
        %1910 = vmatprep.subr.mxu0 0.0
        %1911 = vmatpush1.msra.mxu0 0.0
        %1912 = vmatprep.subr.mxu0 0.0
        %1913 = vmatpush1.msra.mxu0 0.0
        %1914 = vmatprep.subr.mxu0 0.0
        %1915 = vmatpush1.msra.mxu0 0.0
        %1916 = vmatprep.subr.mxu0 0.0
        %1917 = vmatpush1.msra.mxu0 0.0
        %1918 = vmatprep.subr.mxu0 0.0
        %1919 = vmatpush1.msra.mxu0 0.0
        %1920 = vmatprep.subr.mxu0 0.0
        %1921 = vmatpush1.msra.mxu0 0.0
        %1922 = vmatprep.subr.mxu0 0.0
        %1923 = vmatpush1.msra.mxu0 0.0
        %1924 = vmatprep.subr.mxu0 0.0
        %1925 = vmatpush1.msra.mxu0 0.0
        %1926 = vmatprep.subr.mxu0 0.0
        %1927 = vmatpush1.msra.mxu0 0.0
        %1928 = vmatprep.mubr.f32.mxu0 0.0
        %1929 = vmatmul.mubr.f32.gmra.mrb[0].mxu0 %v1844
        %v1930 = vpop.f32.mrb[0].mxu0
        %v1931 = vadd.f32 0.0, %v1930
        %v1932 = vpop.f32.mrb[0].mxu0
        %1933 = vmatprep.mubr.f32.mxu0 0.0
        %1934 = vmatmul.mubr.f32.gmra.mrb[0].mxu0 %v1847
        %v1935 = vpop.f32.mrb[0].mxu0
        %v1936 = vadd.f32 0.0, %v1935
        %v1937 = vpop.f32.mrb[0].mxu0
        %1938 = vmatprep.mubr.f32.mxu0 0.0
        %1939 = vmatmul.mubr.f32.gmra.mrb[0].mxu0 %v1850
        %v1940 = vpop.f32.mrb[0].mxu0
        %v1941 = vadd.f32 0.0, %v1940
        %v1942 = vpop.f32.mrb[0].mxu0
        %1943 = vmatprep.mubr.f32.mxu0 0.0
        %1944 = vmatmul.mubr.f32.gmra.mrb[0].mxu0 %v1853
        %v1945 = vpop.f32.mrb[0].mxu0
        %v1946 = vadd.f32 0.0, %v1945
        %v1947 = vpop.f32.mrb[0].mxu0
        %1948 = vmatprep.mubr.f32.mxu0 0.0
        %1949 = vmatmul.mubr.f32.gmra.mrb[0].mxu0 %v1856
        %v1950 = vpop.f32.mrb[0].mxu0
        %v1951 = vadd.f32 0.0, %v1950
        %v1952 = vpop.f32.mrb[0].mxu0
        %1953 = vmatprep.mubr.f32.mxu0 0.0
        %1954 = vmatmul.mubr.f32.gmra.mrb[0].mxu0 %v1859
        %v1955 = vpop.f32.mrb[0].mxu0
        %v1956 = vadd.f32 0.0, %v1955
        %v1957 = vpop.f32.mrb[0].mxu0
        %1958 = vmatprep.mubr.f32.mxu0 0.0
        %1959 = vmatmul.mubr.f32.gmra.mrb[0].mxu0 %v1862
        %v1960 = vpop.f32.mrb[0].mxu0
        %v1961 = vadd.f32 0.0, %v1960
        %v1962 = vpop.f32.mrb[0].mxu0
        %1963 = vdwg.mxu0
        %v1964 = vadd.f32 %v1824, %v1931
        %v1965 = vadd.f32 %v1825, %v1936
        %v1966 = vadd.f32 %v1826, %v1941
        %v1967 = vadd.f32 %v1827, %v1946
        %v1968 = vadd.f32 %v1828, %v1951
        %v1969 = vadd.f32 %v1829, %v1956
        %v1970 = vadd.f32 %v1830, %v1961
        %v1971 = vld [vmem:[#allocation3 + $0x8] sm:$0xff]
        %v1972 = vld [vmem:[#allocation3 + $0x10] sm:$0xff]
        %v1973 = vld [vmem:[#allocation3 + $0x18] sm:$0xff]
        %v1974 = vld [vmem:[#allocation3 + $0x20] sm:$0xff]
        %v1975 = vld [vmem:[#allocation3 + $0x28] sm:$0xff]
        %v1976 = vld [vmem:[#allocation3 + $0x30] sm:$0xff]
        %v1977 = vld [vmem:[#allocation3 + $0x38] sm:$0xf]
        %s1978 = scalar_lea.vmem %s3, 128
        %v1979 = vld [vmem:[%s1978] sm:$0xff]
        %v1980 = vld [vmem:[%s1978 + $0x8] sm:$0xff]
        %v1981 = vld [vmem:[%s1978 + $0x10] sm:$0xff]
        %v1982 = vld [vmem:[%s1978 + $0x18] sm:$0xff]
        %v1984 = vsel %vm510, %v1971, 0
        %v1987 = vsel %vm510, %v1972, 0
        %v1990 = vsel %vm510, %v1973, 0
        %v1993 = vsel %vm510, %v1974, 0
        %v1996 = vsel %vm510, %v1975, 0
        %v1999 = vsel %vm510, %v1976, 0
        %v2002 = vsel %vm510, %v1977, 0
        %2004 = vmatprep.subr.mxu0 0.0
        %2005 = vmatpush1.msra.mxu0 %v1979
        %2006 = vmatprep.subr.mxu0 0.0
        %2007 = vmatpush1.msra.mxu0 %v1980
        %2008 = vmatprep.subr.mxu0 0.0
        %2009 = vmatpush1.msra.mxu0 %v1981
        %2010 = vmatprep.subr.mxu0 0.0
        %2011 = vmatpush1.msra.mxu0 %v1982
        %2012 = vmatprep.subr.mxu0 0.0
        %2013 = vmatpush1.msra.mxu0 0.0
        %2014 = vmatprep.subr.mxu0 0.0
        %2015 = vmatpush1.msra.mxu0 0.0
        %2016 = vmatprep.subr.mxu0 0.0
        %2017 = vmatpush1.msra.mxu0 0.0
        %2018 = vmatprep.subr.mxu0 0.0
        %2019 = vmatpush1.msra.mxu0 0.0
        %2020 = vmatprep.subr.mxu0 0.0
        %2021 = vmatpush1.msra.mxu0 0.0
        %2022 = vmatprep.subr.mxu0 0.0
        %2023 = vmatpush1.msra.mxu0 0.0
        %2024 = vmatprep.subr.mxu0 0.0
        %2025 = vmatpush1.msra.mxu0 0.0
        %2026 = vmatprep.subr.mxu0 0.0
        %2027 = vmatpush1.msra.mxu0 0.0
        %2028 = vmatprep.subr.mxu0 0.0
        %2029 = vmatpush1.msra.mxu0 0.0
        %2030 = vmatprep.subr.mxu0 0.0
        %2031 = vmatpush1.msra.mxu0 0.0
        %2032 = vmatprep.subr.mxu0 0.0
        %2033 = vmatpush1.msra.mxu0 0.0
        %2034 = vmatprep.subr.mxu0 0.0
        %2035 = vmatpush1.msra.mxu0 0.0
        %2036 = vmatprep.subr.mxu0 0.0
        %2037 = vmatpush1.msra.mxu0 0.0
        %2038 = vmatprep.subr.mxu0 0.0
        %2039 = vmatpush1.msra.mxu0 0.0
        %2040 = vmatprep.subr.mxu0 0.0
        %2041 = vmatpush1.msra.mxu0 0.0
        %2042 = vmatprep.subr.mxu0 0.0
        %2043 = vmatpush1.msra.mxu0 0.0
        %2044 = vmatprep.subr.mxu0 0.0
        %2045 = vmatpush1.msra.mxu0 0.0
        %2046 = vmatprep.subr.mxu0 0.0
        %2047 = vmatpush1.msra.mxu0 0.0
        %2048 = vmatprep.subr.mxu0 0.0
        %2049 = vmatpush1.msra.mxu0 0.0
        %2050 = vmatprep.subr.mxu0 0.0
        %2051 = vmatpush1.msra.mxu0 0.0
        %2052 = vmatprep.subr.mxu0 0.0
        %2053 = vmatpush1.msra.mxu0 0.0
        %2054 = vmatprep.subr.mxu0 0.0
        %2055 = vmatpush1.msra.mxu0 0.0
        %2056 = vmatprep.subr.mxu0 0.0
        %2057 = vmatpush1.msra.mxu0 0.0
        %2058 = vmatprep.subr.mxu0 0.0
        %2059 = vmatpush1.msra.mxu0 0.0
        %2060 = vmatprep.subr.mxu0 0.0
        %2061 = vmatpush1.msra.mxu0 0.0
        %2062 = vmatprep.subr.mxu0 0.0
        %2063 = vmatpush1.msra.mxu0 0.0
        %2064 = vmatprep.subr.mxu0 0.0
        %2065 = vmatpush1.msra.mxu0 0.0
        %2066 = vmatprep.subr.mxu0 0.0
        %2067 = vmatpush1.msra.mxu0 0.0
        %2068 = vmatprep.mubr.f32.mxu0 0.0
        %2069 = vmatmul.mubr.f32.gmra.mrb[0].mxu0 %v1984
        %v2070 = vpop.f32.mrb[0].mxu0
        %v2071 = vadd.f32 0.0, %v2070
        %v2072 = vpop.f32.mrb[0].mxu0
        %2073 = vmatprep.mubr.f32.mxu0 0.0
        %2074 = vmatmul.mubr.f32.gmra.mrb[0].mxu0 %v1987
        %v2075 = vpop.f32.mrb[0].mxu0
        %v2076 = vadd.f32 0.0, %v2075
        %v2077 = vpop.f32.mrb[0].mxu0
        %2078 = vmatprep.mubr.f32.mxu0 0.0
        %2079 = vmatmul.mubr.f32.gmra.mrb[0].mxu0 %v1990
        %v2080 = vpop.f32.mrb[0].mxu0
        %v2081 = vadd.f32 0.0, %v2080
        %v2082 = vpop.f32.mrb[0].mxu0
        %2083 = vmatprep.mubr.f32.mxu0 0.0
        %2084 = vmatmul.mubr.f32.gmra.mrb[0].mxu0 %v1993
        %v2085 = vpop.f32.mrb[0].mxu0
        %v2086 = vadd.f32 0.0, %v2085
        %v2087 = vpop.f32.mrb[0].mxu0
        %2088 = vmatprep.mubr.f32.mxu0 0.0
        %2089 = vmatmul.mubr.f32.gmra.mrb[0].mxu0 %v1996
        %v2090 = vpop.f32.mrb[0].mxu0
        %v2091 = vadd.f32 0.0, %v2090
        %v2092 = vpop.f32.mrb[0].mxu0
        %2093 = vmatprep.mubr.f32.mxu0 0.0
        %2094 = vmatmul.mubr.f32.gmra.mrb[0].mxu0 %v1999
        %v2095 = vpop.f32.mrb[0].mxu0
        %v2096 = vadd.f32 0.0, %v2095
        %v2097 = vpop.f32.mrb[0].mxu0
        %2098 = vmatprep.mubr.f32.mxu0 0.0
        %2099 = vmatmul.mubr.f32.gmra.mrb[0].mxu0 %v2002
        %v2100 = vpop.f32.mrb[0].mxu0
        %v2101 = vadd.f32 0.0, %v2100
        %v2102 = vpop.f32.mrb[0].mxu0
        %2103 = vdwg.mxu0
        %v2104 = vadd.f32 %v1964, %v2071
        %v2105 = vadd.f32 %v1965, %v2076
        %v2106 = vadd.f32 %v1966, %v2081
        %v2107 = vadd.f32 %v1967, %v2086
        %v2108 = vadd.f32 %v1968, %v2091
        %v2109 = vadd.f32 %v1969, %v2096
        %v2110 = vadd.f32 %v1970, %v2101
        %v2111 = vld [vmem:[%s4] sm:$0x1]
        %v2113 = vlaneseq
        %v2114 = vshrl.u32 %v2113, 7
        %v2115 = vsub.s32 0, %v2114
        %v2116 = vrot.slane %v2111, %v2115
        %v2118 = vadd.f32 %v2104, %v2116
        %v2119 = vadd.f32 %v2105, %v2116
        %v2120 = vadd.f32 %v2106, %v2116
        %v2121 = vadd.f32 %v2107, %v2116
        %v2122 = vadd.f32 %v2108, %v2116
        %v2123 = vadd.f32 %v2109, %v2116
        %v2124 = vadd.f32 %v2110, %v2116
        %vm2125 = vcmp.gt.f32.partialorder %v2118, 0.0
        %vm2126 = vcmp.gt.f32.partialorder %v2119, 0.0
        %vm2127 = vcmp.gt.f32.partialorder %v2120, 0.0
        %vm2128 = vcmp.gt.f32.partialorder %v2121, 0.0
        %vm2129 = vcmp.gt.f32.partialorder %v2122, 0.0
        %vm2130 = vcmp.gt.f32.partialorder %v2123, 0.0
        %vm2131 = vcmp.gt.f32.partialorder %v2124, 0.0
        %v2132 = vmul.f32 %v2118, 0.01
        %v2133 = vmul.f32 %v2119, 0.01
        %v2134 = vmul.f32 %v2120, 0.01
        %v2135 = vmul.f32 %v2121, 0.01
        %v2136 = vmul.f32 %v2122, 0.01
        %v2137 = vmul.f32 %v2123, 0.01
        %v2138 = vmul.f32 %v2124, 0.01
        %v2139 = vsel %vm2125, %v2118, %v2132
        %v2140 = vsel %vm2126, %v2119, %v2133
        %v2141 = vsel %vm2127, %v2120, %v2134
        %v2142 = vsel %vm2128, %v2121, %v2135
        %v2143 = vsel %vm2129, %v2122, %v2136
        %v2144 = vsel %vm2130, %v2123, %v2137
        %v2145 = vsel %vm2131, %v2124, %v2138
        %2146 = vst.msk [vmem:[#allocation8] sm:$0xff] %vm510, %v2139
        %2147 = vst.msk [vmem:[#allocation8 + $0x8] sm:$0xff] %vm510, %v2140
        %2148 = vst.msk [vmem:[#allocation8 + $0x10] sm:$0xff] %vm510, %v2141
        %2149 = vst.msk [vmem:[#allocation8 + $0x18] sm:$0xff] %vm510, %v2142
        %2150 = vst.msk [vmem:[#allocation8 + $0x20] sm:$0xff] %vm510, %v2143
        %2151 = vst.msk [vmem:[#allocation8 + $0x28] sm:$0xff] %vm510, %v2144
        %2152 = vst.msk [vmem:[#allocation8 + $0x30] sm:$0xf] %vm518, %v2145
        %v2153 = vld [vmem:[#allocation8] ss:$2 sm:$0xff]
        %s2154 = scalar_lea.vmem [#allocation8], 16
        %v2155 = vld [vmem:[%s2154] ss:$2 sm:$0xff]
        %s2156 = scalar_lea.vmem [#allocation8], 32
        %v2157 = vld [vmem:[%s2156] ss:$2 sm:$0xff]
        %s2158 = scalar_lea.vmem [#allocation8], 48
        %v2159 = vld [vmem:[%s2158] ss:$2 sm:$0x3]
        %s2160 = scalar_lea.vmem [#allocation8], 1
        %v2161 = vld [vmem:[%s2160] ss:$2 sm:$0xff]
        %s2162 = scalar_lea.vmem [#allocation8], 17
        %v2163 = vld [vmem:[%s2162] ss:$2 sm:$0xff]
        %s2164 = scalar_lea.vmem [#allocation8], 33
        %v2165 = vld [vmem:[%s2164] ss:$2 sm:$0xff]
        %s2166 = scalar_lea.vmem [#allocation8], 49
        %v2167 = vld [vmem:[%s2166] ss:$2 sm:$0x3]
        %v2168 = vmax.f32 %v2153, %v2161
        %v2169 = vmax.f32 %v2155, %v2163
        %v2170 = vmax.f32 %v2157, %v2165
        %v2171 = vmax.f32 %v2159, %v2167
        %2172 = vst.msk [vmem:[#allocation4 + $0x8] sm:$0xff] %vm510, %v2168
        %2173 = vst.msk [vmem:[#allocation4 + $0x10] sm:$0xff] %vm510, %v2169
        %2174 = vst.msk [vmem:[#allocation4 + $0x18] sm:$0xff] %vm510, %v2170
        %vm2175 = vcmask 254976
        %2176 = vst.msk [vmem:[#allocation4 + $0x20] sm:$0x3] %vm2175, %v2171
        %v2177 = vld [vmem:[%s1419 + $0x4] sm:$0xff]
        %v2178 = vld [vmem:[%s1419 + $0xc] sm:$0xff]
        %v2179 = vld [vmem:[%s1419 + $0x14] sm:$0xff]
        %v2180 = vld [vmem:[%s1419 + $0x1c] sm:$0xff]
        %v2181 = vld [vmem:[%s1419 + $0x24] sm:$0xff]
        %v2182 = vld [vmem:[%s1419 + $0x2c] sm:$0xff]
        %v2183 = vld [vmem:[%s1419 + $0x34] sm:$0xf]
        %v2184 = vld [vmem:[%s3] sm:$0xff]
        %v2185 = vld [vmem:[%s3 + $0x8] sm:$0xff]
        %v2186 = vld [vmem:[%s3 + $0x10] sm:$0xff]
        %v2187 = vld [vmem:[%s3 + $0x18] sm:$0xff]
        %v2188 = vld [vmem:[%s1419 + $0x5] sm:$0xff]
        %v2189 = vld [vmem:[%s1419 + $0xd] sm:$0xff]
        %v2190 = vld [vmem:[%s1419 + $0x15] sm:$0xff]
        %v2191 = vld [vmem:[%s1419 + $0x1d] sm:$0xff]
        %v2192 = vld [vmem:[%s1419 + $0x25] sm:$0xff]
        %v2193 = vld [vmem:[%s1419 + $0x2d] sm:$0xff]
        %v2194 = vld [vmem:[%s1419 + $0x35] sm:$0xf]
        %v2195 = vld [vmem:[%s1444] sm:$0xff]
        %v2196 = vld [vmem:[%s1444 + $0x8] sm:$0xff]
        %v2197 = vld [vmem:[%s1444 + $0x10] sm:$0xff]
        %v2198 = vld [vmem:[%s1444 + $0x18] sm:$0xff]
        %v2200 = vsel %vm510, %v2188, 0
        %v2203 = vsel %vm510, %v2189, 0
        %v2206 = vsel %vm510, %v2190, 0
        %v2209 = vsel %vm510, %v2191, 0
        %v2212 = vsel %vm510, %v2192, 0
        %v2215 = vsel %vm510, %v2193, 0
        %v2218 = vsel %vm510, %v2194, 0
        %2220 = vmatprep.subr.mxu0 0.0
        %2221 = vmatpush1.msra.mxu0 %v2195
        %2222 = vmatprep.subr.mxu0 0.0
        %2223 = vmatpush1.msra.mxu0 %v2196
        %2224 = vmatprep.subr.mxu0 0.0
        %2225 = vmatpush1.msra.mxu0 %v2197
        %2226 = vmatprep.subr.mxu0 0.0
        %2227 = vmatpush1.msra.mxu0 %v2198
        %2228 = vmatprep.subr.mxu0 0.0
        %2229 = vmatpush1.msra.mxu0 0.0
        %2230 = vmatprep.subr.mxu0 0.0
        %2231 = vmatpush1.msra.mxu0 0.0
        %2232 = vmatprep.subr.mxu0 0.0
        %2233 = vmatpush1.msra.mxu0 0.0
        %2234 = vmatprep.subr.mxu0 0.0
        %2235 = vmatpush1.msra.mxu0 0.0
        %2236 = vmatprep.subr.mxu0 0.0
        %2237 = vmatpush1.msra.mxu0 0.0
        %2238 = vmatprep.subr.mxu0 0.0
        %2239 = vmatpush1.msra.mxu0 0.0
        %2240 = vmatprep.subr.mxu0 0.0
        %2241 = vmatpush1.msra.mxu0 0.0
        %2242 = vmatprep.subr.mxu0 0.0
        %2243 = vmatpush1.msra.mxu0 0.0
        %2244 = vmatprep.subr.mxu0 0.0
        %2245 = vmatpush1.msra.mxu0 0.0
        %2246 = vmatprep.subr.mxu0 0.0
        %2247 = vmatpush1.msra.mxu0 0.0
        %2248 = vmatprep.subr.mxu0 0.0
        %2249 = vmatpush1.msra.mxu0 0.0
        %2250 = vmatprep.subr.mxu0 0.0
        %2251 = vmatpush1.msra.mxu0 0.0
        %2252 = vmatprep.subr.mxu0 0.0
        %2253 = vmatpush1.msra.mxu0 0.0
        %2254 = vmatprep.subr.mxu0 0.0
        %2255 = vmatpush1.msra.mxu0 0.0
        %2256 = vmatprep.subr.mxu0 0.0
        %2257 = vmatpush1.msra.mxu0 0.0
        %2258 = vmatprep.subr.mxu0 0.0
        %2259 = vmatpush1.msra.mxu0 0.0
        %2260 = vmatprep.subr.mxu0 0.0
        %2261 = vmatpush1.msra.mxu0 0.0
        %2262 = vmatprep.subr.mxu0 0.0
        %2263 = vmatpush1.msra.mxu0 0.0
        %2264 = vmatprep.subr.mxu0 0.0
        %2265 = vmatpush1.msra.mxu0 0.0
        %2266 = vmatprep.subr.mxu0 0.0
        %2267 = vmatpush1.msra.mxu0 0.0
        %2268 = vmatprep.subr.mxu0 0.0
        %2269 = vmatpush1.msra.mxu0 0.0
        %2270 = vmatprep.subr.mxu0 0.0
        %2271 = vmatpush1.msra.mxu0 0.0
        %2272 = vmatprep.subr.mxu0 0.0
        %2273 = vmatpush1.msra.mxu0 0.0
        %2274 = vmatprep.subr.mxu0 0.0
        %2275 = vmatpush1.msra.mxu0 0.0
        %2276 = vmatprep.subr.mxu0 0.0
        %2277 = vmatpush1.msra.mxu0 0.0
        %2278 = vmatprep.subr.mxu0 0.0
        %2279 = vmatpush1.msra.mxu0 0.0
        %2280 = vmatprep.subr.mxu0 0.0
        %2281 = vmatpush1.msra.mxu0 0.0
        %2282 = vmatprep.subr.mxu0 0.0
        %2283 = vmatpush1.msra.mxu0 0.0
        %2284 = vmatprep.mubr.f32.mxu0 0.0
        %2285 = vmatmul.mubr.f32.gmra.mrb[0].mxu0 %v2200
        %v2286 = vpop.f32.mrb[0].mxu0
        %v2287 = vadd.f32 0.0, %v2286
        %v2288 = vpop.f32.mrb[0].mxu0
        %2289 = vmatprep.mubr.f32.mxu0 0.0
        %2290 = vmatmul.mubr.f32.gmra.mrb[0].mxu0 %v2203
        %v2291 = vpop.f32.mrb[0].mxu0
        %v2292 = vadd.f32 0.0, %v2291
        %v2293 = vpop.f32.mrb[0].mxu0
        %2294 = vmatprep.mubr.f32.mxu0 0.0
        %2295 = vmatmul.mubr.f32.gmra.mrb[0].mxu0 %v2206
        %v2296 = vpop.f32.mrb[0].mxu0
        %v2297 = vadd.f32 0.0, %v2296
        %v2298 = vpop.f32.mrb[0].mxu0
        %2299 = vmatprep.mubr.f32.mxu0 0.0
        %2300 = vmatmul.mubr.f32.gmra.mrb[0].mxu0 %v2209
        %v2301 = vpop.f32.mrb[0].mxu0
        %v2302 = vadd.f32 0.0, %v2301
        %v2303 = vpop.f32.mrb[0].mxu0
        %2304 = vmatprep.mubr.f32.mxu0 0.0
        %2305 = vmatmul.mubr.f32.gmra.mrb[0].mxu0 %v2212
        %v2306 = vpop.f32.mrb[0].mxu0
        %v2307 = vadd.f32 0.0, %v2306
        %v2308 = vpop.f32.mrb[0].mxu0
        %2309 = vmatprep.mubr.f32.mxu0 0.0
        %2310 = vmatmul.mubr.f32.gmra.mrb[0].mxu0 %v2215
        %v2311 = vpop.f32.mrb[0].mxu0
        %v2312 = vadd.f32 0.0, %v2311
        %v2313 = vpop.f32.mrb[0].mxu0
        %2314 = vmatprep.mubr.f32.mxu0 0.0
        %2315 = vmatmul.mubr.f32.gmra.mrb[0].mxu0 %v2218
        %v2316 = vpop.f32.mrb[0].mxu0
        %v2317 = vadd.f32 0.0, %v2316
        %v2318 = vpop.f32.mrb[0].mxu0
        %2319 = vdwg.mxu0
        %v2321 = vsel %vm510, %v2177, 0
        %v2324 = vsel %vm510, %v2178, 0
        %v2327 = vsel %vm510, %v2179, 0
        %v2330 = vsel %vm510, %v2180, 0
        %v2333 = vsel %vm510, %v2181, 0
        %v2336 = vsel %vm510, %v2182, 0
        %v2339 = vsel %vm510, %v2183, 0
        %2341 = vmatprep.subr.mxu0 0.0
        %2342 = vmatpush1.msra.mxu0 %v2184
        %2343 = vmatprep.subr.mxu0 0.0
        %2344 = vmatpush1.msra.mxu0 %v2185
        %2345 = vmatprep.subr.mxu0 0.0
        %2346 = vmatpush1.msra.mxu0 %v2186
        %2347 = vmatprep.subr.mxu0 0.0
        %2348 = vmatpush1.msra.mxu0 %v2187
        %2349 = vmatprep.subr.mxu0 0.0
        %2350 = vmatpush1.msra.mxu0 0.0
        %2351 = vmatprep.subr.mxu0 0.0
        %2352 = vmatpush1.msra.mxu0 0.0
        %2353 = vmatprep.subr.mxu0 0.0
        %2354 = vmatpush1.msra.mxu0 0.0
        %2355 = vmatprep.subr.mxu0 0.0
        %2356 = vmatpush1.msra.mxu0 0.0
        %2357 = vmatprep.subr.mxu0 0.0
        %2358 = vmatpush1.msra.mxu0 0.0
        %2359 = vmatprep.subr.mxu0 0.0
        %2360 = vmatpush1.msra.mxu0 0.0
        %2361 = vmatprep.subr.mxu0 0.0
        %2362 = vmatpush1.msra.mxu0 0.0
        %2363 = vmatprep.subr.mxu0 0.0
        %2364 = vmatpush1.msra.mxu0 0.0
        %2365 = vmatprep.subr.mxu0 0.0
        %2366 = vmatpush1.msra.mxu0 0.0
        %2367 = vmatprep.subr.mxu0 0.0
        %2368 = vmatpush1.msra.mxu0 0.0
        %2369 = vmatprep.subr.mxu0 0.0
        %2370 = vmatpush1.msra.mxu0 0.0
        %2371 = vmatprep.subr.mxu0 0.0
        %2372 = vmatpush1.msra.mxu0 0.0
        %2373 = vmatprep.subr.mxu0 0.0
        %2374 = vmatpush1.msra.mxu0 0.0
        %2375 = vmatprep.subr.mxu0 0.0
        %2376 = vmatpush1.msra.mxu0 0.0
        %2377 = vmatprep.subr.mxu0 0.0
        %2378 = vmatpush1.msra.mxu0 0.0
        %2379 = vmatprep.subr.mxu0 0.0
        %2380 = vmatpush1.msra.mxu0 0.0
        %2381 = vmatprep.subr.mxu0 0.0
        %2382 = vmatpush1.msra.mxu0 0.0
        %2383 = vmatprep.subr.mxu0 0.0
        %2384 = vmatpush1.msra.mxu0 0.0
        %2385 = vmatprep.subr.mxu0 0.0
        %2386 = vmatpush1.msra.mxu0 0.0
        %2387 = vmatprep.subr.mxu0 0.0
        %2388 = vmatpush1.msra.mxu0 0.0
        %2389 = vmatprep.subr.mxu0 0.0
        %2390 = vmatpush1.msra.mxu0 0.0
        %2391 = vmatprep.subr.mxu0 0.0
        %2392 = vmatpush1.msra.mxu0 0.0
        %2393 = vmatprep.subr.mxu0 0.0
        %2394 = vmatpush1.msra.mxu0 0.0
        %2395 = vmatprep.subr.mxu0 0.0
        %2396 = vmatpush1.msra.mxu0 0.0
        %2397 = vmatprep.subr.mxu0 0.0
        %2398 = vmatpush1.msra.mxu0 0.0
        %2399 = vmatprep.subr.mxu0 0.0
        %2400 = vmatpush1.msra.mxu0 0.0
        %2401 = vmatprep.subr.mxu0 0.0
        %2402 = vmatpush1.msra.mxu0 0.0
        %2403 = vmatprep.subr.mxu0 0.0
        %2404 = vmatpush1.msra.mxu0 0.0
        %2405 = vmatprep.mubr.f32.mxu0 0.0
        %2406 = vmatmul.mubr.f32.gmra.mrb[0].mxu0 %v2321
        %v2407 = vpop.f32.mrb[0].mxu0
        %v2408 = vadd.f32 %v2287, %v2407
        %v2409 = vpop.f32.mrb[0].mxu0
        %2410 = vmatprep.mubr.f32.mxu0 0.0
        %2411 = vmatmul.mubr.f32.gmra.mrb[0].mxu0 %v2324
        %v2412 = vpop.f32.mrb[0].mxu0
        %v2413 = vadd.f32 %v2292, %v2412
        %v2414 = vpop.f32.mrb[0].mxu0
        %2415 = vmatprep.mubr.f32.mxu0 0.0
        %2416 = vmatmul.mubr.f32.gmra.mrb[0].mxu0 %v2327
        %v2417 = vpop.f32.mrb[0].mxu0
        %v2418 = vadd.f32 %v2297, %v2417
        %v2419 = vpop.f32.mrb[0].mxu0
        %2420 = vmatprep.mubr.f32.mxu0 0.0
        %2421 = vmatmul.mubr.f32.gmra.mrb[0].mxu0 %v2330
        %v2422 = vpop.f32.mrb[0].mxu0
        %v2423 = vadd.f32 %v2302, %v2422
        %v2424 = vpop.f32.mrb[0].mxu0
        %2425 = vmatprep.mubr.f32.mxu0 0.0
        %2426 = vmatmul.mubr.f32.gmra.mrb[0].mxu0 %v2333
        %v2427 = vpop.f32.mrb[0].mxu0
        %v2428 = vadd.f32 %v2307, %v2427
        %v2429 = vpop.f32.mrb[0].mxu0
        %2430 = vmatprep.mubr.f32.mxu0 0.0
        %2431 = vmatmul.mubr.f32.gmra.mrb[0].mxu0 %v2336
        %v2432 = vpop.f32.mrb[0].mxu0
        %v2433 = vadd.f32 %v2312, %v2432
        %v2434 = vpop.f32.mrb[0].mxu0
        %2435 = vmatprep.mubr.f32.mxu0 0.0
        %2436 = vmatmul.mubr.f32.gmra.mrb[0].mxu0 %v2339
        %v2437 = vpop.f32.mrb[0].mxu0
        %v2438 = vadd.f32 %v2317, %v2437
        %v2439 = vpop.f32.mrb[0].mxu0
        %2440 = vdwg.mxu0
        %v2441 = vld [vmem:[%s1419 + $0x6] sm:$0xff]
        %v2442 = vld [vmem:[%s1419 + $0xe] sm:$0xff]
        %v2443 = vld [vmem:[%s1419 + $0x16] sm:$0xff]
        %v2444 = vld [vmem:[%s1419 + $0x1e] sm:$0xff]
        %v2445 = vld [vmem:[%s1419 + $0x26] sm:$0xff]
        %v2446 = vld [vmem:[%s1419 + $0x2e] sm:$0xff]
        %v2447 = vld [vmem:[%s1419 + $0x36] sm:$0xf]
        %v2448 = vld [vmem:[%s1698] sm:$0xff]
        %v2449 = vld [vmem:[%s1698 + $0x8] sm:$0xff]
        %v2450 = vld [vmem:[%s1698 + $0x10] sm:$0xff]
        %v2451 = vld [vmem:[%s1698 + $0x18] sm:$0xff]
        %v2453 = vsel %vm510, %v2441, 0
        %v2456 = vsel %vm510, %v2442, 0
        %v2459 = vsel %vm510, %v2443, 0
        %v2462 = vsel %vm510, %v2444, 0
        %v2465 = vsel %vm510, %v2445, 0
        %v2468 = vsel %vm510, %v2446, 0
        %v2471 = vsel %vm510, %v2447, 0
        %2473 = vmatprep.subr.mxu0 0.0
        %2474 = vmatpush1.msra.mxu0 %v2448
        %2475 = vmatprep.subr.mxu0 0.0
        %2476 = vmatpush1.msra.mxu0 %v2449
        %2477 = vmatprep.subr.mxu0 0.0
        %2478 = vmatpush1.msra.mxu0 %v2450
        %2479 = vmatprep.subr.mxu0 0.0
        %2480 = vmatpush1.msra.mxu0 %v2451
        %2481 = vmatprep.subr.mxu0 0.0
        %2482 = vmatpush1.msra.mxu0 0.0
        %2483 = vmatprep.subr.mxu0 0.0
        %2484 = vmatpush1.msra.mxu0 0.0
        %2485 = vmatprep.subr.mxu0 0.0
        %2486 = vmatpush1.msra.mxu0 0.0
        %2487 = vmatprep.subr.mxu0 0.0
        %2488 = vmatpush1.msra.mxu0 0.0
        %2489 = vmatprep.subr.mxu0 0.0
        %2490 = vmatpush1.msra.mxu0 0.0
        %2491 = vmatprep.subr.mxu0 0.0
        %2492 = vmatpush1.msra.mxu0 0.0
        %2493 = vmatprep.subr.mxu0 0.0
        %2494 = vmatpush1.msra.mxu0 0.0
        %2495 = vmatprep.subr.mxu0 0.0
        %2496 = vmatpush1.msra.mxu0 0.0
        %2497 = vmatprep.subr.mxu0 0.0
        %2498 = vmatpush1.msra.mxu0 0.0
        %2499 = vmatprep.subr.mxu0 0.0
        %2500 = vmatpush1.msra.mxu0 0.0
        %2501 = vmatprep.subr.mxu0 0.0
        %2502 = vmatpush1.msra.mxu0 0.0
        %2503 = vmatprep.subr.mxu0 0.0
        %2504 = vmatpush1.msra.mxu0 0.0
        %2505 = vmatprep.subr.mxu0 0.0
        %2506 = vmatpush1.msra.mxu0 0.0
        %2507 = vmatprep.subr.mxu0 0.0
        %2508 = vmatpush1.msra.mxu0 0.0
        %2509 = vmatprep.subr.mxu0 0.0
        %2510 = vmatpush1.msra.mxu0 0.0
        %2511 = vmatprep.subr.mxu0 0.0
        %2512 = vmatpush1.msra.mxu0 0.0
        %2513 = vmatprep.subr.mxu0 0.0
        %2514 = vmatpush1.msra.mxu0 0.0
        %2515 = vmatprep.subr.mxu0 0.0
        %2516 = vmatpush1.msra.mxu0 0.0
        %2517 = vmatprep.subr.mxu0 0.0
        %2518 = vmatpush1.msra.mxu0 0.0
        %2519 = vmatprep.subr.mxu0 0.0
        %2520 = vmatpush1.msra.mxu0 0.0
        %2521 = vmatprep.subr.mxu0 0.0
        %2522 = vmatpush1.msra.mxu0 0.0
        %2523 = vmatprep.subr.mxu0 0.0
        %2524 = vmatpush1.msra.mxu0 0.0
        %2525 = vmatprep.subr.mxu0 0.0
        %2526 = vmatpush1.msra.mxu0 0.0
        %2527 = vmatprep.subr.mxu0 0.0
        %2528 = vmatpush1.msra.mxu0 0.0
        %2529 = vmatprep.subr.mxu0 0.0
        %2530 = vmatpush1.msra.mxu0 0.0
        %2531 = vmatprep.subr.mxu0 0.0
        %2532 = vmatpush1.msra.mxu0 0.0
        %2533 = vmatprep.subr.mxu0 0.0
        %2534 = vmatpush1.msra.mxu0 0.0
        %2535 = vmatprep.subr.mxu0 0.0
        %2536 = vmatpush1.msra.mxu0 0.0
        %2537 = vmatprep.mubr.f32.mxu0 0.0
        %2538 = vmatmul.mubr.f32.gmra.mrb[0].mxu0 %v2453
        %v2539 = vpop.f32.mrb[0].mxu0
        %v2540 = vadd.f32 0.0, %v2539
        %v2541 = vpop.f32.mrb[0].mxu0
        %2542 = vmatprep.mubr.f32.mxu0 0.0
        %2543 = vmatmul.mubr.f32.gmra.mrb[0].mxu0 %v2456
        %v2544 = vpop.f32.mrb[0].mxu0
        %v2545 = vadd.f32 0.0, %v2544
        %v2546 = vpop.f32.mrb[0].mxu0
        %2547 = vmatprep.mubr.f32.mxu0 0.0
        %2548 = vmatmul.mubr.f32.gmra.mrb[0].mxu0 %v2459
        %v2549 = vpop.f32.mrb[0].mxu0
        %v2550 = vadd.f32 0.0, %v2549
        %v2551 = vpop.f32.mrb[0].mxu0
        %2552 = vmatprep.mubr.f32.mxu0 0.0
        %2553 = vmatmul.mubr.f32.gmra.mrb[0].mxu0 %v2462
        %v2554 = vpop.f32.mrb[0].mxu0
        %v2555 = vadd.f32 0.0, %v2554
        %v2556 = vpop.f32.mrb[0].mxu0
        %2557 = vmatprep.mubr.f32.mxu0 0.0
        %2558 = vmatmul.mubr.f32.gmra.mrb[0].mxu0 %v2465
        %v2559 = vpop.f32.mrb[0].mxu0
        %v2560 = vadd.f32 0.0, %v2559
        %v2561 = vpop.f32.mrb[0].mxu0
        %2562 = vmatprep.mubr.f32.mxu0 0.0
        %2563 = vmatmul.mubr.f32.gmra.mrb[0].mxu0 %v2468
        %v2564 = vpop.f32.mrb[0].mxu0
        %v2565 = vadd.f32 0.0, %v2564
        %v2566 = vpop.f32.mrb[0].mxu0
        %2567 = vmatprep.mubr.f32.mxu0 0.0
        %2568 = vmatmul.mubr.f32.gmra.mrb[0].mxu0 %v2471
        %v2569 = vpop.f32.mrb[0].mxu0
        %v2570 = vadd.f32 0.0, %v2569
        %v2571 = vpop.f32.mrb[0].mxu0
        %2572 = vdwg.mxu0
        %v2573 = vadd.f32 %v2408, %v2540
        %v2574 = vadd.f32 %v2413, %v2545
        %v2575 = vadd.f32 %v2418, %v2550
        %v2576 = vadd.f32 %v2423, %v2555
        %v2577 = vadd.f32 %v2428, %v2560
        %v2578 = vadd.f32 %v2433, %v2565
        %v2579 = vadd.f32 %v2438, %v2570
        %v2580 = vld [vmem:[%s1419 + $0x7] sm:$0xff]
        %v2581 = vld [vmem:[%s1419 + $0xf] sm:$0xff]
        %v2582 = vld [vmem:[%s1419 + $0x17] sm:$0xff]
        %v2583 = vld [vmem:[%s1419 + $0x1f] sm:$0xff]
        %v2584 = vld [vmem:[%s1419 + $0x27] sm:$0xff]
        %v2585 = vld [vmem:[%s1419 + $0x2f] sm:$0xff]
        %v2586 = vld [vmem:[%s1419 + $0x37] sm:$0xf]
        %v2587 = vld [vmem:[%s1838] sm:$0xff]
        %v2588 = vld [vmem:[%s1838 + $0x8] sm:$0xff]
        %v2589 = vld [vmem:[%s1838 + $0x10] sm:$0xff]
        %v2590 = vld [vmem:[%s1838 + $0x18] sm:$0xff]
        %v2592 = vsel %vm510, %v2580, 0
        %v2595 = vsel %vm510, %v2581, 0
        %v2598 = vsel %vm510, %v2582, 0
        %v2601 = vsel %vm510, %v2583, 0
        %v2604 = vsel %vm510, %v2584, 0
        %v2607 = vsel %vm510, %v2585, 0
        %v2610 = vsel %vm510, %v2586, 0
        %2612 = vmatprep.subr.mxu0 0.0
        %2613 = vmatpush1.msra.mxu0 %v2587
        %2614 = vmatprep.subr.mxu0 0.0
        %2615 = vmatpush1.msra.mxu0 %v2588
        %2616 = vmatprep.subr.mxu0 0.0
        %2617 = vmatpush1.msra.mxu0 %v2589
        %2618 = vmatprep.subr.mxu0 0.0
        %2619 = vmatpush1.msra.mxu0 %v2590
        %2620 = vmatprep.subr.mxu0 0.0
        %2621 = vmatpush1.msra.mxu0 0.0
        %2622 = vmatprep.subr.mxu0 0.0
        %2623 = vmatpush1.msra.mxu0 0.0
        %2624 = vmatprep.subr.mxu0 0.0
        %2625 = vmatpush1.msra.mxu0 0.0
        %2626 = vmatprep.subr.mxu0 0.0
        %2627 = vmatpush1.msra.mxu0 0.0
        %2628 = vmatprep.subr.mxu0 0.0
        %2629 = vmatpush1.msra.mxu0 0.0
        %2630 = vmatprep.subr.mxu0 0.0
        %2631 = vmatpush1.msra.mxu0 0.0
        %2632 = vmatprep.subr.mxu0 0.0
        %2633 = vmatpush1.msra.mxu0 0.0
        %2634 = vmatprep.subr.mxu0 0.0
        %2635 = vmatpush1.msra.mxu0 0.0
        %2636 = vmatprep.subr.mxu0 0.0
        %2637 = vmatpush1.msra.mxu0 0.0
        %2638 = vmatprep.subr.mxu0 0.0
        %2639 = vmatpush1.msra.mxu0 0.0
        %2640 = vmatprep.subr.mxu0 0.0
        %2641 = vmatpush1.msra.mxu0 0.0
        %2642 = vmatprep.subr.mxu0 0.0
        %2643 = vmatpush1.msra.mxu0 0.0
        %2644 = vmatprep.subr.mxu0 0.0
        %2645 = vmatpush1.msra.mxu0 0.0
        %2646 = vmatprep.subr.mxu0 0.0
        %2647 = vmatpush1.msra.mxu0 0.0
        %2648 = vmatprep.subr.mxu0 0.0
        %2649 = vmatpush1.msra.mxu0 0.0
        %2650 = vmatprep.subr.mxu0 0.0
        %2651 = vmatpush1.msra.mxu0 0.0
        %2652 = vmatprep.subr.mxu0 0.0
        %2653 = vmatpush1.msra.mxu0 0.0
        %2654 = vmatprep.subr.mxu0 0.0
        %2655 = vmatpush1.msra.mxu0 0.0
        %2656 = vmatprep.subr.mxu0 0.0
        %2657 = vmatpush1.msra.mxu0 0.0
        %2658 = vmatprep.subr.mxu0 0.0
        %2659 = vmatpush1.msra.mxu0 0.0
        %2660 = vmatprep.subr.mxu0 0.0
        %2661 = vmatpush1.msra.mxu0 0.0
        %2662 = vmatprep.subr.mxu0 0.0
        %2663 = vmatpush1.msra.mxu0 0.0
        %2664 = vmatprep.subr.mxu0 0.0
        %2665 = vmatpush1.msra.mxu0 0.0
        %2666 = vmatprep.subr.mxu0 0.0
        %2667 = vmatpush1.msra.mxu0 0.0
        %2668 = vmatprep.subr.mxu0 0.0
        %2669 = vmatpush1.msra.mxu0 0.0
        %2670 = vmatprep.subr.mxu0 0.0
        %2671 = vmatpush1.msra.mxu0 0.0
        %2672 = vmatprep.subr.mxu0 0.0
        %2673 = vmatpush1.msra.mxu0 0.0
        %2674 = vmatprep.subr.mxu0 0.0
        %2675 = vmatpush1.msra.mxu0 0.0
        %2676 = vmatprep.mubr.f32.mxu0 0.0
        %2677 = vmatmul.mubr.f32.gmra.mrb[0].mxu0 %v2592
        %v2678 = vpop.f32.mrb[0].mxu0
        %v2679 = vadd.f32 0.0, %v2678
        %v2680 = vpop.f32.mrb[0].mxu0
        %2681 = vmatprep.mubr.f32.mxu0 0.0
        %2682 = vmatmul.mubr.f32.gmra.mrb[0].mxu0 %v2595
        %v2683 = vpop.f32.mrb[0].mxu0
        %v2684 = vadd.f32 0.0, %v2683
        %v2685 = vpop.f32.mrb[0].mxu0
        %2686 = vmatprep.mubr.f32.mxu0 0.0
        %2687 = vmatmul.mubr.f32.gmra.mrb[0].mxu0 %v2598
        %v2688 = vpop.f32.mrb[0].mxu0
        %v2689 = vadd.f32 0.0, %v2688
        %v2690 = vpop.f32.mrb[0].mxu0
        %2691 = vmatprep.mubr.f32.mxu0 0.0
        %2692 = vmatmul.mubr.f32.gmra.mrb[0].mxu0 %v2601
        %v2693 = vpop.f32.mrb[0].mxu0
        %v2694 = vadd.f32 0.0, %v2693
        %v2695 = vpop.f32.mrb[0].mxu0
        %2696 = vmatprep.mubr.f32.mxu0 0.0
        %2697 = vmatmul.mubr.f32.gmra.mrb[0].mxu0 %v2604
        %v2698 = vpop.f32.mrb[0].mxu0
        %v2699 = vadd.f32 0.0, %v2698
        %v2700 = vpop.f32.mrb[0].mxu0
        %2701 = vmatprep.mubr.f32.mxu0 0.0
        %2702 = vmatmul.mubr.f32.gmra.mrb[0].mxu0 %v2607
        %v2703 = vpop.f32.mrb[0].mxu0
        %v2704 = vadd.f32 0.0, %v2703
        %v2705 = vpop.f32.mrb[0].mxu0
        %2706 = vmatprep.mubr.f32.mxu0 0.0
        %2707 = vmatmul.mubr.f32.gmra.mrb[0].mxu0 %v2610
        %v2708 = vpop.f32.mrb[0].mxu0
        %v2709 = vadd.f32 0.0, %v2708
        %v2710 = vpop.f32.mrb[0].mxu0
        %2711 = vdwg.mxu0
        %v2712 = vadd.f32 %v2573, %v2679
        %v2713 = vadd.f32 %v2574, %v2684
        %v2714 = vadd.f32 %v2575, %v2689
        %v2715 = vadd.f32 %v2576, %v2694
        %v2716 = vadd.f32 %v2577, %v2699
        %v2717 = vadd.f32 %v2578, %v2704
        %v2718 = vadd.f32 %v2579, %v2709
        %v2719 = vld [vmem:[%s1419 + $0x8] sm:$0xff]
        %v2720 = vld [vmem:[%s1419 + $0x10] sm:$0xff]
        %v2721 = vld [vmem:[%s1419 + $0x18] sm:$0xff]
        %v2722 = vld [vmem:[%s1419 + $0x20] sm:$0xff]
        %v2723 = vld [vmem:[%s1419 + $0x28] sm:$0xff]
        %v2724 = vld [vmem:[%s1419 + $0x30] sm:$0xff]
        %v2725 = vld [vmem:[%s1419 + $0x38] sm:$0xf]
        %v2726 = vld [vmem:[%s1978] sm:$0xff]
        %v2727 = vld [vmem:[%s1978 + $0x8] sm:$0xff]
        %v2728 = vld [vmem:[%s1978 + $0x10] sm:$0xff]
        %v2729 = vld [vmem:[%s1978 + $0x18] sm:$0xff]
        %v2731 = vsel %vm510, %v2719, 0
        %v2734 = vsel %vm510, %v2720, 0
        %v2737 = vsel %vm510, %v2721, 0
        %v2740 = vsel %vm510, %v2722, 0
        %v2743 = vsel %vm510, %v2723, 0
        %v2746 = vsel %vm510, %v2724, 0
        %v2749 = vsel %vm510, %v2725, 0
        %2751 = vmatprep.subr.mxu0 0.0
        %2752 = vmatpush1.msra.mxu0 %v2726
        %2753 = vmatprep.subr.mxu0 0.0
        %2754 = vmatpush1.msra.mxu0 %v2727
        %2755 = vmatprep.subr.mxu0 0.0
        %2756 = vmatpush1.msra.mxu0 %v2728
        %2757 = vmatprep.subr.mxu0 0.0
        %2758 = vmatpush1.msra.mxu0 %v2729
        %2759 = vmatprep.subr.mxu0 0.0
        %2760 = vmatpush1.msra.mxu0 0.0
        %2761 = vmatprep.subr.mxu0 0.0
        %2762 = vmatpush1.msra.mxu0 0.0
        %2763 = vmatprep.subr.mxu0 0.0
        %2764 = vmatpush1.msra.mxu0 0.0
        %2765 = vmatprep.subr.mxu0 0.0
        %2766 = vmatpush1.msra.mxu0 0.0
        %2767 = vmatprep.subr.mxu0 0.0
        %2768 = vmatpush1.msra.mxu0 0.0
        %2769 = vmatprep.subr.mxu0 0.0
        %2770 = vmatpush1.msra.mxu0 0.0
        %2771 = vmatprep.subr.mxu0 0.0
        %2772 = vmatpush1.msra.mxu0 0.0
        %2773 = vmatprep.subr.mxu0 0.0
        %2774 = vmatpush1.msra.mxu0 0.0
        %2775 = vmatprep.subr.mxu0 0.0
        %2776 = vmatpush1.msra.mxu0 0.0
        %2777 = vmatprep.subr.mxu0 0.0
        %2778 = vmatpush1.msra.mxu0 0.0
        %2779 = vmatprep.subr.mxu0 0.0
        %2780 = vmatpush1.msra.mxu0 0.0
        %2781 = vmatprep.subr.mxu0 0.0
        %2782 = vmatpush1.msra.mxu0 0.0
        %2783 = vmatprep.subr.mxu0 0.0
        %2784 = vmatpush1.msra.mxu0 0.0
        %2785 = vmatprep.subr.mxu0 0.0
        %2786 = vmatpush1.msra.mxu0 0.0
        %2787 = vmatprep.subr.mxu0 0.0
        %2788 = vmatpush1.msra.mxu0 0.0
        %2789 = vmatprep.subr.mxu0 0.0
        %2790 = vmatpush1.msra.mxu0 0.0
        %2791 = vmatprep.subr.mxu0 0.0
        %2792 = vmatpush1.msra.mxu0 0.0
        %2793 = vmatprep.subr.mxu0 0.0
        %2794 = vmatpush1.msra.mxu0 0.0
        %2795 = vmatprep.subr.mxu0 0.0
        %2796 = vmatpush1.msra.mxu0 0.0
        %2797 = vmatprep.subr.mxu0 0.0
        %2798 = vmatpush1.msra.mxu0 0.0
        %2799 = vmatprep.subr.mxu0 0.0
        %2800 = vmatpush1.msra.mxu0 0.0
        %2801 = vmatprep.subr.mxu0 0.0
        %2802 = vmatpush1.msra.mxu0 0.0
        %2803 = vmatprep.subr.mxu0 0.0
        %2804 = vmatpush1.msra.mxu0 0.0
        %2805 = vmatprep.subr.mxu0 0.0
        %2806 = vmatpush1.msra.mxu0 0.0
        %2807 = vmatprep.subr.mxu0 0.0
        %2808 = vmatpush1.msra.mxu0 0.0
        %2809 = vmatprep.subr.mxu0 0.0
        %2810 = vmatpush1.msra.mxu0 0.0
        %2811 = vmatprep.subr.mxu0 0.0
        %2812 = vmatpush1.msra.mxu0 0.0
        %2813 = vmatprep.subr.mxu0 0.0
        %2814 = vmatpush1.msra.mxu0 0.0
        %2815 = vmatprep.mubr.f32.mxu0 0.0
        %2816 = vmatmul.mubr.f32.gmra.mrb[0].mxu0 %v2731
        %v2817 = vpop.f32.mrb[0].mxu0
        %v2818 = vadd.f32 0.0, %v2817
        %v2819 = vpop.f32.mrb[0].mxu0
        %2820 = vmatprep.mubr.f32.mxu0 0.0
        %2821 = vmatmul.mubr.f32.gmra.mrb[0].mxu0 %v2734
        %v2822 = vpop.f32.mrb[0].mxu0
        %v2823 = vadd.f32 0.0, %v2822
        %v2824 = vpop.f32.mrb[0].mxu0
        %2825 = vmatprep.mubr.f32.mxu0 0.0
        %2826 = vmatmul.mubr.f32.gmra.mrb[0].mxu0 %v2737
        %v2827 = vpop.f32.mrb[0].mxu0
        %v2828 = vadd.f32 0.0, %v2827
        %v2829 = vpop.f32.mrb[0].mxu0
        %2830 = vmatprep.mubr.f32.mxu0 0.0
        %2831 = vmatmul.mubr.f32.gmra.mrb[0].mxu0 %v2740
        %v2832 = vpop.f32.mrb[0].mxu0
        %v2833 = vadd.f32 0.0, %v2832
        %v2834 = vpop.f32.mrb[0].mxu0
        %2835 = vmatprep.mubr.f32.mxu0 0.0
        %2836 = vmatmul.mubr.f32.gmra.mrb[0].mxu0 %v2743
        %v2837 = vpop.f32.mrb[0].mxu0
        %v2838 = vadd.f32 0.0, %v2837
        %v2839 = vpop.f32.mrb[0].mxu0
        %2840 = vmatprep.mubr.f32.mxu0 0.0
        %2841 = vmatmul.mubr.f32.gmra.mrb[0].mxu0 %v2746
        %v2842 = vpop.f32.mrb[0].mxu0
        %v2843 = vadd.f32 0.0, %v2842
        %v2844 = vpop.f32.mrb[0].mxu0
        %2845 = vmatprep.mubr.f32.mxu0 0.0
        %2846 = vmatmul.mubr.f32.gmra.mrb[0].mxu0 %v2749
        %v2847 = vpop.f32.mrb[0].mxu0
        %v2848 = vadd.f32 0.0, %v2847
        %v2849 = vpop.f32.mrb[0].mxu0
        %2850 = vdwg.mxu0
        %v2851 = vadd.f32 %v2712, %v2818
        %v2852 = vadd.f32 %v2713, %v2823
        %v2853 = vadd.f32 %v2714, %v2828
        %v2854 = vadd.f32 %v2715, %v2833
        %v2855 = vadd.f32 %v2716, %v2838
        %v2856 = vadd.f32 %v2717, %v2843
        %v2857 = vadd.f32 %v2718, %v2848
        %v2858 = vld [vmem:[%s4] sm:$0x1]
        %v2860 = vlaneseq
        %v2861 = vshrl.u32 %v2860, 7
        %v2862 = vsub.s32 0, %v2861
        %v2863 = vrot.slane %v2858, %v2862
        %v2865 = vadd.f32 %v2851, %v2863
        %v2866 = vadd.f32 %v2852, %v2863
        %v2867 = vadd.f32 %v2853, %v2863
        %v2868 = vadd.f32 %v2854, %v2863
        %v2869 = vadd.f32 %v2855, %v2863
        %v2870 = vadd.f32 %v2856, %v2863
        %v2871 = vadd.f32 %v2857, %v2863
        %vm2872 = vcmp.gt.f32.partialorder %v2865, 0.0
        %vm2873 = vcmp.gt.f32.partialorder %v2866, 0.0
        %vm2874 = vcmp.gt.f32.partialorder %v2867, 0.0
        %vm2875 = vcmp.gt.f32.partialorder %v2868, 0.0
        %vm2876 = vcmp.gt.f32.partialorder %v2869, 0.0
        %vm2877 = vcmp.gt.f32.partialorder %v2870, 0.0
        %vm2878 = vcmp.gt.f32.partialorder %v2871, 0.0
        %v2879 = vmul.f32 %v2865, 0.01
        %v2880 = vmul.f32 %v2866, 0.01
        %v2881 = vmul.f32 %v2867, 0.01
        %v2882 = vmul.f32 %v2868, 0.01
        %v2883 = vmul.f32 %v2869, 0.01
        %v2884 = vmul.f32 %v2870, 0.01
        %v2885 = vmul.f32 %v2871, 0.01
        %v2886 = vsel %vm2872, %v2865, %v2879
        %v2887 = vsel %vm2873, %v2866, %v2880
        %v2888 = vsel %vm2874, %v2867, %v2881
        %v2889 = vsel %vm2875, %v2868, %v2882
        %v2890 = vsel %vm2876, %v2869, %v2883
        %v2891 = vsel %vm2877, %v2870, %v2884
        %v2892 = vsel %vm2878, %v2871, %v2885
        %2893 = vst.msk [vmem:[#allocation8] sm:$0xff] %vm510, %v2886
        %2894 = vst.msk [vmem:[#allocation8 + $0x8] sm:$0xff] %vm510, %v2887
        %2895 = vst.msk [vmem:[#allocation8 + $0x10] sm:$0xff] %vm510, %v2888
        %2896 = vst.msk [vmem:[#allocation8 + $0x18] sm:$0xff] %vm510, %v2889
        %2897 = vst.msk [vmem:[#allocation8 + $0x20] sm:$0xff] %vm510, %v2890
        %2898 = vst.msk [vmem:[#allocation8 + $0x28] sm:$0xff] %vm510, %v2891
        %2899 = vst.msk [vmem:[#allocation8 + $0x30] sm:$0xf] %vm518, %v2892
        %v2900 = vld [vmem:[#allocation8] ss:$2 sm:$0xff]
        %v2901 = vld [vmem:[%s2154] ss:$2 sm:$0xff]
        %v2902 = vld [vmem:[%s2156] ss:$2 sm:$0xff]
        %v2903 = vld [vmem:[%s2158] ss:$2 sm:$0x3]
        %v2904 = vld [vmem:[%s2160] ss:$2 sm:$0xff]
        %v2905 = vld [vmem:[%s2162] ss:$2 sm:$0xff]
        %v2906 = vld [vmem:[%s2164] ss:$2 sm:$0xff]
        %v2907 = vld [vmem:[%s2166] ss:$2 sm:$0x3]
        %v2908 = vmax.f32 %v2900, %v2904
        %v2909 = vmax.f32 %v2901, %v2905
        %v2910 = vmax.f32 %v2902, %v2906
        %v2911 = vmax.f32 %v2903, %v2907
        %s2912 = scalar_lea.vmem [#allocation4], 40
        %2913 = vst.msk [vmem:[%s2912 + $0x8] sm:$0xff] %vm510, %v2908
        %2914 = vst.msk [vmem:[%s2912 + $0x10] sm:$0xff] %vm510, %v2909
        %2915 = vst.msk [vmem:[%s2912 + $0x18] sm:$0xff] %vm510, %v2910
        %2916 = vst.msk [vmem:[%s2912 + $0x20] sm:$0x3] %vm2175, %v2911
        %v2917 = vld [vmem:[#allocation4 + $0x6] sm:$0xff]
        %v2918 = vld [vmem:[#allocation4 + $0xe] sm:$0xff]
        %v2919 = vld [vmem:[#allocation4 + $0x16] sm:$0xff]
        %v2920 = vld [vmem:[#allocation4 + $0x1e] sm:$0x3]
        %v2921 = vld [vmem:[%s5] sm:$0xff]
        %v2922 = vld [vmem:[%s5 + $0x8] sm:$0xff]
        %v2923 = vld [vmem:[%s5 + $0x10] sm:$0xff]
        %v2924 = vld [vmem:[%s5 + $0x18] sm:$0xff]
        %v2925 = vld [vmem:[#allocation4 + $0x7] sm:$0xff]
        %v2926 = vld [vmem:[#allocation4 + $0xf] sm:$0xff]
        %v2927 = vld [vmem:[#allocation4 + $0x17] sm:$0xff]
        %v2928 = vld [vmem:[#allocation4 + $0x1f] sm:$0x3]
        %s2929 = scalar_lea.vmem %s5, 32
        %v2930 = vld [vmem:[%s2929] sm:$0xff]
        %v2931 = vld [vmem:[%s2929 + $0x8] sm:$0xff]
        %v2932 = vld [vmem:[%s2929 + $0x10] sm:$0xff]
        %v2933 = vld [vmem:[%s2929 + $0x18] sm:$0xff]
        %v2935 = vsel %vm510, %v2925, 0
        %v2938 = vsel %vm510, %v2926, 0
        %v2941 = vsel %vm510, %v2927, 0
        %v2944 = vsel %vm510, %v2928, 0
        %2946 = vmatprep.subr.mxu0 0.0
        %2947 = vmatpush1.msra.mxu0 %v2930
        %2948 = vmatprep.subr.mxu0 0.0
        %2949 = vmatpush1.msra.mxu0 %v2931
        %2950 = vmatprep.subr.mxu0 0.0
        %2951 = vmatpush1.msra.mxu0 %v2932
        %2952 = vmatprep.subr.mxu0 0.0
        %2953 = vmatpush1.msra.mxu0 %v2933
        %2954 = vmatprep.subr.mxu0 0.0
        %2955 = vmatpush1.msra.mxu0 0.0
        %2956 = vmatprep.subr.mxu0 0.0
        %2957 = vmatpush1.msra.mxu0 0.0
        %2958 = vmatprep.subr.mxu0 0.0
        %2959 = vmatpush1.msra.mxu0 0.0
        %2960 = vmatprep.subr.mxu0 0.0
        %2961 = vmatpush1.msra.mxu0 0.0
        %2962 = vmatprep.subr.mxu0 0.0
        %2963 = vmatpush1.msra.mxu0 0.0
        %2964 = vmatprep.subr.mxu0 0.0
        %2965 = vmatpush1.msra.mxu0 0.0
        %2966 = vmatprep.subr.mxu0 0.0
        %2967 = vmatpush1.msra.mxu0 0.0
        %2968 = vmatprep.subr.mxu0 0.0
        %2969 = vmatpush1.msra.mxu0 0.0
        %2970 = vmatprep.subr.mxu0 0.0
        %2971 = vmatpush1.msra.mxu0 0.0
        %2972 = vmatprep.subr.mxu0 0.0
        %2973 = vmatpush1.msra.mxu0 0.0
        %2974 = vmatprep.subr.mxu0 0.0
        %2975 = vmatpush1.msra.mxu0 0.0
        %2976 = vmatprep.subr.mxu0 0.0
        %2977 = vmatpush1.msra.mxu0 0.0
        %2978 = vmatprep.subr.mxu0 0.0
        %2979 = vmatpush1.msra.mxu0 0.0
        %2980 = vmatprep.subr.mxu0 0.0
        %2981 = vmatpush1.msra.mxu0 0.0
        %2982 = vmatprep.subr.mxu0 0.0
        %2983 = vmatpush1.msra.mxu0 0.0
        %2984 = vmatprep.subr.mxu0 0.0
        %2985 = vmatpush1.msra.mxu0 0.0
        %2986 = vmatprep.subr.mxu0 0.0
        %2987 = vmatpush1.msra.mxu0 0.0
        %2988 = vmatprep.subr.mxu0 0.0
        %2989 = vmatpush1.msra.mxu0 0.0
        %2990 = vmatprep.subr.mxu0 0.0
        %2991 = vmatpush1.msra.mxu0 0.0
        %2992 = vmatprep.subr.mxu0 0.0
        %2993 = vmatpush1.msra.mxu0 0.0
        %2994 = vmatprep.subr.mxu0 0.0
        %2995 = vmatpush1.msra.mxu0 0.0
        %2996 = vmatprep.subr.mxu0 0.0
        %2997 = vmatpush1.msra.mxu0 0.0
        %2998 = vmatprep.subr.mxu0 0.0
        %2999 = vmatpush1.msra.mxu0 0.0
        %3000 = vmatprep.subr.mxu0 0.0
        %3001 = vmatpush1.msra.mxu0 0.0
        %3002 = vmatprep.subr.mxu0 0.0
        %3003 = vmatpush1.msra.mxu0 0.0
        %3004 = vmatprep.subr.mxu0 0.0
        %3005 = vmatpush1.msra.mxu0 0.0
        %3006 = vmatprep.subr.mxu0 0.0
        %3007 = vmatpush1.msra.mxu0 0.0
        %3008 = vmatprep.subr.mxu0 0.0
        %3009 = vmatpush1.msra.mxu0 0.0
        %3010 = vmatprep.mubr.f32.mxu0 0.0
        %3011 = vmatmul.mubr.f32.gmra.mrb[0].mxu0 %v2935
        %v3012 = vpop.f32.mrb[0].mxu0
        %v3013 = vadd.f32 0.0, %v3012
        %v3014 = vpop.f32.mrb[0].mxu0
        %3015 = vmatprep.mubr.f32.mxu0 0.0
        %3016 = vmatmul.mubr.f32.gmra.mrb[0].mxu0 %v2938
        %v3017 = vpop.f32.mrb[0].mxu0
        %v3018 = vadd.f32 0.0, %v3017
        %v3019 = vpop.f32.mrb[0].mxu0
        %3020 = vmatprep.mubr.f32.mxu0 0.0
        %3021 = vmatmul.mubr.f32.gmra.mrb[0].mxu0 %v2941
        %v3022 = vpop.f32.mrb[0].mxu0
        %v3023 = vadd.f32 0.0, %v3022
        %v3024 = vpop.f32.mrb[0].mxu0
        %3025 = vmatprep.mubr.f32.mxu0 0.0
        %3026 = vmatmul.mubr.f32.gmra.mrb[0].mxu0 %v2944
        %v3027 = vpop.f32.mrb[0].mxu0
        %v3028 = vadd.f32 0.0, %v3027
        %v3029 = vpop.f32.mrb[0].mxu0
        %3030 = vdwg.mxu0
        %v3032 = vsel %vm510, %v2917, 0
        %v3035 = vsel %vm510, %v2918, 0
        %v3038 = vsel %vm510, %v2919, 0
        %v3041 = vsel %vm510, %v2920, 0
        %3043 = vmatprep.subr.mxu0 0.0
        %3044 = vmatpush1.msra.mxu0 %v2921
        %3045 = vmatprep.subr.mxu0 0.0
        %3046 = vmatpush1.msra.mxu0 %v2922
        %3047 = vmatprep.subr.mxu0 0.0
        %3048 = vmatpush1.msra.mxu0 %v2923
        %3049 = vmatprep.subr.mxu0 0.0
        %3050 = vmatpush1.msra.mxu0 %v2924
        %3051 = vmatprep.subr.mxu0 0.0
        %3052 = vmatpush1.msra.mxu0 0.0
        %3053 = vmatprep.subr.mxu0 0.0
        %3054 = vmatpush1.msra.mxu0 0.0
        %3055 = vmatprep.subr.mxu0 0.0
        %3056 = vmatpush1.msra.mxu0 0.0
        %3057 = vmatprep.subr.mxu0 0.0
        %3058 = vmatpush1.msra.mxu0 0.0
        %3059 = vmatprep.subr.mxu0 0.0
        %3060 = vmatpush1.msra.mxu0 0.0
        %3061 = vmatprep.subr.mxu0 0.0
        %3062 = vmatpush1.msra.mxu0 0.0
        %3063 = vmatprep.subr.mxu0 0.0
        %3064 = vmatpush1.msra.mxu0 0.0
        %3065 = vmatprep.subr.mxu0 0.0
        %3066 = vmatpush1.msra.mxu0 0.0
        %3067 = vmatprep.subr.mxu0 0.0
        %3068 = vmatpush1.msra.mxu0 0.0
        %3069 = vmatprep.subr.mxu0 0.0
        %3070 = vmatpush1.msra.mxu0 0.0
        %3071 = vmatprep.subr.mxu0 0.0
        %3072 = vmatpush1.msra.mxu0 0.0
        %3073 = vmatprep.subr.mxu0 0.0
        %3074 = vmatpush1.msra.mxu0 0.0
        %3075 = vmatprep.subr.mxu0 0.0
        %3076 = vmatpush1.msra.mxu0 0.0
        %3077 = vmatprep.subr.mxu0 0.0
        %3078 = vmatpush1.msra.mxu0 0.0
        %3079 = vmatprep.subr.mxu0 0.0
        %3080 = vmatpush1.msra.mxu0 0.0
        %3081 = vmatprep.subr.mxu0 0.0
        %3082 = vmatpush1.msra.mxu0 0.0
        %3083 = vmatprep.subr.mxu0 0.0
        %3084 = vmatpush1.msra.mxu0 0.0
        %3085 = vmatprep.subr.mxu0 0.0
        %3086 = vmatpush1.msra.mxu0 0.0
        %3087 = vmatprep.subr.mxu0 0.0
        %3088 = vmatpush1.msra.mxu0 0.0
        %3089 = vmatprep.subr.mxu0 0.0
        %3090 = vmatpush1.msra.mxu0 0.0
        %3091 = vmatprep.subr.mxu0 0.0
        %3092 = vmatpush1.msra.mxu0 0.0
        %3093 = vmatprep.subr.mxu0 0.0
        %3094 = vmatpush1.msra.mxu0 0.0
        %3095 = vmatprep.subr.mxu0 0.0
        %3096 = vmatpush1.msra.mxu0 0.0
        %3097 = vmatprep.subr.mxu0 0.0
        %3098 = vmatpush1.msra.mxu0 0.0
        %3099 = vmatprep.subr.mxu0 0.0
        %3100 = vmatpush1.msra.mxu0 0.0
        %3101 = vmatprep.subr.mxu0 0.0
        %3102 = vmatpush1.msra.mxu0 0.0
        %3103 = vmatprep.subr.mxu0 0.0
        %3104 = vmatpush1.msra.mxu0 0.0
        %3105 = vmatprep.subr.mxu0 0.0
        %3106 = vmatpush1.msra.mxu0 0.0
        %3107 = vmatprep.mubr.f32.mxu0 0.0
        %3108 = vmatmul.mubr.f32.gmra.mrb[0].mxu0 %v3032
        %v3109 = vpop.f32.mrb[0].mxu0
        %v3110 = vadd.f32 %v3013, %v3109
        %v3111 = vpop.f32.mrb[0].mxu0
        %3112 = vmatprep.mubr.f32.mxu0 0.0
        %3113 = vmatmul.mubr.f32.gmra.mrb[0].mxu0 %v3035
        %v3114 = vpop.f32.mrb[0].mxu0
        %v3115 = vadd.f32 %v3018, %v3114
        %v3116 = vpop.f32.mrb[0].mxu0
        %3117 = vmatprep.mubr.f32.mxu0 0.0
        %3118 = vmatmul.mubr.f32.gmra.mrb[0].mxu0 %v3038
        %v3119 = vpop.f32.mrb[0].mxu0
        %v3120 = vadd.f32 %v3023, %v3119
        %v3121 = vpop.f32.mrb[0].mxu0
        %3122 = vmatprep.mubr.f32.mxu0 0.0
        %3123 = vmatmul.mubr.f32.gmra.mrb[0].mxu0 %v3041
        %v3124 = vpop.f32.mrb[0].mxu0
        %v3125 = vadd.f32 %v3028, %v3124
        %v3126 = vpop.f32.mrb[0].mxu0
        %3127 = vdwg.mxu0
        %v3128 = vld [vmem:[#allocation4 + $0x8] sm:$0xff]
        %v3129 = vld [vmem:[#allocation4 + $0x10] sm:$0xff]
        %v3130 = vld [vmem:[#allocation4 + $0x18] sm:$0xff]
        %v3131 = vld [vmem:[#allocation4 + $0x20] sm:$0x3]
        %s3132 = scalar_lea.vmem %s5, 64
        %v3133 = vld [vmem:[%s3132] sm:$0xff]
        %v3134 = vld [vmem:[%s3132 + $0x8] sm:$0xff]
        %v3135 = vld [vmem:[%s3132 + $0x10] sm:$0xff]
        %v3136 = vld [vmem:[%s3132 + $0x18] sm:$0xff]
        %v3138 = vsel %vm510, %v3128, 0
        %v3141 = vsel %vm510, %v3129, 0
        %v3144 = vsel %vm510, %v3130, 0
        %v3147 = vsel %vm510, %v3131, 0
        %3149 = vmatprep.subr.mxu0 0.0
        %3150 = vmatpush1.msra.mxu0 %v3133
        %3151 = vmatprep.subr.mxu0 0.0
        %3152 = vmatpush1.msra.mxu0 %v3134
        %3153 = vmatprep.subr.mxu0 0.0
        %3154 = vmatpush1.msra.mxu0 %v3135
        %3155 = vmatprep.subr.mxu0 0.0
        %3156 = vmatpush1.msra.mxu0 %v3136
        %3157 = vmatprep.subr.mxu0 0.0
        %3158 = vmatpush1.msra.mxu0 0.0
        %3159 = vmatprep.subr.mxu0 0.0
        %3160 = vmatpush1.msra.mxu0 0.0
        %3161 = vmatprep.subr.mxu0 0.0
        %3162 = vmatpush1.msra.mxu0 0.0
        %3163 = vmatprep.subr.mxu0 0.0
        %3164 = vmatpush1.msra.mxu0 0.0
        %3165 = vmatprep.subr.mxu0 0.0
        %3166 = vmatpush1.msra.mxu0 0.0
        %3167 = vmatprep.subr.mxu0 0.0
        %3168 = vmatpush1.msra.mxu0 0.0
        %3169 = vmatprep.subr.mxu0 0.0
        %3170 = vmatpush1.msra.mxu0 0.0
        %3171 = vmatprep.subr.mxu0 0.0
        %3172 = vmatpush1.msra.mxu0 0.0
        %3173 = vmatprep.subr.mxu0 0.0
        %3174 = vmatpush1.msra.mxu0 0.0
        %3175 = vmatprep.subr.mxu0 0.0
        %3176 = vmatpush1.msra.mxu0 0.0
        %3177 = vmatprep.subr.mxu0 0.0
        %3178 = vmatpush1.msra.mxu0 0.0
        %3179 = vmatprep.subr.mxu0 0.0
        %3180 = vmatpush1.msra.mxu0 0.0
        %3181 = vmatprep.subr.mxu0 0.0
        %3182 = vmatpush1.msra.mxu0 0.0
        %3183 = vmatprep.subr.mxu0 0.0
        %3184 = vmatpush1.msra.mxu0 0.0
        %3185 = vmatprep.subr.mxu0 0.0
        %3186 = vmatpush1.msra.mxu0 0.0
        %3187 = vmatprep.subr.mxu0 0.0
        %3188 = vmatpush1.msra.mxu0 0.0
        %3189 = vmatprep.subr.mxu0 0.0
        %3190 = vmatpush1.msra.mxu0 0.0
        %3191 = vmatprep.subr.mxu0 0.0
        %3192 = vmatpush1.msra.mxu0 0.0
        %3193 = vmatprep.subr.mxu0 0.0
        %3194 = vmatpush1.msra.mxu0 0.0
        %3195 = vmatprep.subr.mxu0 0.0
        %3196 = vmatpush1.msra.mxu0 0.0
        %3197 = vmatprep.subr.mxu0 0.0
        %3198 = vmatpush1.msra.mxu0 0.0
        %3199 = vmatprep.subr.mxu0 0.0
        %3200 = vmatpush1.msra.mxu0 0.0
        %3201 = vmatprep.subr.mxu0 0.0
        %3202 = vmatpush1.msra.mxu0 0.0
        %3203 = vmatprep.subr.mxu0 0.0
        %3204 = vmatpush1.msra.mxu0 0.0
        %3205 = vmatprep.subr.mxu0 0.0
        %3206 = vmatpush1.msra.mxu0 0.0
        %3207 = vmatprep.subr.mxu0 0.0
        %3208 = vmatpush1.msra.mxu0 0.0
        %3209 = vmatprep.subr.mxu0 0.0
        %3210 = vmatpush1.msra.mxu0 0.0
        %3211 = vmatprep.subr.mxu0 0.0
        %3212 = vmatpush1.msra.mxu0 0.0
        %3213 = vmatprep.mubr.f32.mxu0 0.0
        %3214 = vmatmul.mubr.f32.gmra.mrb[0].mxu0 %v3138
        %v3215 = vpop.f32.mrb[0].mxu0
        %v3216 = vadd.f32 0.0, %v3215
        %v3217 = vpop.f32.mrb[0].mxu0
        %3218 = vmatprep.mubr.f32.mxu0 0.0
        %3219 = vmatmul.mubr.f32.gmra.mrb[0].mxu0 %v3141
        %v3220 = vpop.f32.mrb[0].mxu0
        %v3221 = vadd.f32 0.0, %v3220
        %v3222 = vpop.f32.mrb[0].mxu0
        %3223 = vmatprep.mubr.f32.mxu0 0.0
        %3224 = vmatmul.mubr.f32.gmra.mrb[0].mxu0 %v3144
        %v3225 = vpop.f32.mrb[0].mxu0
        %v3226 = vadd.f32 0.0, %v3225
        %v3227 = vpop.f32.mrb[0].mxu0
        %3228 = vmatprep.mubr.f32.mxu0 0.0
        %3229 = vmatmul.mubr.f32.gmra.mrb[0].mxu0 %v3147
        %v3230 = vpop.f32.mrb[0].mxu0
        %v3231 = vadd.f32 0.0, %v3230
        %v3232 = vpop.f32.mrb[0].mxu0
        %3233 = vdwg.mxu0
        %v3234 = vadd.f32 %v3110, %v3216
        %v3235 = vadd.f32 %v3115, %v3221
        %v3236 = vadd.f32 %v3120, %v3226
        %v3237 = vadd.f32 %v3125, %v3231
        %v3238 = vld [vmem:[#allocation4 + $0x9] sm:$0xff]
        %v3239 = vld [vmem:[#allocation4 + $0x11] sm:$0xff]
        %v3240 = vld [vmem:[#allocation4 + $0x19] sm:$0xff]
        %v3241 = vld [vmem:[#allocation4 + $0x21] sm:$0x3]
        %s3242 = scalar_lea.vmem %s5, 96
        %v3243 = vld [vmem:[%s3242] sm:$0xff]
        %v3244 = vld [vmem:[%s3242 + $0x8] sm:$0xff]
        %v3245 = vld [vmem:[%s3242 + $0x10] sm:$0xff]
        %v3246 = vld [vmem:[%s3242 + $0x18] sm:$0xff]
        %v3248 = vsel %vm510, %v3238, 0
        %v3251 = vsel %vm510, %v3239, 0
        %v3254 = vsel %vm510, %v3240, 0
        %v3257 = vsel %vm510, %v3241, 0
        %3259 = vmatprep.subr.mxu0 0.0
        %3260 = vmatpush1.msra.mxu0 %v3243
        %3261 = vmatprep.subr.mxu0 0.0
        %3262 = vmatpush1.msra.mxu0 %v3244
        %3263 = vmatprep.subr.mxu0 0.0
        %3264 = vmatpush1.msra.mxu0 %v3245
        %3265 = vmatprep.subr.mxu0 0.0
        %3266 = vmatpush1.msra.mxu0 %v3246
        %3267 = vmatprep.subr.mxu0 0.0
        %3268 = vmatpush1.msra.mxu0 0.0
        %3269 = vmatprep.subr.mxu0 0.0
        %3270 = vmatpush1.msra.mxu0 0.0
        %3271 = vmatprep.subr.mxu0 0.0
        %3272 = vmatpush1.msra.mxu0 0.0
        %3273 = vmatprep.subr.mxu0 0.0
        %3274 = vmatpush1.msra.mxu0 0.0
        %3275 = vmatprep.subr.mxu0 0.0
        %3276 = vmatpush1.msra.mxu0 0.0
        %3277 = vmatprep.subr.mxu0 0.0
        %3278 = vmatpush1.msra.mxu0 0.0
        %3279 = vmatprep.subr.mxu0 0.0
        %3280 = vmatpush1.msra.mxu0 0.0
        %3281 = vmatprep.subr.mxu0 0.0
        %3282 = vmatpush1.msra.mxu0 0.0
        %3283 = vmatprep.subr.mxu0 0.0
        %3284 = vmatpush1.msra.mxu0 0.0
        %3285 = vmatprep.subr.mxu0 0.0
        %3286 = vmatpush1.msra.mxu0 0.0
        %3287 = vmatprep.subr.mxu0 0.0
        %3288 = vmatpush1.msra.mxu0 0.0
        %3289 = vmatprep.subr.mxu0 0.0
        %3290 = vmatpush1.msra.mxu0 0.0
        %3291 = vmatprep.subr.mxu0 0.0
        %3292 = vmatpush1.msra.mxu0 0.0
        %3293 = vmatprep.subr.mxu0 0.0
        %3294 = vmatpush1.msra.mxu0 0.0
        %3295 = vmatprep.subr.mxu0 0.0
        %3296 = vmatpush1.msra.mxu0 0.0
        %3297 = vmatprep.subr.mxu0 0.0
        %3298 = vmatpush1.msra.mxu0 0.0
        %3299 = vmatprep.subr.mxu0 0.0
        %3300 = vmatpush1.msra.mxu0 0.0
        %3301 = vmatprep.subr.mxu0 0.0
        %3302 = vmatpush1.msra.mxu0 0.0
        %3303 = vmatprep.subr.mxu0 0.0
        %3304 = vmatpush1.msra.mxu0 0.0
        %3305 = vmatprep.subr.mxu0 0.0
        %3306 = vmatpush1.msra.mxu0 0.0
        %3307 = vmatprep.subr.mxu0 0.0
        %3308 = vmatpush1.msra.mxu0 0.0
        %3309 = vmatprep.subr.mxu0 0.0
        %3310 = vmatpush1.msra.mxu0 0.0
        %3311 = vmatprep.subr.mxu0 0.0
        %3312 = vmatpush1.msra.mxu0 0.0
        %3313 = vmatprep.subr.mxu0 0.0
        %3314 = vmatpush1.msra.mxu0 0.0
        %3315 = vmatprep.subr.mxu0 0.0
        %3316 = vmatpush1.msra.mxu0 0.0
        %3317 = vmatprep.subr.mxu0 0.0
        %3318 = vmatpush1.msra.mxu0 0.0
        %3319 = vmatprep.subr.mxu0 0.0
        %3320 = vmatpush1.msra.mxu0 0.0
        %3321 = vmatprep.subr.mxu0 0.0
        %3322 = vmatpush1.msra.mxu0 0.0
        %3323 = vmatprep.mubr.f32.mxu0 0.0
        %3324 = vmatmul.mubr.f32.gmra.mrb[0].mxu0 %v3248
        %v3325 = vpop.f32.mrb[0].mxu0
        %v3326 = vadd.f32 0.0, %v3325
        %v3327 = vpop.f32.mrb[0].mxu0
        %3328 = vmatprep.mubr.f32.mxu0 0.0
        %3329 = vmatmul.mubr.f32.gmra.mrb[0].mxu0 %v3251
        %v3330 = vpop.f32.mrb[0].mxu0
        %v3331 = vadd.f32 0.0, %v3330
        %v3332 = vpop.f32.mrb[0].mxu0
        %3333 = vmatprep.mubr.f32.mxu0 0.0
        %3334 = vmatmul.mubr.f32.gmra.mrb[0].mxu0 %v3254
        %v3335 = vpop.f32.mrb[0].mxu0
        %v3336 = vadd.f32 0.0, %v3335
        %v3337 = vpop.f32.mrb[0].mxu0
        %3338 = vmatprep.mubr.f32.mxu0 0.0
        %3339 = vmatmul.mubr.f32.gmra.mrb[0].mxu0 %v3257
        %v3340 = vpop.f32.mrb[0].mxu0
        %v3341 = vadd.f32 0.0, %v3340
        %v3342 = vpop.f32.mrb[0].mxu0
        %3343 = vdwg.mxu0
        %v3344 = vadd.f32 %v3234, %v3326
        %v3345 = vadd.f32 %v3235, %v3331
        %v3346 = vadd.f32 %v3236, %v3336
        %v3347 = vadd.f32 %v3237, %v3341
        %v3348 = vld [vmem:[#allocation4 + $0xa] sm:$0xff]
        %v3349 = vld [vmem:[#allocation4 + $0x12] sm:$0xff]
        %v3350 = vld [vmem:[#allocation4 + $0x1a] sm:$0xff]
        %v3351 = vld [vmem:[#allocation4 + $0x22] sm:$0x3]
        %s3352 = scalar_lea.vmem %s5, 128
        %v3353 = vld [vmem:[%s3352] sm:$0xff]
        %v3354 = vld [vmem:[%s3352 + $0x8] sm:$0xff]
        %v3355 = vld [vmem:[%s3352 + $0x10] sm:$0xff]
        %v3356 = vld [vmem:[%s3352 + $0x18] sm:$0xff]
        %v3358 = vsel %vm510, %v3348, 0
        %v3361 = vsel %vm510, %v3349, 0
        %v3364 = vsel %vm510, %v3350, 0
        %v3367 = vsel %vm510, %v3351, 0
        %3369 = vmatprep.subr.mxu0 0.0
        %3370 = vmatpush1.msra.mxu0 %v3353
        %3371 = vmatprep.subr.mxu0 0.0
        %3372 = vmatpush1.msra.mxu0 %v3354
        %3373 = vmatprep.subr.mxu0 0.0
        %3374 = vmatpush1.msra.mxu0 %v3355
        %3375 = vmatprep.subr.mxu0 0.0
        %3376 = vmatpush1.msra.mxu0 %v3356
        %3377 = vmatprep.subr.mxu0 0.0
        %3378 = vmatpush1.msra.mxu0 0.0
        %3379 = vmatprep.subr.mxu0 0.0
        %3380 = vmatpush1.msra.mxu0 0.0
        %3381 = vmatprep.subr.mxu0 0.0
        %3382 = vmatpush1.msra.mxu0 0.0
        %3383 = vmatprep.subr.mxu0 0.0
        %3384 = vmatpush1.msra.mxu0 0.0
        %3385 = vmatprep.subr.mxu0 0.0
        %3386 = vmatpush1.msra.mxu0 0.0
        %3387 = vmatprep.subr.mxu0 0.0
        %3388 = vmatpush1.msra.mxu0 0.0
        %3389 = vmatprep.subr.mxu0 0.0
        %3390 = vmatpush1.msra.mxu0 0.0
        %3391 = vmatprep.subr.mxu0 0.0
        %3392 = vmatpush1.msra.mxu0 0.0
        %3393 = vmatprep.subr.mxu0 0.0
        %3394 = vmatpush1.msra.mxu0 0.0
        %3395 = vmatprep.subr.mxu0 0.0
        %3396 = vmatpush1.msra.mxu0 0.0
        %3397 = vmatprep.subr.mxu0 0.0
        %3398 = vmatpush1.msra.mxu0 0.0
        %3399 = vmatprep.subr.mxu0 0.0
        %3400 = vmatpush1.msra.mxu0 0.0
        %3401 = vmatprep.subr.mxu0 0.0
        %3402 = vmatpush1.msra.mxu0 0.0
        %3403 = vmatprep.subr.mxu0 0.0
        %3404 = vmatpush1.msra.mxu0 0.0
        %3405 = vmatprep.subr.mxu0 0.0
        %3406 = vmatpush1.msra.mxu0 0.0
        %3407 = vmatprep.subr.mxu0 0.0
        %3408 = vmatpush1.msra.mxu0 0.0
        %3409 = vmatprep.subr.mxu0 0.0
        %3410 = vmatpush1.msra.mxu0 0.0
        %3411 = vmatprep.subr.mxu0 0.0
        %3412 = vmatpush1.msra.mxu0 0.0
        %3413 = vmatprep.subr.mxu0 0.0
        %3414 = vmatpush1.msra.mxu0 0.0
        %3415 = vmatprep.subr.mxu0 0.0
        %3416 = vmatpush1.msra.mxu0 0.0
        %3417 = vmatprep.subr.mxu0 0.0
        %3418 = vmatpush1.msra.mxu0 0.0
        %3419 = vmatprep.subr.mxu0 0.0
        %3420 = vmatpush1.msra.mxu0 0.0
        %3421 = vmatprep.subr.mxu0 0.0
        %3422 = vmatpush1.msra.mxu0 0.0
        %3423 = vmatprep.subr.mxu0 0.0
        %3424 = vmatpush1.msra.mxu0 0.0
        %3425 = vmatprep.subr.mxu0 0.0
        %3426 = vmatpush1.msra.mxu0 0.0
        %3427 = vmatprep.subr.mxu0 0.0
        %3428 = vmatpush1.msra.mxu0 0.0
        %3429 = vmatprep.subr.mxu0 0.0
        %3430 = vmatpush1.msra.mxu0 0.0
        %3431 = vmatprep.subr.mxu0 0.0
        %3432 = vmatpush1.msra.mxu0 0.0
        %3433 = vmatprep.mubr.f32.mxu0 0.0
        %3434 = vmatmul.mubr.f32.gmra.mrb[0].mxu0 %v3358
        %v3435 = vpop.f32.mrb[0].mxu0
        %v3436 = vadd.f32 0.0, %v3435
        %v3437 = vpop.f32.mrb[0].mxu0
        %3438 = vmatprep.mubr.f32.mxu0 0.0
        %3439 = vmatmul.mubr.f32.gmra.mrb[0].mxu0 %v3361
        %v3440 = vpop.f32.mrb[0].mxu0
        %v3441 = vadd.f32 0.0, %v3440
        %v3442 = vpop.f32.mrb[0].mxu0
        %3443 = vmatprep.mubr.f32.mxu0 0.0
        %3444 = vmatmul.mubr.f32.gmra.mrb[0].mxu0 %v3364
        %v3445 = vpop.f32.mrb[0].mxu0
        %v3446 = vadd.f32 0.0, %v3445
        %v3447 = vpop.f32.mrb[0].mxu0
        %3448 = vmatprep.mubr.f32.mxu0 0.0
        %3449 = vmatmul.mubr.f32.gmra.mrb[0].mxu0 %v3367
        %v3450 = vpop.f32.mrb[0].mxu0
        %v3451 = vadd.f32 0.0, %v3450
        %v3452 = vpop.f32.mrb[0].mxu0
        %3453 = vdwg.mxu0
        %v3454 = vadd.f32 %v3344, %v3436
        %v3455 = vadd.f32 %v3345, %v3441
        %v3456 = vadd.f32 %v3346, %v3446
        %v3457 = vadd.f32 %v3347, %v3451
        %v3458 = vld [vmem:[%s6] sm:$0x1]
        %v3460 = vlaneseq
        %v3461 = vshrl.u32 %v3460, 7
        %v3462 = vsub.s32 0, %v3461
        %v3463 = vrot.slane %v3458, %v3462
        %v3465 = vadd.f32 %v3454, %v3463
        %v3466 = vadd.f32 %v3455, %v3463
        %v3467 = vadd.f32 %v3456, %v3463
        %v3468 = vadd.f32 %v3457, %v3463
        %vm3469 = vcmp.gt.f32.partialorder %v3465, 0.0
        %vm3470 = vcmp.gt.f32.partialorder %v3466, 0.0
        %vm3471 = vcmp.gt.f32.partialorder %v3467, 0.0
        %vm3472 = vcmp.gt.f32.partialorder %v3468, 0.0
        %v3473 = vmul.f32 %v3465, 0.01
        %v3474 = vmul.f32 %v3466, 0.01
        %v3475 = vmul.f32 %v3467, 0.01
        %v3476 = vmul.f32 %v3468, 0.01
        %v3477 = vsel %vm3469, %v3465, %v3473
        %v3478 = vsel %vm3470, %v3466, %v3474
        %v3479 = vsel %vm3471, %v3467, %v3475
        %v3480 = vsel %vm3472, %v3468, %v3476
        %3481 = vst.msk [vmem:[#allocation9] sm:$0xff] %vm538, %v3477
        %3482 = vst.msk [vmem:[#allocation9 + $0x8] sm:$0xff] %vm538, %v3478
        %3483 = vst.msk [vmem:[#allocation9 + $0x10] sm:$0xff] %vm538, %v3479
        %vm3484 = vcmask 517120
        %3485 = vst.msk [vmem:[#allocation9 + $0x18] sm:$0x3] %vm3484, %v3480
        %v3486 = vld [vmem:[#allocation9] ss:$2 sm:$0xff]
        %s3487 = scalar_lea.vmem [#allocation9], 16
        %v3488 = vld [vmem:[%s3487] ss:$2 sm:$0x1f]
        %s3489 = scalar_lea.vmem [#allocation9], 1
        %v3490 = vld [vmem:[%s3489] ss:$2 sm:$0xff]
        %s3491 = scalar_lea.vmem [#allocation9], 17
        %v3492 = vld [vmem:[%s3491] ss:$2 sm:$0x1f]
        %v3493 = vmax.f32 %v3486, %v3490
        %v3494 = vmax.f32 %v3488, %v3492
        %3495 = vst.msk [vmem:[#allocation5 + $0x8] sm:$0xff] %vm538, %v3493
        %vm3496 = vcmask 520192
        %3497 = vst.msk [vmem:[#allocation5 + $0x10] sm:$0x1f] %vm3496, %v3494
        %v3498 = vld [vmem:[%s2912 + $0x6] sm:$0xff]
        %v3499 = vld [vmem:[%s2912 + $0xe] sm:$0xff]
        %v3500 = vld [vmem:[%s2912 + $0x16] sm:$0xff]
        %v3501 = vld [vmem:[%s2912 + $0x1e] sm:$0x3]
        %v3502 = vld [vmem:[%s5] sm:$0xff]
        %v3503 = vld [vmem:[%s5 + $0x8] sm:$0xff]
        %v3504 = vld [vmem:[%s5 + $0x10] sm:$0xff]
        %v3505 = vld [vmem:[%s5 + $0x18] sm:$0xff]
        %v3506 = vld [vmem:[%s2912 + $0x7] sm:$0xff]
        %v3507 = vld [vmem:[%s2912 + $0xf] sm:$0xff]
        %v3508 = vld [vmem:[%s2912 + $0x17] sm:$0xff]
        %v3509 = vld [vmem:[%s2912 + $0x1f] sm:$0x3]
        %v3510 = vld [vmem:[%s2929] sm:$0xff]
        %v3511 = vld [vmem:[%s2929 + $0x8] sm:$0xff]
        %v3512 = vld [vmem:[%s2929 + $0x10] sm:$0xff]
        %v3513 = vld [vmem:[%s2929 + $0x18] sm:$0xff]
        %v3515 = vsel %vm510, %v3506, 0
        %v3518 = vsel %vm510, %v3507, 0
        %v3521 = vsel %vm510, %v3508, 0
        %v3524 = vsel %vm510, %v3509, 0
        %3526 = vmatprep.subr.mxu0 0.0
        %3527 = vmatpush1.msra.mxu0 %v3510
        %3528 = vmatprep.subr.mxu0 0.0
        %3529 = vmatpush1.msra.mxu0 %v3511
        %3530 = vmatprep.subr.mxu0 0.0
        %3531 = vmatpush1.msra.mxu0 %v3512
        %3532 = vmatprep.subr.mxu0 0.0
        %3533 = vmatpush1.msra.mxu0 %v3513
        %3534 = vmatprep.subr.mxu0 0.0
        %3535 = vmatpush1.msra.mxu0 0.0
        %3536 = vmatprep.subr.mxu0 0.0
        %3537 = vmatpush1.msra.mxu0 0.0
        %3538 = vmatprep.subr.mxu0 0.0
        %3539 = vmatpush1.msra.mxu0 0.0
        %3540 = vmatprep.subr.mxu0 0.0
        %3541 = vmatpush1.msra.mxu0 0.0
        %3542 = vmatprep.subr.mxu0 0.0
        %3543 = vmatpush1.msra.mxu0 0.0
        %3544 = vmatprep.subr.mxu0 0.0
        %3545 = vmatpush1.msra.mxu0 0.0
        %3546 = vmatprep.subr.mxu0 0.0
        %3547 = vmatpush1.msra.mxu0 0.0
        %3548 = vmatprep.subr.mxu0 0.0
        %3549 = vmatpush1.msra.mxu0 0.0
        %3550 = vmatprep.subr.mxu0 0.0
        %3551 = vmatpush1.msra.mxu0 0.0
        %3552 = vmatprep.subr.mxu0 0.0
        %3553 = vmatpush1.msra.mxu0 0.0
        %3554 = vmatprep.subr.mxu0 0.0
        %3555 = vmatpush1.msra.mxu0 0.0
        %3556 = vmatprep.subr.mxu0 0.0
        %3557 = vmatpush1.msra.mxu0 0.0
        %3558 = vmatprep.subr.mxu0 0.0
        %3559 = vmatpush1.msra.mxu0 0.0
        %3560 = vmatprep.subr.mxu0 0.0
        %3561 = vmatpush1.msra.mxu0 0.0
        %3562 = vmatprep.subr.mxu0 0.0
        %3563 = vmatpush1.msra.mxu0 0.0
        %3564 = vmatprep.subr.mxu0 0.0
        %3565 = vmatpush1.msra.mxu0 0.0
        %3566 = vmatprep.subr.mxu0 0.0
        %3567 = vmatpush1.msra.mxu0 0.0
        %3568 = vmatprep.subr.mxu0 0.0
        %3569 = vmatpush1.msra.mxu0 0.0
        %3570 = vmatprep.subr.mxu0 0.0
        %3571 = vmatpush1.msra.mxu0 0.0
        %3572 = vmatprep.subr.mxu0 0.0
        %3573 = vmatpush1.msra.mxu0 0.0
        %3574 = vmatprep.subr.mxu0 0.0
        %3575 = vmatpush1.msra.mxu0 0.0
        %3576 = vmatprep.subr.mxu0 0.0
        %3577 = vmatpush1.msra.mxu0 0.0
        %3578 = vmatprep.subr.mxu0 0.0
        %3579 = vmatpush1.msra.mxu0 0.0
        %3580 = vmatprep.subr.mxu0 0.0
        %3581 = vmatpush1.msra.mxu0 0.0
        %3582 = vmatprep.subr.mxu0 0.0
        %3583 = vmatpush1.msra.mxu0 0.0
        %3584 = vmatprep.subr.mxu0 0.0
        %3585 = vmatpush1.msra.mxu0 0.0
        %3586 = vmatprep.subr.mxu0 0.0
        %3587 = vmatpush1.msra.mxu0 0.0
        %3588 = vmatprep.subr.mxu0 0.0
        %3589 = vmatpush1.msra.mxu0 0.0
        %3590 = vmatprep.mubr.f32.mxu0 0.0
        %3591 = vmatmul.mubr.f32.gmra.mrb[0].mxu0 %v3515
        %v3592 = vpop.f32.mrb[0].mxu0
        %v3593 = vadd.f32 0.0, %v3592
        %v3594 = vpop.f32.mrb[0].mxu0
        %3595 = vmatprep.mubr.f32.mxu0 0.0
        %3596 = vmatmul.mubr.f32.gmra.mrb[0].mxu0 %v3518
        %v3597 = vpop.f32.mrb[0].mxu0
        %v3598 = vadd.f32 0.0, %v3597
        %v3599 = vpop.f32.mrb[0].mxu0
        %3600 = vmatprep.mubr.f32.mxu0 0.0
        %3601 = vmatmul.mubr.f32.gmra.mrb[0].mxu0 %v3521
        %v3602 = vpop.f32.mrb[0].mxu0
        %v3603 = vadd.f32 0.0, %v3602
        %v3604 = vpop.f32.mrb[0].mxu0
        %3605 = vmatprep.mubr.f32.mxu0 0.0
        %3606 = vmatmul.mubr.f32.gmra.mrb[0].mxu0 %v3524
        %v3607 = vpop.f32.mrb[0].mxu0
        %v3608 = vadd.f32 0.0, %v3607
        %v3609 = vpop.f32.mrb[0].mxu0
        %3610 = vdwg.mxu0
        %v3612 = vsel %vm510, %v3498, 0
        %v3615 = vsel %vm510, %v3499, 0
        %v3618 = vsel %vm510, %v3500, 0
        %v3621 = vsel %vm510, %v3501, 0
        %3623 = vmatprep.subr.mxu0 0.0
        %3624 = vmatpush1.msra.mxu0 %v3502
        %3625 = vmatprep.subr.mxu0 0.0
        %3626 = vmatpush1.msra.mxu0 %v3503
        %3627 = vmatprep.subr.mxu0 0.0
        %3628 = vmatpush1.msra.mxu0 %v3504
        %3629 = vmatprep.subr.mxu0 0.0
        %3630 = vmatpush1.msra.mxu0 %v3505
        %3631 = vmatprep.subr.mxu0 0.0
        %3632 = vmatpush1.msra.mxu0 0.0
        %3633 = vmatprep.subr.mxu0 0.0
        %3634 = vmatpush1.msra.mxu0 0.0
        %3635 = vmatprep.subr.mxu0 0.0
        %3636 = vmatpush1.msra.mxu0 0.0
        %3637 = vmatprep.subr.mxu0 0.0
        %3638 = vmatpush1.msra.mxu0 0.0
        %3639 = vmatprep.subr.mxu0 0.0
        %3640 = vmatpush1.msra.mxu0 0.0
        %3641 = vmatprep.subr.mxu0 0.0
        %3642 = vmatpush1.msra.mxu0 0.0
        %3643 = vmatprep.subr.mxu0 0.0
        %3644 = vmatpush1.msra.mxu0 0.0
        %3645 = vmatprep.subr.mxu0 0.0
        %3646 = vmatpush1.msra.mxu0 0.0
        %3647 = vmatprep.subr.mxu0 0.0
        %3648 = vmatpush1.msra.mxu0 0.0
        %3649 = vmatprep.subr.mxu0 0.0
        %3650 = vmatpush1.msra.mxu0 0.0
        %3651 = vmatprep.subr.mxu0 0.0
        %3652 = vmatpush1.msra.mxu0 0.0
        %3653 = vmatprep.subr.mxu0 0.0
        %3654 = vmatpush1.msra.mxu0 0.0
        %3655 = vmatprep.subr.mxu0 0.0
        %3656 = vmatpush1.msra.mxu0 0.0
        %3657 = vmatprep.subr.mxu0 0.0
        %3658 = vmatpush1.msra.mxu0 0.0
        %3659 = vmatprep.subr.mxu0 0.0
        %3660 = vmatpush1.msra.mxu0 0.0
        %3661 = vmatprep.subr.mxu0 0.0
        %3662 = vmatpush1.msra.mxu0 0.0
        %3663 = vmatprep.subr.mxu0 0.0
        %3664 = vmatpush1.msra.mxu0 0.0
        %3665 = vmatprep.subr.mxu0 0.0
        %3666 = vmatpush1.msra.mxu0 0.0
        %3667 = vmatprep.subr.mxu0 0.0
        %3668 = vmatpush1.msra.mxu0 0.0
        %3669 = vmatprep.subr.mxu0 0.0
        %3670 = vmatpush1.msra.mxu0 0.0
        %3671 = vmatprep.subr.mxu0 0.0
        %3672 = vmatpush1.msra.mxu0 0.0
        %3673 = vmatprep.subr.mxu0 0.0
        %3674 = vmatpush1.msra.mxu0 0.0
        %3675 = vmatprep.subr.mxu0 0.0
        %3676 = vmatpush1.msra.mxu0 0.0
        %3677 = vmatprep.subr.mxu0 0.0
        %3678 = vmatpush1.msra.mxu0 0.0
        %3679 = vmatprep.subr.mxu0 0.0
        %3680 = vmatpush1.msra.mxu0 0.0
        %3681 = vmatprep.subr.mxu0 0.0
        %3682 = vmatpush1.msra.mxu0 0.0
        %3683 = vmatprep.subr.mxu0 0.0
        %3684 = vmatpush1.msra.mxu0 0.0
        %3685 = vmatprep.subr.mxu0 0.0
        %3686 = vmatpush1.msra.mxu0 0.0
        %3687 = vmatprep.mubr.f32.mxu0 0.0
        %3688 = vmatmul.mubr.f32.gmra.mrb[0].mxu0 %v3612
        %v3689 = vpop.f32.mrb[0].mxu0
        %v3690 = vadd.f32 %v3593, %v3689
        %v3691 = vpop.f32.mrb[0].mxu0
        %3692 = vmatprep.mubr.f32.mxu0 0.0
        %3693 = vmatmul.mubr.f32.gmra.mrb[0].mxu0 %v3615
        %v3694 = vpop.f32.mrb[0].mxu0
        %v3695 = vadd.f32 %v3598, %v3694
        %v3696 = vpop.f32.mrb[0].mxu0
        %3697 = vmatprep.mubr.f32.mxu0 0.0
        %3698 = vmatmul.mubr.f32.gmra.mrb[0].mxu0 %v3618
        %v3699 = vpop.f32.mrb[0].mxu0
        %v3700 = vadd.f32 %v3603, %v3699
        %v3701 = vpop.f32.mrb[0].mxu0
        %3702 = vmatprep.mubr.f32.mxu0 0.0
        %3703 = vmatmul.mubr.f32.gmra.mrb[0].mxu0 %v3621
        %v3704 = vpop.f32.mrb[0].mxu0
        %v3705 = vadd.f32 %v3608, %v3704
        %v3706 = vpop.f32.mrb[0].mxu0
        %3707 = vdwg.mxu0
        %v3708 = vld [vmem:[%s2912 + $0x8] sm:$0xff]
        %v3709 = vld [vmem:[%s2912 + $0x10] sm:$0xff]
        %v3710 = vld [vmem:[%s2912 + $0x18] sm:$0xff]
        %v3711 = vld [vmem:[%s2912 + $0x20] sm:$0x3]
        %v3712 = vld [vmem:[%s3132] sm:$0xff]
        %v3713 = vld [vmem:[%s3132 + $0x8] sm:$0xff]
        %v3714 = vld [vmem:[%s3132 + $0x10] sm:$0xff]
        %v3715 = vld [vmem:[%s3132 + $0x18] sm:$0xff]
        %v3717 = vsel %vm510, %v3708, 0
        %v3720 = vsel %vm510, %v3709, 0
        %v3723 = vsel %vm510, %v3710, 0
        %v3726 = vsel %vm510, %v3711, 0
        %3728 = vmatprep.subr.mxu0 0.0
        %3729 = vmatpush1.msra.mxu0 %v3712
        %3730 = vmatprep.subr.mxu0 0.0
        %3731 = vmatpush1.msra.mxu0 %v3713
        %3732 = vmatprep.subr.mxu0 0.0
        %3733 = vmatpush1.msra.mxu0 %v3714
        %3734 = vmatprep.subr.mxu0 0.0
        %3735 = vmatpush1.msra.mxu0 %v3715
        %3736 = vmatprep.subr.mxu0 0.0
        %3737 = vmatpush1.msra.mxu0 0.0
        %3738 = vmatprep.subr.mxu0 0.0
        %3739 = vmatpush1.msra.mxu0 0.0
        %3740 = vmatprep.subr.mxu0 0.0
        %3741 = vmatpush1.msra.mxu0 0.0
        %3742 = vmatprep.subr.mxu0 0.0
        %3743 = vmatpush1.msra.mxu0 0.0
        %3744 = vmatprep.subr.mxu0 0.0
        %3745 = vmatpush1.msra.mxu0 0.0
        %3746 = vmatprep.subr.mxu0 0.0
        %3747 = vmatpush1.msra.mxu0 0.0
        %3748 = vmatprep.subr.mxu0 0.0
        %3749 = vmatpush1.msra.mxu0 0.0
        %3750 = vmatprep.subr.mxu0 0.0
        %3751 = vmatpush1.msra.mxu0 0.0
        %3752 = vmatprep.subr.mxu0 0.0
        %3753 = vmatpush1.msra.mxu0 0.0
        %3754 = vmatprep.subr.mxu0 0.0
        %3755 = vmatpush1.msra.mxu0 0.0
        %3756 = vmatprep.subr.mxu0 0.0
        %3757 = vmatpush1.msra.mxu0 0.0
        %3758 = vmatprep.subr.mxu0 0.0
        %3759 = vmatpush1.msra.mxu0 0.0
        %3760 = vmatprep.subr.mxu0 0.0
        %3761 = vmatpush1.msra.mxu0 0.0
        %3762 = vmatprep.subr.mxu0 0.0
        %3763 = vmatpush1.msra.mxu0 0.0
        %3764 = vmatprep.subr.mxu0 0.0
        %3765 = vmatpush1.msra.mxu0 0.0
        %3766 = vmatprep.subr.mxu0 0.0
        %3767 = vmatpush1.msra.mxu0 0.0
        %3768 = vmatprep.subr.mxu0 0.0
        %3769 = vmatpush1.msra.mxu0 0.0
        %3770 = vmatprep.subr.mxu0 0.0
        %3771 = vmatpush1.msra.mxu0 0.0
        %3772 = vmatprep.subr.mxu0 0.0
        %3773 = vmatpush1.msra.mxu0 0.0
        %3774 = vmatprep.subr.mxu0 0.0
        %3775 = vmatpush1.msra.mxu0 0.0
        %3776 = vmatprep.subr.mxu0 0.0
        %3777 = vmatpush1.msra.mxu0 0.0
        %3778 = vmatprep.subr.mxu0 0.0
        %3779 = vmatpush1.msra.mxu0 0.0
        %3780 = vmatprep.subr.mxu0 0.0
        %3781 = vmatpush1.msra.mxu0 0.0
        %3782 = vmatprep.subr.mxu0 0.0
        %3783 = vmatpush1.msra.mxu0 0.0
        %3784 = vmatprep.subr.mxu0 0.0
        %3785 = vmatpush1.msra.mxu0 0.0
        %3786 = vmatprep.subr.mxu0 0.0
        %3787 = vmatpush1.msra.mxu0 0.0
        %3788 = vmatprep.subr.mxu0 0.0
        %3789 = vmatpush1.msra.mxu0 0.0
        %3790 = vmatprep.subr.mxu0 0.0
        %3791 = vmatpush1.msra.mxu0 0.0
        %3792 = vmatprep.mubr.f32.mxu0 0.0
        %3793 = vmatmul.mubr.f32.gmra.mrb[0].mxu0 %v3717
        %v3794 = vpop.f32.mrb[0].mxu0
        %v3795 = vadd.f32 0.0, %v3794
        %v3796 = vpop.f32.mrb[0].mxu0
        %3797 = vmatprep.mubr.f32.mxu0 0.0
        %3798 = vmatmul.mubr.f32.gmra.mrb[0].mxu0 %v3720
        %v3799 = vpop.f32.mrb[0].mxu0
        %v3800 = vadd.f32 0.0, %v3799
        %v3801 = vpop.f32.mrb[0].mxu0
        %3802 = vmatprep.mubr.f32.mxu0 0.0
        %3803 = vmatmul.mubr.f32.gmra.mrb[0].mxu0 %v3723
        %v3804 = vpop.f32.mrb[0].mxu0
        %v3805 = vadd.f32 0.0, %v3804
        %v3806 = vpop.f32.mrb[0].mxu0
        %3807 = vmatprep.mubr.f32.mxu0 0.0
        %3808 = vmatmul.mubr.f32.gmra.mrb[0].mxu0 %v3726
        %v3809 = vpop.f32.mrb[0].mxu0
        %v3810 = vadd.f32 0.0, %v3809
        %v3811 = vpop.f32.mrb[0].mxu0
        %3812 = vdwg.mxu0
        %v3813 = vadd.f32 %v3690, %v3795
        %v3814 = vadd.f32 %v3695, %v3800
        %v3815 = vadd.f32 %v3700, %v3805
        %v3816 = vadd.f32 %v3705, %v3810
        %v3817 = vld [vmem:[%s2912 + $0x9] sm:$0xff]
        %v3818 = vld [vmem:[%s2912 + $0x11] sm:$0xff]
        %v3819 = vld [vmem:[%s2912 + $0x19] sm:$0xff]
        %v3820 = vld [vmem:[%s2912 + $0x21] sm:$0x3]
        %v3821 = vld [vmem:[%s3242] sm:$0xff]
        %v3822 = vld [vmem:[%s3242 + $0x8] sm:$0xff]
        %v3823 = vld [vmem:[%s3242 + $0x10] sm:$0xff]
        %v3824 = vld [vmem:[%s3242 + $0x18] sm:$0xff]
        %v3826 = vsel %vm510, %v3817, 0
        %v3829 = vsel %vm510, %v3818, 0
        %v3832 = vsel %vm510, %v3819, 0
        %v3835 = vsel %vm510, %v3820, 0
        %3837 = vmatprep.subr.mxu0 0.0
        %3838 = vmatpush1.msra.mxu0 %v3821
        %3839 = vmatprep.subr.mxu0 0.0
        %3840 = vmatpush1.msra.mxu0 %v3822
        %3841 = vmatprep.subr.mxu0 0.0
        %3842 = vmatpush1.msra.mxu0 %v3823
        %3843 = vmatprep.subr.mxu0 0.0
        %3844 = vmatpush1.msra.mxu0 %v3824
        %3845 = vmatprep.subr.mxu0 0.0
        %3846 = vmatpush1.msra.mxu0 0.0
        %3847 = vmatprep.subr.mxu0 0.0
        %3848 = vmatpush1.msra.mxu0 0.0
        %3849 = vmatprep.subr.mxu0 0.0
        %3850 = vmatpush1.msra.mxu0 0.0
        %3851 = vmatprep.subr.mxu0 0.0
        %3852 = vmatpush1.msra.mxu0 0.0
        %3853 = vmatprep.subr.mxu0 0.0
        %3854 = vmatpush1.msra.mxu0 0.0
        %3855 = vmatprep.subr.mxu0 0.0
        %3856 = vmatpush1.msra.mxu0 0.0
        %3857 = vmatprep.subr.mxu0 0.0
        %3858 = vmatpush1.msra.mxu0 0.0
        %3859 = vmatprep.subr.mxu0 0.0
        %3860 = vmatpush1.msra.mxu0 0.0
        %3861 = vmatprep.subr.mxu0 0.0
        %3862 = vmatpush1.msra.mxu0 0.0
        %3863 = vmatprep.subr.mxu0 0.0
        %3864 = vmatpush1.msra.mxu0 0.0
        %3865 = vmatprep.subr.mxu0 0.0
        %3866 = vmatpush1.msra.mxu0 0.0
        %3867 = vmatprep.subr.mxu0 0.0
        %3868 = vmatpush1.msra.mxu0 0.0
        %3869 = vmatprep.subr.mxu0 0.0
        %3870 = vmatpush1.msra.mxu0 0.0
        %3871 = vmatprep.subr.mxu0 0.0
        %3872 = vmatpush1.msra.mxu0 0.0
        %3873 = vmatprep.subr.mxu0 0.0
        %3874 = vmatpush1.msra.mxu0 0.0
        %3875 = vmatprep.subr.mxu0 0.0
        %3876 = vmatpush1.msra.mxu0 0.0
        %3877 = vmatprep.subr.mxu0 0.0
        %3878 = vmatpush1.msra.mxu0 0.0
        %3879 = vmatprep.subr.mxu0 0.0
        %3880 = vmatpush1.msra.mxu0 0.0
        %3881 = vmatprep.subr.mxu0 0.0
        %3882 = vmatpush1.msra.mxu0 0.0
        %3883 = vmatprep.subr.mxu0 0.0
        %3884 = vmatpush1.msra.mxu0 0.0
        %3885 = vmatprep.subr.mxu0 0.0
        %3886 = vmatpush1.msra.mxu0 0.0
        %3887 = vmatprep.subr.mxu0 0.0
        %3888 = vmatpush1.msra.mxu0 0.0
        %3889 = vmatprep.subr.mxu0 0.0
        %3890 = vmatpush1.msra.mxu0 0.0
        %3891 = vmatprep.subr.mxu0 0.0
        %3892 = vmatpush1.msra.mxu0 0.0
        %3893 = vmatprep.subr.mxu0 0.0
        %3894 = vmatpush1.msra.mxu0 0.0
        %3895 = vmatprep.subr.mxu0 0.0
        %3896 = vmatpush1.msra.mxu0 0.0
        %3897 = vmatprep.subr.mxu0 0.0
        %3898 = vmatpush1.msra.mxu0 0.0
        %3899 = vmatprep.subr.mxu0 0.0
        %3900 = vmatpush1.msra.mxu0 0.0
        %3901 = vmatprep.mubr.f32.mxu0 0.0
        %3902 = vmatmul.mubr.f32.gmra.mrb[0].mxu0 %v3826
        %v3903 = vpop.f32.mrb[0].mxu0
        %v3904 = vadd.f32 0.0, %v3903
        %v3905 = vpop.f32.mrb[0].mxu0
        %3906 = vmatprep.mubr.f32.mxu0 0.0
        %3907 = vmatmul.mubr.f32.gmra.mrb[0].mxu0 %v3829
        %v3908 = vpop.f32.mrb[0].mxu0
        %v3909 = vadd.f32 0.0, %v3908
        %v3910 = vpop.f32.mrb[0].mxu0
        %3911 = vmatprep.mubr.f32.mxu0 0.0
        %3912 = vmatmul.mubr.f32.gmra.mrb[0].mxu0 %v3832
        %v3913 = vpop.f32.mrb[0].mxu0
        %v3914 = vadd.f32 0.0, %v3913
        %v3915 = vpop.f32.mrb[0].mxu0
        %3916 = vmatprep.mubr.f32.mxu0 0.0
        %3917 = vmatmul.mubr.f32.gmra.mrb[0].mxu0 %v3835
        %v3918 = vpop.f32.mrb[0].mxu0
        %v3919 = vadd.f32 0.0, %v3918
        %v3920 = vpop.f32.mrb[0].mxu0
        %3921 = vdwg.mxu0
        %v3922 = vadd.f32 %v3813, %v3904
        %v3923 = vadd.f32 %v3814, %v3909
        %v3924 = vadd.f32 %v3815, %v3914
        %v3925 = vadd.f32 %v3816, %v3919
        %v3926 = vld [vmem:[%s2912 + $0xa] sm:$0xff]
        %v3927 = vld [vmem:[%s2912 + $0x12] sm:$0xff]
        %v3928 = vld [vmem:[%s2912 + $0x1a] sm:$0xff]
        %v3929 = vld [vmem:[%s2912 + $0x22] sm:$0x3]
        %v3930 = vld [vmem:[%s3352] sm:$0xff]
        %v3931 = vld [vmem:[%s3352 + $0x8] sm:$0xff]
        %v3932 = vld [vmem:[%s3352 + $0x10] sm:$0xff]
        %v3933 = vld [vmem:[%s3352 + $0x18] sm:$0xff]
        %v3935 = vsel %vm510, %v3926, 0
        %v3938 = vsel %vm510, %v3927, 0
        %v3941 = vsel %vm510, %v3928, 0
        %v3944 = vsel %vm510, %v3929, 0
        %3946 = vmatprep.subr.mxu0 0.0
        %3947 = vmatpush1.msra.mxu0 %v3930
        %3948 = vmatprep.subr.mxu0 0.0
        %3949 = vmatpush1.msra.mxu0 %v3931
        %3950 = vmatprep.subr.mxu0 0.0
        %3951 = vmatpush1.msra.mxu0 %v3932
        %3952 = vmatprep.subr.mxu0 0.0
        %3953 = vmatpush1.msra.mxu0 %v3933
        %3954 = vmatprep.subr.mxu0 0.0
        %3955 = vmatpush1.msra.mxu0 0.0
        %3956 = vmatprep.subr.mxu0 0.0
        %3957 = vmatpush1.msra.mxu0 0.0
        %3958 = vmatprep.subr.mxu0 0.0
        %3959 = vmatpush1.msra.mxu0 0.0
        %3960 = vmatprep.subr.mxu0 0.0
        %3961 = vmatpush1.msra.mxu0 0.0
        %3962 = vmatprep.subr.mxu0 0.0
        %3963 = vmatpush1.msra.mxu0 0.0
        %3964 = vmatprep.subr.mxu0 0.0
        %3965 = vmatpush1.msra.mxu0 0.0
        %3966 = vmatprep.subr.mxu0 0.0
        %3967 = vmatpush1.msra.mxu0 0.0
        %3968 = vmatprep.subr.mxu0 0.0
        %3969 = vmatpush1.msra.mxu0 0.0
        %3970 = vmatprep.subr.mxu0 0.0
        %3971 = vmatpush1.msra.mxu0 0.0
        %3972 = vmatprep.subr.mxu0 0.0
        %3973 = vmatpush1.msra.mxu0 0.0
        %3974 = vmatprep.subr.mxu0 0.0
        %3975 = vmatpush1.msra.mxu0 0.0
        %3976 = vmatprep.subr.mxu0 0.0
        %3977 = vmatpush1.msra.mxu0 0.0
        %3978 = vmatprep.subr.mxu0 0.0
        %3979 = vmatpush1.msra.mxu0 0.0
        %3980 = vmatprep.subr.mxu0 0.0
        %3981 = vmatpush1.msra.mxu0 0.0
        %3982 = vmatprep.subr.mxu0 0.0
        %3983 = vmatpush1.msra.mxu0 0.0
        %3984 = vmatprep.subr.mxu0 0.0
        %3985 = vmatpush1.msra.mxu0 0.0
        %3986 = vmatprep.subr.mxu0 0.0
        %3987 = vmatpush1.msra.mxu0 0.0
        %3988 = vmatprep.subr.mxu0 0.0
        %3989 = vmatpush1.msra.mxu0 0.0
        %3990 = vmatprep.subr.mxu0 0.0
        %3991 = vmatpush1.msra.mxu0 0.0
        %3992 = vmatprep.subr.mxu0 0.0
        %3993 = vmatpush1.msra.mxu0 0.0
        %3994 = vmatprep.subr.mxu0 0.0
        %3995 = vmatpush1.msra.mxu0 0.0
        %3996 = vmatprep.subr.mxu0 0.0
        %3997 = vmatpush1.msra.mxu0 0.0
        %3998 = vmatprep.subr.mxu0 0.0
        %3999 = vmatpush1.msra.mxu0 0.0
        %4000 = vmatprep.subr.mxu0 0.0
        %4001 = vmatpush1.msra.mxu0 0.0
        %4002 = vmatprep.subr.mxu0 0.0
        %4003 = vmatpush1.msra.mxu0 0.0
        %4004 = vmatprep.subr.mxu0 0.0
        %4005 = vmatpush1.msra.mxu0 0.0
        %4006 = vmatprep.subr.mxu0 0.0
        %4007 = vmatpush1.msra.mxu0 0.0
        %4008 = vmatprep.subr.mxu0 0.0
        %4009 = vmatpush1.msra.mxu0 0.0
        %4010 = vmatprep.mubr.f32.mxu0 0.0
        %4011 = vmatmul.mubr.f32.gmra.mrb[0].mxu0 %v3935
        %v4012 = vpop.f32.mrb[0].mxu0
        %v4013 = vadd.f32 0.0, %v4012
        %v4014 = vpop.f32.mrb[0].mxu0
        %4015 = vmatprep.mubr.f32.mxu0 0.0
        %4016 = vmatmul.mubr.f32.gmra.mrb[0].mxu0 %v3938
        %v4017 = vpop.f32.mrb[0].mxu0
        %v4018 = vadd.f32 0.0, %v4017
        %v4019 = vpop.f32.mrb[0].mxu0
        %4020 = vmatprep.mubr.f32.mxu0 0.0
        %4021 = vmatmul.mubr.f32.gmra.mrb[0].mxu0 %v3941
        %v4022 = vpop.f32.mrb[0].mxu0
        %v4023 = vadd.f32 0.0, %v4022
        %v4024 = vpop.f32.mrb[0].mxu0
        %4025 = vmatprep.mubr.f32.mxu0 0.0
        %4026 = vmatmul.mubr.f32.gmra.mrb[0].mxu0 %v3944
        %v4027 = vpop.f32.mrb[0].mxu0
        %v4028 = vadd.f32 0.0, %v4027
        %v4029 = vpop.f32.mrb[0].mxu0
        %4030 = vdwg.mxu0
        %v4031 = vadd.f32 %v3922, %v4013
        %v4032 = vadd.f32 %v3923, %v4018
        %v4033 = vadd.f32 %v3924, %v4023
        %v4034 = vadd.f32 %v3925, %v4028
        %v4035 = vld [vmem:[%s6] sm:$0x1]
        %v4037 = vlaneseq
        %v4038 = vshrl.u32 %v4037, 7
        %v4039 = vsub.s32 0, %v4038
        %v4040 = vrot.slane %v4035, %v4039
        %v4042 = vadd.f32 %v4031, %v4040
        %v4043 = vadd.f32 %v4032, %v4040
        %v4044 = vadd.f32 %v4033, %v4040
        %v4045 = vadd.f32 %v4034, %v4040
        %vm4046 = vcmp.gt.f32.partialorder %v4042, 0.0
        %vm4047 = vcmp.gt.f32.partialorder %v4043, 0.0
        %vm4048 = vcmp.gt.f32.partialorder %v4044, 0.0
        %vm4049 = vcmp.gt.f32.partialorder %v4045, 0.0
        %v4050 = vmul.f32 %v4042, 0.01
        %v4051 = vmul.f32 %v4043, 0.01
        %v4052 = vmul.f32 %v4044, 0.01
        %v4053 = vmul.f32 %v4045, 0.01
        %v4054 = vsel %vm4046, %v4042, %v4050
        %v4055 = vsel %vm4047, %v4043, %v4051
        %v4056 = vsel %vm4048, %v4044, %v4052
        %v4057 = vsel %vm4049, %v4045, %v4053
        %4058 = vst.msk [vmem:[#allocation9] sm:$0xff] %vm538, %v4054
        %4059 = vst.msk [vmem:[#allocation9 + $0x8] sm:$0xff] %vm538, %v4055
        %4060 = vst.msk [vmem:[#allocation9 + $0x10] sm:$0xff] %vm538, %v4056
        %4061 = vst.msk [vmem:[#allocation9 + $0x18] sm:$0x3] %vm3484, %v4057
        %v4062 = vld [vmem:[#allocation9] ss:$2 sm:$0xff]
        %v4063 = vld [vmem:[%s3487] ss:$2 sm:$0x1f]
        %v4064 = vld [vmem:[%s3489] ss:$2 sm:$0xff]
        %v4065 = vld [vmem:[%s3491] ss:$2 sm:$0x1f]
        %v4066 = vmax.f32 %v4062, %v4064
        %v4067 = vmax.f32 %v4063, %v4065
        %s4068 = scalar_lea.vmem [#allocation5], 24
        %4069 = vst.msk [vmem:[%s4068 + $0x8] sm:$0xff] %vm538, %v4066
        %4070 = vst.msk [vmem:[%s4068 + $0x10] sm:$0x1f] %vm3496, %v4067
        %v4071 = vld [vmem:[#allocation5 + $0x6] sm:$0xff]
        %v4072 = vld [vmem:[#allocation5 + $0xe] sm:$0x3f]
        %v4073 = vld [vmem:[%s7] sm:$0xff]
        %v4074 = vld [vmem:[%s7 + $0x8] sm:$0xff]
        %v4075 = vld [vmem:[%s7 + $0x10] sm:$0xff]
        %v4076 = vld [vmem:[%s7 + $0x18] sm:$0xff]
        %v4077 = vld [vmem:[%s7 + $0x20] sm:$0xff]
        %v4078 = vld [vmem:[%s7 + $0x28] sm:$0xff]
        %v4079 = vld [vmem:[%s7 + $0x30] sm:$0xff]
        %v4080 = vld [vmem:[%s7 + $0x38] sm:$0xff]
        %v4081 = vld [vmem:[#allocation5 + $0x7] sm:$0xff]
        %v4082 = vld [vmem:[#allocation5 + $0xf] sm:$0x3f]
        %s4083 = scalar_lea.vmem %s7, 64
        %v4084 = vld [vmem:[%s4083] sm:$0xff]
        %v4085 = vld [vmem:[%s4083 + $0x8] sm:$0xff]
        %v4086 = vld [vmem:[%s4083 + $0x10] sm:$0xff]
        %v4087 = vld [vmem:[%s4083 + $0x18] sm:$0xff]
        %v4088 = vld [vmem:[%s4083 + $0x20] sm:$0xff]
        %v4089 = vld [vmem:[%s4083 + $0x28] sm:$0xff]
        %v4090 = vld [vmem:[%s4083 + $0x30] sm:$0xff]
        %v4091 = vld [vmem:[%s4083 + $0x38] sm:$0xff]
        %v4093 = vsel %vm538, %v4081, 0
        %v4096 = vsel %vm538, %v4082, 0
        %4098 = vmatprep.subr.mxu0 0.0
        %4099 = vmatpush1.msra.mxu0 %v4084
        %4100 = vmatprep.subr.mxu0 0.0
        %4101 = vmatpush1.msra.mxu0 %v4085
        %4102 = vmatprep.subr.mxu0 0.0
        %4103 = vmatpush1.msra.mxu0 %v4086
        %4104 = vmatprep.subr.mxu0 0.0
        %4105 = vmatpush1.msra.mxu0 %v4087
        %4106 = vmatprep.subr.mxu0 0.0
        %4107 = vmatpush1.msra.mxu0 %v4088
        %4108 = vmatprep.subr.mxu0 0.0
        %4109 = vmatpush1.msra.mxu0 %v4089
        %4110 = vmatprep.subr.mxu0 0.0
        %4111 = vmatpush1.msra.mxu0 %v4090
        %4112 = vmatprep.subr.mxu0 0.0
        %4113 = vmatpush1.msra.mxu0 %v4091
        %4114 = vmatprep.subr.mxu0 0.0
        %4115 = vmatpush1.msra.mxu0 0.0
        %4116 = vmatprep.subr.mxu0 0.0
        %4117 = vmatpush1.msra.mxu0 0.0
        %4118 = vmatprep.subr.mxu0 0.0
        %4119 = vmatpush1.msra.mxu0 0.0
        %4120 = vmatprep.subr.mxu0 0.0
        %4121 = vmatpush1.msra.mxu0 0.0
        %4122 = vmatprep.subr.mxu0 0.0
        %4123 = vmatpush1.msra.mxu0 0.0
        %4124 = vmatprep.subr.mxu0 0.0
        %4125 = vmatpush1.msra.mxu0 0.0
        %4126 = vmatprep.subr.mxu0 0.0
        %4127 = vmatpush1.msra.mxu0 0.0
        %4128 = vmatprep.subr.mxu0 0.0
        %4129 = vmatpush1.msra.mxu0 0.0
        %4130 = vmatprep.subr.mxu0 0.0
        %4131 = vmatpush1.msra.mxu0 0.0
        %4132 = vmatprep.subr.mxu0 0.0
        %4133 = vmatpush1.msra.mxu0 0.0
        %4134 = vmatprep.subr.mxu0 0.0
        %4135 = vmatpush1.msra.mxu0 0.0
        %4136 = vmatprep.subr.mxu0 0.0
        %4137 = vmatpush1.msra.mxu0 0.0
        %4138 = vmatprep.subr.mxu0 0.0
        %4139 = vmatpush1.msra.mxu0 0.0
        %4140 = vmatprep.subr.mxu0 0.0
        %4141 = vmatpush1.msra.mxu0 0.0
        %4142 = vmatprep.subr.mxu0 0.0
        %4143 = vmatpush1.msra.mxu0 0.0
        %4144 = vmatprep.subr.mxu0 0.0
        %4145 = vmatpush1.msra.mxu0 0.0
        %4146 = vmatprep.subr.mxu0 0.0
        %4147 = vmatpush1.msra.mxu0 0.0
        %4148 = vmatprep.subr.mxu0 0.0
        %4149 = vmatpush1.msra.mxu0 0.0
        %4150 = vmatprep.subr.mxu0 0.0
        %4151 = vmatpush1.msra.mxu0 0.0
        %4152 = vmatprep.subr.mxu0 0.0
        %4153 = vmatpush1.msra.mxu0 0.0
        %4154 = vmatprep.subr.mxu0 0.0
        %4155 = vmatpush1.msra.mxu0 0.0
        %4156 = vmatprep.subr.mxu0 0.0
        %4157 = vmatpush1.msra.mxu0 0.0
        %4158 = vmatprep.subr.mxu0 0.0
        %4159 = vmatpush1.msra.mxu0 0.0
        %4160 = vmatprep.subr.mxu0 0.0
        %4161 = vmatpush1.msra.mxu0 0.0
        %4162 = vmatprep.mubr.f32.mxu0 0.0
        %4163 = vmatmul.mubr.f32.gmra.mrb[0].mxu0 %v4093
        %v4164 = vpop.f32.mrb[0].mxu0
        %v4165 = vadd.f32 0.0, %v4164
        %v4166 = vpop.f32.mrb[0].mxu0
        %4167 = vmatprep.mubr.f32.mxu0 0.0
        %4168 = vmatmul.mubr.f32.gmra.mrb[0].mxu0 %v4096
        %v4169 = vpop.f32.mrb[0].mxu0
        %v4170 = vadd.f32 0.0, %v4169
        %v4171 = vpop.f32.mrb[0].mxu0
        %4172 = vdwg.mxu0
        %v4174 = vsel %vm538, %v4071, 0
        %v4177 = vsel %vm538, %v4072, 0
        %4179 = vmatprep.subr.mxu0 0.0
        %4180 = vmatpush1.msra.mxu0 %v4073
        %4181 = vmatprep.subr.mxu0 0.0
        %4182 = vmatpush1.msra.mxu0 %v4074
        %4183 = vmatprep.subr.mxu0 0.0
        %4184 = vmatpush1.msra.mxu0 %v4075
        %4185 = vmatprep.subr.mxu0 0.0
        %4186 = vmatpush1.msra.mxu0 %v4076
        %4187 = vmatprep.subr.mxu0 0.0
        %4188 = vmatpush1.msra.mxu0 %v4077
        %4189 = vmatprep.subr.mxu0 0.0
        %4190 = vmatpush1.msra.mxu0 %v4078
        %4191 = vmatprep.subr.mxu0 0.0
        %4192 = vmatpush1.msra.mxu0 %v4079
        %4193 = vmatprep.subr.mxu0 0.0
        %4194 = vmatpush1.msra.mxu0 %v4080
        %4195 = vmatprep.subr.mxu0 0.0
        %4196 = vmatpush1.msra.mxu0 0.0
        %4197 = vmatprep.subr.mxu0 0.0
        %4198 = vmatpush1.msra.mxu0 0.0
        %4199 = vmatprep.subr.mxu0 0.0
        %4200 = vmatpush1.msra.mxu0 0.0
        %4201 = vmatprep.subr.mxu0 0.0
        %4202 = vmatpush1.msra.mxu0 0.0
        %4203 = vmatprep.subr.mxu0 0.0
        %4204 = vmatpush1.msra.mxu0 0.0
        %4205 = vmatprep.subr.mxu0 0.0
        %4206 = vmatpush1.msra.mxu0 0.0
        %4207 = vmatprep.subr.mxu0 0.0
        %4208 = vmatpush1.msra.mxu0 0.0
        %4209 = vmatprep.subr.mxu0 0.0
        %4210 = vmatpush1.msra.mxu0 0.0
        %4211 = vmatprep.subr.mxu0 0.0
        %4212 = vmatpush1.msra.mxu0 0.0
        %4213 = vmatprep.subr.mxu0 0.0
        %4214 = vmatpush1.msra.mxu0 0.0
        %4215 = vmatprep.subr.mxu0 0.0
        %4216 = vmatpush1.msra.mxu0 0.0
        %4217 = vmatprep.subr.mxu0 0.0
        %4218 = vmatpush1.msra.mxu0 0.0
        %4219 = vmatprep.subr.mxu0 0.0
        %4220 = vmatpush1.msra.mxu0 0.0
        %4221 = vmatprep.subr.mxu0 0.0
        %4222 = vmatpush1.msra.mxu0 0.0
        %4223 = vmatprep.subr.mxu0 0.0
        %4224 = vmatpush1.msra.mxu0 0.0
        %4225 = vmatprep.subr.mxu0 0.0
        %4226 = vmatpush1.msra.mxu0 0.0
        %4227 = vmatprep.subr.mxu0 0.0
        %4228 = vmatpush1.msra.mxu0 0.0
        %4229 = vmatprep.subr.mxu0 0.0
        %4230 = vmatpush1.msra.mxu0 0.0
        %4231 = vmatprep.subr.mxu0 0.0
        %4232 = vmatpush1.msra.mxu0 0.0
        %4233 = vmatprep.subr.mxu0 0.0
        %4234 = vmatpush1.msra.mxu0 0.0
        %4235 = vmatprep.subr.mxu0 0.0
        %4236 = vmatpush1.msra.mxu0 0.0
        %4237 = vmatprep.subr.mxu0 0.0
        %4238 = vmatpush1.msra.mxu0 0.0
        %4239 = vmatprep.subr.mxu0 0.0
        %4240 = vmatpush1.msra.mxu0 0.0
        %4241 = vmatprep.subr.mxu0 0.0
        %4242 = vmatpush1.msra.mxu0 0.0
        %4243 = vmatprep.mubr.f32.mxu0 0.0
        %4244 = vmatmul.mubr.f32.gmra.mrb[0].mxu0 %v4174
        %v4245 = vpop.f32.mrb[0].mxu0
        %v4246 = vadd.f32 %v4165, %v4245
        %v4247 = vpop.f32.mrb[0].mxu0
        %4248 = vmatprep.mubr.f32.mxu0 0.0
        %4249 = vmatmul.mubr.f32.gmra.mrb[0].mxu0 %v4177
        %v4250 = vpop.f32.mrb[0].mxu0
        %v4251 = vadd.f32 %v4170, %v4250
        %v4252 = vpop.f32.mrb[0].mxu0
        %4253 = vdwg.mxu0
        %v4254 = vld [vmem:[#allocation5 + $0x8] sm:$0xff]
        %v4255 = vld [vmem:[#allocation5 + $0x10] sm:$0x3f]
        %s4256 = scalar_lea.vmem %s7, 128
        %v4257 = vld [vmem:[%s4256] sm:$0xff]
        %v4258 = vld [vmem:[%s4256 + $0x8] sm:$0xff]
        %v4259 = vld [vmem:[%s4256 + $0x10] sm:$0xff]
        %v4260 = vld [vmem:[%s4256 + $0x18] sm:$0xff]
        %v4261 = vld [vmem:[%s4256 + $0x20] sm:$0xff]
        %v4262 = vld [vmem:[%s4256 + $0x28] sm:$0xff]
        %v4263 = vld [vmem:[%s4256 + $0x30] sm:$0xff]
        %v4264 = vld [vmem:[%s4256 + $0x38] sm:$0xff]
        %v4266 = vsel %vm538, %v4254, 0
        %v4269 = vsel %vm538, %v4255, 0
        %4271 = vmatprep.subr.mxu0 0.0
        %4272 = vmatpush1.msra.mxu0 %v4257
        %4273 = vmatprep.subr.mxu0 0.0
        %4274 = vmatpush1.msra.mxu0 %v4258
        %4275 = vmatprep.subr.mxu0 0.0
        %4276 = vmatpush1.msra.mxu0 %v4259
        %4277 = vmatprep.subr.mxu0 0.0
        %4278 = vmatpush1.msra.mxu0 %v4260
        %4279 = vmatprep.subr.mxu0 0.0
        %4280 = vmatpush1.msra.mxu0 %v4261
        %4281 = vmatprep.subr.mxu0 0.0
        %4282 = vmatpush1.msra.mxu0 %v4262
        %4283 = vmatprep.subr.mxu0 0.0
        %4284 = vmatpush1.msra.mxu0 %v4263
        %4285 = vmatprep.subr.mxu0 0.0
        %4286 = vmatpush1.msra.mxu0 %v4264
        %4287 = vmatprep.subr.mxu0 0.0
        %4288 = vmatpush1.msra.mxu0 0.0
        %4289 = vmatprep.subr.mxu0 0.0
        %4290 = vmatpush1.msra.mxu0 0.0
        %4291 = vmatprep.subr.mxu0 0.0
        %4292 = vmatpush1.msra.mxu0 0.0
        %4293 = vmatprep.subr.mxu0 0.0
        %4294 = vmatpush1.msra.mxu0 0.0
        %4295 = vmatprep.subr.mxu0 0.0
        %4296 = vmatpush1.msra.mxu0 0.0
        %4297 = vmatprep.subr.mxu0 0.0
        %4298 = vmatpush1.msra.mxu0 0.0
        %4299 = vmatprep.subr.mxu0 0.0
        %4300 = vmatpush1.msra.mxu0 0.0
        %4301 = vmatprep.subr.mxu0 0.0
        %4302 = vmatpush1.msra.mxu0 0.0
        %4303 = vmatprep.subr.mxu0 0.0
        %4304 = vmatpush1.msra.mxu0 0.0
        %4305 = vmatprep.subr.mxu0 0.0
        %4306 = vmatpush1.msra.mxu0 0.0
        %4307 = vmatprep.subr.mxu0 0.0
        %4308 = vmatpush1.msra.mxu0 0.0
        %4309 = vmatprep.subr.mxu0 0.0
        %4310 = vmatpush1.msra.mxu0 0.0
        %4311 = vmatprep.subr.mxu0 0.0
        %4312 = vmatpush1.msra.mxu0 0.0
        %4313 = vmatprep.subr.mxu0 0.0
        %4314 = vmatpush1.msra.mxu0 0.0
        %4315 = vmatprep.subr.mxu0 0.0
        %4316 = vmatpush1.msra.mxu0 0.0
        %4317 = vmatprep.subr.mxu0 0.0
        %4318 = vmatpush1.msra.mxu0 0.0
        %4319 = vmatprep.subr.mxu0 0.0
        %4320 = vmatpush1.msra.mxu0 0.0
        %4321 = vmatprep.subr.mxu0 0.0
        %4322 = vmatpush1.msra.mxu0 0.0
        %4323 = vmatprep.subr.mxu0 0.0
        %4324 = vmatpush1.msra.mxu0 0.0
        %4325 = vmatprep.subr.mxu0 0.0
        %4326 = vmatpush1.msra.mxu0 0.0
        %4327 = vmatprep.subr.mxu0 0.0
        %4328 = vmatpush1.msra.mxu0 0.0
        %4329 = vmatprep.subr.mxu0 0.0
        %4330 = vmatpush1.msra.mxu0 0.0
        %4331 = vmatprep.subr.mxu0 0.0
        %4332 = vmatpush1.msra.mxu0 0.0
        %4333 = vmatprep.subr.mxu0 0.0
        %4334 = vmatpush1.msra.mxu0 0.0
        %4335 = vmatprep.mubr.f32.mxu0 0.0
        %4336 = vmatmul.mubr.f32.gmra.mrb[0].mxu0 %v4266
        %v4337 = vpop.f32.mrb[0].mxu0
        %v4338 = vadd.f32 0.0, %v4337
        %v4339 = vpop.f32.mrb[0].mxu0
        %4340 = vmatprep.mubr.f32.mxu0 0.0
        %4341 = vmatmul.mubr.f32.gmra.mrb[0].mxu0 %v4269
        %v4342 = vpop.f32.mrb[0].mxu0
        %v4343 = vadd.f32 0.0, %v4342
        %v4344 = vpop.f32.mrb[0].mxu0
        %4345 = vdwg.mxu0
        %v4346 = vadd.f32 %v4246, %v4338
        %v4347 = vadd.f32 %v4251, %v4343
        %v4348 = vld [vmem:[#allocation5 + $0x9] sm:$0xff]
        %v4349 = vld [vmem:[#allocation5 + $0x11] sm:$0x3f]
        %s4350 = scalar_lea.vmem %s7, 192
        %v4351 = vld [vmem:[%s4350] sm:$0xff]
        %v4352 = vld [vmem:[%s4350 + $0x8] sm:$0xff]
        %v4353 = vld [vmem:[%s4350 + $0x10] sm:$0xff]
        %v4354 = vld [vmem:[%s4350 + $0x18] sm:$0xff]
        %v4355 = vld [vmem:[%s4350 + $0x20] sm:$0xff]
        %v4356 = vld [vmem:[%s4350 + $0x28] sm:$0xff]
        %v4357 = vld [vmem:[%s4350 + $0x30] sm:$0xff]
        %v4358 = vld [vmem:[%s4350 + $0x38] sm:$0xff]
        %v4360 = vsel %vm538, %v4348, 0
        %v4363 = vsel %vm538, %v4349, 0
        %4365 = vmatprep.subr.mxu0 0.0
        %4366 = vmatpush1.msra.mxu0 %v4351
        %4367 = vmatprep.subr.mxu0 0.0
        %4368 = vmatpush1.msra.mxu0 %v4352
        %4369 = vmatprep.subr.mxu0 0.0
        %4370 = vmatpush1.msra.mxu0 %v4353
        %4371 = vmatprep.subr.mxu0 0.0
        %4372 = vmatpush1.msra.mxu0 %v4354
        %4373 = vmatprep.subr.mxu0 0.0
        %4374 = vmatpush1.msra.mxu0 %v4355
        %4375 = vmatprep.subr.mxu0 0.0
        %4376 = vmatpush1.msra.mxu0 %v4356
        %4377 = vmatprep.subr.mxu0 0.0
        %4378 = vmatpush1.msra.mxu0 %v4357
        %4379 = vmatprep.subr.mxu0 0.0
        %4380 = vmatpush1.msra.mxu0 %v4358
        %4381 = vmatprep.subr.mxu0 0.0
        %4382 = vmatpush1.msra.mxu0 0.0
        %4383 = vmatprep.subr.mxu0 0.0
        %4384 = vmatpush1.msra.mxu0 0.0
        %4385 = vmatprep.subr.mxu0 0.0
        %4386 = vmatpush1.msra.mxu0 0.0
        %4387 = vmatprep.subr.mxu0 0.0
        %4388 = vmatpush1.msra.mxu0 0.0
        %4389 = vmatprep.subr.mxu0 0.0
        %4390 = vmatpush1.msra.mxu0 0.0
        %4391 = vmatprep.subr.mxu0 0.0
        %4392 = vmatpush1.msra.mxu0 0.0
        %4393 = vmatprep.subr.mxu0 0.0
        %4394 = vmatpush1.msra.mxu0 0.0
        %4395 = vmatprep.subr.mxu0 0.0
        %4396 = vmatpush1.msra.mxu0 0.0
        %4397 = vmatprep.subr.mxu0 0.0
        %4398 = vmatpush1.msra.mxu0 0.0
        %4399 = vmatprep.subr.mxu0 0.0
        %4400 = vmatpush1.msra.mxu0 0.0
        %4401 = vmatprep.subr.mxu0 0.0
        %4402 = vmatpush1.msra.mxu0 0.0
        %4403 = vmatprep.subr.mxu0 0.0
        %4404 = vmatpush1.msra.mxu0 0.0
        %4405 = vmatprep.subr.mxu0 0.0
        %4406 = vmatpush1.msra.mxu0 0.0
        %4407 = vmatprep.subr.mxu0 0.0
        %4408 = vmatpush1.msra.mxu0 0.0
        %4409 = vmatprep.subr.mxu0 0.0
        %4410 = vmatpush1.msra.mxu0 0.0
        %4411 = vmatprep.subr.mxu0 0.0
        %4412 = vmatpush1.msra.mxu0 0.0
        %4413 = vmatprep.subr.mxu0 0.0
        %4414 = vmatpush1.msra.mxu0 0.0
        %4415 = vmatprep.subr.mxu0 0.0
        %4416 = vmatpush1.msra.mxu0 0.0
        %4417 = vmatprep.subr.mxu0 0.0
        %4418 = vmatpush1.msra.mxu0 0.0
        %4419 = vmatprep.subr.mxu0 0.0
        %4420 = vmatpush1.msra.mxu0 0.0
        %4421 = vmatprep.subr.mxu0 0.0
        %4422 = vmatpush1.msra.mxu0 0.0
        %4423 = vmatprep.subr.mxu0 0.0
        %4424 = vmatpush1.msra.mxu0 0.0
        %4425 = vmatprep.subr.mxu0 0.0
        %4426 = vmatpush1.msra.mxu0 0.0
        %4427 = vmatprep.subr.mxu0 0.0
        %4428 = vmatpush1.msra.mxu0 0.0
        %4429 = vmatprep.mubr.f32.mxu0 0.0
        %4430 = vmatmul.mubr.f32.gmra.mrb[0].mxu0 %v4360
        %v4431 = vpop.f32.mrb[0].mxu0
        %v4432 = vadd.f32 0.0, %v4431
        %v4433 = vpop.f32.mrb[0].mxu0
        %4434 = vmatprep.mubr.f32.mxu0 0.0
        %4435 = vmatmul.mubr.f32.gmra.mrb[0].mxu0 %v4363
        %v4436 = vpop.f32.mrb[0].mxu0
        %v4437 = vadd.f32 0.0, %v4436
        %v4438 = vpop.f32.mrb[0].mxu0
        %4439 = vdwg.mxu0
        %v4440 = vadd.f32 %v4346, %v4432
        %v4441 = vadd.f32 %v4347, %v4437
        %v4442 = vld [vmem:[%s8] sm:$0x1]
        %v4444 = vlaneseq
        %v4445 = vshrl.u32 %v4444, 7
        %v4446 = vsub.s32 0, %v4445
        %v4447 = vrot.slane %v4442, %v4446
        %v4449 = vadd.f32 %v4440, %v4447
        %v4450 = vadd.f32 %v4441, %v4447
        %vm4451 = vcmp.gt.f32.partialorder %v4449, 0.0
        %vm4452 = vcmp.gt.f32.partialorder %v4450, 0.0
        %v4453 = vmul.f32 %v4449, 0.01
        %v4454 = vmul.f32 %v4450, 0.01
        %v4455 = vsel %vm4451, %v4449, %v4453
        %v4456 = vsel %vm4452, %v4450, %v4454
        %4457 = vst [vmem:[#allocation6] sm:$0xff] %v4455
        %4458 = vst [vmem:[#allocation6 + $0x8] sm:$0x3f] %v4456
        %v4459 = vld [vmem:[%s4068 + $0x6] sm:$0xff]
        %v4460 = vld [vmem:[%s4068 + $0xe] sm:$0x3f]
        %v4461 = vld [vmem:[%s7] sm:$0xff]
        %v4462 = vld [vmem:[%s7 + $0x8] sm:$0xff]
        %v4463 = vld [vmem:[%s7 + $0x10] sm:$0xff]
        %v4464 = vld [vmem:[%s7 + $0x18] sm:$0xff]
        %v4465 = vld [vmem:[%s7 + $0x20] sm:$0xff]
        %v4466 = vld [vmem:[%s7 + $0x28] sm:$0xff]
        %v4467 = vld [vmem:[%s7 + $0x30] sm:$0xff]
        %v4468 = vld [vmem:[%s7 + $0x38] sm:$0xff]
        %v4469 = vld [vmem:[%s4068 + $0x7] sm:$0xff]
        %v4470 = vld [vmem:[%s4068 + $0xf] sm:$0x3f]
        %v4471 = vld [vmem:[%s4083] sm:$0xff]
        %v4472 = vld [vmem:[%s4083 + $0x8] sm:$0xff]
        %v4473 = vld [vmem:[%s4083 + $0x10] sm:$0xff]
        %v4474 = vld [vmem:[%s4083 + $0x18] sm:$0xff]
        %v4475 = vld [vmem:[%s4083 + $0x20] sm:$0xff]
        %v4476 = vld [vmem:[%s4083 + $0x28] sm:$0xff]
        %v4477 = vld [vmem:[%s4083 + $0x30] sm:$0xff]
        %v4478 = vld [vmem:[%s4083 + $0x38] sm:$0xff]
        %v4480 = vsel %vm538, %v4469, 0
        %v4483 = vsel %vm538, %v4470, 0
        %4485 = vmatprep.subr.mxu0 0.0
        %4486 = vmatpush1.msra.mxu0 %v4471
        %4487 = vmatprep.subr.mxu0 0.0
        %4488 = vmatpush1.msra.mxu0 %v4472
        %4489 = vmatprep.subr.mxu0 0.0
        %4490 = vmatpush1.msra.mxu0 %v4473
        %4491 = vmatprep.subr.mxu0 0.0
        %4492 = vmatpush1.msra.mxu0 %v4474
        %4493 = vmatprep.subr.mxu0 0.0
        %4494 = vmatpush1.msra.mxu0 %v4475
        %4495 = vmatprep.subr.mxu0 0.0
        %4496 = vmatpush1.msra.mxu0 %v4476
        %4497 = vmatprep.subr.mxu0 0.0
        %4498 = vmatpush1.msra.mxu0 %v4477
        %4499 = vmatprep.subr.mxu0 0.0
        %4500 = vmatpush1.msra.mxu0 %v4478
        %4501 = vmatprep.subr.mxu0 0.0
        %4502 = vmatpush1.msra.mxu0 0.0
        %4503 = vmatprep.subr.mxu0 0.0
        %4504 = vmatpush1.msra.mxu0 0.0
        %4505 = vmatprep.subr.mxu0 0.0
        %4506 = vmatpush1.msra.mxu0 0.0
        %4507 = vmatprep.subr.mxu0 0.0
        %4508 = vmatpush1.msra.mxu0 0.0
        %4509 = vmatprep.subr.mxu0 0.0
        %4510 = vmatpush1.msra.mxu0 0.0
        %4511 = vmatprep.subr.mxu0 0.0
        %4512 = vmatpush1.msra.mxu0 0.0
        %4513 = vmatprep.subr.mxu0 0.0
        %4514 = vmatpush1.msra.mxu0 0.0
        %4515 = vmatprep.subr.mxu0 0.0
        %4516 = vmatpush1.msra.mxu0 0.0
        %4517 = vmatprep.subr.mxu0 0.0
        %4518 = vmatpush1.msra.mxu0 0.0
        %4519 = vmatprep.subr.mxu0 0.0
        %4520 = vmatpush1.msra.mxu0 0.0
        %4521 = vmatprep.subr.mxu0 0.0
        %4522 = vmatpush1.msra.mxu0 0.0
        %4523 = vmatprep.subr.mxu0 0.0
        %4524 = vmatpush1.msra.mxu0 0.0
        %4525 = vmatprep.subr.mxu0 0.0
        %4526 = vmatpush1.msra.mxu0 0.0
        %4527 = vmatprep.subr.mxu0 0.0
        %4528 = vmatpush1.msra.mxu0 0.0
        %4529 = vmatprep.subr.mxu0 0.0
        %4530 = vmatpush1.msra.mxu0 0.0
        %4531 = vmatprep.subr.mxu0 0.0
        %4532 = vmatpush1.msra.mxu0 0.0
        %4533 = vmatprep.subr.mxu0 0.0
        %4534 = vmatpush1.msra.mxu0 0.0
        %4535 = vmatprep.subr.mxu0 0.0
        %4536 = vmatpush1.msra.mxu0 0.0
        %4537 = vmatprep.subr.mxu0 0.0
        %4538 = vmatpush1.msra.mxu0 0.0
        %4539 = vmatprep.subr.mxu0 0.0
        %4540 = vmatpush1.msra.mxu0 0.0
        %4541 = vmatprep.subr.mxu0 0.0
        %4542 = vmatpush1.msra.mxu0 0.0
        %4543 = vmatprep.subr.mxu0 0.0
        %4544 = vmatpush1.msra.mxu0 0.0
        %4545 = vmatprep.subr.mxu0 0.0
        %4546 = vmatpush1.msra.mxu0 0.0
        %4547 = vmatprep.subr.mxu0 0.0
        %4548 = vmatpush1.msra.mxu0 0.0
        %4549 = vmatprep.mubr.f32.mxu0 0.0
        %4550 = vmatmul.mubr.f32.gmra.mrb[0].mxu0 %v4480
        %v4551 = vpop.f32.mrb[0].mxu0
        %v4552 = vadd.f32 0.0, %v4551
        %v4553 = vpop.f32.mrb[0].mxu0
        %4554 = vmatprep.mubr.f32.mxu0 0.0
        %4555 = vmatmul.mubr.f32.gmra.mrb[0].mxu0 %v4483
        %v4556 = vpop.f32.mrb[0].mxu0
        %v4557 = vadd.f32 0.0, %v4556
        %v4558 = vpop.f32.mrb[0].mxu0
        %4559 = vdwg.mxu0
        %v4561 = vsel %vm538, %v4459, 0
        %v4564 = vsel %vm538, %v4460, 0
        %4566 = vmatprep.subr.mxu0 0.0
        %4567 = vmatpush1.msra.mxu0 %v4461
        %4568 = vmatprep.subr.mxu0 0.0
        %4569 = vmatpush1.msra.mxu0 %v4462
        %4570 = vmatprep.subr.mxu0 0.0
        %4571 = vmatpush1.msra.mxu0 %v4463
        %4572 = vmatprep.subr.mxu0 0.0
        %4573 = vmatpush1.msra.mxu0 %v4464
        %4574 = vmatprep.subr.mxu0 0.0
        %4575 = vmatpush1.msra.mxu0 %v4465
        %4576 = vmatprep.subr.mxu0 0.0
        %4577 = vmatpush1.msra.mxu0 %v4466
        %4578 = vmatprep.subr.mxu0 0.0
        %4579 = vmatpush1.msra.mxu0 %v4467
        %4580 = vmatprep.subr.mxu0 0.0
        %4581 = vmatpush1.msra.mxu0 %v4468
        %4582 = vmatprep.subr.mxu0 0.0
        %4583 = vmatpush1.msra.mxu0 0.0
        %4584 = vmatprep.subr.mxu0 0.0
        %4585 = vmatpush1.msra.mxu0 0.0
        %4586 = vmatprep.subr.mxu0 0.0
        %4587 = vmatpush1.msra.mxu0 0.0
        %4588 = vmatprep.subr.mxu0 0.0
        %4589 = vmatpush1.msra.mxu0 0.0
        %4590 = vmatprep.subr.mxu0 0.0
        %4591 = vmatpush1.msra.mxu0 0.0
        %4592 = vmatprep.subr.mxu0 0.0
        %4593 = vmatpush1.msra.mxu0 0.0
        %4594 = vmatprep.subr.mxu0 0.0
        %4595 = vmatpush1.msra.mxu0 0.0
        %4596 = vmatprep.subr.mxu0 0.0
        %4597 = vmatpush1.msra.mxu0 0.0
        %4598 = vmatprep.subr.mxu0 0.0
        %4599 = vmatpush1.msra.mxu0 0.0
        %4600 = vmatprep.subr.mxu0 0.0
        %4601 = vmatpush1.msra.mxu0 0.0
        %4602 = vmatprep.subr.mxu0 0.0
        %4603 = vmatpush1.msra.mxu0 0.0
        %4604 = vmatprep.subr.mxu0 0.0
        %4605 = vmatpush1.msra.mxu0 0.0
        %4606 = vmatprep.subr.mxu0 0.0
        %4607 = vmatpush1.msra.mxu0 0.0
        %4608 = vmatprep.subr.mxu0 0.0
        %4609 = vmatpush1.msra.mxu0 0.0
        %4610 = vmatprep.subr.mxu0 0.0
        %4611 = vmatpush1.msra.mxu0 0.0
        %4612 = vmatprep.subr.mxu0 0.0
        %4613 = vmatpush1.msra.mxu0 0.0
        %4614 = vmatprep.subr.mxu0 0.0
        %4615 = vmatpush1.msra.mxu0 0.0
        %4616 = vmatprep.subr.mxu0 0.0
        %4617 = vmatpush1.msra.mxu0 0.0
        %4618 = vmatprep.subr.mxu0 0.0
        %4619 = vmatpush1.msra.mxu0 0.0
        %4620 = vmatprep.subr.mxu0 0.0
        %4621 = vmatpush1.msra.mxu0 0.0
        %4622 = vmatprep.subr.mxu0 0.0
        %4623 = vmatpush1.msra.mxu0 0.0
        %4624 = vmatprep.subr.mxu0 0.0
        %4625 = vmatpush1.msra.mxu0 0.0
        %4626 = vmatprep.subr.mxu0 0.0
        %4627 = vmatpush1.msra.mxu0 0.0
        %4628 = vmatprep.subr.mxu0 0.0
        %4629 = vmatpush1.msra.mxu0 0.0
        %4630 = vmatprep.mubr.f32.mxu0 0.0
        %4631 = vmatmul.mubr.f32.gmra.mrb[0].mxu0 %v4561
        %v4632 = vpop.f32.mrb[0].mxu0
        %v4633 = vadd.f32 %v4552, %v4632
        %v4634 = vpop.f32.mrb[0].mxu0
        %4635 = vmatprep.mubr.f32.mxu0 0.0
        %4636 = vmatmul.mubr.f32.gmra.mrb[0].mxu0 %v4564
        %v4637 = vpop.f32.mrb[0].mxu0
        %v4638 = vadd.f32 %v4557, %v4637
        %v4639 = vpop.f32.mrb[0].mxu0
        %4640 = vdwg.mxu0
        %v4641 = vld [vmem:[%s4068 + $0x8] sm:$0xff]
        %v4642 = vld [vmem:[%s4068 + $0x10] sm:$0x3f]
        %v4643 = vld [vmem:[%s4256] sm:$0xff]
        %v4644 = vld [vmem:[%s4256 + $0x8] sm:$0xff]
        %v4645 = vld [vmem:[%s4256 + $0x10] sm:$0xff]
        %v4646 = vld [vmem:[%s4256 + $0x18] sm:$0xff]
        %v4647 = vld [vmem:[%s4256 + $0x20] sm:$0xff]
        %v4648 = vld [vmem:[%s4256 + $0x28] sm:$0xff]
        %v4649 = vld [vmem:[%s4256 + $0x30] sm:$0xff]
        %v4650 = vld [vmem:[%s4256 + $0x38] sm:$0xff]
        %v4652 = vsel %vm538, %v4641, 0
        %v4655 = vsel %vm538, %v4642, 0
        %4657 = vmatprep.subr.mxu0 0.0
        %4658 = vmatpush1.msra.mxu0 %v4643
        %4659 = vmatprep.subr.mxu0 0.0
        %4660 = vmatpush1.msra.mxu0 %v4644
        %4661 = vmatprep.subr.mxu0 0.0
        %4662 = vmatpush1.msra.mxu0 %v4645
        %4663 = vmatprep.subr.mxu0 0.0
        %4664 = vmatpush1.msra.mxu0 %v4646
        %4665 = vmatprep.subr.mxu0 0.0
        %4666 = vmatpush1.msra.mxu0 %v4647
        %4667 = vmatprep.subr.mxu0 0.0
        %4668 = vmatpush1.msra.mxu0 %v4648
        %4669 = vmatprep.subr.mxu0 0.0
        %4670 = vmatpush1.msra.mxu0 %v4649
        %4671 = vmatprep.subr.mxu0 0.0
        %4672 = vmatpush1.msra.mxu0 %v4650
        %4673 = vmatprep.subr.mxu0 0.0
        %4674 = vmatpush1.msra.mxu0 0.0
        %4675 = vmatprep.subr.mxu0 0.0
        %4676 = vmatpush1.msra.mxu0 0.0
        %4677 = vmatprep.subr.mxu0 0.0
        %4678 = vmatpush1.msra.mxu0 0.0
        %4679 = vmatprep.subr.mxu0 0.0
        %4680 = vmatpush1.msra.mxu0 0.0
        %4681 = vmatprep.subr.mxu0 0.0
        %4682 = vmatpush1.msra.mxu0 0.0
        %4683 = vmatprep.subr.mxu0 0.0
        %4684 = vmatpush1.msra.mxu0 0.0
        %4685 = vmatprep.subr.mxu0 0.0
        %4686 = vmatpush1.msra.mxu0 0.0
        %4687 = vmatprep.subr.mxu0 0.0
        %4688 = vmatpush1.msra.mxu0 0.0
        %4689 = vmatprep.subr.mxu0 0.0
        %4690 = vmatpush1.msra.mxu0 0.0
        %4691 = vmatprep.subr.mxu0 0.0
        %4692 = vmatpush1.msra.mxu0 0.0
        %4693 = vmatprep.subr.mxu0 0.0
        %4694 = vmatpush1.msra.mxu0 0.0
        %4695 = vmatprep.subr.mxu0 0.0
        %4696 = vmatpush1.msra.mxu0 0.0
        %4697 = vmatprep.subr.mxu0 0.0
        %4698 = vmatpush1.msra.mxu0 0.0
        %4699 = vmatprep.subr.mxu0 0.0
        %4700 = vmatpush1.msra.mxu0 0.0
        %4701 = vmatprep.subr.mxu0 0.0
        %4702 = vmatpush1.msra.mxu0 0.0
        %4703 = vmatprep.subr.mxu0 0.0
        %4704 = vmatpush1.msra.mxu0 0.0
        %4705 = vmatprep.subr.mxu0 0.0
        %4706 = vmatpush1.msra.mxu0 0.0
        %4707 = vmatprep.subr.mxu0 0.0
        %4708 = vmatpush1.msra.mxu0 0.0
        %4709 = vmatprep.subr.mxu0 0.0
        %4710 = vmatpush1.msra.mxu0 0.0
        %4711 = vmatprep.subr.mxu0 0.0
        %4712 = vmatpush1.msra.mxu0 0.0
        %4713 = vmatprep.subr.mxu0 0.0
        %4714 = vmatpush1.msra.mxu0 0.0
        %4715 = vmatprep.subr.mxu0 0.0
        %4716 = vmatpush1.msra.mxu0 0.0
        %4717 = vmatprep.subr.mxu0 0.0
        %4718 = vmatpush1.msra.mxu0 0.0
        %4719 = vmatprep.subr.mxu0 0.0
        %4720 = vmatpush1.msra.mxu0 0.0
        %4721 = vmatprep.mubr.f32.mxu0 0.0
        %4722 = vmatmul.mubr.f32.gmra.mrb[0].mxu0 %v4652
        %v4723 = vpop.f32.mrb[0].mxu0
        %v4724 = vadd.f32 0.0, %v4723
        %v4725 = vpop.f32.mrb[0].mxu0
        %4726 = vmatprep.mubr.f32.mxu0 0.0
        %4727 = vmatmul.mubr.f32.gmra.mrb[0].mxu0 %v4655
        %v4728 = vpop.f32.mrb[0].mxu0
        %v4729 = vadd.f32 0.0, %v4728
        %v4730 = vpop.f32.mrb[0].mxu0
        %4731 = vdwg.mxu0
        %v4732 = vadd.f32 %v4633, %v4724
        %v4733 = vadd.f32 %v4638, %v4729
        %v4734 = vld [vmem:[%s4068 + $0x9] sm:$0xff]
        %v4735 = vld [vmem:[%s4068 + $0x11] sm:$0x3f]
        %v4736 = vld [vmem:[%s4350] sm:$0xff]
        %v4737 = vld [vmem:[%s4350 + $0x8] sm:$0xff]
        %v4738 = vld [vmem:[%s4350 + $0x10] sm:$0xff]
        %v4739 = vld [vmem:[%s4350 + $0x18] sm:$0xff]
        %v4740 = vld [vmem:[%s4350 + $0x20] sm:$0xff]
        %v4741 = vld [vmem:[%s4350 + $0x28] sm:$0xff]
        %v4742 = vld [vmem:[%s4350 + $0x30] sm:$0xff]
        %v4743 = vld [vmem:[%s4350 + $0x38] sm:$0xff]
        %v4745 = vsel %vm538, %v4734, 0
        %v4748 = vsel %vm538, %v4735, 0
        %4750 = vmatprep.subr.mxu0 0.0
        %4751 = vmatpush1.msra.mxu0 %v4736
        %4752 = vmatprep.subr.mxu0 0.0
        %4753 = vmatpush1.msra.mxu0 %v4737
        %4754 = vmatprep.subr.mxu0 0.0
        %4755 = vmatpush1.msra.mxu0 %v4738
        %4756 = vmatprep.subr.mxu0 0.0
        %4757 = vmatpush1.msra.mxu0 %v4739
        %4758 = vmatprep.subr.mxu0 0.0
        %4759 = vmatpush1.msra.mxu0 %v4740
        %4760 = vmatprep.subr.mxu0 0.0
        %4761 = vmatpush1.msra.mxu0 %v4741
        %4762 = vmatprep.subr.mxu0 0.0
        %4763 = vmatpush1.msra.mxu0 %v4742
        %4764 = vmatprep.subr.mxu0 0.0
        %4765 = vmatpush1.msra.mxu0 %v4743
        %4766 = vmatprep.subr.mxu0 0.0
        %4767 = vmatpush1.msra.mxu0 0.0
        %4768 = vmatprep.subr.mxu0 0.0
        %4769 = vmatpush1.msra.mxu0 0.0
        %4770 = vmatprep.subr.mxu0 0.0
        %4771 = vmatpush1.msra.mxu0 0.0
        %4772 = vmatprep.subr.mxu0 0.0
        %4773 = vmatpush1.msra.mxu0 0.0
        %4774 = vmatprep.subr.mxu0 0.0
        %4775 = vmatpush1.msra.mxu0 0.0
        %4776 = vmatprep.subr.mxu0 0.0
        %4777 = vmatpush1.msra.mxu0 0.0
        %4778 = vmatprep.subr.mxu0 0.0
        %4779 = vmatpush1.msra.mxu0 0.0
        %4780 = vmatprep.subr.mxu0 0.0
        %4781 = vmatpush1.msra.mxu0 0.0
        %4782 = vmatprep.subr.mxu0 0.0
        %4783 = vmatpush1.msra.mxu0 0.0
        %4784 = vmatprep.subr.mxu0 0.0
        %4785 = vmatpush1.msra.mxu0 0.0
        %4786 = vmatprep.subr.mxu0 0.0
        %4787 = vmatpush1.msra.mxu0 0.0
        %4788 = vmatprep.subr.mxu0 0.0
        %4789 = vmatpush1.msra.mxu0 0.0
        %4790 = vmatprep.subr.mxu0 0.0
        %4791 = vmatpush1.msra.mxu0 0.0
        %4792 = vmatprep.subr.mxu0 0.0
        %4793 = vmatpush1.msra.mxu0 0.0
        %4794 = vmatprep.subr.mxu0 0.0
        %4795 = vmatpush1.msra.mxu0 0.0
        %4796 = vmatprep.subr.mxu0 0.0
        %4797 = vmatpush1.msra.mxu0 0.0
        %4798 = vmatprep.subr.mxu0 0.0
        %4799 = vmatpush1.msra.mxu0 0.0
        %4800 = vmatprep.subr.mxu0 0.0
        %4801 = vmatpush1.msra.mxu0 0.0
        %4802 = vmatprep.subr.mxu0 0.0
        %4803 = vmatpush1.msra.mxu0 0.0
        %4804 = vmatprep.subr.mxu0 0.0
        %4805 = vmatpush1.msra.mxu0 0.0
        %4806 = vmatprep.subr.mxu0 0.0
        %4807 = vmatpush1.msra.mxu0 0.0
        %4808 = vmatprep.subr.mxu0 0.0
        %4809 = vmatpush1.msra.mxu0 0.0
        %4810 = vmatprep.subr.mxu0 0.0
        %4811 = vmatpush1.msra.mxu0 0.0
        %4812 = vmatprep.subr.mxu0 0.0
        %4813 = vmatpush1.msra.mxu0 0.0
        %4814 = vmatprep.mubr.f32.mxu0 0.0
        %4815 = vmatmul.mubr.f32.gmra.mrb[0].mxu0 %v4745
        %v4816 = vpop.f32.mrb[0].mxu0
        %v4817 = vadd.f32 0.0, %v4816
        %v4818 = vpop.f32.mrb[0].mxu0
        %4819 = vmatprep.mubr.f32.mxu0 0.0
        %4820 = vmatmul.mubr.f32.gmra.mrb[0].mxu0 %v4748
        %v4821 = vpop.f32.mrb[0].mxu0
        %v4822 = vadd.f32 0.0, %v4821
        %v4823 = vpop.f32.mrb[0].mxu0
        %4824 = vdwg.mxu0
        %v4825 = vadd.f32 %v4732, %v4817
        %v4826 = vadd.f32 %v4733, %v4822
        %v4827 = vld [vmem:[%s8] sm:$0x1]
        %v4829 = vlaneseq
        %v4830 = vshrl.u32 %v4829, 7
        %v4831 = vsub.s32 0, %v4830
        %v4832 = vrot.slane %v4827, %v4831
        %v4834 = vadd.f32 %v4825, %v4832
        %v4835 = vadd.f32 %v4826, %v4832
        %vm4836 = vcmp.gt.f32.partialorder %v4834, 0.0
        %vm4837 = vcmp.gt.f32.partialorder %v4835, 0.0
        %v4838 = vmul.f32 %v4834, 0.01
        %v4839 = vmul.f32 %v4835, 0.01
        %v4840 = vsel %vm4836, %v4834, %v4838
        %v4841 = vsel %vm4837, %v4835, %v4839
        %s4842 = scalar_lea.vmem [#allocation6], 16
        %4843 = vst [vmem:[%s4842] sm:$0xff] %v4840
        %4844 = vst [vmem:[%s4842 + $0x8] sm:$0x3f] %v4841
        %v4845 = vld [vmem:[#allocation6] sm:$0xff]
        %v4846 = vld [vmem:[#allocation6 + $0x8] sm:$0xf]
        %v4847 = vld [vmem:[%s9] sm:$0xff]
        %v4848 = vld [vmem:[%s9 + $0x8] sm:$0xff]
        %v4849 = vld [vmem:[%s9 + $0x10] sm:$0xff]
        %v4850 = vld [vmem:[%s9 + $0x18] sm:$0xff]
        %v4851 = vld [vmem:[%s9 + $0x20] sm:$0xff]
        %v4852 = vld [vmem:[%s9 + $0x28] sm:$0xff]
        %v4853 = vld [vmem:[%s9 + $0x30] sm:$0xff]
        %v4854 = vld [vmem:[%s9 + $0x38] sm:$0xff]
        %v4855 = vld [vmem:[%s9 + $0x40] sm:$0xff]
        %v4856 = vld [vmem:[%s9 + $0x48] sm:$0xff]
        %v4857 = vld [vmem:[%s9 + $0x50] sm:$0xff]
        %v4858 = vld [vmem:[%s9 + $0x58] sm:$0xff]
        %v4859 = vld [vmem:[%s9 + $0x60] sm:$0xff]
        %v4860 = vld [vmem:[%s9 + $0x68] sm:$0xff]
        %v4861 = vld [vmem:[%s9 + $0x70] sm:$0xff]
        %v4862 = vld [vmem:[%s9 + $0x78] sm:$0xff]
        %v4863 = vld [vmem:[#allocation6 + $0x1] sm:$0xff]
        %v4864 = vld [vmem:[#allocation6 + $0x9] sm:$0xf]
        %s4865 = scalar_lea.vmem %s9, 128
        %v4866 = vld [vmem:[%s4865] sm:$0xff]
        %v4867 = vld [vmem:[%s4865 + $0x8] sm:$0xff]
        %v4868 = vld [vmem:[%s4865 + $0x10] sm:$0xff]
        %v4869 = vld [vmem:[%s4865 + $0x18] sm:$0xff]
        %v4870 = vld [vmem:[%s4865 + $0x20] sm:$0xff]
        %v4871 = vld [vmem:[%s4865 + $0x28] sm:$0xff]
        %v4872 = vld [vmem:[%s4865 + $0x30] sm:$0xff]
        %v4873 = vld [vmem:[%s4865 + $0x38] sm:$0xff]
        %v4874 = vld [vmem:[%s4865 + $0x40] sm:$0xff]
        %v4875 = vld [vmem:[%s4865 + $0x48] sm:$0xff]
        %v4876 = vld [vmem:[%s4865 + $0x50] sm:$0xff]
        %v4877 = vld [vmem:[%s4865 + $0x58] sm:$0xff]
        %v4878 = vld [vmem:[%s4865 + $0x60] sm:$0xff]
        %v4879 = vld [vmem:[%s4865 + $0x68] sm:$0xff]
        %v4880 = vld [vmem:[%s4865 + $0x70] sm:$0xff]
        %v4881 = vld [vmem:[%s4865 + $0x78] sm:$0xff]
        %4882 = vmatprep.subr.mxu0 0.0
        %4883 = vmatpush1.msra.mxu0 %v4866
        %4884 = vmatprep.subr.mxu0 0.0
        %4885 = vmatpush1.msra.mxu0 %v4867
        %4886 = vmatprep.subr.mxu0 0.0
        %4887 = vmatpush1.msra.mxu0 %v4868
        %4888 = vmatprep.subr.mxu0 0.0
        %4889 = vmatpush1.msra.mxu0 %v4869
        %4890 = vmatprep.subr.mxu0 0.0
        %4891 = vmatpush1.msra.mxu0 %v4870
        %4892 = vmatprep.subr.mxu0 0.0
        %4893 = vmatpush1.msra.mxu0 %v4871
        %4894 = vmatprep.subr.mxu0 0.0
        %4895 = vmatpush1.msra.mxu0 %v4872
        %4896 = vmatprep.subr.mxu0 0.0
        %4897 = vmatpush1.msra.mxu0 %v4873
        %4898 = vmatprep.subr.mxu0 0.0
        %4899 = vmatpush1.msra.mxu0 %v4874
        %4900 = vmatprep.subr.mxu0 0.0
        %4901 = vmatpush1.msra.mxu0 %v4875
        %4902 = vmatprep.subr.mxu0 0.0
        %4903 = vmatpush1.msra.mxu0 %v4876
        %4904 = vmatprep.subr.mxu0 0.0
        %4905 = vmatpush1.msra.mxu0 %v4877
        %4906 = vmatprep.subr.mxu0 0.0
        %4907 = vmatpush1.msra.mxu0 %v4878
        %4908 = vmatprep.subr.mxu0 0.0
        %4909 = vmatpush1.msra.mxu0 %v4879
        %4910 = vmatprep.subr.mxu0 0.0
        %4911 = vmatpush1.msra.mxu0 %v4880
        %4912 = vmatprep.subr.mxu0 0.0
        %4913 = vmatpush1.msra.mxu0 %v4881
        %4914 = vmatprep.subr.mxu0 0.0
        %4915 = vmatpush1.msra.mxu0 0.0
        %4916 = vmatprep.subr.mxu0 0.0
        %4917 = vmatpush1.msra.mxu0 0.0
        %4918 = vmatprep.subr.mxu0 0.0
        %4919 = vmatpush1.msra.mxu0 0.0
        %4920 = vmatprep.subr.mxu0 0.0
        %4921 = vmatpush1.msra.mxu0 0.0
        %4922 = vmatprep.subr.mxu0 0.0
        %4923 = vmatpush1.msra.mxu0 0.0
        %4924 = vmatprep.subr.mxu0 0.0
        %4925 = vmatpush1.msra.mxu0 0.0
        %4926 = vmatprep.subr.mxu0 0.0
        %4927 = vmatpush1.msra.mxu0 0.0
        %4928 = vmatprep.subr.mxu0 0.0
        %4929 = vmatpush1.msra.mxu0 0.0
        %4930 = vmatprep.subr.mxu0 0.0
        %4931 = vmatpush1.msra.mxu0 0.0
        %4932 = vmatprep.subr.mxu0 0.0
        %4933 = vmatpush1.msra.mxu0 0.0
        %4934 = vmatprep.subr.mxu0 0.0
        %4935 = vmatpush1.msra.mxu0 0.0
        %4936 = vmatprep.subr.mxu0 0.0
        %4937 = vmatpush1.msra.mxu0 0.0
        %4938 = vmatprep.subr.mxu0 0.0
        %4939 = vmatpush1.msra.mxu0 0.0
        %4940 = vmatprep.subr.mxu0 0.0
        %4941 = vmatpush1.msra.mxu0 0.0
        %4942 = vmatprep.subr.mxu0 0.0
        %4943 = vmatpush1.msra.mxu0 0.0
        %4944 = vmatprep.subr.mxu0 0.0
        %4945 = vmatpush1.msra.mxu0 0.0
        %4946 = vmatprep.mubr.f32.mxu0 0.0
        %4947 = vmatmul.mubr.f32.gmra.mrb[0].mxu0 %v4863
        %v4948 = vpop.f32.mrb[0].mxu0
        %v4949 = vadd.f32 0.0, %v4948
        %v4950 = vpop.f32.mrb[0].mxu0
        %4951 = vmatprep.mubr.f32.mxu0 0.0
        %4952 = vmatmul.mubr.f32.gmra.mrb[0].mxu0 %v4864
        %v4953 = vpop.f32.mrb[0].mxu0
        %v4954 = vadd.f32 0.0, %v4953
        %v4955 = vpop.f32.mrb[0].mxu0
        %4956 = vdwg.mxu0
        %4957 = vmatprep.subr.mxu0 0.0
        %4958 = vmatpush1.msra.mxu0 %v4847
        %4959 = vmatprep.subr.mxu0 0.0
        %4960 = vmatpush1.msra.mxu0 %v4848
        %4961 = vmatprep.subr.mxu0 0.0
        %4962 = vmatpush1.msra.mxu0 %v4849
        %4963 = vmatprep.subr.mxu0 0.0
        %4964 = vmatpush1.msra.mxu0 %v4850
        %4965 = vmatprep.subr.mxu0 0.0
        %4966 = vmatpush1.msra.mxu0 %v4851
        %4967 = vmatprep.subr.mxu0 0.0
        %4968 = vmatpush1.msra.mxu0 %v4852
        %4969 = vmatprep.subr.mxu0 0.0
        %4970 = vmatpush1.msra.mxu0 %v4853
        %4971 = vmatprep.subr.mxu0 0.0
        %4972 = vmatpush1.msra.mxu0 %v4854
        %4973 = vmatprep.subr.mxu0 0.0
        %4974 = vmatpush1.msra.mxu0 %v4855
        %4975 = vmatprep.subr.mxu0 0.0
        %4976 = vmatpush1.msra.mxu0 %v4856
        %4977 = vmatprep.subr.mxu0 0.0
        %4978 = vmatpush1.msra.mxu0 %v4857
        %4979 = vmatprep.subr.mxu0 0.0
        %4980 = vmatpush1.msra.mxu0 %v4858
        %4981 = vmatprep.subr.mxu0 0.0
        %4982 = vmatpush1.msra.mxu0 %v4859
        %4983 = vmatprep.subr.mxu0 0.0
        %4984 = vmatpush1.msra.mxu0 %v4860
        %4985 = vmatprep.subr.mxu0 0.0
        %4986 = vmatpush1.msra.mxu0 %v4861
        %4987 = vmatprep.subr.mxu0 0.0
        %4988 = vmatpush1.msra.mxu0 %v4862
        %4989 = vmatprep.subr.mxu0 0.0
        %4990 = vmatpush1.msra.mxu0 0.0
        %4991 = vmatprep.subr.mxu0 0.0
        %4992 = vmatpush1.msra.mxu0 0.0
        %4993 = vmatprep.subr.mxu0 0.0
        %4994 = vmatpush1.msra.mxu0 0.0
        %4995 = vmatprep.subr.mxu0 0.0
        %4996 = vmatpush1.msra.mxu0 0.0
        %4997 = vmatprep.subr.mxu0 0.0
        %4998 = vmatpush1.msra.mxu0 0.0
        %4999 = vmatprep.subr.mxu0 0.0
        %5000 = vmatpush1.msra.mxu0 0.0
        %5001 = vmatprep.subr.mxu0 0.0
        %5002 = vmatpush1.msra.mxu0 0.0
        %5003 = vmatprep.subr.mxu0 0.0
        %5004 = vmatpush1.msra.mxu0 0.0
        %5005 = vmatprep.subr.mxu0 0.0
        %5006 = vmatpush1.msra.mxu0 0.0
        %5007 = vmatprep.subr.mxu0 0.0
        %5008 = vmatpush1.msra.mxu0 0.0
        %5009 = vmatprep.subr.mxu0 0.0
        %5010 = vmatpush1.msra.mxu0 0.0
        %5011 = vmatprep.subr.mxu0 0.0
        %5012 = vmatpush1.msra.mxu0 0.0
        %5013 = vmatprep.subr.mxu0 0.0
        %5014 = vmatpush1.msra.mxu0 0.0
        %5015 = vmatprep.subr.mxu0 0.0
        %5016 = vmatpush1.msra.mxu0 0.0
        %5017 = vmatprep.subr.mxu0 0.0
        %5018 = vmatpush1.msra.mxu0 0.0
        %5019 = vmatprep.subr.mxu0 0.0
        %5020 = vmatpush1.msra.mxu0 0.0
        %5021 = vmatprep.mubr.f32.mxu0 0.0
        %5022 = vmatmul.mubr.f32.gmra.mrb[0].mxu0 %v4845
        %v5023 = vpop.f32.mrb[0].mxu0
        %v5024 = vadd.f32 %v4949, %v5023
        %v5025 = vpop.f32.mrb[0].mxu0
        %5026 = vmatprep.mubr.f32.mxu0 0.0
        %5027 = vmatmul.mubr.f32.gmra.mrb[0].mxu0 %v4846
        %v5028 = vpop.f32.mrb[0].mxu0
        %v5029 = vadd.f32 %v4954, %v5028
        %v5030 = vpop.f32.mrb[0].mxu0
        %5031 = vdwg.mxu0
        %v5032 = vld [vmem:[#allocation6 + $0x2] sm:$0xff]
        %v5033 = vld [vmem:[#allocation6 + $0xa] sm:$0xf]
        %s5034 = scalar_lea.vmem %s9, 256
        %v5035 = vld [vmem:[%s5034] sm:$0xff]
        %v5036 = vld [vmem:[%s5034 + $0x8] sm:$0xff]
        %v5037 = vld [vmem:[%s5034 + $0x10] sm:$0xff]
        %v5038 = vld [vmem:[%s5034 + $0x18] sm:$0xff]
        %v5039 = vld [vmem:[%s5034 + $0x20] sm:$0xff]
        %v5040 = vld [vmem:[%s5034 + $0x28] sm:$0xff]
        %v5041 = vld [vmem:[%s5034 + $0x30] sm:$0xff]
        %v5042 = vld [vmem:[%s5034 + $0x38] sm:$0xff]
        %v5043 = vld [vmem:[%s5034 + $0x40] sm:$0xff]
        %v5044 = vld [vmem:[%s5034 + $0x48] sm:$0xff]
        %v5045 = vld [vmem:[%s5034 + $0x50] sm:$0xff]
        %v5046 = vld [vmem:[%s5034 + $0x58] sm:$0xff]
        %v5047 = vld [vmem:[%s5034 + $0x60] sm:$0xff]
        %v5048 = vld [vmem:[%s5034 + $0x68] sm:$0xff]
        %v5049 = vld [vmem:[%s5034 + $0x70] sm:$0xff]
        %v5050 = vld [vmem:[%s5034 + $0x78] sm:$0xff]
        %5051 = vmatprep.subr.mxu0 0.0
        %5052 = vmatpush1.msra.mxu0 %v5035
        %5053 = vmatprep.subr.mxu0 0.0
        %5054 = vmatpush1.msra.mxu0 %v5036
        %5055 = vmatprep.subr.mxu0 0.0
        %5056 = vmatpush1.msra.mxu0 %v5037
        %5057 = vmatprep.subr.mxu0 0.0
        %5058 = vmatpush1.msra.mxu0 %v5038
        %5059 = vmatprep.subr.mxu0 0.0
        %5060 = vmatpush1.msra.mxu0 %v5039
        %5061 = vmatprep.subr.mxu0 0.0
        %5062 = vmatpush1.msra.mxu0 %v5040
        %5063 = vmatprep.subr.mxu0 0.0
        %5064 = vmatpush1.msra.mxu0 %v5041
        %5065 = vmatprep.subr.mxu0 0.0
        %5066 = vmatpush1.msra.mxu0 %v5042
        %5067 = vmatprep.subr.mxu0 0.0
        %5068 = vmatpush1.msra.mxu0 %v5043
        %5069 = vmatprep.subr.mxu0 0.0
        %5070 = vmatpush1.msra.mxu0 %v5044
        %5071 = vmatprep.subr.mxu0 0.0
        %5072 = vmatpush1.msra.mxu0 %v5045
        %5073 = vmatprep.subr.mxu0 0.0
        %5074 = vmatpush1.msra.mxu0 %v5046
        %5075 = vmatprep.subr.mxu0 0.0
        %5076 = vmatpush1.msra.mxu0 %v5047
        %5077 = vmatprep.subr.mxu0 0.0
        %5078 = vmatpush1.msra.mxu0 %v5048
        %5079 = vmatprep.subr.mxu0 0.0
        %5080 = vmatpush1.msra.mxu0 %v5049
        %5081 = vmatprep.subr.mxu0 0.0
        %5082 = vmatpush1.msra.mxu0 %v5050
        %5083 = vmatprep.subr.mxu0 0.0
        %5084 = vmatpush1.msra.mxu0 0.0
        %5085 = vmatprep.subr.mxu0 0.0
        %5086 = vmatpush1.msra.mxu0 0.0
        %5087 = vmatprep.subr.mxu0 0.0
        %5088 = vmatpush1.msra.mxu0 0.0
        %5089 = vmatprep.subr.mxu0 0.0
        %5090 = vmatpush1.msra.mxu0 0.0
        %5091 = vmatprep.subr.mxu0 0.0
        %5092 = vmatpush1.msra.mxu0 0.0
        %5093 = vmatprep.subr.mxu0 0.0
        %5094 = vmatpush1.msra.mxu0 0.0
        %5095 = vmatprep.subr.mxu0 0.0
        %5096 = vmatpush1.msra.mxu0 0.0
        %5097 = vmatprep.subr.mxu0 0.0
        %5098 = vmatpush1.msra.mxu0 0.0
        %5099 = vmatprep.subr.mxu0 0.0
        %5100 = vmatpush1.msra.mxu0 0.0
        %5101 = vmatprep.subr.mxu0 0.0
        %5102 = vmatpush1.msra.mxu0 0.0
        %5103 = vmatprep.subr.mxu0 0.0
        %5104 = vmatpush1.msra.mxu0 0.0
        %5105 = vmatprep.subr.mxu0 0.0
        %5106 = vmatpush1.msra.mxu0 0.0
        %5107 = vmatprep.subr.mxu0 0.0
        %5108 = vmatpush1.msra.mxu0 0.0
        %5109 = vmatprep.subr.mxu0 0.0
        %5110 = vmatpush1.msra.mxu0 0.0
        %5111 = vmatprep.subr.mxu0 0.0
        %5112 = vmatpush1.msra.mxu0 0.0
        %5113 = vmatprep.subr.mxu0 0.0
        %5114 = vmatpush1.msra.mxu0 0.0
        %5115 = vmatprep.mubr.f32.mxu0 0.0
        %5116 = vmatmul.mubr.f32.gmra.mrb[0].mxu0 %v5032
        %v5117 = vpop.f32.mrb[0].mxu0
        %v5118 = vadd.f32 0.0, %v5117
        %v5119 = vpop.f32.mrb[0].mxu0
        %5120 = vmatprep.mubr.f32.mxu0 0.0
        %5121 = vmatmul.mubr.f32.gmra.mrb[0].mxu0 %v5033
        %v5122 = vpop.f32.mrb[0].mxu0
        %v5123 = vadd.f32 0.0, %v5122
        %v5124 = vpop.f32.mrb[0].mxu0
        %5125 = vdwg.mxu0
        %v5126 = vadd.f32 %v5024, %v5118
        %v5127 = vadd.f32 %v5029, %v5123
        %v5128 = vld [vmem:[%s10] sm:$0x1]
        %v5130 = vlaneseq
        %v5131 = vshrl.u32 %v5130, 7
        %v5132 = vsub.s32 0, %v5131
        %v5133 = vrot.slane %v5128, %v5132
        %v5135 = vadd.f32 %v5126, %v5133
        %v5136 = vadd.f32 %v5127, %v5133
        %vm5137 = vcmp.gt.f32.partialorder %v5135, 0.0
        %vm5138 = vcmp.gt.f32.partialorder %v5136, 0.0
        %v5139 = vmul.f32 %v5135, 0.01
        %v5140 = vmul.f32 %v5136, 0.01
        %v5141 = vsel %vm5137, %v5135, %v5139
        %v5142 = vsel %vm5138, %v5136, %v5140
        %5143 = vst [vmem:[#allocation10] sm:$0xff] %v5141
        %5144 = vst [vmem:[#allocation10 + $0x8] sm:$0xf] %v5142
        %v5145 = vld [vmem:[#allocation10] ss:$2 sm:$0x3f]
        %s5146 = scalar_lea.vmem [#allocation10], 1
        %v5147 = vld [vmem:[%s5146] ss:$2 sm:$0x3f]
        %v5148 = vmax.f32 %v5145, %v5147
        %5149 = vst [vmem:[#allocation7 + $0x8] sm:$0x3f] %v5148
        %v5150 = vld [vmem:[%s4842] sm:$0xff]
        %v5151 = vld [vmem:[%s4842 + $0x8] sm:$0xf]
        %v5152 = vld [vmem:[%s9] sm:$0xff]
        %v5153 = vld [vmem:[%s9 + $0x8] sm:$0xff]
        %v5154 = vld [vmem:[%s9 + $0x10] sm:$0xff]
        %v5155 = vld [vmem:[%s9 + $0x18] sm:$0xff]
        %v5156 = vld [vmem:[%s9 + $0x20] sm:$0xff]
        %v5157 = vld [vmem:[%s9 + $0x28] sm:$0xff]
        %v5158 = vld [vmem:[%s9 + $0x30] sm:$0xff]
        %v5159 = vld [vmem:[%s9 + $0x38] sm:$0xff]
        %v5160 = vld [vmem:[%s9 + $0x40] sm:$0xff]
        %v5161 = vld [vmem:[%s9 + $0x48] sm:$0xff]
        %v5162 = vld [vmem:[%s9 + $0x50] sm:$0xff]
        %v5163 = vld [vmem:[%s9 + $0x58] sm:$0xff]
        %v5164 = vld [vmem:[%s9 + $0x60] sm:$0xff]
        %v5165 = vld [vmem:[%s9 + $0x68] sm:$0xff]
        %v5166 = vld [vmem:[%s9 + $0x70] sm:$0xff]
        %v5167 = vld [vmem:[%s9 + $0x78] sm:$0xff]
        %v5168 = vld [vmem:[%s4842 + $0x1] sm:$0xff]
        %v5169 = vld [vmem:[%s4842 + $0x9] sm:$0xf]
        %v5170 = vld [vmem:[%s4865] sm:$0xff]
        %v5171 = vld [vmem:[%s4865 + $0x8] sm:$0xff]
        %v5172 = vld [vmem:[%s4865 + $0x10] sm:$0xff]
        %v5173 = vld [vmem:[%s4865 + $0x18] sm:$0xff]
        %v5174 = vld [vmem:[%s4865 + $0x20] sm:$0xff]
        %v5175 = vld [vmem:[%s4865 + $0x28] sm:$0xff]
        %v5176 = vld [vmem:[%s4865 + $0x30] sm:$0xff]
        %v5177 = vld [vmem:[%s4865 + $0x38] sm:$0xff]
        %v5178 = vld [vmem:[%s4865 + $0x40] sm:$0xff]
        %v5179 = vld [vmem:[%s4865 + $0x48] sm:$0xff]
        %v5180 = vld [vmem:[%s4865 + $0x50] sm:$0xff]
        %v5181 = vld [vmem:[%s4865 + $0x58] sm:$0xff]
        %v5182 = vld [vmem:[%s4865 + $0x60] sm:$0xff]
        %v5183 = vld [vmem:[%s4865 + $0x68] sm:$0xff]
        %v5184 = vld [vmem:[%s4865 + $0x70] sm:$0xff]
        %v5185 = vld [vmem:[%s4865 + $0x78] sm:$0xff]
        %5186 = vmatprep.subr.mxu0 0.0
        %5187 = vmatpush1.msra.mxu0 %v5170
        %5188 = vmatprep.subr.mxu0 0.0
        %5189 = vmatpush1.msra.mxu0 %v5171
        %5190 = vmatprep.subr.mxu0 0.0
        %5191 = vmatpush1.msra.mxu0 %v5172
        %5192 = vmatprep.subr.mxu0 0.0
        %5193 = vmatpush1.msra.mxu0 %v5173
        %5194 = vmatprep.subr.mxu0 0.0
        %5195 = vmatpush1.msra.mxu0 %v5174
        %5196 = vmatprep.subr.mxu0 0.0
        %5197 = vmatpush1.msra.mxu0 %v5175
        %5198 = vmatprep.subr.mxu0 0.0
        %5199 = vmatpush1.msra.mxu0 %v5176
        %5200 = vmatprep.subr.mxu0 0.0
        %5201 = vmatpush1.msra.mxu0 %v5177
        %5202 = vmatprep.subr.mxu0 0.0
        %5203 = vmatpush1.msra.mxu0 %v5178
        %5204 = vmatprep.subr.mxu0 0.0
        %5205 = vmatpush1.msra.mxu0 %v5179
        %5206 = vmatprep.subr.mxu0 0.0
        %5207 = vmatpush1.msra.mxu0 %v5180
        %5208 = vmatprep.subr.mxu0 0.0
        %5209 = vmatpush1.msra.mxu0 %v5181
        %5210 = vmatprep.subr.mxu0 0.0
        %5211 = vmatpush1.msra.mxu0 %v5182
        %5212 = vmatprep.subr.mxu0 0.0
        %5213 = vmatpush1.msra.mxu0 %v5183
        %5214 = vmatprep.subr.mxu0 0.0
        %5215 = vmatpush1.msra.mxu0 %v5184
        %5216 = vmatprep.subr.mxu0 0.0
        %5217 = vmatpush1.msra.mxu0 %v5185
        %5218 = vmatprep.subr.mxu0 0.0
        %5219 = vmatpush1.msra.mxu0 0.0
        %5220 = vmatprep.subr.mxu0 0.0
        %5221 = vmatpush1.msra.mxu0 0.0
        %5222 = vmatprep.subr.mxu0 0.0
        %5223 = vmatpush1.msra.mxu0 0.0
        %5224 = vmatprep.subr.mxu0 0.0
        %5225 = vmatpush1.msra.mxu0 0.0
        %5226 = vmatprep.subr.mxu0 0.0
        %5227 = vmatpush1.msra.mxu0 0.0
        %5228 = vmatprep.subr.mxu0 0.0
        %5229 = vmatpush1.msra.mxu0 0.0
        %5230 = vmatprep.subr.mxu0 0.0
        %5231 = vmatpush1.msra.mxu0 0.0
        %5232 = vmatprep.subr.mxu0 0.0
        %5233 = vmatpush1.msra.mxu0 0.0
        %5234 = vmatprep.subr.mxu0 0.0
        %5235 = vmatpush1.msra.mxu0 0.0
        %5236 = vmatprep.subr.mxu0 0.0
        %5237 = vmatpush1.msra.mxu0 0.0
        %5238 = vmatprep.subr.mxu0 0.0
        %5239 = vmatpush1.msra.mxu0 0.0
        %5240 = vmatprep.subr.mxu0 0.0
        %5241 = vmatpush1.msra.mxu0 0.0
        %5242 = vmatprep.subr.mxu0 0.0
        %5243 = vmatpush1.msra.mxu0 0.0
        %5244 = vmatprep.subr.mxu0 0.0
        %5245 = vmatpush1.msra.mxu0 0.0
        %5246 = vmatprep.subr.mxu0 0.0
        %5247 = vmatpush1.msra.mxu0 0.0
        %5248 = vmatprep.subr.mxu0 0.0
        %5249 = vmatpush1.msra.mxu0 0.0
        %5250 = vmatprep.mubr.f32.mxu0 0.0
        %5251 = vmatmul.mubr.f32.gmra.mrb[0].mxu0 %v5168
        %v5252 = vpop.f32.mrb[0].mxu0
        %v5253 = vadd.f32 0.0, %v5252
        %v5254 = vpop.f32.mrb[0].mxu0
        %5255 = vmatprep.mubr.f32.mxu0 0.0
        %5256 = vmatmul.mubr.f32.gmra.mrb[0].mxu0 %v5169
        %v5257 = vpop.f32.mrb[0].mxu0
        %v5258 = vadd.f32 0.0, %v5257
        %v5259 = vpop.f32.mrb[0].mxu0
        %5260 = vdwg.mxu0
        %5261 = vmatprep.subr.mxu0 0.0
        %5262 = vmatpush1.msra.mxu0 %v5152
        %5263 = vmatprep.subr.mxu0 0.0
        %5264 = vmatpush1.msra.mxu0 %v5153
        %5265 = vmatprep.subr.mxu0 0.0
        %5266 = vmatpush1.msra.mxu0 %v5154
        %5267 = vmatprep.subr.mxu0 0.0
        %5268 = vmatpush1.msra.mxu0 %v5155
        %5269 = vmatprep.subr.mxu0 0.0
        %5270 = vmatpush1.msra.mxu0 %v5156
        %5271 = vmatprep.subr.mxu0 0.0
        %5272 = vmatpush1.msra.mxu0 %v5157
        %5273 = vmatprep.subr.mxu0 0.0
        %5274 = vmatpush1.msra.mxu0 %v5158
        %5275 = vmatprep.subr.mxu0 0.0
        %5276 = vmatpush1.msra.mxu0 %v5159
        %5277 = vmatprep.subr.mxu0 0.0
        %5278 = vmatpush1.msra.mxu0 %v5160
        %5279 = vmatprep.subr.mxu0 0.0
        %5280 = vmatpush1.msra.mxu0 %v5161
        %5281 = vmatprep.subr.mxu0 0.0
        %5282 = vmatpush1.msra.mxu0 %v5162
        %5283 = vmatprep.subr.mxu0 0.0
        %5284 = vmatpush1.msra.mxu0 %v5163
        %5285 = vmatprep.subr.mxu0 0.0
        %5286 = vmatpush1.msra.mxu0 %v5164
        %5287 = vmatprep.subr.mxu0 0.0
        %5288 = vmatpush1.msra.mxu0 %v5165
        %5289 = vmatprep.subr.mxu0 0.0
        %5290 = vmatpush1.msra.mxu0 %v5166
        %5291 = vmatprep.subr.mxu0 0.0
        %5292 = vmatpush1.msra.mxu0 %v5167
        %5293 = vmatprep.subr.mxu0 0.0
        %5294 = vmatpush1.msra.mxu0 0.0
        %5295 = vmatprep.subr.mxu0 0.0
        %5296 = vmatpush1.msra.mxu0 0.0
        %5297 = vmatprep.subr.mxu0 0.0
        %5298 = vmatpush1.msra.mxu0 0.0
        %5299 = vmatprep.subr.mxu0 0.0
        %5300 = vmatpush1.msra.mxu0 0.0
        %5301 = vmatprep.subr.mxu0 0.0
        %5302 = vmatpush1.msra.mxu0 0.0
        %5303 = vmatprep.subr.mxu0 0.0
        %5304 = vmatpush1.msra.mxu0 0.0
        %5305 = vmatprep.subr.mxu0 0.0
        %5306 = vmatpush1.msra.mxu0 0.0
        %5307 = vmatprep.subr.mxu0 0.0
        %5308 = vmatpush1.msra.mxu0 0.0
        %5309 = vmatprep.subr.mxu0 0.0
        %5310 = vmatpush1.msra.mxu0 0.0
        %5311 = vmatprep.subr.mxu0 0.0
        %5312 = vmatpush1.msra.mxu0 0.0
        %5313 = vmatprep.subr.mxu0 0.0
        %5314 = vmatpush1.msra.mxu0 0.0
        %5315 = vmatprep.subr.mxu0 0.0
        %5316 = vmatpush1.msra.mxu0 0.0
        %5317 = vmatprep.subr.mxu0 0.0
        %5318 = vmatpush1.msra.mxu0 0.0
        %5319 = vmatprep.subr.mxu0 0.0
        %5320 = vmatpush1.msra.mxu0 0.0
        %5321 = vmatprep.subr.mxu0 0.0
        %5322 = vmatpush1.msra.mxu0 0.0
        %5323 = vmatprep.subr.mxu0 0.0
        %5324 = vmatpush1.msra.mxu0 0.0
        %5325 = vmatprep.mubr.f32.mxu0 0.0
        %5326 = vmatmul.mubr.f32.gmra.mrb[0].mxu0 %v5150
        %v5327 = vpop.f32.mrb[0].mxu0
        %v5328 = vadd.f32 %v5253, %v5327
        %v5329 = vpop.f32.mrb[0].mxu0
        %5330 = vmatprep.mubr.f32.mxu0 0.0
        %5331 = vmatmul.mubr.f32.gmra.mrb[0].mxu0 %v5151
        %v5332 = vpop.f32.mrb[0].mxu0
        %v5333 = vadd.f32 %v5258, %v5332
        %v5334 = vpop.f32.mrb[0].mxu0
        %5335 = vdwg.mxu0
        %v5336 = vld [vmem:[%s4842 + $0x2] sm:$0xff]
        %v5337 = vld [vmem:[%s4842 + $0xa] sm:$0xf]
        %v5338 = vld [vmem:[%s5034] sm:$0xff]
        %v5339 = vld [vmem:[%s5034 + $0x8] sm:$0xff]
        %v5340 = vld [vmem:[%s5034 + $0x10] sm:$0xff]
        %v5341 = vld [vmem:[%s5034 + $0x18] sm:$0xff]
        %v5342 = vld [vmem:[%s5034 + $0x20] sm:$0xff]
        %v5343 = vld [vmem:[%s5034 + $0x28] sm:$0xff]
        %v5344 = vld [vmem:[%s5034 + $0x30] sm:$0xff]
        %v5345 = vld [vmem:[%s5034 + $0x38] sm:$0xff]
        %v5346 = vld [vmem:[%s5034 + $0x40] sm:$0xff]
        %v5347 = vld [vmem:[%s5034 + $0x48] sm:$0xff]
        %v5348 = vld [vmem:[%s5034 + $0x50] sm:$0xff]
        %v5349 = vld [vmem:[%s5034 + $0x58] sm:$0xff]
        %v5350 = vld [vmem:[%s5034 + $0x60] sm:$0xff]
        %v5351 = vld [vmem:[%s5034 + $0x68] sm:$0xff]
        %v5352 = vld [vmem:[%s5034 + $0x70] sm:$0xff]
        %v5353 = vld [vmem:[%s5034 + $0x78] sm:$0xff]
        %5354 = vmatprep.subr.mxu0 0.0
        %5355 = vmatpush1.msra.mxu0 %v5338
        %5356 = vmatprep.subr.mxu0 0.0
        %5357 = vmatpush1.msra.mxu0 %v5339
        %5358 = vmatprep.subr.mxu0 0.0
        %5359 = vmatpush1.msra.mxu0 %v5340
        %5360 = vmatprep.subr.mxu0 0.0
        %5361 = vmatpush1.msra.mxu0 %v5341
        %5362 = vmatprep.subr.mxu0 0.0
        %5363 = vmatpush1.msra.mxu0 %v5342
        %5364 = vmatprep.subr.mxu0 0.0
        %5365 = vmatpush1.msra.mxu0 %v5343
        %5366 = vmatprep.subr.mxu0 0.0
        %5367 = vmatpush1.msra.mxu0 %v5344
        %5368 = vmatprep.subr.mxu0 0.0
        %5369 = vmatpush1.msra.mxu0 %v5345
        %5370 = vmatprep.subr.mxu0 0.0
        %5371 = vmatpush1.msra.mxu0 %v5346
        %5372 = vmatprep.subr.mxu0 0.0
        %5373 = vmatpush1.msra.mxu0 %v5347
        %5374 = vmatprep.subr.mxu0 0.0
        %5375 = vmatpush1.msra.mxu0 %v5348
        %5376 = vmatprep.subr.mxu0 0.0
        %5377 = vmatpush1.msra.mxu0 %v5349
        %5378 = vmatprep.subr.mxu0 0.0
        %5379 = vmatpush1.msra.mxu0 %v5350
        %5380 = vmatprep.subr.mxu0 0.0
        %5381 = vmatpush1.msra.mxu0 %v5351
        %5382 = vmatprep.subr.mxu0 0.0
        %5383 = vmatpush1.msra.mxu0 %v5352
        %5384 = vmatprep.subr.mxu0 0.0
        %5385 = vmatpush1.msra.mxu0 %v5353
        %5386 = vmatprep.subr.mxu0 0.0
        %5387 = vmatpush1.msra.mxu0 0.0
        %5388 = vmatprep.subr.mxu0 0.0
        %5389 = vmatpush1.msra.mxu0 0.0
        %5390 = vmatprep.subr.mxu0 0.0
        %5391 = vmatpush1.msra.mxu0 0.0
        %5392 = vmatprep.subr.mxu0 0.0
        %5393 = vmatpush1.msra.mxu0 0.0
        %5394 = vmatprep.subr.mxu0 0.0
        %5395 = vmatpush1.msra.mxu0 0.0
        %5396 = vmatprep.subr.mxu0 0.0
        %5397 = vmatpush1.msra.mxu0 0.0
        %5398 = vmatprep.subr.mxu0 0.0
        %5399 = vmatpush1.msra.mxu0 0.0
        %5400 = vmatprep.subr.mxu0 0.0
        %5401 = vmatpush1.msra.mxu0 0.0
        %5402 = vmatprep.subr.mxu0 0.0
        %5403 = vmatpush1.msra.mxu0 0.0
        %5404 = vmatprep.subr.mxu0 0.0
        %5405 = vmatpush1.msra.mxu0 0.0
        %5406 = vmatprep.subr.mxu0 0.0
        %5407 = vmatpush1.msra.mxu0 0.0
        %5408 = vmatprep.subr.mxu0 0.0
        %5409 = vmatpush1.msra.mxu0 0.0
        %5410 = vmatprep.subr.mxu0 0.0
        %5411 = vmatpush1.msra.mxu0 0.0
        %5412 = vmatprep.subr.mxu0 0.0
        %5413 = vmatpush1.msra.mxu0 0.0
        %5414 = vmatprep.subr.mxu0 0.0
        %5415 = vmatpush1.msra.mxu0 0.0
        %5416 = vmatprep.subr.mxu0 0.0
        %5417 = vmatpush1.msra.mxu0 0.0
        %5418 = vmatprep.mubr.f32.mxu0 0.0
        %5419 = vmatmul.mubr.f32.gmra.mrb[0].mxu0 %v5336
        %v5420 = vpop.f32.mrb[0].mxu0
        %v5421 = vadd.f32 0.0, %v5420
        %v5422 = vpop.f32.mrb[0].mxu0
        %5423 = vmatprep.mubr.f32.mxu0 0.0
        %5424 = vmatmul.mubr.f32.gmra.mrb[0].mxu0 %v5337
        %v5425 = vpop.f32.mrb[0].mxu0
        %v5426 = vadd.f32 0.0, %v5425
        %v5427 = vpop.f32.mrb[0].mxu0
        %5428 = vdwg.mxu0
        %v5429 = vadd.f32 %v5328, %v5421
        %v5430 = vadd.f32 %v5333, %v5426
        %v5431 = vld [vmem:[%s10] sm:$0x1]
        %v5433 = vlaneseq
        %v5434 = vshrl.u32 %v5433, 7
        %v5435 = vsub.s32 0, %v5434
        %v5436 = vrot.slane %v5431, %v5435
        %v5438 = vadd.f32 %v5429, %v5436
        %v5439 = vadd.f32 %v5430, %v5436
        %vm5440 = vcmp.gt.f32.partialorder %v5438, 0.0
        %vm5441 = vcmp.gt.f32.partialorder %v5439, 0.0
        %v5442 = vmul.f32 %v5438, 0.01
        %v5443 = vmul.f32 %v5439, 0.01
        %v5444 = vsel %vm5440, %v5438, %v5442
        %v5445 = vsel %vm5441, %v5439, %v5443
        %5446 = vst [vmem:[#allocation10] sm:$0xff] %v5444
        %5447 = vst [vmem:[#allocation10 + $0x8] sm:$0xf] %v5445
        %v5448 = vld [vmem:[#allocation10] ss:$2 sm:$0x3f]
        %v5449 = vld [vmem:[%s5146] ss:$2 sm:$0x3f]
        %v5450 = vmax.f32 %v5448, %v5449
        %s5451 = scalar_lea.vmem [#allocation7], 16
        %5452 = vst [vmem:[%s5451 + $0x8] sm:$0x3f] %v5450
        %v5453 = vld [vmem:[#allocation7 + $0x7] sm:$0x3f]
        %v5454 = vld [vmem:[%s11] sm:$0xff]
        %v5455 = vld [vmem:[%s11 + $0x8] sm:$0xff]
        %v5456 = vld [vmem:[%s11 + $0x10] sm:$0xff]
        %v5457 = vld [vmem:[%s11 + $0x18] sm:$0xff]
        %v5458 = vld [vmem:[%s11 + $0x20] sm:$0xff]
        %v5459 = vld [vmem:[%s11 + $0x28] sm:$0xff]
        %v5460 = vld [vmem:[%s11 + $0x30] sm:$0xff]
        %v5461 = vld [vmem:[%s11 + $0x38] sm:$0xff]
        %v5462 = vld [vmem:[%s11 + $0x40] sm:$0xff]
        %v5463 = vld [vmem:[%s11 + $0x48] sm:$0xff]
        %v5464 = vld [vmem:[%s11 + $0x50] sm:$0xff]
        %v5465 = vld [vmem:[%s11 + $0x58] sm:$0xff]
        %v5466 = vld [vmem:[%s11 + $0x60] sm:$0xff]
        %v5467 = vld [vmem:[%s11 + $0x68] sm:$0xff]
        %v5468 = vld [vmem:[%s11 + $0x70] sm:$0xff]
        %v5469 = vld [vmem:[%s11 + $0x78] sm:$0xff]
        %v5470 = vld [vmem:[%s11 + $0x80] sm:$0xff]
        %v5471 = vld [vmem:[%s11 + $0x88] sm:$0xff]
        %v5472 = vld [vmem:[%s11 + $0x90] sm:$0xff]
        %v5473 = vld [vmem:[%s11 + $0x98] sm:$0xff]
        %v5474 = vld [vmem:[%s11 + $0xa0] sm:$0xff]
        %v5475 = vld [vmem:[%s11 + $0xa8] sm:$0xff]
        %v5476 = vld [vmem:[%s11 + $0xb0] sm:$0xff]
        %v5477 = vld [vmem:[%s11 + $0xb8] sm:$0xff]
        %v5478 = vld [vmem:[%s11 + $0xc0] sm:$0xff]
        %v5479 = vld [vmem:[%s11 + $0xc8] sm:$0xff]
        %v5480 = vld [vmem:[%s11 + $0xd0] sm:$0xff]
        %v5481 = vld [vmem:[%s11 + $0xd8] sm:$0xff]
        %v5482 = vld [vmem:[%s11 + $0xe0] sm:$0xff]
        %v5483 = vld [vmem:[%s11 + $0xe8] sm:$0xff]
        %v5484 = vld [vmem:[%s11 + $0xf0] sm:$0xff]
        %v5485 = vld [vmem:[%s11 + $0xf8] sm:$0xff]
        %v5486 = vld [vmem:[#allocation7 + $0x8] sm:$0x3f]
        %s5487 = scalar_lea.vmem %s11, 256
        %v5488 = vld [vmem:[%s5487] sm:$0xff]
        %v5489 = vld [vmem:[%s5487 + $0x8] sm:$0xff]
        %v5490 = vld [vmem:[%s5487 + $0x10] sm:$0xff]
        %v5491 = vld [vmem:[%s5487 + $0x18] sm:$0xff]
        %v5492 = vld [vmem:[%s5487 + $0x20] sm:$0xff]
        %v5493 = vld [vmem:[%s5487 + $0x28] sm:$0xff]
        %v5494 = vld [vmem:[%s5487 + $0x30] sm:$0xff]
        %v5495 = vld [vmem:[%s5487 + $0x38] sm:$0xff]
        %v5496 = vld [vmem:[%s5487 + $0x40] sm:$0xff]
        %v5497 = vld [vmem:[%s5487 + $0x48] sm:$0xff]
        %v5498 = vld [vmem:[%s5487 + $0x50] sm:$0xff]
        %v5499 = vld [vmem:[%s5487 + $0x58] sm:$0xff]
        %v5500 = vld [vmem:[%s5487 + $0x60] sm:$0xff]
        %v5501 = vld [vmem:[%s5487 + $0x68] sm:$0xff]
        %v5502 = vld [vmem:[%s5487 + $0x70] sm:$0xff]
        %v5503 = vld [vmem:[%s5487 + $0x78] sm:$0xff]
        %v5504 = vld [vmem:[%s5487 + $0x80] sm:$0xff]
        %v5505 = vld [vmem:[%s5487 + $0x88] sm:$0xff]
        %v5506 = vld [vmem:[%s5487 + $0x90] sm:$0xff]
        %v5507 = vld [vmem:[%s5487 + $0x98] sm:$0xff]
        %v5508 = vld [vmem:[%s5487 + $0xa0] sm:$0xff]
        %v5509 = vld [vmem:[%s5487 + $0xa8] sm:$0xff]
        %v5510 = vld [vmem:[%s5487 + $0xb0] sm:$0xff]
        %v5511 = vld [vmem:[%s5487 + $0xb8] sm:$0xff]
        %v5512 = vld [vmem:[%s5487 + $0xc0] sm:$0xff]
        %v5513 = vld [vmem:[%s5487 + $0xc8] sm:$0xff]
        %v5514 = vld [vmem:[%s5487 + $0xd0] sm:$0xff]
        %v5515 = vld [vmem:[%s5487 + $0xd8] sm:$0xff]
        %v5516 = vld [vmem:[%s5487 + $0xe0] sm:$0xff]
        %v5517 = vld [vmem:[%s5487 + $0xe8] sm:$0xff]
        %v5518 = vld [vmem:[%s5487 + $0xf0] sm:$0xff]
        %v5519 = vld [vmem:[%s5487 + $0xf8] sm:$0xff]
        %5520 = vmatprep.subr.mxu0 %v5489
        %5521 = vmatpush1.msra.mxu0 %v5488
        %5522 = vmatprep.subr.mxu0 %v5491
        %5523 = vmatpush1.msra.mxu0 %v5490
        %5524 = vmatprep.subr.mxu0 %v5493
        %5525 = vmatpush1.msra.mxu0 %v5492
        %5526 = vmatprep.subr.mxu0 %v5495
        %5527 = vmatpush1.msra.mxu0 %v5494
        %5528 = vmatprep.subr.mxu0 %v5497
        %5529 = vmatpush1.msra.mxu0 %v5496
        %5530 = vmatprep.subr.mxu0 %v5499
        %5531 = vmatpush1.msra.mxu0 %v5498
        %5532 = vmatprep.subr.mxu0 %v5501
        %5533 = vmatpush1.msra.mxu0 %v5500
        %5534 = vmatprep.subr.mxu0 %v5503
        %5535 = vmatpush1.msra.mxu0 %v5502
        %5536 = vmatprep.subr.mxu0 %v5505
        %5537 = vmatpush1.msra.mxu0 %v5504
        %5538 = vmatprep.subr.mxu0 %v5507
        %5539 = vmatpush1.msra.mxu0 %v5506
        %5540 = vmatprep.subr.mxu0 %v5509
        %5541 = vmatpush1.msra.mxu0 %v5508
        %5542 = vmatprep.subr.mxu0 %v5511
        %5543 = vmatpush1.msra.mxu0 %v5510
        %5544 = vmatprep.subr.mxu0 %v5513
        %5545 = vmatpush1.msra.mxu0 %v5512
        %5546 = vmatprep.subr.mxu0 %v5515
        %5547 = vmatpush1.msra.mxu0 %v5514
        %5548 = vmatprep.subr.mxu0 %v5517
        %5549 = vmatpush1.msra.mxu0 %v5516
        %5550 = vmatprep.subr.mxu0 %v5519
        %5551 = vmatpush1.msra.mxu0 %v5518
        %5552 = vmatprep.subr.mxu0 0.0
        %5553 = vmatpush1.msra.mxu0 0.0
        %5554 = vmatprep.subr.mxu0 0.0
        %5555 = vmatpush1.msra.mxu0 0.0
        %5556 = vmatprep.subr.mxu0 0.0
        %5557 = vmatpush1.msra.mxu0 0.0
        %5558 = vmatprep.subr.mxu0 0.0
        %5559 = vmatpush1.msra.mxu0 0.0
        %5560 = vmatprep.subr.mxu0 0.0
        %5561 = vmatpush1.msra.mxu0 0.0
        %5562 = vmatprep.subr.mxu0 0.0
        %5563 = vmatpush1.msra.mxu0 0.0
        %5564 = vmatprep.subr.mxu0 0.0
        %5565 = vmatpush1.msra.mxu0 0.0
        %5566 = vmatprep.subr.mxu0 0.0
        %5567 = vmatpush1.msra.mxu0 0.0
        %5568 = vmatprep.subr.mxu0 0.0
        %5569 = vmatpush1.msra.mxu0 0.0
        %5570 = vmatprep.subr.mxu0 0.0
        %5571 = vmatpush1.msra.mxu0 0.0
        %5572 = vmatprep.subr.mxu0 0.0
        %5573 = vmatpush1.msra.mxu0 0.0
        %5574 = vmatprep.subr.mxu0 0.0
        %5575 = vmatpush1.msra.mxu0 0.0
        %5576 = vmatprep.subr.mxu0 0.0
        %5577 = vmatpush1.msra.mxu0 0.0
        %5578 = vmatprep.subr.mxu0 0.0
        %5579 = vmatpush1.msra.mxu0 0.0
        %5580 = vmatprep.subr.mxu0 0.0
        %5581 = vmatpush1.msra.mxu0 0.0
        %5582 = vmatprep.subr.mxu0 0.0
        %5583 = vmatpush1.msra.mxu0 0.0
        %5584 = vmatprep.mubr.f32.mxu0 0.0
        %5585 = vmatmul.mubr.f32.gmra.mrb[0].mxu0 %v5486
        %v5586 = vpop.f32.mrb[0].mxu0
        %v5587 = vadd.f32 0.0, %v5586
        %v5588 = vpop.f32.mrb[0].mxu0
        %v5589 = vadd.f32 0.0, %v5588
        %5590 = vdwg.mxu0
        %5591 = vmatprep.subr.mxu0 %v5455
        %5592 = vmatpush1.msra.mxu0 %v5454
        %5593 = vmatprep.subr.mxu0 %v5457
        %5594 = vmatpush1.msra.mxu0 %v5456
        %5595 = vmatprep.subr.mxu0 %v5459
        %5596 = vmatpush1.msra.mxu0 %v5458
        %5597 = vmatprep.subr.mxu0 %v5461
        %5598 = vmatpush1.msra.mxu0 %v5460
        %5599 = vmatprep.subr.mxu0 %v5463
        %5600 = vmatpush1.msra.mxu0 %v5462
        %5601 = vmatprep.subr.mxu0 %v5465
        %5602 = vmatpush1.msra.mxu0 %v5464
        %5603 = vmatprep.subr.mxu0 %v5467
        %5604 = vmatpush1.msra.mxu0 %v5466
        %5605 = vmatprep.subr.mxu0 %v5469
        %5606 = vmatpush1.msra.mxu0 %v5468
        %5607 = vmatprep.subr.mxu0 %v5471
        %5608 = vmatpush1.msra.mxu0 %v5470
        %5609 = vmatprep.subr.mxu0 %v5473
        %5610 = vmatpush1.msra.mxu0 %v5472
        %5611 = vmatprep.subr.mxu0 %v5475
        %5612 = vmatpush1.msra.mxu0 %v5474
        %5613 = vmatprep.subr.mxu0 %v5477
        %5614 = vmatpush1.msra.mxu0 %v5476
        %5615 = vmatprep.subr.mxu0 %v5479
        %5616 = vmatpush1.msra.mxu0 %v5478
        %5617 = vmatprep.subr.mxu0 %v5481
        %5618 = vmatpush1.msra.mxu0 %v5480
        %5619 = vmatprep.subr.mxu0 %v5483
        %5620 = vmatpush1.msra.mxu0 %v5482
        %5621 = vmatprep.subr.mxu0 %v5485
        %5622 = vmatpush1.msra.mxu0 %v5484
        %5623 = vmatprep.subr.mxu0 0.0
        %5624 = vmatpush1.msra.mxu0 0.0
        %5625 = vmatprep.subr.mxu0 0.0
        %5626 = vmatpush1.msra.mxu0 0.0
        %5627 = vmatprep.subr.mxu0 0.0
        %5628 = vmatpush1.msra.mxu0 0.0
        %5629 = vmatprep.subr.mxu0 0.0
        %5630 = vmatpush1.msra.mxu0 0.0
        %5631 = vmatprep.subr.mxu0 0.0
        %5632 = vmatpush1.msra.mxu0 0.0
        %5633 = vmatprep.subr.mxu0 0.0
        %5634 = vmatpush1.msra.mxu0 0.0
        %5635 = vmatprep.subr.mxu0 0.0
        %5636 = vmatpush1.msra.mxu0 0.0
        %5637 = vmatprep.subr.mxu0 0.0
        %5638 = vmatpush1.msra.mxu0 0.0
        %5639 = vmatprep.subr.mxu0 0.0
        %5640 = vmatpush1.msra.mxu0 0.0
        %5641 = vmatprep.subr.mxu0 0.0
        %5642 = vmatpush1.msra.mxu0 0.0
        %5643 = vmatprep.subr.mxu0 0.0
        %5644 = vmatpush1.msra.mxu0 0.0
        %5645 = vmatprep.subr.mxu0 0.0
        %5646 = vmatpush1.msra.mxu0 0.0
        %5647 = vmatprep.subr.mxu0 0.0
        %5648 = vmatpush1.msra.mxu0 0.0
        %5649 = vmatprep.subr.mxu0 0.0
        %5650 = vmatpush1.msra.mxu0 0.0
        %5651 = vmatprep.subr.mxu0 0.0
        %5652 = vmatpush1.msra.mxu0 0.0
        %5653 = vmatprep.subr.mxu0 0.0
        %5654 = vmatpush1.msra.mxu0 0.0
        %5655 = vmatprep.mubr.f32.mxu0 0.0
        %5656 = vmatmul.mubr.f32.gmra.mrb[0].mxu0 %v5453
        %v5657 = vpop.f32.mrb[0].mxu0
        %v5658 = vadd.f32 %v5587, %v5657
        %v5659 = vpop.f32.mrb[0].mxu0
        %v5660 = vadd.f32 %v5589, %v5659
        %5661 = vdwg.mxu0
        %v5662 = vld [vmem:[#allocation7 + $0x9] sm:$0x3f]
        %s5663 = scalar_lea.vmem %s11, 512
        %v5664 = vld [vmem:[%s5663] sm:$0xff]
        %v5665 = vld [vmem:[%s5663 + $0x8] sm:$0xff]
        %v5666 = vld [vmem:[%s5663 + $0x10] sm:$0xff]
        %v5667 = vld [vmem:[%s5663 + $0x18] sm:$0xff]
        %v5668 = vld [vmem:[%s5663 + $0x20] sm:$0xff]
        %v5669 = vld [vmem:[%s5663 + $0x28] sm:$0xff]
        %v5670 = vld [vmem:[%s5663 + $0x30] sm:$0xff]
        %v5671 = vld [vmem:[%s5663 + $0x38] sm:$0xff]
        %v5672 = vld [vmem:[%s5663 + $0x40] sm:$0xff]
        %v5673 = vld [vmem:[%s5663 + $0x48] sm:$0xff]
        %v5674 = vld [vmem:[%s5663 + $0x50] sm:$0xff]
        %v5675 = vld [vmem:[%s5663 + $0x58] sm:$0xff]
        %v5676 = vld [vmem:[%s5663 + $0x60] sm:$0xff]
        %v5677 = vld [vmem:[%s5663 + $0x68] sm:$0xff]
        %v5678 = vld [vmem:[%s5663 + $0x70] sm:$0xff]
        %v5679 = vld [vmem:[%s5663 + $0x78] sm:$0xff]
        %v5680 = vld [vmem:[%s5663 + $0x80] sm:$0xff]
        %v5681 = vld [vmem:[%s5663 + $0x88] sm:$0xff]
        %v5682 = vld [vmem:[%s5663 + $0x90] sm:$0xff]
        %v5683 = vld [vmem:[%s5663 + $0x98] sm:$0xff]
        %v5684 = vld [vmem:[%s5663 + $0xa0] sm:$0xff]
        %v5685 = vld [vmem:[%s5663 + $0xa8] sm:$0xff]
        %v5686 = vld [vmem:[%s5663 + $0xb0] sm:$0xff]
        %v5687 = vld [vmem:[%s5663 + $0xb8] sm:$0xff]
        %v5688 = vld [vmem:[%s5663 + $0xc0] sm:$0xff]
        %v5689 = vld [vmem:[%s5663 + $0xc8] sm:$0xff]
        %v5690 = vld [vmem:[%s5663 + $0xd0] sm:$0xff]
        %v5691 = vld [vmem:[%s5663 + $0xd8] sm:$0xff]
        %v5692 = vld [vmem:[%s5663 + $0xe0] sm:$0xff]
        %v5693 = vld [vmem:[%s5663 + $0xe8] sm:$0xff]
        %v5694 = vld [vmem:[%s5663 + $0xf0] sm:$0xff]
        %v5695 = vld [vmem:[%s5663 + $0xf8] sm:$0xff]
        %5696 = vmatprep.subr.mxu0 %v5665
        %5697 = vmatpush1.msra.mxu0 %v5664
        %5698 = vmatprep.subr.mxu0 %v5667
        %5699 = vmatpush1.msra.mxu0 %v5666
        %5700 = vmatprep.subr.mxu0 %v5669
        %5701 = vmatpush1.msra.mxu0 %v5668
        %5702 = vmatprep.subr.mxu0 %v5671
        %5703 = vmatpush1.msra.mxu0 %v5670
        %5704 = vmatprep.subr.mxu0 %v5673
        %5705 = vmatpush1.msra.mxu0 %v5672
        %5706 = vmatprep.subr.mxu0 %v5675
        %5707 = vmatpush1.msra.mxu0 %v5674
        %5708 = vmatprep.subr.mxu0 %v5677
        %5709 = vmatpush1.msra.mxu0 %v5676
        %5710 = vmatprep.subr.mxu0 %v5679
        %5711 = vmatpush1.msra.mxu0 %v5678
        %5712 = vmatprep.subr.mxu0 %v5681
        %5713 = vmatpush1.msra.mxu0 %v5680
        %5714 = vmatprep.subr.mxu0 %v5683
        %5715 = vmatpush1.msra.mxu0 %v5682
        %5716 = vmatprep.subr.mxu0 %v5685
        %5717 = vmatpush1.msra.mxu0 %v5684
        %5718 = vmatprep.subr.mxu0 %v5687
        %5719 = vmatpush1.msra.mxu0 %v5686
        %5720 = vmatprep.subr.mxu0 %v5689
        %5721 = vmatpush1.msra.mxu0 %v5688
        %5722 = vmatprep.subr.mxu0 %v5691
        %5723 = vmatpush1.msra.mxu0 %v5690
        %5724 = vmatprep.subr.mxu0 %v5693
        %5725 = vmatpush1.msra.mxu0 %v5692
        %5726 = vmatprep.subr.mxu0 %v5695
        %5727 = vmatpush1.msra.mxu0 %v5694
        %5728 = vmatprep.subr.mxu0 0.0
        %5729 = vmatpush1.msra.mxu0 0.0
        %5730 = vmatprep.subr.mxu0 0.0
        %5731 = vmatpush1.msra.mxu0 0.0
        %5732 = vmatprep.subr.mxu0 0.0
        %5733 = vmatpush1.msra.mxu0 0.0
        %5734 = vmatprep.subr.mxu0 0.0
        %5735 = vmatpush1.msra.mxu0 0.0
        %5736 = vmatprep.subr.mxu0 0.0
        %5737 = vmatpush1.msra.mxu0 0.0
        %5738 = vmatprep.subr.mxu0 0.0
        %5739 = vmatpush1.msra.mxu0 0.0
        %5740 = vmatprep.subr.mxu0 0.0
        %5741 = vmatpush1.msra.mxu0 0.0
        %5742 = vmatprep.subr.mxu0 0.0
        %5743 = vmatpush1.msra.mxu0 0.0
        %5744 = vmatprep.subr.mxu0 0.0
        %5745 = vmatpush1.msra.mxu0 0.0
        %5746 = vmatprep.subr.mxu0 0.0
        %5747 = vmatpush1.msra.mxu0 0.0
        %5748 = vmatprep.subr.mxu0 0.0
        %5749 = vmatpush1.msra.mxu0 0.0
        %5750 = vmatprep.subr.mxu0 0.0
        %5751 = vmatpush1.msra.mxu0 0.0
        %5752 = vmatprep.subr.mxu0 0.0
        %5753 = vmatpush1.msra.mxu0 0.0
        %5754 = vmatprep.subr.mxu0 0.0
        %5755 = vmatpush1.msra.mxu0 0.0
        %5756 = vmatprep.subr.mxu0 0.0
        %5757 = vmatpush1.msra.mxu0 0.0
        %5758 = vmatprep.subr.mxu0 0.0
        %5759 = vmatpush1.msra.mxu0 0.0
        %5760 = vmatprep.mubr.f32.mxu0 0.0
        %5761 = vmatmul.mubr.f32.gmra.mrb[0].mxu0 %v5662
        %v5762 = vpop.f32.mrb[0].mxu0
        %v5763 = vadd.f32 0.0, %v5762
        %v5764 = vpop.f32.mrb[0].mxu0
        %v5765 = vadd.f32 0.0, %v5764
        %5766 = vdwg.mxu0
        %v5767 = vadd.f32 %v5658, %v5763
        %v5768 = vadd.f32 %v5660, %v5765
        %v5769 = vld [vmem:[%s12] sm:$0x3]
        %v5771 = vlaneseq
        %v5772 = vshrl.u32 %v5771, 7
        %v5773 = vsub.s32 0, %v5772
        %v5774 = vrot.slane %v5769, %v5773
        %v5775 = vlaneseq
        %v5776 = vshrl.u32 %v5775, 7
        %v5777 = vsub.s32 1, %v5776
        %v5778 = vrot.slane %v5769, %v5777
        %v5781 = vadd.f32 %v5767, %v5774
        %v5782 = vadd.f32 %v5768, %v5778
        %vm5783 = vcmp.gt.f32.partialorder %v5781, 0.0
        %vm5784 = vcmp.gt.f32.partialorder %v5782, 0.0
        %v5785 = vmul.f32 %v5781, 0.01
        %v5786 = vmul.f32 %v5782, 0.01
        %v5787 = vsel %vm5783, %v5781, %v5785
        %v5788 = vsel %vm5784, %v5782, %v5786
        %5789 = vst [vmem:[#allocation11] sm:$0x3f] %v5787
        %5790 = vst [vmem:[#allocation11 + $0x8] sm:$0x3f] %v5788
        %v5791 = vld [vmem:[#allocation11] ss:$8 sm:$0x3]
        %s5792 = scalar_lea.vmem [#allocation11], 1
        %v5793 = vld [vmem:[%s5792] ss:$8 sm:$0x3]
        %s5794 = scalar_lea.vmem [#allocation11], 2
        %v5795 = vld [vmem:[%s5794] ss:$8 sm:$0x3]
        %s5796 = scalar_lea.vmem [#allocation11], 3
        %v5797 = vld [vmem:[%s5796] ss:$8 sm:$0x3]
        %s5798 = scalar_lea.vmem [#allocation11], 4
        %v5799 = vld [vmem:[%s5798] ss:$8 sm:$0x3]
        %s5800 = scalar_lea.vmem [#allocation11], 5
        %v5801 = vld [vmem:[%s5800] ss:$8 sm:$0x3]
        %v5802 = vld [vmem:[%s5451 + $0x7] sm:$0x3f]
        %v5803 = vld [vmem:[%s11] sm:$0xff]
        %v5804 = vld [vmem:[%s11 + $0x8] sm:$0xff]
        %v5805 = vld [vmem:[%s11 + $0x10] sm:$0xff]
        %v5806 = vld [vmem:[%s11 + $0x18] sm:$0xff]
        %v5807 = vld [vmem:[%s11 + $0x20] sm:$0xff]
        %v5808 = vld [vmem:[%s11 + $0x28] sm:$0xff]
        %v5809 = vld [vmem:[%s11 + $0x30] sm:$0xff]
        %v5810 = vld [vmem:[%s11 + $0x38] sm:$0xff]
        %v5811 = vld [vmem:[%s11 + $0x40] sm:$0xff]
        %v5812 = vld [vmem:[%s11 + $0x48] sm:$0xff]
        %v5813 = vld [vmem:[%s11 + $0x50] sm:$0xff]
        %v5814 = vld [vmem:[%s11 + $0x58] sm:$0xff]
        %v5815 = vld [vmem:[%s11 + $0x60] sm:$0xff]
        %v5816 = vld [vmem:[%s11 + $0x68] sm:$0xff]
        %v5817 = vld [vmem:[%s11 + $0x70] sm:$0xff]
        %v5818 = vld [vmem:[%s11 + $0x78] sm:$0xff]
        %v5819 = vld [vmem:[%s11 + $0x80] sm:$0xff]
        %v5820 = vld [vmem:[%s11 + $0x88] sm:$0xff]
        %v5821 = vld [vmem:[%s11 + $0x90] sm:$0xff]
        %v5822 = vld [vmem:[%s11 + $0x98] sm:$0xff]
        %v5823 = vld [vmem:[%s11 + $0xa0] sm:$0xff]
        %v5824 = vld [vmem:[%s11 + $0xa8] sm:$0xff]
        %v5825 = vld [vmem:[%s11 + $0xb0] sm:$0xff]
        %v5826 = vld [vmem:[%s11 + $0xb8] sm:$0xff]
        %v5827 = vld [vmem:[%s11 + $0xc0] sm:$0xff]
        %v5828 = vld [vmem:[%s11 + $0xc8] sm:$0xff]
        %v5829 = vld [vmem:[%s11 + $0xd0] sm:$0xff]
        %v5830 = vld [vmem:[%s11 + $0xd8] sm:$0xff]
        %v5831 = vld [vmem:[%s11 + $0xe0] sm:$0xff]
        %v5832 = vld [vmem:[%s11 + $0xe8] sm:$0xff]
        %v5833 = vld [vmem:[%s11 + $0xf0] sm:$0xff]
        %v5834 = vld [vmem:[%s11 + $0xf8] sm:$0xff]
        %v5835 = vld [vmem:[%s5451 + $0x8] sm:$0x3f]
        %v5836 = vld [vmem:[%s5487] sm:$0xff]
        %v5837 = vld [vmem:[%s5487 + $0x8] sm:$0xff]
        %v5838 = vld [vmem:[%s5487 + $0x10] sm:$0xff]
        %v5839 = vld [vmem:[%s5487 + $0x18] sm:$0xff]
        %v5840 = vld [vmem:[%s5487 + $0x20] sm:$0xff]
        %v5841 = vld [vmem:[%s5487 + $0x28] sm:$0xff]
        %v5842 = vld [vmem:[%s5487 + $0x30] sm:$0xff]
        %v5843 = vld [vmem:[%s5487 + $0x38] sm:$0xff]
        %v5844 = vld [vmem:[%s5487 + $0x40] sm:$0xff]
        %v5845 = vld [vmem:[%s5487 + $0x48] sm:$0xff]
        %v5846 = vld [vmem:[%s5487 + $0x50] sm:$0xff]
        %v5847 = vld [vmem:[%s5487 + $0x58] sm:$0xff]
        %v5848 = vld [vmem:[%s5487 + $0x60] sm:$0xff]
        %v5849 = vld [vmem:[%s5487 + $0x68] sm:$0xff]
        %v5850 = vld [vmem:[%s5487 + $0x70] sm:$0xff]
        %v5851 = vld [vmem:[%s5487 + $0x78] sm:$0xff]
        %v5852 = vld [vmem:[%s5487 + $0x80] sm:$0xff]
        %v5853 = vld [vmem:[%s5487 + $0x88] sm:$0xff]
        %v5854 = vld [vmem:[%s5487 + $0x90] sm:$0xff]
        %v5855 = vld [vmem:[%s5487 + $0x98] sm:$0xff]
        %v5856 = vld [vmem:[%s5487 + $0xa0] sm:$0xff]
        %v5857 = vld [vmem:[%s5487 + $0xa8] sm:$0xff]
        %v5858 = vld [vmem:[%s5487 + $0xb0] sm:$0xff]
        %v5859 = vld [vmem:[%s5487 + $0xb8] sm:$0xff]
        %v5860 = vld [vmem:[%s5487 + $0xc0] sm:$0xff]
        %v5861 = vld [vmem:[%s5487 + $0xc8] sm:$0xff]
        %v5862 = vld [vmem:[%s5487 + $0xd0] sm:$0xff]
        %v5863 = vld [vmem:[%s5487 + $0xd8] sm:$0xff]
        %v5864 = vld [vmem:[%s5487 + $0xe0] sm:$0xff]
        %v5865 = vld [vmem:[%s5487 + $0xe8] sm:$0xff]
        %v5866 = vld [vmem:[%s5487 + $0xf0] sm:$0xff]
        %v5867 = vld [vmem:[%s5487 + $0xf8] sm:$0xff]
        %5868 = vmatprep.subr.mxu0 %v5837
        %5869 = vmatpush1.msra.mxu0 %v5836
        %5870 = vmatprep.subr.mxu0 %v5839
        %5871 = vmatpush1.msra.mxu0 %v5838
        %5872 = vmatprep.subr.mxu0 %v5841
        %5873 = vmatpush1.msra.mxu0 %v5840
        %5874 = vmatprep.subr.mxu0 %v5843
        %5875 = vmatpush1.msra.mxu0 %v5842
        %5876 = vmatprep.subr.mxu0 %v5845
        %5877 = vmatpush1.msra.mxu0 %v5844
        %5878 = vmatprep.subr.mxu0 %v5847
        %5879 = vmatpush1.msra.mxu0 %v5846
        %5880 = vmatprep.subr.mxu0 %v5849
        %5881 = vmatpush1.msra.mxu0 %v5848
        %5882 = vmatprep.subr.mxu0 %v5851
        %5883 = vmatpush1.msra.mxu0 %v5850
        %5884 = vmatprep.subr.mxu0 %v5853
        %5885 = vmatpush1.msra.mxu0 %v5852
        %5886 = vmatprep.subr.mxu0 %v5855
        %5887 = vmatpush1.msra.mxu0 %v5854
        %5888 = vmatprep.subr.mxu0 %v5857
        %5889 = vmatpush1.msra.mxu0 %v5856
        %5890 = vmatprep.subr.mxu0 %v5859
        %5891 = vmatpush1.msra.mxu0 %v5858
        %5892 = vmatprep.subr.mxu0 %v5861
        %5893 = vmatpush1.msra.mxu0 %v5860
        %5894 = vmatprep.subr.mxu0 %v5863
        %5895 = vmatpush1.msra.mxu0 %v5862
        %5896 = vmatprep.subr.mxu0 %v5865
        %5897 = vmatpush1.msra.mxu0 %v5864
        %5898 = vmatprep.subr.mxu0 %v5867
        %5899 = vmatpush1.msra.mxu0 %v5866
        %5900 = vmatprep.subr.mxu0 0.0
        %5901 = vmatpush1.msra.mxu0 0.0
        %5902 = vmatprep.subr.mxu0 0.0
        %5903 = vmatpush1.msra.mxu0 0.0
        %5904 = vmatprep.subr.mxu0 0.0
        %5905 = vmatpush1.msra.mxu0 0.0
        %5906 = vmatprep.subr.mxu0 0.0
        %5907 = vmatpush1.msra.mxu0 0.0
        %5908 = vmatprep.subr.mxu0 0.0
        %5909 = vmatpush1.msra.mxu0 0.0
        %5910 = vmatprep.subr.mxu0 0.0
        %5911 = vmatpush1.msra.mxu0 0.0
        %5912 = vmatprep.subr.mxu0 0.0
        %5913 = vmatpush1.msra.mxu0 0.0
        %5914 = vmatprep.subr.mxu0 0.0
        %5915 = vmatpush1.msra.mxu0 0.0
        %5916 = vmatprep.subr.mxu0 0.0
        %5917 = vmatpush1.msra.mxu0 0.0
        %5918 = vmatprep.subr.mxu0 0.0
        %5919 = vmatpush1.msra.mxu0 0.0
        %5920 = vmatprep.subr.mxu0 0.0
        %5921 = vmatpush1.msra.mxu0 0.0
        %5922 = vmatprep.subr.mxu0 0.0
        %5923 = vmatpush1.msra.mxu0 0.0
        %5924 = vmatprep.subr.mxu0 0.0
        %5925 = vmatpush1.msra.mxu0 0.0
        %5926 = vmatprep.subr.mxu0 0.0
        %5927 = vmatpush1.msra.mxu0 0.0
        %5928 = vmatprep.subr.mxu0 0.0
        %5929 = vmatpush1.msra.mxu0 0.0
        %5930 = vmatprep.subr.mxu0 0.0
        %5931 = vmatpush1.msra.mxu0 0.0
        %5932 = vmatprep.mubr.f32.mxu0 0.0
        %5933 = vmatmul.mubr.f32.gmra.mrb[0].mxu0 %v5835
        %v5934 = vpop.f32.mrb[0].mxu0
        %v5935 = vadd.f32 0.0, %v5934
        %v5936 = vpop.f32.mrb[0].mxu0
        %v5937 = vadd.f32 0.0, %v5936
        %5938 = vdwg.mxu0
        %5939 = vmatprep.subr.mxu0 %v5804
        %5940 = vmatpush1.msra.mxu0 %v5803
        %5941 = vmatprep.subr.mxu0 %v5806
        %5942 = vmatpush1.msra.mxu0 %v5805
        %5943 = vmatprep.subr.mxu0 %v5808
        %5944 = vmatpush1.msra.mxu0 %v5807
        %5945 = vmatprep.subr.mxu0 %v5810
        %5946 = vmatpush1.msra.mxu0 %v5809
        %5947 = vmatprep.subr.mxu0 %v5812
        %5948 = vmatpush1.msra.mxu0 %v5811
        %5949 = vmatprep.subr.mxu0 %v5814
        %5950 = vmatpush1.msra.mxu0 %v5813
        %5951 = vmatprep.subr.mxu0 %v5816
        %5952 = vmatpush1.msra.mxu0 %v5815
        %5953 = vmatprep.subr.mxu0 %v5818
        %5954 = vmatpush1.msra.mxu0 %v5817
        %5955 = vmatprep.subr.mxu0 %v5820
        %5956 = vmatpush1.msra.mxu0 %v5819
        %5957 = vmatprep.subr.mxu0 %v5822
        %5958 = vmatpush1.msra.mxu0 %v5821
        %5959 = vmatprep.subr.mxu0 %v5824
        %5960 = vmatpush1.msra.mxu0 %v5823
        %5961 = vmatprep.subr.mxu0 %v5826
        %5962 = vmatpush1.msra.mxu0 %v5825
        %5963 = vmatprep.subr.mxu0 %v5828
        %5964 = vmatpush1.msra.mxu0 %v5827
        %5965 = vmatprep.subr.mxu0 %v5830
        %5966 = vmatpush1.msra.mxu0 %v5829
        %5967 = vmatprep.subr.mxu0 %v5832
        %5968 = vmatpush1.msra.mxu0 %v5831
        %5969 = vmatprep.subr.mxu0 %v5834
        %5970 = vmatpush1.msra.mxu0 %v5833
        %5971 = vmatprep.subr.mxu0 0.0
        %5972 = vmatpush1.msra.mxu0 0.0
        %5973 = vmatprep.subr.mxu0 0.0
        %5974 = vmatpush1.msra.mxu0 0.0
        %5975 = vmatprep.subr.mxu0 0.0
        %5976 = vmatpush1.msra.mxu0 0.0
        %5977 = vmatprep.subr.mxu0 0.0
        %5978 = vmatpush1.msra.mxu0 0.0
        %5979 = vmatprep.subr.mxu0 0.0
        %5980 = vmatpush1.msra.mxu0 0.0
        %5981 = vmatprep.subr.mxu0 0.0
        %5982 = vmatpush1.msra.mxu0 0.0
        %5983 = vmatprep.subr.mxu0 0.0
        %5984 = vmatpush1.msra.mxu0 0.0
        %5985 = vmatprep.subr.mxu0 0.0
        %5986 = vmatpush1.msra.mxu0 0.0
        %5987 = vmatprep.subr.mxu0 0.0
        %5988 = vmatpush1.msra.mxu0 0.0
        %5989 = vmatprep.subr.mxu0 0.0
        %5990 = vmatpush1.msra.mxu0 0.0
        %5991 = vmatprep.subr.mxu0 0.0
        %5992 = vmatpush1.msra.mxu0 0.0
        %5993 = vmatprep.subr.mxu0 0.0
        %5994 = vmatpush1.msra.mxu0 0.0
        %5995 = vmatprep.subr.mxu0 0.0
        %5996 = vmatpush1.msra.mxu0 0.0
        %5997 = vmatprep.subr.mxu0 0.0
        %5998 = vmatpush1.msra.mxu0 0.0
        %5999 = vmatprep.subr.mxu0 0.0
        %6000 = vmatpush1.msra.mxu0 0.0
        %6001 = vmatprep.subr.mxu0 0.0
        %6002 = vmatpush1.msra.mxu0 0.0
        %6003 = vmatprep.mubr.f32.mxu0 0.0
        %6004 = vmatmul.mubr.f32.gmra.mrb[0].mxu0 %v5802
        %v6005 = vpop.f32.mrb[0].mxu0
        %v6006 = vadd.f32 %v5935, %v6005
        %v6007 = vpop.f32.mrb[0].mxu0
        %v6008 = vadd.f32 %v5937, %v6007
        %6009 = vdwg.mxu0
        %v6010 = vld [vmem:[%s5451 + $0x9] sm:$0x3f]
        %v6011 = vld [vmem:[%s5663] sm:$0xff]
        %v6012 = vld [vmem:[%s5663 + $0x8] sm:$0xff]
        %v6013 = vld [vmem:[%s5663 + $0x10] sm:$0xff]
        %v6014 = vld [vmem:[%s5663 + $0x18] sm:$0xff]
        %v6015 = vld [vmem:[%s5663 + $0x20] sm:$0xff]
        %v6016 = vld [vmem:[%s5663 + $0x28] sm:$0xff]
        %v6017 = vld [vmem:[%s5663 + $0x30] sm:$0xff]
        %v6018 = vld [vmem:[%s5663 + $0x38] sm:$0xff]
        %v6019 = vld [vmem:[%s5663 + $0x40] sm:$0xff]
        %v6020 = vld [vmem:[%s5663 + $0x48] sm:$0xff]
        %v6021 = vld [vmem:[%s5663 + $0x50] sm:$0xff]
        %v6022 = vld [vmem:[%s5663 + $0x58] sm:$0xff]
        %v6023 = vld [vmem:[%s5663 + $0x60] sm:$0xff]
        %v6024 = vld [vmem:[%s5663 + $0x68] sm:$0xff]
        %v6025 = vld [vmem:[%s5663 + $0x70] sm:$0xff]
        %v6026 = vld [vmem:[%s5663 + $0x78] sm:$0xff]
        %v6027 = vld [vmem:[%s5663 + $0x80] sm:$0xff]
        %v6028 = vld [vmem:[%s5663 + $0x88] sm:$0xff]
        %v6029 = vld [vmem:[%s5663 + $0x90] sm:$0xff]
        %v6030 = vld [vmem:[%s5663 + $0x98] sm:$0xff]
        %v6031 = vld [vmem:[%s5663 + $0xa0] sm:$0xff]
        %v6032 = vld [vmem:[%s5663 + $0xa8] sm:$0xff]
        %v6033 = vld [vmem:[%s5663 + $0xb0] sm:$0xff]
        %v6034 = vld [vmem:[%s5663 + $0xb8] sm:$0xff]
        %v6035 = vld [vmem:[%s5663 + $0xc0] sm:$0xff]
        %v6036 = vld [vmem:[%s5663 + $0xc8] sm:$0xff]
        %v6037 = vld [vmem:[%s5663 + $0xd0] sm:$0xff]
        %v6038 = vld [vmem:[%s5663 + $0xd8] sm:$0xff]
        %v6039 = vld [vmem:[%s5663 + $0xe0] sm:$0xff]
        %v6040 = vld [vmem:[%s5663 + $0xe8] sm:$0xff]
        %v6041 = vld [vmem:[%s5663 + $0xf0] sm:$0xff]
        %v6042 = vld [vmem:[%s5663 + $0xf8] sm:$0xff]
        %6043 = vmatprep.subr.mxu0 %v6012
        %6044 = vmatpush1.msra.mxu0 %v6011
        %6045 = vmatprep.subr.mxu0 %v6014
        %6046 = vmatpush1.msra.mxu0 %v6013
        %6047 = vmatprep.subr.mxu0 %v6016
        %6048 = vmatpush1.msra.mxu0 %v6015
        %6049 = vmatprep.subr.mxu0 %v6018
        %6050 = vmatpush1.msra.mxu0 %v6017
        %6051 = vmatprep.subr.mxu0 %v6020
        %6052 = vmatpush1.msra.mxu0 %v6019
        %6053 = vmatprep.subr.mxu0 %v6022
        %6054 = vmatpush1.msra.mxu0 %v6021
        %6055 = vmatprep.subr.mxu0 %v6024
        %6056 = vmatpush1.msra.mxu0 %v6023
        %6057 = vmatprep.subr.mxu0 %v6026
        %6058 = vmatpush1.msra.mxu0 %v6025
        %6059 = vmatprep.subr.mxu0 %v6028
        %6060 = vmatpush1.msra.mxu0 %v6027
        %6061 = vmatprep.subr.mxu0 %v6030
        %6062 = vmatpush1.msra.mxu0 %v6029
        %6063 = vmatprep.subr.mxu0 %v6032
        %6064 = vmatpush1.msra.mxu0 %v6031
        %6065 = vmatprep.subr.mxu0 %v6034
        %6066 = vmatpush1.msra.mxu0 %v6033
        %6067 = vmatprep.subr.mxu0 %v6036
        %6068 = vmatpush1.msra.mxu0 %v6035
        %6069 = vmatprep.subr.mxu0 %v6038
        %6070 = vmatpush1.msra.mxu0 %v6037
        %6071 = vmatprep.subr.mxu0 %v6040
        %6072 = vmatpush1.msra.mxu0 %v6039
        %6073 = vmatprep.subr.mxu0 %v6042
        %6074 = vmatpush1.msra.mxu0 %v6041
        %6075 = vmatprep.subr.mxu0 0.0
        %6076 = vmatpush1.msra.mxu0 0.0
        %6077 = vmatprep.subr.mxu0 0.0
        %6078 = vmatpush1.msra.mxu0 0.0
        %6079 = vmatprep.subr.mxu0 0.0
        %6080 = vmatpush1.msra.mxu0 0.0
        %6081 = vmatprep.subr.mxu0 0.0
        %6082 = vmatpush1.msra.mxu0 0.0
        %6083 = vmatprep.subr.mxu0 0.0
        %6084 = vmatpush1.msra.mxu0 0.0
        %6085 = vmatprep.subr.mxu0 0.0
        %6086 = vmatpush1.msra.mxu0 0.0
        %6087 = vmatprep.subr.mxu0 0.0
        %6088 = vmatpush1.msra.mxu0 0.0
        %6089 = vmatprep.subr.mxu0 0.0
        %6090 = vmatpush1.msra.mxu0 0.0
        %6091 = vmatprep.subr.mxu0 0.0
        %6092 = vmatpush1.msra.mxu0 0.0
        %6093 = vmatprep.subr.mxu0 0.0
        %6094 = vmatpush1.msra.mxu0 0.0
        %6095 = vmatprep.subr.mxu0 0.0
        %6096 = vmatpush1.msra.mxu0 0.0
        %6097 = vmatprep.subr.mxu0 0.0
        %6098 = vmatpush1.msra.mxu0 0.0
        %6099 = vmatprep.subr.mxu0 0.0
        %6100 = vmatpush1.msra.mxu0 0.0
        %6101 = vmatprep.subr.mxu0 0.0
        %6102 = vmatpush1.msra.mxu0 0.0
        %6103 = vmatprep.subr.mxu0 0.0
        %6104 = vmatpush1.msra.mxu0 0.0
        %6105 = vmatprep.subr.mxu0 0.0
        %6106 = vmatpush1.msra.mxu0 0.0
        %6107 = vmatprep.mubr.f32.mxu0 0.0
        %6108 = vmatmul.mubr.f32.gmra.mrb[0].mxu0 %v6010
        %v6109 = vpop.f32.mrb[0].mxu0
        %v6110 = vadd.f32 0.0, %v6109
        %v6111 = vpop.f32.mrb[0].mxu0
        %v6112 = vadd.f32 0.0, %v6111
        %6113 = vdwg.mxu0
        %v6114 = vadd.f32 %v6006, %v6110
        %v6115 = vadd.f32 %v6008, %v6112
        %v6116 = vld [vmem:[%s12] sm:$0x3]
        %v6118 = vlaneseq
        %v6119 = vshrl.u32 %v6118, 7
        %v6120 = vsub.s32 0, %v6119
        %v6121 = vrot.slane %v6116, %v6120
        %v6122 = vlaneseq
        %v6123 = vshrl.u32 %v6122, 7
        %v6124 = vsub.s32 1, %v6123
        %v6125 = vrot.slane %v6116, %v6124
        %v6128 = vadd.f32 %v6114, %v6121
        %v6129 = vadd.f32 %v6115, %v6125
        %vm6130 = vcmp.gt.f32.partialorder %v6128, 0.0
        %vm6131 = vcmp.gt.f32.partialorder %v6129, 0.0
        %v6132 = vmul.f32 %v6128, 0.01
        %v6133 = vmul.f32 %v6129, 0.01
        %v6134 = vsel %vm6130, %v6128, %v6132
        %v6135 = vsel %vm6131, %v6129, %v6133
        %6136 = vst [vmem:[#allocation11] sm:$0x3f] %v6134
        %6137 = vst [vmem:[#allocation11 + $0x8] sm:$0x3f] %v6135
        %v6138 = vld [vmem:[#allocation11] ss:$8 sm:$0x3]
        %v6139 = vld [vmem:[%s5792] ss:$8 sm:$0x3]
        %v6140 = vld [vmem:[%s5794] ss:$8 sm:$0x3]
        %v6141 = vld [vmem:[%s5796] ss:$8 sm:$0x3]
        %v6142 = vld [vmem:[%s5798] ss:$8 sm:$0x3]
        %v6143 = vld [vmem:[%s5800] ss:$8 sm:$0x3]
        %v6145 = vlaneseq
        %v6146 = vshrl.u32 %v6145, 7
        %v6147 = vsub.s32 0, %v6146
        %v6148 = vrot.slane %v5791, %v6147
        %v6149 = vlaneseq
        %v6150 = vshrl.u32 %v6149, 7
        %v6151 = vsub.s32 1, %v6150
        %v6152 = vrot.slane %v5791, %v6151
        %v6156 = vlaneseq
        %v6157 = vshrl.u32 %v6156, 7
        %v6158 = vsub.s32 0, %v6157
        %v6159 = vrot.slane %v5793, %v6158
        %v6160 = vlaneseq
        %v6161 = vshrl.u32 %v6160, 7
        %v6162 = vsub.s32 1, %v6161
        %v6163 = vrot.slane %v5793, %v6162
        %v6167 = vlaneseq
        %v6168 = vshrl.u32 %v6167, 7
        %v6169 = vsub.s32 0, %v6168
        %v6170 = vrot.slane %v5795, %v6169
        %v6171 = vlaneseq
        %v6172 = vshrl.u32 %v6171, 7
        %v6173 = vsub.s32 1, %v6172
        %v6174 = vrot.slane %v5795, %v6173
        %v6178 = vlaneseq
        %v6179 = vshrl.u32 %v6178, 7
        %v6180 = vsub.s32 0, %v6179
        %v6181 = vrot.slane %v5797, %v6180
        %v6182 = vlaneseq
        %v6183 = vshrl.u32 %v6182, 7
        %v6184 = vsub.s32 1, %v6183
        %v6185 = vrot.slane %v5797, %v6184
        %v6189 = vlaneseq
        %v6190 = vshrl.u32 %v6189, 7
        %v6191 = vsub.s32 0, %v6190
        %v6192 = vrot.slane %v5799, %v6191
        %v6193 = vlaneseq
        %v6194 = vshrl.u32 %v6193, 7
        %v6195 = vsub.s32 1, %v6194
        %v6196 = vrot.slane %v5799, %v6195
        %v6200 = vlaneseq
        %v6201 = vshrl.u32 %v6200, 7
        %v6202 = vsub.s32 0, %v6201
        %v6203 = vrot.slane %v5801, %v6202
        %v6204 = vlaneseq
        %v6205 = vshrl.u32 %v6204, 7
        %v6206 = vsub.s32 1, %v6205
        %v6207 = vrot.slane %v5801, %v6206
        %v6211 = vlaneseq
        %v6212 = vshrl.u32 %v6211, 7
        %v6213 = vsub.s32 0, %v6212
        %v6214 = vrot.slane %v6138, %v6213
        %v6215 = vlaneseq
        %v6216 = vshrl.u32 %v6215, 7
        %v6217 = vsub.s32 1, %v6216
        %v6218 = vrot.slane %v6138, %v6217
        %v6222 = vlaneseq
        %v6223 = vshrl.u32 %v6222, 7
        %v6224 = vsub.s32 0, %v6223
        %v6225 = vrot.slane %v6139, %v6224
        %v6226 = vlaneseq
        %v6227 = vshrl.u32 %v6226, 7
        %v6228 = vsub.s32 1, %v6227
        %v6229 = vrot.slane %v6139, %v6228
        %v6233 = vlaneseq
        %v6234 = vshrl.u32 %v6233, 7
        %v6235 = vsub.s32 0, %v6234
        %v6236 = vrot.slane %v6140, %v6235
        %v6237 = vlaneseq
        %v6238 = vshrl.u32 %v6237, 7
        %v6239 = vsub.s32 1, %v6238
        %v6240 = vrot.slane %v6140, %v6239
        %v6244 = vlaneseq
        %v6245 = vshrl.u32 %v6244, 7
        %v6246 = vsub.s32 0, %v6245
        %v6247 = vrot.slane %v6141, %v6246
        %v6248 = vlaneseq
        %v6249 = vshrl.u32 %v6248, 7
        %v6250 = vsub.s32 1, %v6249
        %v6251 = vrot.slane %v6141, %v6250
        %v6255 = vlaneseq
        %v6256 = vshrl.u32 %v6255, 7
        %v6257 = vsub.s32 0, %v6256
        %v6258 = vrot.slane %v6142, %v6257
        %v6259 = vlaneseq
        %v6260 = vshrl.u32 %v6259, 7
        %v6261 = vsub.s32 1, %v6260
        %v6262 = vrot.slane %v6142, %v6261
        %v6266 = vlaneseq
        %v6267 = vshrl.u32 %v6266, 7
        %v6268 = vsub.s32 0, %v6267
        %v6269 = vrot.slane %v6143, %v6268
        %v6270 = vlaneseq
        %v6271 = vshrl.u32 %v6270, 7
        %v6272 = vsub.s32 1, %v6271
        %v6273 = vrot.slane %v6143, %v6272
        %v6276 = vld [vmem:[%s13] sm:$0xff]
        %v6277 = vld [vmem:[%s13 + $0x8] sm:$0xff]
        %v6278 = vld [vmem:[%s13 + $0x10] sm:$0xff]
        %v6279 = vld [vmem:[%s13 + $0x18] sm:$0xff]
        %v6280 = vld [vmem:[%s13 + $0x20] sm:$0xff]
        %v6281 = vld [vmem:[%s13 + $0x28] sm:$0xff]
        %v6282 = vld [vmem:[%s13 + $0x30] sm:$0xff]
        %v6283 = vld [vmem:[%s13 + $0x38] sm:$0xff]
        %v6284 = vld [vmem:[%s13 + $0x40] sm:$0xff]
        %v6285 = vld [vmem:[%s13 + $0x48] sm:$0xff]
        %v6286 = vld [vmem:[%s13 + $0x50] sm:$0xff]
        %v6287 = vld [vmem:[%s13 + $0x58] sm:$0xff]
        %v6288 = vld [vmem:[%s13 + $0x60] sm:$0xff]
        %v6289 = vld [vmem:[%s13 + $0x68] sm:$0xff]
        %v6290 = vld [vmem:[%s13 + $0x70] sm:$0xff]
        %v6291 = vld [vmem:[%s13 + $0x78] sm:$0xff]
        %v6292 = vld [vmem:[%s13 + $0x80] sm:$0xff]
        %v6293 = vld [vmem:[%s13 + $0x88] sm:$0xff]
        %v6294 = vld [vmem:[%s13 + $0x90] sm:$0xff]
        %v6295 = vld [vmem:[%s13 + $0x98] sm:$0xff]
        %v6296 = vld [vmem:[%s13 + $0xa0] sm:$0xff]
        %v6297 = vld [vmem:[%s13 + $0xa8] sm:$0xff]
        %v6298 = vld [vmem:[%s13 + $0xb0] sm:$0xff]
        %v6299 = vld [vmem:[%s13 + $0xb8] sm:$0xff]
        %v6300 = vld [vmem:[%s13 + $0xc0] sm:$0xff]
        %v6301 = vld [vmem:[%s13 + $0xc8] sm:$0xff]
        %v6302 = vld [vmem:[%s13 + $0xd0] sm:$0xff]
        %v6303 = vld [vmem:[%s13 + $0xd8] sm:$0xff]
        %v6304 = vld [vmem:[%s13 + $0xe0] sm:$0xff]
        %v6305 = vld [vmem:[%s13 + $0xe8] sm:$0xff]
        %v6306 = vld [vmem:[%s13 + $0xf0] sm:$0xff]
        %v6307 = vld [vmem:[%s13 + $0xf8] sm:$0xff]
        %v6308 = vld [vmem:[%s13 + $0x100] sm:$0xff]
        %v6309 = vld [vmem:[%s13 + $0x108] sm:$0xff]
        %v6310 = vld [vmem:[%s13 + $0x110] sm:$0xff]
        %v6311 = vld [vmem:[%s13 + $0x118] sm:$0xff]
        %v6312 = vld [vmem:[%s13 + $0x120] sm:$0xff]
        %v6313 = vld [vmem:[%s13 + $0x128] sm:$0xff]
        %v6314 = vld [vmem:[%s13 + $0x130] sm:$0xff]
        %v6315 = vld [vmem:[%s13 + $0x138] sm:$0xff]
        %v6316 = vld [vmem:[%s13 + $0x140] sm:$0xff]
        %v6317 = vld [vmem:[%s13 + $0x148] sm:$0xff]
        %v6318 = vld [vmem:[%s13 + $0x150] sm:$0xff]
        %v6319 = vld [vmem:[%s13 + $0x158] sm:$0xff]
        %v6320 = vld [vmem:[%s13 + $0x160] sm:$0xff]
        %v6321 = vld [vmem:[%s13 + $0x168] sm:$0xff]
        %v6322 = vld [vmem:[%s13 + $0x170] sm:$0xff]
        %v6323 = vld [vmem:[%s13 + $0x178] sm:$0xff]
        %v6324 = vld [vmem:[%s13 + $0x180] sm:$0xff]
        %v6325 = vld [vmem:[%s13 + $0x188] sm:$0xff]
        %v6326 = vld [vmem:[%s13 + $0x190] sm:$0xff]
        %v6327 = vld [vmem:[%s13 + $0x198] sm:$0xff]
        %v6328 = vld [vmem:[%s13 + $0x1a0] sm:$0xff]
        %v6329 = vld [vmem:[%s13 + $0x1a8] sm:$0xff]
        %v6330 = vld [vmem:[%s13 + $0x1b0] sm:$0xff]
        %v6331 = vld [vmem:[%s13 + $0x1b8] sm:$0xff]
        %v6332 = vld [vmem:[%s13 + $0x1c0] sm:$0xff]
        %v6333 = vld [vmem:[%s13 + $0x1c8] sm:$0xff]
        %v6334 = vld [vmem:[%s13 + $0x1d0] sm:$0xff]
        %v6335 = vld [vmem:[%s13 + $0x1d8] sm:$0xff]
        %v6336 = vld [vmem:[%s13 + $0x1e0] sm:$0xff]
        %v6337 = vld [vmem:[%s13 + $0x1e8] sm:$0xff]
        %v6338 = vld [vmem:[%s13 + $0x1f0] sm:$0xff]
        %v6339 = vld [vmem:[%s13 + $0x1f8] sm:$0xff]
        %v6340 = vld [vmem:[%s13 + $0x200] sm:$0xff]
        %v6341 = vld [vmem:[%s13 + $0x208] sm:$0xff]
        %v6342 = vld [vmem:[%s13 + $0x210] sm:$0xff]
        %v6343 = vld [vmem:[%s13 + $0x218] sm:$0xff]
        %v6344 = vld [vmem:[%s13 + $0x220] sm:$0xff]
        %v6345 = vld [vmem:[%s13 + $0x228] sm:$0xff]
        %v6346 = vld [vmem:[%s13 + $0x230] sm:$0xff]
        %v6347 = vld [vmem:[%s13 + $0x238] sm:$0xff]
        %v6348 = vld [vmem:[%s13 + $0x240] sm:$0xff]
        %v6349 = vld [vmem:[%s13 + $0x248] sm:$0xff]
        %v6350 = vld [vmem:[%s13 + $0x250] sm:$0xff]
        %v6351 = vld [vmem:[%s13 + $0x258] sm:$0xff]
        %v6352 = vld [vmem:[%s13 + $0x260] sm:$0xff]
        %v6353 = vld [vmem:[%s13 + $0x268] sm:$0xff]
        %v6354 = vld [vmem:[%s13 + $0x270] sm:$0xff]
        %v6355 = vld [vmem:[%s13 + $0x278] sm:$0xff]
        %v6356 = vld [vmem:[%s13 + $0x280] sm:$0xff]
        %v6357 = vld [vmem:[%s13 + $0x288] sm:$0xff]
        %v6358 = vld [vmem:[%s13 + $0x290] sm:$0xff]
        %v6359 = vld [vmem:[%s13 + $0x298] sm:$0xff]
        %v6360 = vld [vmem:[%s13 + $0x2a0] sm:$0xff]
        %v6361 = vld [vmem:[%s13 + $0x2a8] sm:$0xff]
        %v6362 = vld [vmem:[%s13 + $0x2b0] sm:$0xff]
        %v6363 = vld [vmem:[%s13 + $0x2b8] sm:$0xff]
        %v6364 = vld [vmem:[%s13 + $0x2c0] sm:$0xff]
        %v6365 = vld [vmem:[%s13 + $0x2c8] sm:$0xff]
        %v6366 = vld [vmem:[%s13 + $0x2d0] sm:$0xff]
        %v6367 = vld [vmem:[%s13 + $0x2d8] sm:$0xff]
        %v6368 = vld [vmem:[%s13 + $0x2e0] sm:$0xff]
        %v6369 = vld [vmem:[%s13 + $0x2e8] sm:$0xff]
        %v6370 = vld [vmem:[%s13 + $0x2f0] sm:$0xff]
        %v6371 = vld [vmem:[%s13 + $0x2f8] sm:$0xff]
        %v6372 = vld [vmem:[%s13 + $0x300] sm:$0xff]
        %v6373 = vld [vmem:[%s13 + $0x308] sm:$0xff]
        %v6374 = vld [vmem:[%s13 + $0x310] sm:$0xff]
        %v6375 = vld [vmem:[%s13 + $0x318] sm:$0xff]
        %v6376 = vld [vmem:[%s13 + $0x320] sm:$0xff]
        %v6377 = vld [vmem:[%s13 + $0x328] sm:$0xff]
        %v6378 = vld [vmem:[%s13 + $0x330] sm:$0xff]
        %v6379 = vld [vmem:[%s13 + $0x338] sm:$0xff]
        %v6380 = vld [vmem:[%s13 + $0x340] sm:$0xff]
        %v6381 = vld [vmem:[%s13 + $0x348] sm:$0xff]
        %v6382 = vld [vmem:[%s13 + $0x350] sm:$0xff]
        %v6383 = vld [vmem:[%s13 + $0x358] sm:$0xff]
        %v6384 = vld [vmem:[%s13 + $0x360] sm:$0xff]
        %v6385 = vld [vmem:[%s13 + $0x368] sm:$0xff]
        %v6386 = vld [vmem:[%s13 + $0x370] sm:$0xff]
        %v6387 = vld [vmem:[%s13 + $0x378] sm:$0xff]
        %v6388 = vld [vmem:[%s13 + $0x380] sm:$0xff]
        %v6389 = vld [vmem:[%s13 + $0x388] sm:$0xff]
        %v6390 = vld [vmem:[%s13 + $0x390] sm:$0xff]
        %v6391 = vld [vmem:[%s13 + $0x398] sm:$0xff]
        %v6392 = vld [vmem:[%s13 + $0x3a0] sm:$0xff]
        %v6393 = vld [vmem:[%s13 + $0x3a8] sm:$0xff]
        %v6394 = vld [vmem:[%s13 + $0x3b0] sm:$0xff]
        %v6395 = vld [vmem:[%s13 + $0x3b8] sm:$0xff]
        %v6396 = vld [vmem:[%s13 + $0x3c0] sm:$0xff]
        %v6397 = vld [vmem:[%s13 + $0x3c8] sm:$0xff]
        %v6398 = vld [vmem:[%s13 + $0x3d0] sm:$0xff]
        %v6399 = vld [vmem:[%s13 + $0x3d8] sm:$0xff]
        %v6400 = vld [vmem:[%s13 + $0x3e0] sm:$0xff]
        %v6401 = vld [vmem:[%s13 + $0x3e8] sm:$0xff]
        %v6402 = vld [vmem:[%s13 + $0x3f0] sm:$0xff]
        %v6403 = vld [vmem:[%s13 + $0x3f8] sm:$0xff]
        %v6404 = vld [vmem:[%s13 + $0x400] sm:$0xff]
        %v6405 = vld [vmem:[%s13 + $0x408] sm:$0xff]
        %v6406 = vld [vmem:[%s13 + $0x410] sm:$0xff]
        %v6407 = vld [vmem:[%s13 + $0x418] sm:$0xff]
        %v6408 = vld [vmem:[%s13 + $0x420] sm:$0xff]
        %v6409 = vld [vmem:[%s13 + $0x428] sm:$0xff]
        %v6410 = vld [vmem:[%s13 + $0x430] sm:$0xff]
        %v6411 = vld [vmem:[%s13 + $0x438] sm:$0xff]
        %v6412 = vld [vmem:[%s13 + $0x440] sm:$0xff]
        %v6413 = vld [vmem:[%s13 + $0x448] sm:$0xff]
        %v6414 = vld [vmem:[%s13 + $0x450] sm:$0xff]
        %v6415 = vld [vmem:[%s13 + $0x458] sm:$0xff]
        %v6416 = vld [vmem:[%s13 + $0x460] sm:$0xff]
        %v6417 = vld [vmem:[%s13 + $0x468] sm:$0xff]
        %v6418 = vld [vmem:[%s13 + $0x470] sm:$0xff]
        %v6419 = vld [vmem:[%s13 + $0x478] sm:$0xff]
        %v6420 = vld [vmem:[%s13 + $0x480] sm:$0xff]
        %v6421 = vld [vmem:[%s13 + $0x488] sm:$0xff]
        %v6422 = vld [vmem:[%s13 + $0x490] sm:$0xff]
        %v6423 = vld [vmem:[%s13 + $0x498] sm:$0xff]
        %v6424 = vld [vmem:[%s13 + $0x4a0] sm:$0xff]
        %v6425 = vld [vmem:[%s13 + $0x4a8] sm:$0xff]
        %v6426 = vld [vmem:[%s13 + $0x4b0] sm:$0xff]
        %v6427 = vld [vmem:[%s13 + $0x4b8] sm:$0xff]
        %v6428 = vld [vmem:[%s13 + $0x4c0] sm:$0xff]
        %v6429 = vld [vmem:[%s13 + $0x4c8] sm:$0xff]
        %v6430 = vld [vmem:[%s13 + $0x4d0] sm:$0xff]
        %v6431 = vld [vmem:[%s13 + $0x4d8] sm:$0xff]
        %v6432 = vld [vmem:[%s13 + $0x4e0] sm:$0xff]
        %v6433 = vld [vmem:[%s13 + $0x4e8] sm:$0xff]
        %v6434 = vld [vmem:[%s13 + $0x4f0] sm:$0xff]
        %v6435 = vld [vmem:[%s13 + $0x4f8] sm:$0xff]
        %v6436 = vld [vmem:[%s13 + $0x500] sm:$0xff]
        %v6437 = vld [vmem:[%s13 + $0x508] sm:$0xff]
        %v6438 = vld [vmem:[%s13 + $0x510] sm:$0xff]
        %v6439 = vld [vmem:[%s13 + $0x518] sm:$0xff]
        %v6440 = vld [vmem:[%s13 + $0x520] sm:$0xff]
        %v6441 = vld [vmem:[%s13 + $0x528] sm:$0xff]
        %v6442 = vld [vmem:[%s13 + $0x530] sm:$0xff]
        %v6443 = vld [vmem:[%s13 + $0x538] sm:$0xff]
        %v6444 = vld [vmem:[%s13 + $0x540] sm:$0xff]
        %v6445 = vld [vmem:[%s13 + $0x548] sm:$0xff]
        %v6446 = vld [vmem:[%s13 + $0x550] sm:$0xff]
        %v6447 = vld [vmem:[%s13 + $0x558] sm:$0xff]
        %v6448 = vld [vmem:[%s13 + $0x560] sm:$0xff]
        %v6449 = vld [vmem:[%s13 + $0x568] sm:$0xff]
        %v6450 = vld [vmem:[%s13 + $0x570] sm:$0xff]
        %v6451 = vld [vmem:[%s13 + $0x578] sm:$0xff]
        %v6452 = vld [vmem:[%s13 + $0x580] sm:$0xff]
        %v6453 = vld [vmem:[%s13 + $0x588] sm:$0xff]
        %v6454 = vld [vmem:[%s13 + $0x590] sm:$0xff]
        %v6455 = vld [vmem:[%s13 + $0x598] sm:$0xff]
        %v6456 = vld [vmem:[%s13 + $0x5a0] sm:$0xff]
        %v6457 = vld [vmem:[%s13 + $0x5a8] sm:$0xff]
        %v6458 = vld [vmem:[%s13 + $0x5b0] sm:$0xff]
        %v6459 = vld [vmem:[%s13 + $0x5b8] sm:$0xff]
        %v6460 = vld [vmem:[%s13 + $0x5c0] sm:$0xff]
        %v6461 = vld [vmem:[%s13 + $0x5c8] sm:$0xff]
        %v6462 = vld [vmem:[%s13 + $0x5d0] sm:$0xff]
        %v6463 = vld [vmem:[%s13 + $0x5d8] sm:$0xff]
        %v6464 = vld [vmem:[%s13 + $0x5e0] sm:$0xff]
        %v6465 = vld [vmem:[%s13 + $0x5e8] sm:$0xff]
        %v6466 = vld [vmem:[%s13 + $0x5f0] sm:$0xff]
        %v6467 = vld [vmem:[%s13 + $0x5f8] sm:$0xff]
        %v6468 = vld [vmem:[%s13 + $0x600] sm:$0xff]
        %v6469 = vld [vmem:[%s13 + $0x608] sm:$0xff]
        %v6470 = vld [vmem:[%s13 + $0x610] sm:$0xff]
        %v6471 = vld [vmem:[%s13 + $0x618] sm:$0xff]
        %v6472 = vld [vmem:[%s13 + $0x620] sm:$0xff]
        %v6473 = vld [vmem:[%s13 + $0x628] sm:$0xff]
        %v6474 = vld [vmem:[%s13 + $0x630] sm:$0xff]
        %v6475 = vld [vmem:[%s13 + $0x638] sm:$0xff]
        %v6476 = vld [vmem:[%s13 + $0x640] sm:$0xff]
        %v6477 = vld [vmem:[%s13 + $0x648] sm:$0xff]
        %v6478 = vld [vmem:[%s13 + $0x650] sm:$0xff]
        %v6479 = vld [vmem:[%s13 + $0x658] sm:$0xff]
        %v6480 = vld [vmem:[%s13 + $0x660] sm:$0xff]
        %v6481 = vld [vmem:[%s13 + $0x668] sm:$0xff]
        %v6482 = vld [vmem:[%s13 + $0x670] sm:$0xff]
        %v6483 = vld [vmem:[%s13 + $0x678] sm:$0xff]
        %v6484 = vld [vmem:[%s13 + $0x680] sm:$0xff]
        %v6485 = vld [vmem:[%s13 + $0x688] sm:$0xff]
        %v6486 = vld [vmem:[%s13 + $0x690] sm:$0xff]
        %v6487 = vld [vmem:[%s13 + $0x698] sm:$0xff]
        %v6488 = vld [vmem:[%s13 + $0x6a0] sm:$0xff]
        %v6489 = vld [vmem:[%s13 + $0x6a8] sm:$0xff]
        %v6490 = vld [vmem:[%s13 + $0x6b0] sm:$0xff]
        %v6491 = vld [vmem:[%s13 + $0x6b8] sm:$0xff]
        %v6492 = vld [vmem:[%s13 + $0x6c0] sm:$0xff]
        %v6493 = vld [vmem:[%s13 + $0x6c8] sm:$0xff]
        %v6494 = vld [vmem:[%s13 + $0x6d0] sm:$0xff]
        %v6495 = vld [vmem:[%s13 + $0x6d8] sm:$0xff]
        %v6496 = vld [vmem:[%s13 + $0x6e0] sm:$0xff]
        %v6497 = vld [vmem:[%s13 + $0x6e8] sm:$0xff]
        %v6498 = vld [vmem:[%s13 + $0x6f0] sm:$0xff]
        %v6499 = vld [vmem:[%s13 + $0x6f8] sm:$0xff]
        %v6500 = vld [vmem:[%s13 + $0x700] sm:$0xff]
        %v6501 = vld [vmem:[%s13 + $0x708] sm:$0xff]
        %v6502 = vld [vmem:[%s13 + $0x710] sm:$0xff]
        %v6503 = vld [vmem:[%s13 + $0x718] sm:$0xff]
        %v6504 = vld [vmem:[%s13 + $0x720] sm:$0xff]
        %v6505 = vld [vmem:[%s13 + $0x728] sm:$0xff]
        %v6506 = vld [vmem:[%s13 + $0x730] sm:$0xff]
        %v6507 = vld [vmem:[%s13 + $0x738] sm:$0xff]
        %v6508 = vld [vmem:[%s13 + $0x740] sm:$0xff]
        %v6509 = vld [vmem:[%s13 + $0x748] sm:$0xff]
        %v6510 = vld [vmem:[%s13 + $0x750] sm:$0xff]
        %v6511 = vld [vmem:[%s13 + $0x758] sm:$0xff]
        %v6512 = vld [vmem:[%s13 + $0x760] sm:$0xff]
        %v6513 = vld [vmem:[%s13 + $0x768] sm:$0xff]
        %v6514 = vld [vmem:[%s13 + $0x770] sm:$0xff]
        %v6515 = vld [vmem:[%s13 + $0x778] sm:$0xff]
        %v6516 = vld [vmem:[%s13 + $0x780] sm:$0xff]
        %v6517 = vld [vmem:[%s13 + $0x788] sm:$0xff]
        %v6518 = vld [vmem:[%s13 + $0x790] sm:$0xff]
        %v6519 = vld [vmem:[%s13 + $0x798] sm:$0xff]
        %v6520 = vld [vmem:[%s13 + $0x7a0] sm:$0xff]
        %v6521 = vld [vmem:[%s13 + $0x7a8] sm:$0xff]
        %v6522 = vld [vmem:[%s13 + $0x7b0] sm:$0xff]
        %v6523 = vld [vmem:[%s13 + $0x7b8] sm:$0xff]
        %v6524 = vld [vmem:[%s13 + $0x7c0] sm:$0xff]
        %v6525 = vld [vmem:[%s13 + $0x7c8] sm:$0xff]
        %v6526 = vld [vmem:[%s13 + $0x7d0] sm:$0xff]
        %v6527 = vld [vmem:[%s13 + $0x7d8] sm:$0xff]
        %v6528 = vld [vmem:[%s13 + $0x7e0] sm:$0xff]
        %v6529 = vld [vmem:[%s13 + $0x7e8] sm:$0xff]
        %v6530 = vld [vmem:[%s13 + $0x7f0] sm:$0xff]
        %v6531 = vld [vmem:[%s13 + $0x7f8] sm:$0xff]
        %v6532 = vld [vmem:[%s13 + $0x800] sm:$0xff]
        %v6533 = vld [vmem:[%s13 + $0x808] sm:$0xff]
        %v6534 = vld [vmem:[%s13 + $0x810] sm:$0xff]
        %v6535 = vld [vmem:[%s13 + $0x818] sm:$0xff]
        %v6536 = vld [vmem:[%s13 + $0x820] sm:$0xff]
        %v6537 = vld [vmem:[%s13 + $0x828] sm:$0xff]
        %v6538 = vld [vmem:[%s13 + $0x830] sm:$0xff]
        %v6539 = vld [vmem:[%s13 + $0x838] sm:$0xff]
        %v6540 = vld [vmem:[%s13 + $0x840] sm:$0xff]
        %v6541 = vld [vmem:[%s13 + $0x848] sm:$0xff]
        %v6542 = vld [vmem:[%s13 + $0x850] sm:$0xff]
        %v6543 = vld [vmem:[%s13 + $0x858] sm:$0xff]
        %v6544 = vld [vmem:[%s13 + $0x860] sm:$0xff]
        %v6545 = vld [vmem:[%s13 + $0x868] sm:$0xff]
        %v6546 = vld [vmem:[%s13 + $0x870] sm:$0xff]
        %v6547 = vld [vmem:[%s13 + $0x878] sm:$0xff]
        %v6548 = vld [vmem:[%s13 + $0x880] sm:$0xff]
        %v6549 = vld [vmem:[%s13 + $0x888] sm:$0xff]
        %v6550 = vld [vmem:[%s13 + $0x890] sm:$0xff]
        %v6551 = vld [vmem:[%s13 + $0x898] sm:$0xff]
        %v6552 = vld [vmem:[%s13 + $0x8a0] sm:$0xff]
        %v6553 = vld [vmem:[%s13 + $0x8a8] sm:$0xff]
        %v6554 = vld [vmem:[%s13 + $0x8b0] sm:$0xff]
        %v6555 = vld [vmem:[%s13 + $0x8b8] sm:$0xff]
        %v6556 = vld [vmem:[%s13 + $0x8c0] sm:$0xff]
        %v6557 = vld [vmem:[%s13 + $0x8c8] sm:$0xff]
        %v6558 = vld [vmem:[%s13 + $0x8d0] sm:$0xff]
        %v6559 = vld [vmem:[%s13 + $0x8d8] sm:$0xff]
        %v6560 = vld [vmem:[%s13 + $0x8e0] sm:$0xff]
        %v6561 = vld [vmem:[%s13 + $0x8e8] sm:$0xff]
        %v6562 = vld [vmem:[%s13 + $0x8f0] sm:$0xff]
        %v6563 = vld [vmem:[%s13 + $0x8f8] sm:$0xff]
        %v6564 = vld [vmem:[%s13 + $0x900] sm:$0xff]
        %v6565 = vld [vmem:[%s13 + $0x908] sm:$0xff]
        %v6566 = vld [vmem:[%s13 + $0x910] sm:$0xff]
        %v6567 = vld [vmem:[%s13 + $0x918] sm:$0xff]
        %v6568 = vld [vmem:[%s13 + $0x920] sm:$0xff]
        %v6569 = vld [vmem:[%s13 + $0x928] sm:$0xff]
        %v6570 = vld [vmem:[%s13 + $0x930] sm:$0xff]
        %v6571 = vld [vmem:[%s13 + $0x938] sm:$0xff]
        %v6572 = vld [vmem:[%s13 + $0x940] sm:$0xff]
        %v6573 = vld [vmem:[%s13 + $0x948] sm:$0xff]
        %v6574 = vld [vmem:[%s13 + $0x950] sm:$0xff]
        %v6575 = vld [vmem:[%s13 + $0x958] sm:$0xff]
        %v6576 = vld [vmem:[%s13 + $0x960] sm:$0xff]
        %v6577 = vld [vmem:[%s13 + $0x968] sm:$0xff]
        %v6578 = vld [vmem:[%s13 + $0x970] sm:$0xff]
        %v6579 = vld [vmem:[%s13 + $0x978] sm:$0xff]
        %v6580 = vld [vmem:[%s13 + $0x980] sm:$0xff]
        %v6581 = vld [vmem:[%s13 + $0x988] sm:$0xff]
        %v6582 = vld [vmem:[%s13 + $0x990] sm:$0xff]
        %v6583 = vld [vmem:[%s13 + $0x998] sm:$0xff]
        %v6584 = vld [vmem:[%s13 + $0x9a0] sm:$0xff]
        %v6585 = vld [vmem:[%s13 + $0x9a8] sm:$0xff]
        %v6586 = vld [vmem:[%s13 + $0x9b0] sm:$0xff]
        %v6587 = vld [vmem:[%s13 + $0x9b8] sm:$0xff]
        %v6588 = vld [vmem:[%s13 + $0x9c0] sm:$0xff]
        %v6589 = vld [vmem:[%s13 + $0x9c8] sm:$0xff]
        %v6590 = vld [vmem:[%s13 + $0x9d0] sm:$0xff]
        %v6591 = vld [vmem:[%s13 + $0x9d8] sm:$0xff]
        %v6592 = vld [vmem:[%s13 + $0x9e0] sm:$0xff]
        %v6593 = vld [vmem:[%s13 + $0x9e8] sm:$0xff]
        %v6594 = vld [vmem:[%s13 + $0x9f0] sm:$0xff]
        %v6595 = vld [vmem:[%s13 + $0x9f8] sm:$0xff]
        %v6596 = vld [vmem:[%s13 + $0xa00] sm:$0xff]
        %v6597 = vld [vmem:[%s13 + $0xa08] sm:$0xff]
        %v6598 = vld [vmem:[%s13 + $0xa10] sm:$0xff]
        %v6599 = vld [vmem:[%s13 + $0xa18] sm:$0xff]
        %v6600 = vld [vmem:[%s13 + $0xa20] sm:$0xff]
        %v6601 = vld [vmem:[%s13 + $0xa28] sm:$0xff]
        %v6602 = vld [vmem:[%s13 + $0xa30] sm:$0xff]
        %v6603 = vld [vmem:[%s13 + $0xa38] sm:$0xff]
        %v6604 = vld [vmem:[%s13 + $0xa40] sm:$0xff]
        %v6605 = vld [vmem:[%s13 + $0xa48] sm:$0xff]
        %v6606 = vld [vmem:[%s13 + $0xa50] sm:$0xff]
        %v6607 = vld [vmem:[%s13 + $0xa58] sm:$0xff]
        %v6608 = vld [vmem:[%s13 + $0xa60] sm:$0xff]
        %v6609 = vld [vmem:[%s13 + $0xa68] sm:$0xff]
        %v6610 = vld [vmem:[%s13 + $0xa70] sm:$0xff]
        %v6611 = vld [vmem:[%s13 + $0xa78] sm:$0xff]
        %v6612 = vld [vmem:[%s13 + $0xa80] sm:$0xff]
        %v6613 = vld [vmem:[%s13 + $0xa88] sm:$0xff]
        %v6614 = vld [vmem:[%s13 + $0xa90] sm:$0xff]
        %v6615 = vld [vmem:[%s13 + $0xa98] sm:$0xff]
        %v6616 = vld [vmem:[%s13 + $0xaa0] sm:$0xff]
        %v6617 = vld [vmem:[%s13 + $0xaa8] sm:$0xff]
        %v6618 = vld [vmem:[%s13 + $0xab0] sm:$0xff]
        %v6619 = vld [vmem:[%s13 + $0xab8] sm:$0xff]
        %v6620 = vld [vmem:[%s13 + $0xac0] sm:$0xff]
        %v6621 = vld [vmem:[%s13 + $0xac8] sm:$0xff]
        %v6622 = vld [vmem:[%s13 + $0xad0] sm:$0xff]
        %v6623 = vld [vmem:[%s13 + $0xad8] sm:$0xff]
        %v6624 = vld [vmem:[%s13 + $0xae0] sm:$0xff]
        %v6625 = vld [vmem:[%s13 + $0xae8] sm:$0xff]
        %v6626 = vld [vmem:[%s13 + $0xaf0] sm:$0xff]
        %v6627 = vld [vmem:[%s13 + $0xaf8] sm:$0xff]
        %v6628 = vld [vmem:[%s13 + $0xb00] sm:$0xff]
        %v6629 = vld [vmem:[%s13 + $0xb08] sm:$0xff]
        %v6630 = vld [vmem:[%s13 + $0xb10] sm:$0xff]
        %v6631 = vld [vmem:[%s13 + $0xb18] sm:$0xff]
        %v6632 = vld [vmem:[%s13 + $0xb20] sm:$0xff]
        %v6633 = vld [vmem:[%s13 + $0xb28] sm:$0xff]
        %v6634 = vld [vmem:[%s13 + $0xb30] sm:$0xff]
        %v6635 = vld [vmem:[%s13 + $0xb38] sm:$0xff]
        %v6636 = vld [vmem:[%s13 + $0xb40] sm:$0xff]
        %v6637 = vld [vmem:[%s13 + $0xb48] sm:$0xff]
        %v6638 = vld [vmem:[%s13 + $0xb50] sm:$0xff]
        %v6639 = vld [vmem:[%s13 + $0xb58] sm:$0xff]
        %v6640 = vld [vmem:[%s13 + $0xb60] sm:$0xff]
        %v6641 = vld [vmem:[%s13 + $0xb68] sm:$0xff]
        %v6642 = vld [vmem:[%s13 + $0xb70] sm:$0xff]
        %v6643 = vld [vmem:[%s13 + $0xb78] sm:$0xff]
        %v6644 = vld [vmem:[%s13 + $0xb80] sm:$0xff]
        %v6645 = vld [vmem:[%s13 + $0xb88] sm:$0xff]
        %v6646 = vld [vmem:[%s13 + $0xb90] sm:$0xff]
        %v6647 = vld [vmem:[%s13 + $0xb98] sm:$0xff]
        %v6648 = vld [vmem:[%s13 + $0xba0] sm:$0xff]
        %v6649 = vld [vmem:[%s13 + $0xba8] sm:$0xff]
        %v6650 = vld [vmem:[%s13 + $0xbb0] sm:$0xff]
        %v6651 = vld [vmem:[%s13 + $0xbb8] sm:$0xff]
        %v6652 = vld [vmem:[%s13 + $0xbc0] sm:$0xff]
        %v6653 = vld [vmem:[%s13 + $0xbc8] sm:$0xff]
        %v6654 = vld [vmem:[%s13 + $0xbd0] sm:$0xff]
        %v6655 = vld [vmem:[%s13 + $0xbd8] sm:$0xff]
        %v6656 = vld [vmem:[%s13 + $0xbe0] sm:$0xff]
        %v6657 = vld [vmem:[%s13 + $0xbe8] sm:$0xff]
        %v6658 = vld [vmem:[%s13 + $0xbf0] sm:$0xff]
        %v6659 = vld [vmem:[%s13 + $0xbf8] sm:$0xff]
        %v6660 = vld [vmem:[%s14] sm:$0x1]
        %6661 = vmatprep.subr.mxu0 0.0
        %6662 = vmatpush1.msra.mxu0 %v6276
        %6663 = vmatprep.subr.mxu0 0.0
        %6664 = vmatpush1.msra.mxu0 %v6277
        %6665 = vmatprep.subr.mxu0 0.0
        %6666 = vmatpush1.msra.mxu0 %v6278
        %6667 = vmatprep.subr.mxu0 0.0
        %6668 = vmatpush1.msra.mxu0 %v6279
        %6669 = vmatprep.subr.mxu0 0.0
        %6670 = vmatpush1.msra.mxu0 %v6280
        %6671 = vmatprep.subr.mxu0 0.0
        %6672 = vmatpush1.msra.mxu0 %v6281
        %6673 = vmatprep.subr.mxu0 0.0
        %6674 = vmatpush1.msra.mxu0 %v6282
        %6675 = vmatprep.subr.mxu0 0.0
        %6676 = vmatpush1.msra.mxu0 %v6283
        %6677 = vmatprep.subr.mxu0 0.0
        %6678 = vmatpush1.msra.mxu0 %v6284
        %6679 = vmatprep.subr.mxu0 0.0
        %6680 = vmatpush1.msra.mxu0 %v6285
        %6681 = vmatprep.subr.mxu0 0.0
        %6682 = vmatpush1.msra.mxu0 %v6286
        %6683 = vmatprep.subr.mxu0 0.0
        %6684 = vmatpush1.msra.mxu0 %v6287
        %6685 = vmatprep.subr.mxu0 0.0
        %6686 = vmatpush1.msra.mxu0 %v6288
        %6687 = vmatprep.subr.mxu0 0.0
        %6688 = vmatpush1.msra.mxu0 %v6289
        %6689 = vmatprep.subr.mxu0 0.0
        %6690 = vmatpush1.msra.mxu0 %v6290
        %6691 = vmatprep.subr.mxu0 0.0
        %6692 = vmatpush1.msra.mxu0 %v6291
        %6693 = vmatprep.subr.mxu0 0.0
        %6694 = vmatpush1.msra.mxu0 %v6292
        %6695 = vmatprep.subr.mxu0 0.0
        %6696 = vmatpush1.msra.mxu0 %v6293
        %6697 = vmatprep.subr.mxu0 0.0
        %6698 = vmatpush1.msra.mxu0 %v6294
        %6699 = vmatprep.subr.mxu0 0.0
        %6700 = vmatpush1.msra.mxu0 %v6295
        %6701 = vmatprep.subr.mxu0 0.0
        %6702 = vmatpush1.msra.mxu0 %v6296
        %6703 = vmatprep.subr.mxu0 0.0
        %6704 = vmatpush1.msra.mxu0 %v6297
        %6705 = vmatprep.subr.mxu0 0.0
        %6706 = vmatpush1.msra.mxu0 %v6298
        %6707 = vmatprep.subr.mxu0 0.0
        %6708 = vmatpush1.msra.mxu0 %v6299
        %6709 = vmatprep.subr.mxu0 0.0
        %6710 = vmatpush1.msra.mxu0 %v6300
        %6711 = vmatprep.subr.mxu0 0.0
        %6712 = vmatpush1.msra.mxu0 %v6301
        %6713 = vmatprep.subr.mxu0 0.0
        %6714 = vmatpush1.msra.mxu0 %v6302
        %6715 = vmatprep.subr.mxu0 0.0
        %6716 = vmatpush1.msra.mxu0 %v6303
        %6717 = vmatprep.subr.mxu0 0.0
        %6718 = vmatpush1.msra.mxu0 %v6304
        %6719 = vmatprep.subr.mxu0 0.0
        %6720 = vmatpush1.msra.mxu0 %v6305
        %6721 = vmatprep.subr.mxu0 0.0
        %6722 = vmatpush1.msra.mxu0 %v6306
        %6723 = vmatprep.subr.mxu0 0.0
        %6724 = vmatpush1.msra.mxu0 %v6307
        %6725 = vmatprep.mubr.f32.mxu0 %v6152
        %6726 = vmatmul.mubr.f32.gmra.mrb[0].mxu0 %v6148
        %v6727 = vpop.f32.mrb[0].mxu0
        %v6728 = vadd.f32 %v6660, %v6727
        %v6729 = vpop.f32.mrb[0].mxu0
        %6730 = vdwg.mxu0
        %6731 = vmatprep.subr.mxu0 0.0
        %6732 = vmatpush1.msra.mxu0 %v6308
        %6733 = vmatprep.subr.mxu0 0.0
        %6734 = vmatpush1.msra.mxu0 %v6309
        %6735 = vmatprep.subr.mxu0 0.0
        %6736 = vmatpush1.msra.mxu0 %v6310
        %6737 = vmatprep.subr.mxu0 0.0
        %6738 = vmatpush1.msra.mxu0 %v6311
        %6739 = vmatprep.subr.mxu0 0.0
        %6740 = vmatpush1.msra.mxu0 %v6312
        %6741 = vmatprep.subr.mxu0 0.0
        %6742 = vmatpush1.msra.mxu0 %v6313
        %6743 = vmatprep.subr.mxu0 0.0
        %6744 = vmatpush1.msra.mxu0 %v6314
        %6745 = vmatprep.subr.mxu0 0.0
        %6746 = vmatpush1.msra.mxu0 %v6315
        %6747 = vmatprep.subr.mxu0 0.0
        %6748 = vmatpush1.msra.mxu0 %v6316
        %6749 = vmatprep.subr.mxu0 0.0
        %6750 = vmatpush1.msra.mxu0 %v6317
        %6751 = vmatprep.subr.mxu0 0.0
        %6752 = vmatpush1.msra.mxu0 %v6318
        %6753 = vmatprep.subr.mxu0 0.0
        %6754 = vmatpush1.msra.mxu0 %v6319
        %6755 = vmatprep.subr.mxu0 0.0
        %6756 = vmatpush1.msra.mxu0 %v6320
        %6757 = vmatprep.subr.mxu0 0.0
        %6758 = vmatpush1.msra.mxu0 %v6321
        %6759 = vmatprep.subr.mxu0 0.0
        %6760 = vmatpush1.msra.mxu0 %v6322
        %6761 = vmatprep.subr.mxu0 0.0
        %6762 = vmatpush1.msra.mxu0 %v6323
        %6763 = vmatprep.subr.mxu0 0.0
        %6764 = vmatpush1.msra.mxu0 %v6324
        %6765 = vmatprep.subr.mxu0 0.0
        %6766 = vmatpush1.msra.mxu0 %v6325
        %6767 = vmatprep.subr.mxu0 0.0
        %6768 = vmatpush1.msra.mxu0 %v6326
        %6769 = vmatprep.subr.mxu0 0.0
        %6770 = vmatpush1.msra.mxu0 %v6327
        %6771 = vmatprep.subr.mxu0 0.0
        %6772 = vmatpush1.msra.mxu0 %v6328
        %6773 = vmatprep.subr.mxu0 0.0
        %6774 = vmatpush1.msra.mxu0 %v6329
        %6775 = vmatprep.subr.mxu0 0.0
        %6776 = vmatpush1.msra.mxu0 %v6330
        %6777 = vmatprep.subr.mxu0 0.0
        %6778 = vmatpush1.msra.mxu0 %v6331
        %6779 = vmatprep.subr.mxu0 0.0
        %6780 = vmatpush1.msra.mxu0 %v6332
        %6781 = vmatprep.subr.mxu0 0.0
        %6782 = vmatpush1.msra.mxu0 %v6333
        %6783 = vmatprep.subr.mxu0 0.0
        %6784 = vmatpush1.msra.mxu0 %v6334
        %6785 = vmatprep.subr.mxu0 0.0
        %6786 = vmatpush1.msra.mxu0 %v6335
        %6787 = vmatprep.subr.mxu0 0.0
        %6788 = vmatpush1.msra.mxu0 %v6336
        %6789 = vmatprep.subr.mxu0 0.0
        %6790 = vmatpush1.msra.mxu0 %v6337
        %6791 = vmatprep.subr.mxu0 0.0
        %6792 = vmatpush1.msra.mxu0 %v6338
        %6793 = vmatprep.subr.mxu0 0.0
        %6794 = vmatpush1.msra.mxu0 %v6339
        %6795 = vmatprep.mubr.f32.mxu0 %v6163
        %6796 = vmatmul.mubr.f32.gmra.mrb[0].mxu0 %v6159
        %v6797 = vpop.f32.mrb[0].mxu0
        %v6798 = vadd.f32 %v6728, %v6797
        %v6799 = vpop.f32.mrb[0].mxu0
        %6800 = vdwg.mxu0
        %6801 = vmatprep.subr.mxu0 0.0
        %6802 = vmatpush1.msra.mxu0 %v6340
        %6803 = vmatprep.subr.mxu0 0.0
        %6804 = vmatpush1.msra.mxu0 %v6341
        %6805 = vmatprep.subr.mxu0 0.0
        %6806 = vmatpush1.msra.mxu0 %v6342
        %6807 = vmatprep.subr.mxu0 0.0
        %6808 = vmatpush1.msra.mxu0 %v6343
        %6809 = vmatprep.subr.mxu0 0.0
        %6810 = vmatpush1.msra.mxu0 %v6344
        %6811 = vmatprep.subr.mxu0 0.0
        %6812 = vmatpush1.msra.mxu0 %v6345
        %6813 = vmatprep.subr.mxu0 0.0
        %6814 = vmatpush1.msra.mxu0 %v6346
        %6815 = vmatprep.subr.mxu0 0.0
        %6816 = vmatpush1.msra.mxu0 %v6347
        %6817 = vmatprep.subr.mxu0 0.0
        %6818 = vmatpush1.msra.mxu0 %v6348
        %6819 = vmatprep.subr.mxu0 0.0
        %6820 = vmatpush1.msra.mxu0 %v6349
        %6821 = vmatprep.subr.mxu0 0.0
        %6822 = vmatpush1.msra.mxu0 %v6350
        %6823 = vmatprep.subr.mxu0 0.0
        %6824 = vmatpush1.msra.mxu0 %v6351
        %6825 = vmatprep.subr.mxu0 0.0
        %6826 = vmatpush1.msra.mxu0 %v6352
        %6827 = vmatprep.subr.mxu0 0.0
        %6828 = vmatpush1.msra.mxu0 %v6353
        %6829 = vmatprep.subr.mxu0 0.0
        %6830 = vmatpush1.msra.mxu0 %v6354
        %6831 = vmatprep.subr.mxu0 0.0
        %6832 = vmatpush1.msra.mxu0 %v6355
        %6833 = vmatprep.subr.mxu0 0.0
        %6834 = vmatpush1.msra.mxu0 %v6356
        %6835 = vmatprep.subr.mxu0 0.0
        %6836 = vmatpush1.msra.mxu0 %v6357
        %6837 = vmatprep.subr.mxu0 0.0
        %6838 = vmatpush1.msra.mxu0 %v6358
        %6839 = vmatprep.subr.mxu0 0.0
        %6840 = vmatpush1.msra.mxu0 %v6359
        %6841 = vmatprep.subr.mxu0 0.0
        %6842 = vmatpush1.msra.mxu0 %v6360
        %6843 = vmatprep.subr.mxu0 0.0
        %6844 = vmatpush1.msra.mxu0 %v6361
        %6845 = vmatprep.subr.mxu0 0.0
        %6846 = vmatpush1.msra.mxu0 %v6362
        %6847 = vmatprep.subr.mxu0 0.0
        %6848 = vmatpush1.msra.mxu0 %v6363
        %6849 = vmatprep.subr.mxu0 0.0
        %6850 = vmatpush1.msra.mxu0 %v6364
        %6851 = vmatprep.subr.mxu0 0.0
        %6852 = vmatpush1.msra.mxu0 %v6365
        %6853 = vmatprep.subr.mxu0 0.0
        %6854 = vmatpush1.msra.mxu0 %v6366
        %6855 = vmatprep.subr.mxu0 0.0
        %6856 = vmatpush1.msra.mxu0 %v6367
        %6857 = vmatprep.subr.mxu0 0.0
        %6858 = vmatpush1.msra.mxu0 %v6368
        %6859 = vmatprep.subr.mxu0 0.0
        %6860 = vmatpush1.msra.mxu0 %v6369
        %6861 = vmatprep.subr.mxu0 0.0
        %6862 = vmatpush1.msra.mxu0 %v6370
        %6863 = vmatprep.subr.mxu0 0.0
        %6864 = vmatpush1.msra.mxu0 %v6371
        %6865 = vmatprep.mubr.f32.mxu0 %v6174
        %6866 = vmatmul.mubr.f32.gmra.mrb[0].mxu0 %v6170
        %v6867 = vpop.f32.mrb[0].mxu0
        %v6868 = vadd.f32 %v6798, %v6867
        %v6869 = vpop.f32.mrb[0].mxu0
        %6870 = vdwg.mxu0
        %6871 = vmatprep.subr.mxu0 0.0
        %6872 = vmatpush1.msra.mxu0 %v6372
        %6873 = vmatprep.subr.mxu0 0.0
        %6874 = vmatpush1.msra.mxu0 %v6373
        %6875 = vmatprep.subr.mxu0 0.0
        %6876 = vmatpush1.msra.mxu0 %v6374
        %6877 = vmatprep.subr.mxu0 0.0
        %6878 = vmatpush1.msra.mxu0 %v6375
        %6879 = vmatprep.subr.mxu0 0.0
        %6880 = vmatpush1.msra.mxu0 %v6376
        %6881 = vmatprep.subr.mxu0 0.0
        %6882 = vmatpush1.msra.mxu0 %v6377
        %6883 = vmatprep.subr.mxu0 0.0
        %6884 = vmatpush1.msra.mxu0 %v6378
        %6885 = vmatprep.subr.mxu0 0.0
        %6886 = vmatpush1.msra.mxu0 %v6379
        %6887 = vmatprep.subr.mxu0 0.0
        %6888 = vmatpush1.msra.mxu0 %v6380
        %6889 = vmatprep.subr.mxu0 0.0
        %6890 = vmatpush1.msra.mxu0 %v6381
        %6891 = vmatprep.subr.mxu0 0.0
        %6892 = vmatpush1.msra.mxu0 %v6382
        %6893 = vmatprep.subr.mxu0 0.0
        %6894 = vmatpush1.msra.mxu0 %v6383
        %6895 = vmatprep.subr.mxu0 0.0
        %6896 = vmatpush1.msra.mxu0 %v6384
        %6897 = vmatprep.subr.mxu0 0.0
        %6898 = vmatpush1.msra.mxu0 %v6385
        %6899 = vmatprep.subr.mxu0 0.0
        %6900 = vmatpush1.msra.mxu0 %v6386
        %6901 = vmatprep.subr.mxu0 0.0
        %6902 = vmatpush1.msra.mxu0 %v6387
        %6903 = vmatprep.subr.mxu0 0.0
        %6904 = vmatpush1.msra.mxu0 %v6388
        %6905 = vmatprep.subr.mxu0 0.0
        %6906 = vmatpush1.msra.mxu0 %v6389
        %6907 = vmatprep.subr.mxu0 0.0
        %6908 = vmatpush1.msra.mxu0 %v6390
        %6909 = vmatprep.subr.mxu0 0.0
        %6910 = vmatpush1.msra.mxu0 %v6391
        %6911 = vmatprep.subr.mxu0 0.0
        %6912 = vmatpush1.msra.mxu0 %v6392
        %6913 = vmatprep.subr.mxu0 0.0
        %6914 = vmatpush1.msra.mxu0 %v6393
        %6915 = vmatprep.subr.mxu0 0.0
        %6916 = vmatpush1.msra.mxu0 %v6394
        %6917 = vmatprep.subr.mxu0 0.0
        %6918 = vmatpush1.msra.mxu0 %v6395
        %6919 = vmatprep.subr.mxu0 0.0
        %6920 = vmatpush1.msra.mxu0 %v6396
        %6921 = vmatprep.subr.mxu0 0.0
        %6922 = vmatpush1.msra.mxu0 %v6397
        %6923 = vmatprep.subr.mxu0 0.0
        %6924 = vmatpush1.msra.mxu0 %v6398
        %6925 = vmatprep.subr.mxu0 0.0
        %6926 = vmatpush1.msra.mxu0 %v6399
        %6927 = vmatprep.subr.mxu0 0.0
        %6928 = vmatpush1.msra.mxu0 %v6400
        %6929 = vmatprep.subr.mxu0 0.0
        %6930 = vmatpush1.msra.mxu0 %v6401
        %6931 = vmatprep.subr.mxu0 0.0
        %6932 = vmatpush1.msra.mxu0 %v6402
        %6933 = vmatprep.subr.mxu0 0.0
        %6934 = vmatpush1.msra.mxu0 %v6403
        %6935 = vmatprep.mubr.f32.mxu0 %v6185
        %6936 = vmatmul.mubr.f32.gmra.mrb[0].mxu0 %v6181
        %v6937 = vpop.f32.mrb[0].mxu0
        %v6938 = vadd.f32 %v6868, %v6937
        %v6939 = vpop.f32.mrb[0].mxu0
        %6940 = vdwg.mxu0
        %6941 = vmatprep.subr.mxu0 0.0
        %6942 = vmatpush1.msra.mxu0 %v6404
        %6943 = vmatprep.subr.mxu0 0.0
        %6944 = vmatpush1.msra.mxu0 %v6405
        %6945 = vmatprep.subr.mxu0 0.0
        %6946 = vmatpush1.msra.mxu0 %v6406
        %6947 = vmatprep.subr.mxu0 0.0
        %6948 = vmatpush1.msra.mxu0 %v6407
        %6949 = vmatprep.subr.mxu0 0.0
        %6950 = vmatpush1.msra.mxu0 %v6408
        %6951 = vmatprep.subr.mxu0 0.0
        %6952 = vmatpush1.msra.mxu0 %v6409
        %6953 = vmatprep.subr.mxu0 0.0
        %6954 = vmatpush1.msra.mxu0 %v6410
        %6955 = vmatprep.subr.mxu0 0.0
        %6956 = vmatpush1.msra.mxu0 %v6411
        %6957 = vmatprep.subr.mxu0 0.0
        %6958 = vmatpush1.msra.mxu0 %v6412
        %6959 = vmatprep.subr.mxu0 0.0
        %6960 = vmatpush1.msra.mxu0 %v6413
        %6961 = vmatprep.subr.mxu0 0.0
        %6962 = vmatpush1.msra.mxu0 %v6414
        %6963 = vmatprep.subr.mxu0 0.0
        %6964 = vmatpush1.msra.mxu0 %v6415
        %6965 = vmatprep.subr.mxu0 0.0
        %6966 = vmatpush1.msra.mxu0 %v6416
        %6967 = vmatprep.subr.mxu0 0.0
        %6968 = vmatpush1.msra.mxu0 %v6417
        %6969 = vmatprep.subr.mxu0 0.0
        %6970 = vmatpush1.msra.mxu0 %v6418
        %6971 = vmatprep.subr.mxu0 0.0
        %6972 = vmatpush1.msra.mxu0 %v6419
        %6973 = vmatprep.subr.mxu0 0.0
        %6974 = vmatpush1.msra.mxu0 %v6420
        %6975 = vmatprep.subr.mxu0 0.0
        %6976 = vmatpush1.msra.mxu0 %v6421
        %6977 = vmatprep.subr.mxu0 0.0
        %6978 = vmatpush1.msra.mxu0 %v6422
        %6979 = vmatprep.subr.mxu0 0.0
        %6980 = vmatpush1.msra.mxu0 %v6423
        %6981 = vmatprep.subr.mxu0 0.0
        %6982 = vmatpush1.msra.mxu0 %v6424
        %6983 = vmatprep.subr.mxu0 0.0
        %6984 = vmatpush1.msra.mxu0 %v6425
        %6985 = vmatprep.subr.mxu0 0.0
        %6986 = vmatpush1.msra.mxu0 %v6426
        %6987 = vmatprep.subr.mxu0 0.0
        %6988 = vmatpush1.msra.mxu0 %v6427
        %6989 = vmatprep.subr.mxu0 0.0
        %6990 = vmatpush1.msra.mxu0 %v6428
        %6991 = vmatprep.subr.mxu0 0.0
        %6992 = vmatpush1.msra.mxu0 %v6429
        %6993 = vmatprep.subr.mxu0 0.0
        %6994 = vmatpush1.msra.mxu0 %v6430
        %6995 = vmatprep.subr.mxu0 0.0
        %6996 = vmatpush1.msra.mxu0 %v6431
        %6997 = vmatprep.subr.mxu0 0.0
        %6998 = vmatpush1.msra.mxu0 %v6432
        %6999 = vmatprep.subr.mxu0 0.0
        %7000 = vmatpush1.msra.mxu0 %v6433
        %7001 = vmatprep.subr.mxu0 0.0
        %7002 = vmatpush1.msra.mxu0 %v6434
        %7003 = vmatprep.subr.mxu0 0.0
        %7004 = vmatpush1.msra.mxu0 %v6435
        %7005 = vmatprep.mubr.f32.mxu0 %v6196
        %7006 = vmatmul.mubr.f32.gmra.mrb[0].mxu0 %v6192
        %v7007 = vpop.f32.mrb[0].mxu0
        %v7008 = vadd.f32 %v6938, %v7007
        %v7009 = vpop.f32.mrb[0].mxu0
        %7010 = vdwg.mxu0
        %7011 = vmatprep.subr.mxu0 0.0
        %7012 = vmatpush1.msra.mxu0 %v6436
        %7013 = vmatprep.subr.mxu0 0.0
        %7014 = vmatpush1.msra.mxu0 %v6437
        %7015 = vmatprep.subr.mxu0 0.0
        %7016 = vmatpush1.msra.mxu0 %v6438
        %7017 = vmatprep.subr.mxu0 0.0
        %7018 = vmatpush1.msra.mxu0 %v6439
        %7019 = vmatprep.subr.mxu0 0.0
        %7020 = vmatpush1.msra.mxu0 %v6440
        %7021 = vmatprep.subr.mxu0 0.0
        %7022 = vmatpush1.msra.mxu0 %v6441
        %7023 = vmatprep.subr.mxu0 0.0
        %7024 = vmatpush1.msra.mxu0 %v6442
        %7025 = vmatprep.subr.mxu0 0.0
        %7026 = vmatpush1.msra.mxu0 %v6443
        %7027 = vmatprep.subr.mxu0 0.0
        %7028 = vmatpush1.msra.mxu0 %v6444
        %7029 = vmatprep.subr.mxu0 0.0
        %7030 = vmatpush1.msra.mxu0 %v6445
        %7031 = vmatprep.subr.mxu0 0.0
        %7032 = vmatpush1.msra.mxu0 %v6446
        %7033 = vmatprep.subr.mxu0 0.0
        %7034 = vmatpush1.msra.mxu0 %v6447
        %7035 = vmatprep.subr.mxu0 0.0
        %7036 = vmatpush1.msra.mxu0 %v6448
        %7037 = vmatprep.subr.mxu0 0.0
        %7038 = vmatpush1.msra.mxu0 %v6449
        %7039 = vmatprep.subr.mxu0 0.0
        %7040 = vmatpush1.msra.mxu0 %v6450
        %7041 = vmatprep.subr.mxu0 0.0
        %7042 = vmatpush1.msra.mxu0 %v6451
        %7043 = vmatprep.subr.mxu0 0.0
        %7044 = vmatpush1.msra.mxu0 %v6452
        %7045 = vmatprep.subr.mxu0 0.0
        %7046 = vmatpush1.msra.mxu0 %v6453
        %7047 = vmatprep.subr.mxu0 0.0
        %7048 = vmatpush1.msra.mxu0 %v6454
        %7049 = vmatprep.subr.mxu0 0.0
        %7050 = vmatpush1.msra.mxu0 %v6455
        %7051 = vmatprep.subr.mxu0 0.0
        %7052 = vmatpush1.msra.mxu0 %v6456
        %7053 = vmatprep.subr.mxu0 0.0
        %7054 = vmatpush1.msra.mxu0 %v6457
        %7055 = vmatprep.subr.mxu0 0.0
        %7056 = vmatpush1.msra.mxu0 %v6458
        %7057 = vmatprep.subr.mxu0 0.0
        %7058 = vmatpush1.msra.mxu0 %v6459
        %7059 = vmatprep.subr.mxu0 0.0
        %7060 = vmatpush1.msra.mxu0 %v6460
        %7061 = vmatprep.subr.mxu0 0.0
        %7062 = vmatpush1.msra.mxu0 %v6461
        %7063 = vmatprep.subr.mxu0 0.0
        %7064 = vmatpush1.msra.mxu0 %v6462
        %7065 = vmatprep.subr.mxu0 0.0
        %7066 = vmatpush1.msra.mxu0 %v6463
        %7067 = vmatprep.subr.mxu0 0.0
        %7068 = vmatpush1.msra.mxu0 %v6464
        %7069 = vmatprep.subr.mxu0 0.0
        %7070 = vmatpush1.msra.mxu0 %v6465
        %7071 = vmatprep.subr.mxu0 0.0
        %7072 = vmatpush1.msra.mxu0 %v6466
        %7073 = vmatprep.subr.mxu0 0.0
        %7074 = vmatpush1.msra.mxu0 %v6467
        %7075 = vmatprep.mubr.f32.mxu0 %v6207
        %7076 = vmatmul.mubr.f32.gmra.mrb[0].mxu0 %v6203
        %v7077 = vpop.f32.mrb[0].mxu0
        %v7078 = vadd.f32 %v7008, %v7077
        %v7079 = vpop.f32.mrb[0].mxu0
        %7080 = vdwg.mxu0
        %7081 = vmatprep.subr.mxu0 0.0
        %7082 = vmatpush1.msra.mxu0 %v6468
        %7083 = vmatprep.subr.mxu0 0.0
        %7084 = vmatpush1.msra.mxu0 %v6469
        %7085 = vmatprep.subr.mxu0 0.0
        %7086 = vmatpush1.msra.mxu0 %v6470
        %7087 = vmatprep.subr.mxu0 0.0
        %7088 = vmatpush1.msra.mxu0 %v6471
        %7089 = vmatprep.subr.mxu0 0.0
        %7090 = vmatpush1.msra.mxu0 %v6472
        %7091 = vmatprep.subr.mxu0 0.0
        %7092 = vmatpush1.msra.mxu0 %v6473
        %7093 = vmatprep.subr.mxu0 0.0
        %7094 = vmatpush1.msra.mxu0 %v6474
        %7095 = vmatprep.subr.mxu0 0.0
        %7096 = vmatpush1.msra.mxu0 %v6475
        %7097 = vmatprep.subr.mxu0 0.0
        %7098 = vmatpush1.msra.mxu0 %v6476
        %7099 = vmatprep.subr.mxu0 0.0
        %7100 = vmatpush1.msra.mxu0 %v6477
        %7101 = vmatprep.subr.mxu0 0.0
        %7102 = vmatpush1.msra.mxu0 %v6478
        %7103 = vmatprep.subr.mxu0 0.0
        %7104 = vmatpush1.msra.mxu0 %v6479
        %7105 = vmatprep.subr.mxu0 0.0
        %7106 = vmatpush1.msra.mxu0 %v6480
        %7107 = vmatprep.subr.mxu0 0.0
        %7108 = vmatpush1.msra.mxu0 %v6481
        %7109 = vmatprep.subr.mxu0 0.0
        %7110 = vmatpush1.msra.mxu0 %v6482
        %7111 = vmatprep.subr.mxu0 0.0
        %7112 = vmatpush1.msra.mxu0 %v6483
        %7113 = vmatprep.subr.mxu0 0.0
        %7114 = vmatpush1.msra.mxu0 %v6484
        %7115 = vmatprep.subr.mxu0 0.0
        %7116 = vmatpush1.msra.mxu0 %v6485
        %7117 = vmatprep.subr.mxu0 0.0
        %7118 = vmatpush1.msra.mxu0 %v6486
        %7119 = vmatprep.subr.mxu0 0.0
        %7120 = vmatpush1.msra.mxu0 %v6487
        %7121 = vmatprep.subr.mxu0 0.0
        %7122 = vmatpush1.msra.mxu0 %v6488
        %7123 = vmatprep.subr.mxu0 0.0
        %7124 = vmatpush1.msra.mxu0 %v6489
        %7125 = vmatprep.subr.mxu0 0.0
        %7126 = vmatpush1.msra.mxu0 %v6490
        %7127 = vmatprep.subr.mxu0 0.0
        %7128 = vmatpush1.msra.mxu0 %v6491
        %7129 = vmatprep.subr.mxu0 0.0
        %7130 = vmatpush1.msra.mxu0 %v6492
        %7131 = vmatprep.subr.mxu0 0.0
        %7132 = vmatpush1.msra.mxu0 %v6493
        %7133 = vmatprep.subr.mxu0 0.0
        %7134 = vmatpush1.msra.mxu0 %v6494
        %7135 = vmatprep.subr.mxu0 0.0
        %7136 = vmatpush1.msra.mxu0 %v6495
        %7137 = vmatprep.subr.mxu0 0.0
        %7138 = vmatpush1.msra.mxu0 %v6496
        %7139 = vmatprep.subr.mxu0 0.0
        %7140 = vmatpush1.msra.mxu0 %v6497
        %7141 = vmatprep.subr.mxu0 0.0
        %7142 = vmatpush1.msra.mxu0 %v6498
        %7143 = vmatprep.subr.mxu0 0.0
        %7144 = vmatpush1.msra.mxu0 %v6499
        %7145 = vmatprep.mubr.f32.mxu0 %v6218
        %7146 = vmatmul.mubr.f32.gmra.mrb[0].mxu0 %v6214
        %v7147 = vpop.f32.mrb[0].mxu0
        %v7148 = vadd.f32 %v7078, %v7147
        %v7149 = vpop.f32.mrb[0].mxu0
        %7150 = vdwg.mxu0
        %7151 = vmatprep.subr.mxu0 0.0
        %7152 = vmatpush1.msra.mxu0 %v6500
        %7153 = vmatprep.subr.mxu0 0.0
        %7154 = vmatpush1.msra.mxu0 %v6501
        %7155 = vmatprep.subr.mxu0 0.0
        %7156 = vmatpush1.msra.mxu0 %v6502
        %7157 = vmatprep.subr.mxu0 0.0
        %7158 = vmatpush1.msra.mxu0 %v6503
        %7159 = vmatprep.subr.mxu0 0.0
        %7160 = vmatpush1.msra.mxu0 %v6504
        %7161 = vmatprep.subr.mxu0 0.0
        %7162 = vmatpush1.msra.mxu0 %v6505
        %7163 = vmatprep.subr.mxu0 0.0
        %7164 = vmatpush1.msra.mxu0 %v6506
        %7165 = vmatprep.subr.mxu0 0.0
        %7166 = vmatpush1.msra.mxu0 %v6507
        %7167 = vmatprep.subr.mxu0 0.0
        %7168 = vmatpush1.msra.mxu0 %v6508
        %7169 = vmatprep.subr.mxu0 0.0
        %7170 = vmatpush1.msra.mxu0 %v6509
        %7171 = vmatprep.subr.mxu0 0.0
        %7172 = vmatpush1.msra.mxu0 %v6510
        %7173 = vmatprep.subr.mxu0 0.0
        %7174 = vmatpush1.msra.mxu0 %v6511
        %7175 = vmatprep.subr.mxu0 0.0
        %7176 = vmatpush1.msra.mxu0 %v6512
        %7177 = vmatprep.subr.mxu0 0.0
        %7178 = vmatpush1.msra.mxu0 %v6513
        %7179 = vmatprep.subr.mxu0 0.0
        %7180 = vmatpush1.msra.mxu0 %v6514
        %7181 = vmatprep.subr.mxu0 0.0
        %7182 = vmatpush1.msra.mxu0 %v6515
        %7183 = vmatprep.subr.mxu0 0.0
        %7184 = vmatpush1.msra.mxu0 %v6516
        %7185 = vmatprep.subr.mxu0 0.0
        %7186 = vmatpush1.msra.mxu0 %v6517
        %7187 = vmatprep.subr.mxu0 0.0
        %7188 = vmatpush1.msra.mxu0 %v6518
        %7189 = vmatprep.subr.mxu0 0.0
        %7190 = vmatpush1.msra.mxu0 %v6519
        %7191 = vmatprep.subr.mxu0 0.0
        %7192 = vmatpush1.msra.mxu0 %v6520
        %7193 = vmatprep.subr.mxu0 0.0
        %7194 = vmatpush1.msra.mxu0 %v6521
        %7195 = vmatprep.subr.mxu0 0.0
        %7196 = vmatpush1.msra.mxu0 %v6522
        %7197 = vmatprep.subr.mxu0 0.0
        %7198 = vmatpush1.msra.mxu0 %v6523
        %7199 = vmatprep.subr.mxu0 0.0
        %7200 = vmatpush1.msra.mxu0 %v6524
        %7201 = vmatprep.subr.mxu0 0.0
        %7202 = vmatpush1.msra.mxu0 %v6525
        %7203 = vmatprep.subr.mxu0 0.0
        %7204 = vmatpush1.msra.mxu0 %v6526
        %7205 = vmatprep.subr.mxu0 0.0
        %7206 = vmatpush1.msra.mxu0 %v6527
        %7207 = vmatprep.subr.mxu0 0.0
        %7208 = vmatpush1.msra.mxu0 %v6528
        %7209 = vmatprep.subr.mxu0 0.0
        %7210 = vmatpush1.msra.mxu0 %v6529
        %7211 = vmatprep.subr.mxu0 0.0
        %7212 = vmatpush1.msra.mxu0 %v6530
        %7213 = vmatprep.subr.mxu0 0.0
        %7214 = vmatpush1.msra.mxu0 %v6531
        %7215 = vmatprep.mubr.f32.mxu0 %v6229
        %7216 = vmatmul.mubr.f32.gmra.mrb[0].mxu0 %v6225
        %v7217 = vpop.f32.mrb[0].mxu0
        %v7218 = vadd.f32 %v7148, %v7217
        %v7219 = vpop.f32.mrb[0].mxu0
        %7220 = vdwg.mxu0
        %7221 = vmatprep.subr.mxu0 0.0
        %7222 = vmatpush1.msra.mxu0 %v6532
        %7223 = vmatprep.subr.mxu0 0.0
        %7224 = vmatpush1.msra.mxu0 %v6533
        %7225 = vmatprep.subr.mxu0 0.0
        %7226 = vmatpush1.msra.mxu0 %v6534
        %7227 = vmatprep.subr.mxu0 0.0
        %7228 = vmatpush1.msra.mxu0 %v6535
        %7229 = vmatprep.subr.mxu0 0.0
        %7230 = vmatpush1.msra.mxu0 %v6536
        %7231 = vmatprep.subr.mxu0 0.0
        %7232 = vmatpush1.msra.mxu0 %v6537
        %7233 = vmatprep.subr.mxu0 0.0
        %7234 = vmatpush1.msra.mxu0 %v6538
        %7235 = vmatprep.subr.mxu0 0.0
        %7236 = vmatpush1.msra.mxu0 %v6539
        %7237 = vmatprep.subr.mxu0 0.0
        %7238 = vmatpush1.msra.mxu0 %v6540
        %7239 = vmatprep.subr.mxu0 0.0
        %7240 = vmatpush1.msra.mxu0 %v6541
        %7241 = vmatprep.subr.mxu0 0.0
        %7242 = vmatpush1.msra.mxu0 %v6542
        %7243 = vmatprep.subr.mxu0 0.0
        %7244 = vmatpush1.msra.mxu0 %v6543
        %7245 = vmatprep.subr.mxu0 0.0
        %7246 = vmatpush1.msra.mxu0 %v6544
        %7247 = vmatprep.subr.mxu0 0.0
        %7248 = vmatpush1.msra.mxu0 %v6545
        %7249 = vmatprep.subr.mxu0 0.0
        %7250 = vmatpush1.msra.mxu0 %v6546
        %7251 = vmatprep.subr.mxu0 0.0
        %7252 = vmatpush1.msra.mxu0 %v6547
        %7253 = vmatprep.subr.mxu0 0.0
        %7254 = vmatpush1.msra.mxu0 %v6548
        %7255 = vmatprep.subr.mxu0 0.0
        %7256 = vmatpush1.msra.mxu0 %v6549
        %7257 = vmatprep.subr.mxu0 0.0
        %7258 = vmatpush1.msra.mxu0 %v6550
        %7259 = vmatprep.subr.mxu0 0.0
        %7260 = vmatpush1.msra.mxu0 %v6551
        %7261 = vmatprep.subr.mxu0 0.0
        %7262 = vmatpush1.msra.mxu0 %v6552
        %7263 = vmatprep.subr.mxu0 0.0
        %7264 = vmatpush1.msra.mxu0 %v6553
        %7265 = vmatprep.subr.mxu0 0.0
        %7266 = vmatpush1.msra.mxu0 %v6554
        %7267 = vmatprep.subr.mxu0 0.0
        %7268 = vmatpush1.msra.mxu0 %v6555
        %7269 = vmatprep.subr.mxu0 0.0
        %7270 = vmatpush1.msra.mxu0 %v6556
        %7271 = vmatprep.subr.mxu0 0.0
        %7272 = vmatpush1.msra.mxu0 %v6557
        %7273 = vmatprep.subr.mxu0 0.0
        %7274 = vmatpush1.msra.mxu0 %v6558
        %7275 = vmatprep.subr.mxu0 0.0
        %7276 = vmatpush1.msra.mxu0 %v6559
        %7277 = vmatprep.subr.mxu0 0.0
        %7278 = vmatpush1.msra.mxu0 %v6560
        %7279 = vmatprep.subr.mxu0 0.0
        %7280 = vmatpush1.msra.mxu0 %v6561
        %7281 = vmatprep.subr.mxu0 0.0
        %7282 = vmatpush1.msra.mxu0 %v6562
        %7283 = vmatprep.subr.mxu0 0.0
        %7284 = vmatpush1.msra.mxu0 %v6563
        %7285 = vmatprep.mubr.f32.mxu0 %v6240
        %7286 = vmatmul.mubr.f32.gmra.mrb[0].mxu0 %v6236
        %v7287 = vpop.f32.mrb[0].mxu0
        %v7288 = vadd.f32 %v7218, %v7287
        %v7289 = vpop.f32.mrb[0].mxu0
        %7290 = vdwg.mxu0
        %7291 = vmatprep.subr.mxu0 0.0
        %7292 = vmatpush1.msra.mxu0 %v6564
        %7293 = vmatprep.subr.mxu0 0.0
        %7294 = vmatpush1.msra.mxu0 %v6565
        %7295 = vmatprep.subr.mxu0 0.0
        %7296 = vmatpush1.msra.mxu0 %v6566
        %7297 = vmatprep.subr.mxu0 0.0
        %7298 = vmatpush1.msra.mxu0 %v6567
        %7299 = vmatprep.subr.mxu0 0.0
        %7300 = vmatpush1.msra.mxu0 %v6568
        %7301 = vmatprep.subr.mxu0 0.0
        %7302 = vmatpush1.msra.mxu0 %v6569
        %7303 = vmatprep.subr.mxu0 0.0
        %7304 = vmatpush1.msra.mxu0 %v6570
        %7305 = vmatprep.subr.mxu0 0.0
        %7306 = vmatpush1.msra.mxu0 %v6571
        %7307 = vmatprep.subr.mxu0 0.0
        %7308 = vmatpush1.msra.mxu0 %v6572
        %7309 = vmatprep.subr.mxu0 0.0
        %7310 = vmatpush1.msra.mxu0 %v6573
        %7311 = vmatprep.subr.mxu0 0.0
        %7312 = vmatpush1.msra.mxu0 %v6574
        %7313 = vmatprep.subr.mxu0 0.0
        %7314 = vmatpush1.msra.mxu0 %v6575
        %7315 = vmatprep.subr.mxu0 0.0
        %7316 = vmatpush1.msra.mxu0 %v6576
        %7317 = vmatprep.subr.mxu0 0.0
        %7318 = vmatpush1.msra.mxu0 %v6577
        %7319 = vmatprep.subr.mxu0 0.0
        %7320 = vmatpush1.msra.mxu0 %v6578
        %7321 = vmatprep.subr.mxu0 0.0
        %7322 = vmatpush1.msra.mxu0 %v6579
        %7323 = vmatprep.subr.mxu0 0.0
        %7324 = vmatpush1.msra.mxu0 %v6580
        %7325 = vmatprep.subr.mxu0 0.0
        %7326 = vmatpush1.msra.mxu0 %v6581
        %7327 = vmatprep.subr.mxu0 0.0
        %7328 = vmatpush1.msra.mxu0 %v6582
        %7329 = vmatprep.subr.mxu0 0.0
        %7330 = vmatpush1.msra.mxu0 %v6583
        %7331 = vmatprep.subr.mxu0 0.0
        %7332 = vmatpush1.msra.mxu0 %v6584
        %7333 = vmatprep.subr.mxu0 0.0
        %7334 = vmatpush1.msra.mxu0 %v6585
        %7335 = vmatprep.subr.mxu0 0.0
        %7336 = vmatpush1.msra.mxu0 %v6586
        %7337 = vmatprep.subr.mxu0 0.0
        %7338 = vmatpush1.msra.mxu0 %v6587
        %7339 = vmatprep.subr.mxu0 0.0
        %7340 = vmatpush1.msra.mxu0 %v6588
        %7341 = vmatprep.subr.mxu0 0.0
        %7342 = vmatpush1.msra.mxu0 %v6589
        %7343 = vmatprep.subr.mxu0 0.0
        %7344 = vmatpush1.msra.mxu0 %v6590
        %7345 = vmatprep.subr.mxu0 0.0
        %7346 = vmatpush1.msra.mxu0 %v6591
        %7347 = vmatprep.subr.mxu0 0.0
        %7348 = vmatpush1.msra.mxu0 %v6592
        %7349 = vmatprep.subr.mxu0 0.0
        %7350 = vmatpush1.msra.mxu0 %v6593
        %7351 = vmatprep.subr.mxu0 0.0
        %7352 = vmatpush1.msra.mxu0 %v6594
        %7353 = vmatprep.subr.mxu0 0.0
        %7354 = vmatpush1.msra.mxu0 %v6595
        %7355 = vmatprep.mubr.f32.mxu0 %v6251
        %7356 = vmatmul.mubr.f32.gmra.mrb[0].mxu0 %v6247
        %v7357 = vpop.f32.mrb[0].mxu0
        %v7358 = vadd.f32 %v7288, %v7357
        %v7359 = vpop.f32.mrb[0].mxu0
        %7360 = vdwg.mxu0
        %7361 = vmatprep.subr.mxu0 0.0
        %7362 = vmatpush1.msra.mxu0 %v6596
        %7363 = vmatprep.subr.mxu0 0.0
        %7364 = vmatpush1.msra.mxu0 %v6597
        %7365 = vmatprep.subr.mxu0 0.0
        %7366 = vmatpush1.msra.mxu0 %v6598
        %7367 = vmatprep.subr.mxu0 0.0
        %7368 = vmatpush1.msra.mxu0 %v6599
        %7369 = vmatprep.subr.mxu0 0.0
        %7370 = vmatpush1.msra.mxu0 %v6600
        %7371 = vmatprep.subr.mxu0 0.0
        %7372 = vmatpush1.msra.mxu0 %v6601
        %7373 = vmatprep.subr.mxu0 0.0
        %7374 = vmatpush1.msra.mxu0 %v6602
        %7375 = vmatprep.subr.mxu0 0.0
        %7376 = vmatpush1.msra.mxu0 %v6603
        %7377 = vmatprep.subr.mxu0 0.0
        %7378 = vmatpush1.msra.mxu0 %v6604
        %7379 = vmatprep.subr.mxu0 0.0
        %7380 = vmatpush1.msra.mxu0 %v6605
        %7381 = vmatprep.subr.mxu0 0.0
        %7382 = vmatpush1.msra.mxu0 %v6606
        %7383 = vmatprep.subr.mxu0 0.0
        %7384 = vmatpush1.msra.mxu0 %v6607
        %7385 = vmatprep.subr.mxu0 0.0
        %7386 = vmatpush1.msra.mxu0 %v6608
        %7387 = vmatprep.subr.mxu0 0.0
        %7388 = vmatpush1.msra.mxu0 %v6609
        %7389 = vmatprep.subr.mxu0 0.0
        %7390 = vmatpush1.msra.mxu0 %v6610
        %7391 = vmatprep.subr.mxu0 0.0
        %7392 = vmatpush1.msra.mxu0 %v6611
        %7393 = vmatprep.subr.mxu0 0.0
        %7394 = vmatpush1.msra.mxu0 %v6612
        %7395 = vmatprep.subr.mxu0 0.0
        %7396 = vmatpush1.msra.mxu0 %v6613
        %7397 = vmatprep.subr.mxu0 0.0
        %7398 = vmatpush1.msra.mxu0 %v6614
        %7399 = vmatprep.subr.mxu0 0.0
        %7400 = vmatpush1.msra.mxu0 %v6615
        %7401 = vmatprep.subr.mxu0 0.0
        %7402 = vmatpush1.msra.mxu0 %v6616
        %7403 = vmatprep.subr.mxu0 0.0
        %7404 = vmatpush1.msra.mxu0 %v6617
        %7405 = vmatprep.subr.mxu0 0.0
        %7406 = vmatpush1.msra.mxu0 %v6618
        %7407 = vmatprep.subr.mxu0 0.0
        %7408 = vmatpush1.msra.mxu0 %v6619
        %7409 = vmatprep.subr.mxu0 0.0
        %7410 = vmatpush1.msra.mxu0 %v6620
        %7411 = vmatprep.subr.mxu0 0.0
        %7412 = vmatpush1.msra.mxu0 %v6621
        %7413 = vmatprep.subr.mxu0 0.0
        %7414 = vmatpush1.msra.mxu0 %v6622
        %7415 = vmatprep.subr.mxu0 0.0
        %7416 = vmatpush1.msra.mxu0 %v6623
        %7417 = vmatprep.subr.mxu0 0.0
        %7418 = vmatpush1.msra.mxu0 %v6624
        %7419 = vmatprep.subr.mxu0 0.0
        %7420 = vmatpush1.msra.mxu0 %v6625
        %7421 = vmatprep.subr.mxu0 0.0
        %7422 = vmatpush1.msra.mxu0 %v6626
        %7423 = vmatprep.subr.mxu0 0.0
        %7424 = vmatpush1.msra.mxu0 %v6627
        %7425 = vmatprep.mubr.f32.mxu0 %v6262
        %7426 = vmatmul.mubr.f32.gmra.mrb[0].mxu0 %v6258
        %v7427 = vpop.f32.mrb[0].mxu0
        %v7428 = vadd.f32 %v7358, %v7427
        %v7429 = vpop.f32.mrb[0].mxu0
        %7430 = vdwg.mxu0
        %7431 = vmatprep.subr.mxu0 0.0
        %7432 = vmatpush1.msra.mxu0 %v6628
        %7433 = vmatprep.subr.mxu0 0.0
        %7434 = vmatpush1.msra.mxu0 %v6629
        %7435 = vmatprep.subr.mxu0 0.0
        %7436 = vmatpush1.msra.mxu0 %v6630
        %7437 = vmatprep.subr.mxu0 0.0
        %7438 = vmatpush1.msra.mxu0 %v6631
        %7439 = vmatprep.subr.mxu0 0.0
        %7440 = vmatpush1.msra.mxu0 %v6632
        %7441 = vmatprep.subr.mxu0 0.0
        %7442 = vmatpush1.msra.mxu0 %v6633
        %7443 = vmatprep.subr.mxu0 0.0
        %7444 = vmatpush1.msra.mxu0 %v6634
        %7445 = vmatprep.subr.mxu0 0.0
        %7446 = vmatpush1.msra.mxu0 %v6635
        %7447 = vmatprep.subr.mxu0 0.0
        %7448 = vmatpush1.msra.mxu0 %v6636
        %7449 = vmatprep.subr.mxu0 0.0
        %7450 = vmatpush1.msra.mxu0 %v6637
        %7451 = vmatprep.subr.mxu0 0.0
        %7452 = vmatpush1.msra.mxu0 %v6638
        %7453 = vmatprep.subr.mxu0 0.0
        %7454 = vmatpush1.msra.mxu0 %v6639
        %7455 = vmatprep.subr.mxu0 0.0
        %7456 = vmatpush1.msra.mxu0 %v6640
        %7457 = vmatprep.subr.mxu0 0.0
        %7458 = vmatpush1.msra.mxu0 %v6641
        %7459 = vmatprep.subr.mxu0 0.0
        %7460 = vmatpush1.msra.mxu0 %v6642
        %7461 = vmatprep.subr.mxu0 0.0
        %7462 = vmatpush1.msra.mxu0 %v6643
        %7463 = vmatprep.subr.mxu0 0.0
        %7464 = vmatpush1.msra.mxu0 %v6644
        %7465 = vmatprep.subr.mxu0 0.0
        %7466 = vmatpush1.msra.mxu0 %v6645
        %7467 = vmatprep.subr.mxu0 0.0
        %7468 = vmatpush1.msra.mxu0 %v6646
        %7469 = vmatprep.subr.mxu0 0.0
        %7470 = vmatpush1.msra.mxu0 %v6647
        %7471 = vmatprep.subr.mxu0 0.0
        %7472 = vmatpush1.msra.mxu0 %v6648
        %7473 = vmatprep.subr.mxu0 0.0
        %7474 = vmatpush1.msra.mxu0 %v6649
        %7475 = vmatprep.subr.mxu0 0.0
        %7476 = vmatpush1.msra.mxu0 %v6650
        %7477 = vmatprep.subr.mxu0 0.0
        %7478 = vmatpush1.msra.mxu0 %v6651
        %7479 = vmatprep.subr.mxu0 0.0
        %7480 = vmatpush1.msra.mxu0 %v6652
        %7481 = vmatprep.subr.mxu0 0.0
        %7482 = vmatpush1.msra.mxu0 %v6653
        %7483 = vmatprep.subr.mxu0 0.0
        %7484 = vmatpush1.msra.mxu0 %v6654
        %7485 = vmatprep.subr.mxu0 0.0
        %7486 = vmatpush1.msra.mxu0 %v6655
        %7487 = vmatprep.subr.mxu0 0.0
        %7488 = vmatpush1.msra.mxu0 %v6656
        %7489 = vmatprep.subr.mxu0 0.0
        %7490 = vmatpush1.msra.mxu0 %v6657
        %7491 = vmatprep.subr.mxu0 0.0
        %7492 = vmatpush1.msra.mxu0 %v6658
        %7493 = vmatprep.subr.mxu0 0.0
        %7494 = vmatpush1.msra.mxu0 %v6659
        %7495 = vmatprep.mubr.f32.mxu0 %v6273
        %7496 = vmatmul.mubr.f32.gmra.mrb[0].mxu0 %v6269
        %v7497 = vpop.f32.mrb[0].mxu0
        %v7498 = vadd.f32 %v7428, %v7497
        %v7499 = vpop.f32.mrb[0].mxu0
        %7500 = vdwg.mxu0
        %vm7501 = vcmask 385024
        %7502 = vst.msk [vmem:[%s486] sm:$0x1] %vm7501, %v7498
        %s7503 = sand.u32 %s357, 1
        %s7504 = scalar_lea.sflag [#allocation13], %s7503
        %s7505 = sand.u32 %s357, 1
        %s7506 = scalar_lea.vmem [#allocation12], %s7505
        // Predicated region
        $region81: #{tpu_custom_call.1} parent=79 // pred_check
          %p7507 = pneg %p367
        $region82: #{tpu_custom_call.1} parent=79 // pred_check_branch
          %7509 = sbr.rel (%p7507) target = $region84
        $region83: #{tpu_custom_call.1} parent=79 // pred_region
          %s7511 = ssub.s32 16, 16
          %7512 = vsyncadd %s7504, %s7511
          %s7513 = smul.addr %s29, 16
          %s7514 = scalar_lea.hbm %s15, %s7513
          %s7516 = sshll.u32 %s7506, 4
          %s7517 = int_to_ptr.vmem [resolvable:$true] %s7516
          %7519 = dma.vmem_to_hbm [thread:$0]  %s7517, 16, %s7514, %s7504
        $region84: #{tpu_custom_call.1} parent=79 // pred_fallthru
          _
      $region80: #{tpu_custom_call.1} parent=5 // pred_fallthru
        _
      %p7520 = scmp.le.s32.totalorder 2, %s24
      // Predicated region
      $region85: #{tpu_custom_call.1} parent=5 // pred_check
        %p7521 = pneg %p7520
      $region86: #{tpu_custom_call.1} parent=5 // pred_check_branch
        %7523 = sbr.rel (%p7521) target = $region88
      $region87: #{tpu_custom_call.1} parent=5 // pred_region
        %s7524 = ssub.s32 %s24, 2
        // Predicated region
        $region89: #{tpu_custom_call.1} parent=87 // pred_check
          %p7525 = pneg %p373
        $region90: #{tpu_custom_call.1} parent=87 // pred_check_branch
          %7527 = sbr.rel (%p7525) target = $region92
        $region91: #{tpu_custom_call.1} parent=87 // pred_region
          %s7528 = sand.u32 %s358, 1
          %s7529 = scalar_lea.sflag [#allocation13], %s7528
          %s7530 = sand.u32 %s358, 1
          %s7531 = scalar_lea.vmem [#allocation12], %s7530
          %7532 = dma.done %s7529, 16
        $region92: #{tpu_custom_call.1} parent=87 // pred_fallthru
          _
      $region88: #{tpu_custom_call.1} parent=5 // pred_fallthru
        _
    $region6: #{tpu_custom_call.1} parent=1 // loop_footer
      %s28 = sadd.s32 1, %s24
    $region7: #{tpu_custom_call.1} parent=1 // loop_footer_branch
      %23 = sbr.rel target = $region3
    $region8: #{tpu_custom_call.1} parent=1 // loop_exit
      _
    %7533 = vsyncpa [#allocation13], 1
    %s7534 = scalar_lea.sflag [#allocation13], 1
    %7535 = vsyncpa %s7534, 1

</llo_original>
